<compile_context>
chip_gen: v7x
topology: tpu7x:2x2x1
jax: 0.10.0
libtpu: 0.0.40
codegen_flags: <defaults>
</compile_context>

<pallas_src>
import jax
import jax.numpy as jnp
from jax.experimental import pallas as pl
from jax.experimental.pallas import tpu as pltpu

INPUT_SIZE = 28 * 28          # 784
HIDDEN1 = 1024
HIDDEN2 = 512
OUTPUT_SIZE = 10              # logical output width
OUT_PAD = 128                 # lane-dense padded output width


def mlp_kernel(x_ref, w1_ref, b1_ref, w2_ref, b2_ref, w3_ref, b3_ref, o_ref):
    # x arrives f32 (no wrapper-side cast); cast to bf16 in VMEM for the MXU.
    x = x_ref[...].astype(jnp.bfloat16)
    # fc1 + ReLU  (bf16 MXU inputs, f32 accumulation, f32 VPU epilogue)
    h1 = jnp.dot(x, w1_ref[...], preferred_element_type=jnp.float32)
    h1 = jnp.maximum(h1 + b1_ref[...], 0.0)
    # fc2 + ReLU
    h2 = jnp.dot(h1.astype(jnp.bfloat16), w2_ref[...],
                 preferred_element_type=jnp.float32)
    h2 = jnp.maximum(h2 + b2_ref[...], 0.0)
    # fc3 (no activation), stored as a lane-dense [tile, 128] slab
    y = jnp.dot(h2.astype(jnp.bfloat16), w3_ref[...],
                preferred_element_type=jnp.float32)
    o_ref[...] = (y + b3_ref[...]).astype(o_ref.dtype)


def _pick_batch_tile(batch):
    # Prefer the largest MXU-friendly tile (>=256 fills the 256-deep MXU on
    # v6e/v7x) that divides the batch AND leaves >=2 grid steps so both v7x
    # TensorCores are fed.  Fall back to a single-step grid for small batches.
    for cand in (1024, 512, 256, 128, 64, 32, 16, 8):
        if batch % cand == 0 and batch // cand >= 2:
            return cand
    for cand in (1024, 512, 256, 128, 64, 32, 16, 8):
        if batch % cand == 0:
            return cand
    return batch  # full-batch block (legal even if not a multiple of 8)


def prepare_params(w1, b1, w2, b2, w3, b3):
    """ONE-TIME conversion of f32 nn.Linear-style params ([in, out] weights,
    [1, out] biases) into kernel-ready form: bf16 weights, f32 biases, with
    the last layer padded to a lane-dense 128-wide output."""
    w1k = w1.astype(jnp.bfloat16)                                   # [784, 1024]
    w2k = w2.astype(jnp.bfloat16)                                   # [1024, 512]
    w3k = jnp.pad(w3, ((0, 0), (0, OUT_PAD - OUTPUT_SIZE))).astype(jnp.bfloat16)
    b3k = jnp.pad(b3, ((0, 0), (0, OUT_PAD - OUTPUT_SIZE)))         # f32 [1, 128]
    return (jax.device_put(w1k), jax.device_put(b1),
            jax.device_put(w2k), jax.device_put(b2),
            jax.device_put(w3k), jax.device_put(b3k))


def mlp_forward(x, w1k, b1, w2k, b2, w3k, b3k, *, batch_tile=None):
    """x: [B, 784] f32; params from prepare_params(); returns [B, 10] f32."""
    B = x.shape[0]
    if batch_tile is None:
        batch_tile = _pick_batch_tile(B)
    assert B % batch_tile == 0, "batch must be divisible by batch_tile"
    assert batch_tile == B or batch_tile % 8 == 0, \
        "batch_tile must be a multiple of 8 (sublane tiling) or the full batch"
    grid = (B // batch_tile,)

    flops = 2 * B * (INPUT_SIZE * HIDDEN1 + HIDDEN1 * HIDDEN2 + HIDDEN2 * OUT_PAD)
    bytes_accessed = (
        x.size * 4                                   # f32 activations in
        + w1k.size * 2 + w2k.size * 2 + w3k.size * 2  # bf16 weights (read once)
        + b1.size * 4 + b2.size * 4 + b3k.size * 4    # f32 biases
        + B * OUT_PAD * 4                             # f32 padded output
    )
    cost = pl.CostEstimate(flops=flops, transcendentals=0,
                           bytes_accessed=bytes_accessed)

    out = pl.pallas_call(
        mlp_kernel,
        out_shape=jax.ShapeDtypeStruct((B, OUT_PAD), jnp.float32),
        grid_spec=pltpu.PrefetchScalarGridSpec(
            num_scalar_prefetch=0,
            grid=grid,
            in_specs=[
                # batch-tiled f32 activations; 784 == full last dim -> legal block
                pl.BlockSpec((batch_tile, INPUT_SIZE), lambda i: (i, 0)),
                # weights/biases: constant block index -> loaded once, resident
                pl.BlockSpec((INPUT_SIZE, HIDDEN1), lambda i: (0, 0),
                             pipeline_mode=pl.Buffered(1)),
                pl.BlockSpec((1, HIDDEN1), lambda i: (0, 0),
                             pipeline_mode=pl.Buffered(1)),
                pl.BlockSpec((HIDDEN1, HIDDEN2), lambda i: (0, 0),
                             pipeline_mode=pl.Buffered(1)),
                pl.BlockSpec((1, HIDDEN2), lambda i: (0, 0),
                             pipeline_mode=pl.Buffered(1)),
                pl.BlockSpec((HIDDEN2, OUT_PAD), lambda i: (0, 0),
                             pipeline_mode=pl.Buffered(1)),
                pl.BlockSpec((1, OUT_PAD), lambda i: (0, 0),
                             pipeline_mode=pl.Buffered(1)),
            ],
            out_specs=pl.BlockSpec((batch_tile, OUT_PAD), lambda i: (i, 0)),
        ),
        compiler_params=pltpu.CompilerParams(
            dimension_semantics=("parallel",),       # shard batch grid over v7x's 2 TCs
            vmem_limit_bytes=32 * 1024 * 1024,       # headroom under v7x's 64 MiB/TC
        ),
        cost_estimate=cost,
    )(x, w1k, b1, w2k, b2, w3k, b3k)

    return out[:, :OUTPUT_SIZE]


def init_params(key):
    # Deterministic f32 init mimicking nn.Linear's U(-1/sqrt(fan_in), 1/sqrt(fan_in)).
    keys = jax.random.split(key, 6)

    def linear(kw, kb, fan_in, fan_out):
        bound = 1.0 / jnp.sqrt(fan_in)
        w = jax.random.uniform(kw, (fan_in, fan_out), jnp.float32, -bound, bound)
        b = jax.random.uniform(kb, (1, fan_out), jnp.float32, -bound, bound)
        return w, b

    w1, b1 = linear(keys[0], keys[1], INPUT_SIZE, HIDDEN1)
    w2, b2 = linear(keys[2], keys[3], HIDDEN1, HIDDEN2)
    w3, b3 = linear(keys[4], keys[5], HIDDEN2, OUTPUT_SIZE)
    return w1, b1, w2, b2, w3, b3


if __name__ == "__main__":
    key = jax.random.PRNGKey(0)
    k_x, k_p = jax.random.split(key)

    # 512 rows -> two grid steps of 256: fills the 256-deep MXU (v6e/v7x) and
    # keeps both v7x TensorCores busy; single extra-step cost on v5e is ~0.35 us.
    batch = 512
    x = jax.random.normal(k_x, (batch, INPUT_SIZE), jnp.float32)
    w1, b1, w2, b2, w3, b3 = init_params(k_p)

    # One-time param preparation (pad + bf16 cast) outside the hot path.
    w1k, b1k, w2k, b2k, w3k, b3k = prepare_params(w1, b1, w2, b2, w3, b3)

    y = mlp_forward(x, w1k, b1k, w2k, b2k, w3k, b3k)
    y = jax.block_until_ready(y)

    # Pure-JAX reference using the same bf16-matmul / f32-accumulate recipe.
    def ref_fwd(x, w1, b1, w2, b2, w3, b3):
        h1 = jnp.dot(x.astype(jnp.bfloat16), w1.astype(jnp.bfloat16),
                     preferred_element_type=jnp.float32)
        h1 = jnp.maximum(h1 + b1, 0.0)
        h2 = jnp.dot(h1.astype(jnp.bfloat16), w2.astype(jnp.bfloat16),
                     preferred_element_type=jnp.float32)
        h2 = jnp.maximum(h2 + b2, 0.0)
        return jnp.dot(h2.astype(jnp.bfloat16), w3.astype(jnp.bfloat16),
                       preferred_element_type=jnp.float32) + b3

    ref = ref_fwd(x, w1, b1, w2, b2, w3, b3)
    assert y.shape == (batch, OUTPUT_SIZE)
    assert jnp.allclose(y, ref, atol=2e-2, rtol=2e-2), \
        float(jnp.max(jnp.abs(y - ref)))

    print("KERNEL_OK")
</pallas_src>

<mosaic_0001>
module attributes {stable_mosaic.version = 11 : i64} {
  func.func @mlp_kernel(%arg0: i32, %arg1: memref<256x784xf32, #tpu.memory_space<vmem>>, %arg2: memref<784x1024xbf16, #tpu.memory_space<vmem>>, %arg3: memref<1x1024xf32, #tpu.memory_space<vmem>>, %arg4: memref<1024x512xbf16, #tpu.memory_space<vmem>>, %arg5: memref<1x512xf32, #tpu.memory_space<vmem>>, %arg6: memref<512x128xbf16, #tpu.memory_space<vmem>>, %arg7: memref<1x128xf32, #tpu.memory_space<vmem>>, %arg8: memref<256x128xf32, #tpu.memory_space<vmem>>) attributes {dimension_semantics = [#tpu.dimension_semantics<parallel>], iteration_bounds = array<i64: 2>, scalar_prefetch = 0 : i64, scratch_operands = 0 : i64, tpu.core_type = #tpu.core_type<tc>, window_params = [{transform_indices = @transform_0, window_bounds = array<i64: 256, 784>}, {pipeline_mode = #tpu.pipeline_mode<synchronous>, transform_indices = @transform_1, window_bounds = array<i64: 784, 1024>}, {pipeline_mode = #tpu.pipeline_mode<synchronous>, transform_indices = @transform_2, window_bounds = array<i64: 1, 1024>}, {pipeline_mode = #tpu.pipeline_mode<synchronous>, transform_indices = @transform_3, window_bounds = array<i64: 1024, 512>}, {pipeline_mode = #tpu.pipeline_mode<synchronous>, transform_indices = @transform_4, window_bounds = array<i64: 1, 512>}, {pipeline_mode = #tpu.pipeline_mode<synchronous>, transform_indices = @transform_5, window_bounds = array<i64: 512, 128>}, {pipeline_mode = #tpu.pipeline_mode<synchronous>, transform_indices = @transform_6, window_bounds = array<i64: 1, 128>}, {transform_indices = @transform_7, window_bounds = array<i64: 256, 128>}]} {
    %c0 = arith.constant 0 : index
    %c0_0 = arith.constant 0 : index
    %0 = vector.load %arg1[%c0, %c0_0] : memref<256x784xf32, #tpu.memory_space<vmem>>, vector<256x784xf32>
    %1 = arith.truncf %0 : vector<256x784xf32> to vector<256x784xbf16>
    %c0_1 = arith.constant 0 : index
    %c0_2 = arith.constant 0 : index
    %2 = vector.load %arg2[%c0_1, %c0_2] : memref<784x1024xbf16, #tpu.memory_space<vmem>>, vector<784x1024xbf16>
    %cst = arith.constant dense<0.000000e+00> : vector<256x1024xf32>
    %3 = tpu.matmul %1, %2, %cst {dimension_numbers = #tpu.dot_dimension_numbers<[1], [0], [0], [1], [0, 0, 1, 1], [], []>} : vector<256x784xbf16>, vector<784x1024xbf16>, vector<256x1024xf32> -> vector<256x1024xf32>
    %c0_3 = arith.constant 0 : index
    %c0_4 = arith.constant 0 : index
    %4 = vector.load %arg3[%c0_3, %c0_4] : memref<1x1024xf32, #tpu.memory_space<vmem>>, vector<1x1024xf32>
    %5 = vector.broadcast %4 : vector<1x1024xf32> to vector<256x1024xf32>
    %6 = arith.addf %3, %5 : vector<256x1024xf32>
    %cst_5 = arith.constant 0.000000e+00 : f32
    %7 = vector.broadcast %cst_5 : f32 to vector<256x1024xf32>
    %8 = arith.maximumf %6, %7 : vector<256x1024xf32>
    %9 = arith.truncf %8 : vector<256x1024xf32> to vector<256x1024xbf16>
    %c0_6 = arith.constant 0 : index
    %c0_7 = arith.constant 0 : index
    %10 = vector.load %arg4[%c0_6, %c0_7] : memref<1024x512xbf16, #tpu.memory_space<vmem>>, vector<1024x512xbf16>
    %cst_8 = arith.constant dense<0.000000e+00> : vector<256x512xf32>
    %11 = tpu.matmul %9, %10, %cst_8 {dimension_numbers = #tpu.dot_dimension_numbers<[1], [0], [0], [1], [0, 0, 1, 1], [], []>} : vector<256x1024xbf16>, vector<1024x512xbf16>, vector<256x512xf32> -> vector<256x512xf32>
    %c0_9 = arith.constant 0 : index
    %c0_10 = arith.constant 0 : index
    %12 = vector.load %arg5[%c0_9, %c0_10] : memref<1x512xf32, #tpu.memory_space<vmem>>, vector<1x512xf32>
    %13 = vector.broadcast %12 : vector<1x512xf32> to vector<256x512xf32>
    %14 = arith.addf %11, %13 : vector<256x512xf32>
    %cst_11 = arith.constant 0.000000e+00 : f32
    %15 = vector.broadcast %cst_11 : f32 to vector<256x512xf32>
    %16 = arith.maximumf %14, %15 : vector<256x512xf32>
    %17 = arith.truncf %16 : vector<256x512xf32> to vector<256x512xbf16>
    %c0_12 = arith.constant 0 : index
    %c0_13 = arith.constant 0 : index
    %18 = vector.load %arg6[%c0_12, %c0_13] : memref<512x128xbf16, #tpu.memory_space<vmem>>, vector<512x128xbf16>
    %cst_14 = arith.constant dense<0.000000e+00> : vector<256x128xf32>
    %19 = tpu.matmul %17, %18, %cst_14 {dimension_numbers = #tpu.dot_dimension_numbers<[1], [0], [0], [1], [0, 0, 1, 1], [], []>} : vector<256x512xbf16>, vector<512x128xbf16>, vector<256x128xf32> -> vector<256x128xf32>
    %c0_15 = arith.constant 0 : index
    %c0_16 = arith.constant 0 : index
    %20 = vector.load %arg7[%c0_15, %c0_16] : memref<1x128xf32, #tpu.memory_space<vmem>>, vector<1x128xf32>
    %21 = vector.broadcast %20 : vector<1x128xf32> to vector<256x128xf32>
    %22 = arith.addf %19, %21 : vector<256x128xf32>
    %c0_17 = arith.constant 0 : index
    %c0_18 = arith.constant 0 : index
    %23 = vector.load %arg8[%c0_17, %c0_18] : memref<256x128xf32, #tpu.memory_space<vmem>>, vector<256x128xf32>
    tpu.vector_store %arg8[%c0_17, %c0_18], %22 {strides = array<i32>} : memref<256x128xf32, #tpu.memory_space<vmem>>, vector<256x128xf32>,
    return
  }
  func.func @transform_0(%arg0: i32) -> (i32, i32) {
    %c0_i32 = arith.constant 0 : i32
    %c0_i32_0 = arith.constant 0 : i32
    return %arg0, %c0_i32 : i32, i32
  }
  func.func @transform_1(%arg0: i32) -> (i32, i32) {
    %c0_i32 = arith.constant 0 : i32
    %c0_i32_0 = arith.constant 0 : i32
    %c0_i32_1 = arith.constant 0 : i32
    return %c0_i32, %c0_i32_0 : i32, i32
  }
  func.func @transform_2(%arg0: i32) -> (i32, i32) {
    %c0_i32 = arith.constant 0 : i32
    %c0_i32_0 = arith.constant 0 : i32
    %c0_i32_1 = arith.constant 0 : i32
    return %c0_i32, %c0_i32_0 : i32, i32
  }
  func.func @transform_3(%arg0: i32) -> (i32, i32) {
    %c0_i32 = arith.constant 0 : i32
    %c0_i32_0 = arith.constant 0 : i32
    %c0_i32_1 = arith.constant 0 : i32
    return %c0_i32, %c0_i32_0 : i32, i32
  }
  func.func @transform_4(%arg0: i32) -> (i32, i32) {
    %c0_i32 = arith.constant 0 : i32
    %c0_i32_0 = arith.constant 0 : i32
    %c0_i32_1 = arith.constant 0 : i32
    return %c0_i32, %c0_i32_0 : i32, i32
  }
  func.func @transform_5(%arg0: i32) -> (i32, i32) {
    %c0_i32 = arith.constant 0 : i32
    %c0_i32_0 = arith.constant 0 : i32
    %c0_i32_1 = arith.constant 0 : i32
    return %c0_i32, %c0_i32_0 : i32, i32
  }
  func.func @transform_6(%arg0: i32) -> (i32, i32) {
    %c0_i32 = arith.constant 0 : i32
    %c0_i32_0 = arith.constant 0 : i32
    %c0_i32_1 = arith.constant 0 : i32
    return %c0_i32, %c0_i32_0 : i32, i32
  }
  func.func @transform_7(%arg0: i32) -> (i32, i32) {
    %c0_i32 = arith.constant 0 : i32
    %c0_i32_0 = arith.constant 0 : i32
    return %arg0, %c0_i32 : i32, i32
  }
}

</mosaic_0001>

<llo_original>
// kernel: tpu_custom_call.1
$region0: #{tpu_custom_call.1}
  #allocation0 [shape = 'u32[]', space=smem, size = 0x4, offset = 0x4, fixed_abs, tag = 'smem constant byte address 0x4 - core index']
  #allocation1 [shape = 'u32[144,128]{1,0:T(1,128)}', space=vmem, size = 0x12000, scoped, tag = 'internal scratch']
  %s0 = inlined_call_operand.vmem [shape: f32[512,784], index: 0, kind: input, shape index: {}]
  %s1 = inlined_call_operand.vmem [shape: bf16[784,1024], index: 1, kind: input, shape index: {}]
  %s2 = inlined_call_operand.vmem [shape: f32[1,1024], index: 2, kind: input, shape index: {}]
  %s3 = inlined_call_operand.vmem [shape: bf16[1024,512], index: 3, kind: input, shape index: {}]
  %s4 = inlined_call_operand.vmem [shape: f32[1,512], index: 4, kind: input, shape index: {}]
  %s5 = inlined_call_operand.vmem [shape: bf16[512,128], index: 5, kind: input, shape index: {}]
  %s6 = inlined_call_operand.vmem [shape: f32[1,128], index: 6, kind: input, shape index: {}]
  %s7 = inlined_call_operand.hbm [shape: f32[512,128], index: 7, kind: output, shape index: {}]
  %s8 = sld [smem:[#allocation0]]
  $region61: #{tpu_custom_call.1} parent=0
    _
  %s10 = ssub.s32 1, %s8
  %s11 = scalar_select 0, %s10, %s8
  $region1: #{tpu_custom_call.1} parent=0
    #allocation2 [shape = 'u8[262144]{0}', space=vmem, size = 0x40000, scoped, tag = 'output window, operand 0']
    #allocation3 [shape = 's32[2]{0}', space=sflag, size = 0x8, scoped, tag = 'scoped memory for tpu_custom_call.1']
    %12 = vsyncpa [#allocation3], 0
    %s13 = scalar_lea.sflag [#allocation3], 1
    %14 = vsyncpa %s13, 0
    loop: start=0, step=1, limit=4
    $region2: #{tpu_custom_call.1} parent=1 // loop_pre_header
      _
    $region3: #{tpu_custom_call.1} parent=1 // loop_header
      %s16 = sphi 0, %s20
      %p17 = scmp.ge.s32.totalorder %s16, 4
      %s26 = sphi 0, %s28
      %s29 = sphi 0, %s26
      %s30 = sphi 0, %s29
      %s46 = sphi 0, %s30
      %s50 = sphi 0, %s50
      %s52 = sphi 0, %s50
      %s53 = sphi 0, %s52
      %s67 = sphi 0, %s53
      %s71 = sphi 0, %s71
      %s73 = sphi 0, %s71
      %s74 = sphi 0, %s73
      %s88 = sphi 0, %s74
      %s92 = sphi 0, %s92
      %s94 = sphi 0, %s92
      %s95 = sphi 0, %s94
      %s109 = sphi 0, %s95
      %s113 = sphi 0, %s113
      %s115 = sphi 0, %s113
      %s116 = sphi 0, %s115
      %s130 = sphi 0, %s116
      %s134 = sphi 0, %s134
      %s136 = sphi 0, %s134
      %s137 = sphi 0, %s136
      %s151 = sphi 0, %s137
      %s155 = sphi 0, %s155
      %s157 = sphi 0, %s155
      %s158 = sphi 0, %s157
      %s172 = sphi 0, %s158
      %s178 = sphi 0, %s180
      %s181 = sphi 0, %s178
      %s182 = sphi 0, %s181
      %s198 = sphi 0, %s182
    $region4: #{tpu_custom_call.1} parent=1 // loop_header_branch
      %19 = sbr.rel (%p17) target = $region8
    $region5: #{tpu_custom_call.1} parent=1 // loop_body
      %s21 = ssub.s32 %s16, 1
      %s22 = ssub.s32 %s16, 2
      %s23 = sadd.s32 %s16, 1
      %s24 = ssub.s32 %s16, %s23
      %p25 = scmp.eq.s32.totalorder %s24, 0
      %s27 = sadd.s32 %s26, 1
      %s28 = scalar_select %p25, %s26, %s27
      %p31 = pneg %p25
      %p32 = scmp.eq.s32.totalorder %s16, 1
      %p33 = por %p31, %p32
      %p34 = scmp.ne.s32.totalorder %s26, %s29
      %p35 = scmp.eq.s32.totalorder %s16, 0
      %p36 = por %p34, %p35
      %p37 = scmp.ne.s32.totalorder %s26, %s29
      %p38 = scmp.eq.s32.totalorder %s21, 1
      %p39 = por %p37, %p38
      %p40 = scmp.ne.s32.totalorder %s29, %s30
      %p41 = scmp.eq.s32.totalorder %s21, 0
      %p42 = por %p40, %p41
      %p43 = scmp.ne.s32.totalorder %s29, %s30
      %p44 = scmp.eq.s32.totalorder %s22, 1
      %p45 = por %p43, %p44
      %p47 = scmp.ne.s32.totalorder %s30, %s46
      %p48 = scmp.eq.s32.totalorder %s22, 0
      %p49 = por %p47, %p48
      %s51 = sadd.s32 %s50, 1
      %p54 = scmp.eq.s32.totalorder %s16, 1
      %p55 = scmp.ne.s32.totalorder %s50, %s52
      %p56 = scmp.eq.s32.totalorder %s16, 0
      %p57 = por %p55, %p56
      %p58 = scmp.ne.s32.totalorder %s50, %s52
      %p59 = scmp.eq.s32.totalorder %s21, 1
      %p60 = por %p58, %p59
      %p61 = scmp.ne.s32.totalorder %s52, %s53
      %p62 = scmp.eq.s32.totalorder %s21, 0
      %p63 = por %p61, %p62
      %p64 = scmp.ne.s32.totalorder %s52, %s53
      %p65 = scmp.eq.s32.totalorder %s22, 1
      %p66 = por %p64, %p65
      %p68 = scmp.ne.s32.totalorder %s53, %s67
      %p69 = scmp.eq.s32.totalorder %s22, 0
      %p70 = por %p68, %p69
      %s72 = sadd.s32 %s71, 1
      %p75 = scmp.eq.s32.totalorder %s16, 1
      %p76 = scmp.ne.s32.totalorder %s71, %s73
      %p77 = scmp.eq.s32.totalorder %s16, 0
      %p78 = por %p76, %p77
      %p79 = scmp.ne.s32.totalorder %s71, %s73
      %p80 = scmp.eq.s32.totalorder %s21, 1
      %p81 = por %p79, %p80
      %p82 = scmp.ne.s32.totalorder %s73, %s74
      %p83 = scmp.eq.s32.totalorder %s21, 0
      %p84 = por %p82, %p83
      %p85 = scmp.ne.s32.totalorder %s73, %s74
      %p86 = scmp.eq.s32.totalorder %s22, 1
      %p87 = por %p85, %p86
      %p89 = scmp.ne.s32.totalorder %s74, %s88
      %p90 = scmp.eq.s32.totalorder %s22, 0
      %p91 = por %p89, %p90
      %s93 = sadd.s32 %s92, 1
      %p96 = scmp.eq.s32.totalorder %s16, 1
      %p97 = scmp.ne.s32.totalorder %s92, %s94
      %p98 = scmp.eq.s32.totalorder %s16, 0
      %p99 = por %p97, %p98
      %p100 = scmp.ne.s32.totalorder %s92, %s94
      %p101 = scmp.eq.s32.totalorder %s21, 1
      %p102 = por %p100, %p101
      %p103 = scmp.ne.s32.totalorder %s94, %s95
      %p104 = scmp.eq.s32.totalorder %s21, 0
      %p105 = por %p103, %p104
      %p106 = scmp.ne.s32.totalorder %s94, %s95
      %p107 = scmp.eq.s32.totalorder %s22, 1
      %p108 = por %p106, %p107
      %p110 = scmp.ne.s32.totalorder %s95, %s109
      %p111 = scmp.eq.s32.totalorder %s22, 0
      %p112 = por %p110, %p111
      %s114 = sadd.s32 %s113, 1
      %p117 = scmp.eq.s32.totalorder %s16, 1
      %p118 = scmp.ne.s32.totalorder %s113, %s115
      %p119 = scmp.eq.s32.totalorder %s16, 0
      %p120 = por %p118, %p119
      %p121 = scmp.ne.s32.totalorder %s113, %s115
      %p122 = scmp.eq.s32.totalorder %s21, 1
      %p123 = por %p121, %p122
      %p124 = scmp.ne.s32.totalorder %s115, %s116
      %p125 = scmp.eq.s32.totalorder %s21, 0
      %p126 = por %p124, %p125
      %p127 = scmp.ne.s32.totalorder %s115, %s116
      %p128 = scmp.eq.s32.totalorder %s22, 1
      %p129 = por %p127, %p128
      %p131 = scmp.ne.s32.totalorder %s116, %s130
      %p132 = scmp.eq.s32.totalorder %s22, 0
      %p133 = por %p131, %p132
      %s135 = sadd.s32 %s134, 1
      %p138 = scmp.eq.s32.totalorder %s16, 1
      %p139 = scmp.ne.s32.totalorder %s134, %s136
      %p140 = scmp.eq.s32.totalorder %s16, 0
      %p141 = por %p139, %p140
      %p142 = scmp.ne.s32.totalorder %s134, %s136
      %p143 = scmp.eq.s32.totalorder %s21, 1
      %p144 = por %p142, %p143
      %p145 = scmp.ne.s32.totalorder %s136, %s137
      %p146 = scmp.eq.s32.totalorder %s21, 0
      %p147 = por %p145, %p146
      %p148 = scmp.ne.s32.totalorder %s136, %s137
      %p149 = scmp.eq.s32.totalorder %s22, 1
      %p150 = por %p148, %p149
      %p152 = scmp.ne.s32.totalorder %s137, %s151
      %p153 = scmp.eq.s32.totalorder %s22, 0
      %p154 = por %p152, %p153
      %s156 = sadd.s32 %s155, 1
      %p159 = scmp.eq.s32.totalorder %s16, 1
      %p160 = scmp.ne.s32.totalorder %s155, %s157
      %p161 = scmp.eq.s32.totalorder %s16, 0
      %p162 = por %p160, %p161
      %p163 = scmp.ne.s32.totalorder %s155, %s157
      %p164 = scmp.eq.s32.totalorder %s21, 1
      %p165 = por %p163, %p164
      %p166 = scmp.ne.s32.totalorder %s157, %s158
      %p167 = scmp.eq.s32.totalorder %s21, 0
      %p168 = por %p166, %p167
      %p169 = scmp.ne.s32.totalorder %s157, %s158
      %p170 = scmp.eq.s32.totalorder %s22, 1
      %p171 = por %p169, %p170
      %p173 = scmp.ne.s32.totalorder %s158, %s172
      %p174 = scmp.eq.s32.totalorder %s22, 0
      %p175 = por %p173, %p174
      %s176 = ssub.s32 %s16, %s23
      %p177 = scmp.eq.s32.totalorder %s176, 0
      %s179 = sadd.s32 %s178, 1
      %s180 = scalar_select %p177, %s178, %s179
      %p183 = pneg %p177
      %p184 = scmp.eq.s32.totalorder %s16, 1
      %p185 = por %p183, %p184
      %p186 = scmp.ne.s32.totalorder %s178, %s181
      %p187 = scmp.eq.s32.totalorder %s16, 0
      %p188 = por %p186, %p187
      %p189 = scmp.ne.s32.totalorder %s178, %s181
      %p190 = scmp.eq.s32.totalorder %s21, 1
      %p191 = por %p189, %p190
      %p192 = scmp.ne.s32.totalorder %s181, %s182
      %p193 = scmp.eq.s32.totalorder %s21, 0
      %p194 = por %p192, %p193
      %p195 = scmp.ne.s32.totalorder %s181, %s182
      %p196 = scmp.eq.s32.totalorder %s22, 1
      %p197 = por %p195, %p196
      %p199 = scmp.ne.s32.totalorder %s182, %s198
      %p200 = scmp.eq.s32.totalorder %s22, 0
      %p201 = por %p199, %p200
      %p202 = scmp.le.s32.totalorder 1, %s16
      %p203 = scmp.lt.s32.totalorder %s16, 3
      %p204 = pnand %p202, %p203
      %p205 = pneg %p204
      // Predicated region
      $region9: #{tpu_custom_call.1} parent=5 // pred_check
        _
      $region10: #{tpu_custom_call.1} parent=5 // pred_check_branch
        %207 = sbr.rel (%p204) target = $region12
      $region11: #{tpu_custom_call.1} parent=5 // pred_region
        %s208 = ssub.s32 %s16, 1
        // Predicated region
        $region13: #{tpu_custom_call.1} parent=11 // pred_check
          %p209 = pneg %p63
        $region14: #{tpu_custom_call.1} parent=11 // pred_check_branch
          %211 = sbr.rel (%p209) target = $region16
        $region15: #{tpu_custom_call.1} parent=11 // pred_region
          _
        $region16: #{tpu_custom_call.1} parent=11 // pred_fallthru
          _
        // Predicated region
        $region17: #{tpu_custom_call.1} parent=11 // pred_check
          %p212 = pneg %p84
        $region18: #{tpu_custom_call.1} parent=11 // pred_check_branch
          %214 = sbr.rel (%p212) target = $region20
        $region19: #{tpu_custom_call.1} parent=11 // pred_region
          _
        $region20: #{tpu_custom_call.1} parent=11 // pred_fallthru
          _
        // Predicated region
        $region21: #{tpu_custom_call.1} parent=11 // pred_check
          %p215 = pneg %p105
        $region22: #{tpu_custom_call.1} parent=11 // pred_check_branch
          %217 = sbr.rel (%p215) target = $region24
        $region23: #{tpu_custom_call.1} parent=11 // pred_region
          _
        $region24: #{tpu_custom_call.1} parent=11 // pred_fallthru
          _
        // Predicated region
        $region25: #{tpu_custom_call.1} parent=11 // pred_check
          %p218 = pneg %p126
        $region26: #{tpu_custom_call.1} parent=11 // pred_check_branch
          %220 = sbr.rel (%p218) target = $region28
        $region27: #{tpu_custom_call.1} parent=11 // pred_region
          _
        $region28: #{tpu_custom_call.1} parent=11 // pred_fallthru
          _
        // Predicated region
        $region29: #{tpu_custom_call.1} parent=11 // pred_check
          %p221 = pneg %p147
        $region30: #{tpu_custom_call.1} parent=11 // pred_check_branch
          %223 = sbr.rel (%p221) target = $region32
        $region31: #{tpu_custom_call.1} parent=11 // pred_region
          _
        $region32: #{tpu_custom_call.1} parent=11 // pred_fallthru
          _
        // Predicated region
        $region33: #{tpu_custom_call.1} parent=11 // pred_check
          %p224 = pneg %p168
        $region34: #{tpu_custom_call.1} parent=11 // pred_check_branch
          %226 = sbr.rel (%p224) target = $region36
        $region35: #{tpu_custom_call.1} parent=11 // pred_region
          _
        $region36: #{tpu_custom_call.1} parent=11 // pred_fallthru
          _
      $region12: #{tpu_custom_call.1} parent=5 // pred_fallthru
        _
      %p227 = scmp.lt.s32.totalorder %s16, 2
      // Predicated region
      $region37: #{tpu_custom_call.1} parent=5 // pred_check
        %p228 = pneg %p227
      $region38: #{tpu_custom_call.1} parent=5 // pred_check_branch
        %230 = sbr.rel (%p228) target = $region40
      $region39: #{tpu_custom_call.1} parent=5 // pred_region
        // Predicated region
        $region41: #{tpu_custom_call.1} parent=39 // pred_check
          %p231 = pneg %p36
        $region42: #{tpu_custom_call.1} parent=39 // pred_check_branch
          %233 = sbr.rel (%p231) target = $region44
        $region43: #{tpu_custom_call.1} parent=39 // pred_region
          %s234 = smul.u32 32, %s16
          %p235 = scmp.lt.s32.totalorder %s234, 63
          %s236 = scalar_select %p235, %s234, 63
          %s237 = smul.addr %s236, 7
          %s238 = smul.addr %s237, 8
          %s239 = scalar_lea.vmem %s0, %s238
          %s240 = smul.u32 32, %s16
        $region44: #{tpu_custom_call.1} parent=39 // pred_fallthru
          _
      $region40: #{tpu_custom_call.1} parent=5 // pred_fallthru
        _
      %p241 = scmp.le.s32.totalorder 1, %s16
      %p242 = scmp.lt.s32.totalorder %s16, 3
      %p243 = pnand %p241, %p242
      %p244 = pneg %p243
      // Predicated region
      $region45: #{tpu_custom_call.1} parent=5 // pred_check
        _
      $region46: #{tpu_custom_call.1} parent=5 // pred_check_branch
        %246 = sbr.rel (%p243) target = $region48
      $region47: #{tpu_custom_call.1} parent=5 // pred_region
        %s247 = ssub.s32 %s16, 1
        %s248 = smul.u32 32, %s21
        %p249 = scmp.lt.s32.totalorder %s248, 63
        %s250 = scalar_select %p249, %s248, 63
        %s251 = smul.addr %s250, 7
        %s252 = smul.addr %s251, 8
        %s253 = scalar_lea.vmem %s0, %s252
        %p254 = pneg %p42
        %p255 = pneg %p39
        %p256 = pneg %p63
        %p257 = pneg %p60
        %p258 = pneg %p84
        %p259 = pneg %p81
        %p260 = pneg %p105
        %p261 = pneg %p102
        %p262 = pneg %p126
        %p263 = pneg %p123
        %p264 = pneg %p147
        %p265 = pneg %p144
        %p266 = pneg %p168
        %p267 = pneg %p165
        %p268 = pneg %p194
        %p269 = pneg %p191
        %s270 = sand.u32 %s181, 1
        %s271 = scalar_lea.sflag [#allocation3], %s270
        %s272 = sand.u32 %s181, 1
        %s273 = smul.addr %s272, 256
        %s274 = scalar_lea.vmem [#allocation2], %s273
        %s275 = smul.u32 32, %s21
        %p276 = scmp.lt.s32.totalorder %s275, 63
        %s277 = scalar_select %p276, %s275, 63
        %s278 = smul.addr %s277, 7
        %s279 = smul.addr %s278, 8
        %s280 = scalar_lea.vmem %s0, %s279
        %s281 = smul.u32 32, %s21
        %s282 = smul.u32 32, %s21
        %v284 = vld [vmem:[%s280] sm:$0xff]
        %v285 = vld [vmem:[%s280 + $0x8] sm:$0xff]
        %v286 = vld [vmem:[%s280 + $0x10] sm:$0xff]
        %v287 = vld [vmem:[%s280 + $0x18] sm:$0xff]
        %v288 = vld [vmem:[%s280 + $0x20] sm:$0xff]
        %v289 = vld [vmem:[%s280 + $0x28] sm:$0xff]
        %v290 = vld [vmem:[%s280 + $0x30] sm:$0xff]
        %v291 = vld [vmem:[%s280 + $0x38] sm:$0xff]
        %v292 = vld [vmem:[%s280 + $0x40] sm:$0xff]
        %v293 = vld [vmem:[%s280 + $0x48] sm:$0xff]
        %v294 = vld [vmem:[%s280 + $0x50] sm:$0xff]
        %v295 = vld [vmem:[%s280 + $0x58] sm:$0xff]
        %v296 = vld [vmem:[%s280 + $0x60] sm:$0xff]
        %v297 = vld [vmem:[%s280 + $0x68] sm:$0xff]
        %v298 = vld [vmem:[%s280 + $0x70] sm:$0xff]
        %v299 = vld [vmem:[%s280 + $0x78] sm:$0xff]
        %v300 = vld [vmem:[%s280 + $0x80] sm:$0xff]
        %v301 = vld [vmem:[%s280 + $0x88] sm:$0xff]
        %v302 = vld [vmem:[%s280 + $0x90] sm:$0xff]
        %v303 = vld [vmem:[%s280 + $0x98] sm:$0xff]
        %v304 = vld [vmem:[%s280 + $0xa0] sm:$0xff]
        %v305 = vld [vmem:[%s280 + $0xa8] sm:$0xff]
        %v306 = vld [vmem:[%s280 + $0xb0] sm:$0xff]
        %v307 = vld [vmem:[%s280 + $0xb8] sm:$0xff]
        %v308 = vld [vmem:[%s280 + $0xc0] sm:$0xff]
        %v309 = vld [vmem:[%s280 + $0xc8] sm:$0xff]
        %v310 = vld [vmem:[%s280 + $0xd0] sm:$0xff]
        %v311 = vld [vmem:[%s280 + $0xd8] sm:$0xff]
        %v312 = vld [vmem:[%s280 + $0xe0] sm:$0xff]
        %v313 = vld [vmem:[%s280 + $0xe8] sm:$0xff]
        %v314 = vld [vmem:[%s280 + $0xf0] sm:$0xff]
        %v315 = vld [vmem:[%s280 + $0xf8] sm:$0xff]
        %v316 = vld [vmem:[%s280 + $0x100] sm:$0xff]
        %v317 = vld [vmem:[%s280 + $0x108] sm:$0xff]
        %v318 = vld [vmem:[%s280 + $0x110] sm:$0xff]
        %v319 = vld [vmem:[%s280 + $0x118] sm:$0xff]
        %v320 = vld [vmem:[%s280 + $0x120] sm:$0xff]
        %v321 = vld [vmem:[%s280 + $0x128] sm:$0xff]
        %v322 = vld [vmem:[%s280 + $0x130] sm:$0xff]
        %v323 = vld [vmem:[%s280 + $0x138] sm:$0xff]
        %v324 = vld [vmem:[%s280 + $0x140] sm:$0xff]
        %v325 = vld [vmem:[%s280 + $0x148] sm:$0xff]
        %v326 = vld [vmem:[%s280 + $0x150] sm:$0xff]
        %v327 = vld [vmem:[%s280 + $0x158] sm:$0xff]
        %v328 = vld [vmem:[%s280 + $0x160] sm:$0xff]
        %v329 = vld [vmem:[%s280 + $0x168] sm:$0xff]
        %v330 = vld [vmem:[%s280 + $0x170] sm:$0xff]
        %v331 = vld [vmem:[%s280 + $0x178] sm:$0xff]
        %v332 = vld [vmem:[%s280 + $0x180] sm:$0xff]
        %v333 = vld [vmem:[%s280 + $0x188] sm:$0xff]
        %v334 = vld [vmem:[%s280 + $0x190] sm:$0xff]
        %v335 = vld [vmem:[%s280 + $0x198] sm:$0xff]
        %v336 = vld [vmem:[%s280 + $0x1a0] sm:$0xff]
        %v337 = vld [vmem:[%s280 + $0x1a8] sm:$0xff]
        %v338 = vld [vmem:[%s280 + $0x1b0] sm:$0xff]
        %v339 = vld [vmem:[%s280 + $0x1b8] sm:$0xff]
        %v340 = vld [vmem:[%s280 + $0x1c0] sm:$0xff]
        %v341 = vld [vmem:[%s280 + $0x1c8] sm:$0xff]
        %v342 = vld [vmem:[%s280 + $0x1d0] sm:$0xff]
        %v343 = vld [vmem:[%s280 + $0x1d8] sm:$0xff]
        %v344 = vld [vmem:[%s280 + $0x1e0] sm:$0xff]
        %v345 = vld [vmem:[%s280 + $0x1e8] sm:$0xff]
        %v346 = vld [vmem:[%s280 + $0x1f0] sm:$0xff]
        %v347 = vld [vmem:[%s280 + $0x1f8] sm:$0xff]
        %v348 = vld [vmem:[%s280 + $0x200] sm:$0xff]
        %v349 = vld [vmem:[%s280 + $0x208] sm:$0xff]
        %v350 = vld [vmem:[%s280 + $0x210] sm:$0xff]
        %v351 = vld [vmem:[%s280 + $0x218] sm:$0xff]
        %v352 = vld [vmem:[%s280 + $0x220] sm:$0xff]
        %v353 = vld [vmem:[%s280 + $0x228] sm:$0xff]
        %v354 = vld [vmem:[%s280 + $0x230] sm:$0xff]
        %v355 = vld [vmem:[%s280 + $0x238] sm:$0xff]
        %v356 = vld [vmem:[%s280 + $0x240] sm:$0xff]
        %v357 = vld [vmem:[%s280 + $0x248] sm:$0xff]
        %v358 = vld [vmem:[%s280 + $0x250] sm:$0xff]
        %v359 = vld [vmem:[%s280 + $0x258] sm:$0xff]
        %v360 = vld [vmem:[%s280 + $0x260] sm:$0xff]
        %v361 = vld [vmem:[%s280 + $0x268] sm:$0xff]
        %v362 = vld [vmem:[%s280 + $0x270] sm:$0xff]
        %v363 = vld [vmem:[%s280 + $0x278] sm:$0xff]
        %v364 = vld [vmem:[%s280 + $0x280] sm:$0xff]
        %v365 = vld [vmem:[%s280 + $0x288] sm:$0xff]
        %v366 = vld [vmem:[%s280 + $0x290] sm:$0xff]
        %v367 = vld [vmem:[%s280 + $0x298] sm:$0xff]
        %v368 = vld [vmem:[%s280 + $0x2a0] sm:$0xff]
        %v369 = vld [vmem:[%s280 + $0x2a8] sm:$0xff]
        %v370 = vld [vmem:[%s280 + $0x2b0] sm:$0xff]
        %v371 = vld [vmem:[%s280 + $0x2b8] sm:$0xff]
        %v372 = vld [vmem:[%s280 + $0x2c0] sm:$0xff]
        %v373 = vld [vmem:[%s280 + $0x2c8] sm:$0xff]
        %v374 = vld [vmem:[%s280 + $0x2d0] sm:$0xff]
        %v375 = vld [vmem:[%s280 + $0x2d8] sm:$0xff]
        %v376 = vld [vmem:[%s280 + $0x2e0] sm:$0xff]
        %v377 = vld [vmem:[%s280 + $0x2e8] sm:$0xff]
        %v378 = vld [vmem:[%s280 + $0x2f0] sm:$0xff]
        %v379 = vld [vmem:[%s280 + $0x2f8] sm:$0xff]
        %v380 = vld [vmem:[%s280 + $0x300] sm:$0xff]
        %v381 = vld [vmem:[%s280 + $0x308] sm:$0xff]
        %v382 = vld [vmem:[%s280 + $0x310] sm:$0xff]
        %v383 = vld [vmem:[%s280 + $0x318] sm:$0xff]
        %v384 = vld [vmem:[%s280 + $0x320] sm:$0xff]
        %v385 = vld [vmem:[%s280 + $0x328] sm:$0xff]
        %v386 = vld [vmem:[%s280 + $0x330] sm:$0xff]
        %v387 = vld [vmem:[%s280 + $0x338] sm:$0xff]
        %v388 = vld [vmem:[%s280 + $0x340] sm:$0xff]
        %v389 = vld [vmem:[%s280 + $0x348] sm:$0xff]
        %v390 = vld [vmem:[%s280 + $0x350] sm:$0xff]
        %v391 = vld [vmem:[%s280 + $0x358] sm:$0xff]
        %v392 = vld [vmem:[%s280 + $0x360] sm:$0xff]
        %v393 = vld [vmem:[%s280 + $0x368] sm:$0xff]
        %v394 = vld [vmem:[%s280 + $0x370] sm:$0xff]
        %v395 = vld [vmem:[%s280 + $0x378] sm:$0xff]
        %v396 = vld [vmem:[%s280 + $0x380] sm:$0xff]
        %v397 = vld [vmem:[%s280 + $0x388] sm:$0xff]
        %v398 = vld [vmem:[%s280 + $0x390] sm:$0xff]
        %v399 = vld [vmem:[%s280 + $0x398] sm:$0xff]
        %v400 = vld [vmem:[%s280 + $0x3a0] sm:$0xff]
        %v401 = vld [vmem:[%s280 + $0x3a8] sm:$0xff]
        %v402 = vld [vmem:[%s280 + $0x3b0] sm:$0xff]
        %v403 = vld [vmem:[%s280 + $0x3b8] sm:$0xff]
        %v404 = vld [vmem:[%s280 + $0x3c0] sm:$0xff]
        %v405 = vld [vmem:[%s280 + $0x3c8] sm:$0xff]
        %v406 = vld [vmem:[%s280 + $0x3d0] sm:$0xff]
        %v407 = vld [vmem:[%s280 + $0x3d8] sm:$0xff]
        %v408 = vld [vmem:[%s280 + $0x3e0] sm:$0xff]
        %v409 = vld [vmem:[%s280 + $0x3e8] sm:$0xff]
        %v410 = vld [vmem:[%s280 + $0x3f0] sm:$0xff]
        %v411 = vld [vmem:[%s280 + $0x3f8] sm:$0xff]
        %v412 = vld [vmem:[%s280 + $0x400] sm:$0xff]
        %v413 = vld [vmem:[%s280 + $0x408] sm:$0xff]
        %v414 = vld [vmem:[%s280 + $0x410] sm:$0xff]
        %v415 = vld [vmem:[%s280 + $0x418] sm:$0xff]
        %v416 = vld [vmem:[%s280 + $0x420] sm:$0xff]
        %v417 = vld [vmem:[%s280 + $0x428] sm:$0xff]
        %v418 = vld [vmem:[%s280 + $0x430] sm:$0xff]
        %v419 = vld [vmem:[%s280 + $0x438] sm:$0xff]
        %v420 = vld [vmem:[%s280 + $0x440] sm:$0xff]
        %v421 = vld [vmem:[%s280 + $0x448] sm:$0xff]
        %v422 = vld [vmem:[%s280 + $0x450] sm:$0xff]
        %v423 = vld [vmem:[%s280 + $0x458] sm:$0xff]
        %v424 = vld [vmem:[%s280 + $0x460] sm:$0xff]
        %v425 = vld [vmem:[%s280 + $0x468] sm:$0xff]
        %v426 = vld [vmem:[%s280 + $0x470] sm:$0xff]
        %v427 = vld [vmem:[%s280 + $0x478] sm:$0xff]
        %v428 = vld [vmem:[%s280 + $0x480] sm:$0xff]
        %v429 = vld [vmem:[%s280 + $0x488] sm:$0xff]
        %v430 = vld [vmem:[%s280 + $0x490] sm:$0xff]
        %v431 = vld [vmem:[%s280 + $0x498] sm:$0xff]
        %v432 = vld [vmem:[%s280 + $0x4a0] sm:$0xff]
        %v433 = vld [vmem:[%s280 + $0x4a8] sm:$0xff]
        %v434 = vld [vmem:[%s280 + $0x4b0] sm:$0xff]
        %v435 = vld [vmem:[%s280 + $0x4b8] sm:$0xff]
        %v436 = vld [vmem:[%s280 + $0x4c0] sm:$0xff]
        %v437 = vld [vmem:[%s280 + $0x4c8] sm:$0xff]
        %v438 = vld [vmem:[%s280 + $0x4d0] sm:$0xff]
        %v439 = vld [vmem:[%s280 + $0x4d8] sm:$0xff]
        %v440 = vld [vmem:[%s280 + $0x4e0] sm:$0xff]
        %v441 = vld [vmem:[%s280 + $0x4e8] sm:$0xff]
        %v442 = vld [vmem:[%s280 + $0x4f0] sm:$0xff]
        %v443 = vld [vmem:[%s280 + $0x4f8] sm:$0xff]
        %v444 = vld [vmem:[%s280 + $0x500] sm:$0xff]
        %v445 = vld [vmem:[%s280 + $0x508] sm:$0xff]
        %v446 = vld [vmem:[%s280 + $0x510] sm:$0xff]
        %v447 = vld [vmem:[%s280 + $0x518] sm:$0xff]
        %v448 = vld [vmem:[%s280 + $0x520] sm:$0xff]
        %v449 = vld [vmem:[%s280 + $0x528] sm:$0xff]
        %v450 = vld [vmem:[%s280 + $0x530] sm:$0xff]
        %v451 = vld [vmem:[%s280 + $0x538] sm:$0xff]
        %v452 = vld [vmem:[%s280 + $0x540] sm:$0xff]
        %v453 = vld [vmem:[%s280 + $0x548] sm:$0xff]
        %v454 = vld [vmem:[%s280 + $0x550] sm:$0xff]
        %v455 = vld [vmem:[%s280 + $0x558] sm:$0xff]
        %v456 = vld [vmem:[%s280 + $0x560] sm:$0xff]
        %v457 = vld [vmem:[%s280 + $0x568] sm:$0xff]
        %v458 = vld [vmem:[%s280 + $0x570] sm:$0xff]
        %v459 = vld [vmem:[%s280 + $0x578] sm:$0xff]
        %v460 = vld [vmem:[%s280 + $0x580] sm:$0xff]
        %v461 = vld [vmem:[%s280 + $0x588] sm:$0xff]
        %v462 = vld [vmem:[%s280 + $0x590] sm:$0xff]
        %v463 = vld [vmem:[%s280 + $0x598] sm:$0xff]
        %v464 = vld [vmem:[%s280 + $0x5a0] sm:$0xff]
        %v465 = vld [vmem:[%s280 + $0x5a8] sm:$0xff]
        %v466 = vld [vmem:[%s280 + $0x5b0] sm:$0xff]
        %v467 = vld [vmem:[%s280 + $0x5b8] sm:$0xff]
        %v468 = vld [vmem:[%s280 + $0x5c0] sm:$0xff]
        %v469 = vld [vmem:[%s280 + $0x5c8] sm:$0xff]
        %v470 = vld [vmem:[%s280 + $0x5d0] sm:$0xff]
        %v471 = vld [vmem:[%s280 + $0x5d8] sm:$0xff]
        %v472 = vld [vmem:[%s280 + $0x5e0] sm:$0xff]
        %v473 = vld [vmem:[%s280 + $0x5e8] sm:$0xff]
        %v474 = vld [vmem:[%s280 + $0x5f0] sm:$0xff]
        %v475 = vld [vmem:[%s280 + $0x5f8] sm:$0xff]
        %v476 = vld [vmem:[%s280 + $0x600] sm:$0xff]
        %v477 = vld [vmem:[%s280 + $0x608] sm:$0xff]
        %v478 = vld [vmem:[%s280 + $0x610] sm:$0xff]
        %v479 = vld [vmem:[%s280 + $0x618] sm:$0xff]
        %v480 = vld [vmem:[%s280 + $0x620] sm:$0xff]
        %v481 = vld [vmem:[%s280 + $0x628] sm:$0xff]
        %v482 = vld [vmem:[%s280 + $0x630] sm:$0xff]
        %v483 = vld [vmem:[%s280 + $0x638] sm:$0xff]
        %v484 = vld [vmem:[%s280 + $0x640] sm:$0xff]
        %v485 = vld [vmem:[%s280 + $0x648] sm:$0xff]
        %v486 = vld [vmem:[%s280 + $0x650] sm:$0xff]
        %v487 = vld [vmem:[%s280 + $0x658] sm:$0xff]
        %v488 = vld [vmem:[%s280 + $0x660] sm:$0xff]
        %v489 = vld [vmem:[%s280 + $0x668] sm:$0xff]
        %v490 = vld [vmem:[%s280 + $0x670] sm:$0xff]
        %v491 = vld [vmem:[%s280 + $0x678] sm:$0xff]
        %v492 = vld [vmem:[%s280 + $0x680] sm:$0xff]
        %v493 = vld [vmem:[%s280 + $0x688] sm:$0xff]
        %v494 = vld [vmem:[%s280 + $0x690] sm:$0xff]
        %v495 = vld [vmem:[%s280 + $0x698] sm:$0xff]
        %v496 = vld [vmem:[%s280 + $0x6a0] sm:$0xff]
        %v497 = vld [vmem:[%s280 + $0x6a8] sm:$0xff]
        %v498 = vld [vmem:[%s280 + $0x6b0] sm:$0xff]
        %v499 = vld [vmem:[%s280 + $0x6b8] sm:$0xff]
        %v500 = vld [vmem:[%s280 + $0x6c0] sm:$0xff]
        %v501 = vld [vmem:[%s280 + $0x6c8] sm:$0xff]
        %v502 = vld [vmem:[%s280 + $0x6d0] sm:$0xff]
        %v503 = vld [vmem:[%s280 + $0x6d8] sm:$0xff]
        %v504 = vld [vmem:[%s280 + $0x6e0] sm:$0xff]
        %v505 = vld [vmem:[%s280 + $0x6e8] sm:$0xff]
        %v506 = vld [vmem:[%s280 + $0x6f0] sm:$0xff]
        %v507 = vld [vmem:[%s280 + $0x6f8] sm:$0xff]
        %v508 = vpack.c.bf16 %v291, %v284
        %v509 = vpack.c.bf16 %v292, %v285
        %v510 = vpack.c.bf16 %v293, %v286
        %v511 = vpack.c.bf16 %v294, %v287
        %v512 = vpack.c.bf16 %v295, %v288
        %v513 = vpack.c.bf16 %v296, %v289
        %v514 = vpack.c.bf16 %v297, %v290
        %v515 = vpack.c.bf16 %v305, %v298
        %v516 = vpack.c.bf16 %v306, %v299
        %v517 = vpack.c.bf16 %v307, %v300
        %v518 = vpack.c.bf16 %v308, %v301
        %v519 = vpack.c.bf16 %v309, %v302
        %v520 = vpack.c.bf16 %v310, %v303
        %v521 = vpack.c.bf16 %v311, %v304
        %v522 = vpack.c.bf16 %v319, %v312
        %v523 = vpack.c.bf16 %v320, %v313
        %v524 = vpack.c.bf16 %v321, %v314
        %v525 = vpack.c.bf16 %v322, %v315
        %v526 = vpack.c.bf16 %v323, %v316
        %v527 = vpack.c.bf16 %v324, %v317
        %v528 = vpack.c.bf16 %v325, %v318
        %v529 = vpack.c.bf16 %v333, %v326
        %v530 = vpack.c.bf16 %v334, %v327
        %v531 = vpack.c.bf16 %v335, %v328
        %v532 = vpack.c.bf16 %v336, %v329
        %v533 = vpack.c.bf16 %v337, %v330
        %v534 = vpack.c.bf16 %v338, %v331
        %v535 = vpack.c.bf16 %v339, %v332
        %v536 = vpack.c.bf16 %v347, %v340
        %v537 = vpack.c.bf16 %v348, %v341
        %v538 = vpack.c.bf16 %v349, %v342
        %v539 = vpack.c.bf16 %v350, %v343
        %v540 = vpack.c.bf16 %v351, %v344
        %v541 = vpack.c.bf16 %v352, %v345
        %v542 = vpack.c.bf16 %v353, %v346
        %v543 = vpack.c.bf16 %v361, %v354
        %v544 = vpack.c.bf16 %v362, %v355
        %v545 = vpack.c.bf16 %v363, %v356
        %v546 = vpack.c.bf16 %v364, %v357
        %v547 = vpack.c.bf16 %v365, %v358
        %v548 = vpack.c.bf16 %v366, %v359
        %v549 = vpack.c.bf16 %v367, %v360
        %v550 = vpack.c.bf16 %v375, %v368
        %v551 = vpack.c.bf16 %v376, %v369
        %v552 = vpack.c.bf16 %v377, %v370
        %v553 = vpack.c.bf16 %v378, %v371
        %v554 = vpack.c.bf16 %v379, %v372
        %v555 = vpack.c.bf16 %v380, %v373
        %v556 = vpack.c.bf16 %v381, %v374
        %v557 = vpack.c.bf16 %v389, %v382
        %v558 = vpack.c.bf16 %v390, %v383
        %v559 = vpack.c.bf16 %v391, %v384
        %v560 = vpack.c.bf16 %v392, %v385
        %v561 = vpack.c.bf16 %v393, %v386
        %v562 = vpack.c.bf16 %v394, %v387
        %v563 = vpack.c.bf16 %v395, %v388
        %v564 = vpack.c.bf16 %v403, %v396
        %v565 = vpack.c.bf16 %v404, %v397
        %v566 = vpack.c.bf16 %v405, %v398
        %v567 = vpack.c.bf16 %v406, %v399
        %v568 = vpack.c.bf16 %v407, %v400
        %v569 = vpack.c.bf16 %v408, %v401
        %v570 = vpack.c.bf16 %v409, %v402
        %v571 = vpack.c.bf16 %v417, %v410
        %v572 = vpack.c.bf16 %v418, %v411
        %v573 = vpack.c.bf16 %v419, %v412
        %v574 = vpack.c.bf16 %v420, %v413
        %v575 = vpack.c.bf16 %v421, %v414
        %v576 = vpack.c.bf16 %v422, %v415
        %v577 = vpack.c.bf16 %v423, %v416
        %v578 = vpack.c.bf16 %v431, %v424
        %v579 = vpack.c.bf16 %v432, %v425
        %v580 = vpack.c.bf16 %v433, %v426
        %v581 = vpack.c.bf16 %v434, %v427
        %v582 = vpack.c.bf16 %v435, %v428
        %v583 = vpack.c.bf16 %v436, %v429
        %v584 = vpack.c.bf16 %v437, %v430
        %v585 = vpack.c.bf16 %v445, %v438
        %v586 = vpack.c.bf16 %v446, %v439
        %v587 = vpack.c.bf16 %v447, %v440
        %v588 = vpack.c.bf16 %v448, %v441
        %v589 = vpack.c.bf16 %v449, %v442
        %v590 = vpack.c.bf16 %v450, %v443
        %v591 = vpack.c.bf16 %v451, %v444
        %v592 = vpack.c.bf16 %v459, %v452
        %v593 = vpack.c.bf16 %v460, %v453
        %v594 = vpack.c.bf16 %v461, %v454
        %v595 = vpack.c.bf16 %v462, %v455
        %v596 = vpack.c.bf16 %v463, %v456
        %v597 = vpack.c.bf16 %v464, %v457
        %v598 = vpack.c.bf16 %v465, %v458
        %v599 = vpack.c.bf16 %v473, %v466
        %v600 = vpack.c.bf16 %v474, %v467
        %v601 = vpack.c.bf16 %v475, %v468
        %v602 = vpack.c.bf16 %v476, %v469
        %v603 = vpack.c.bf16 %v477, %v470
        %v604 = vpack.c.bf16 %v478, %v471
        %v605 = vpack.c.bf16 %v479, %v472
        %v606 = vpack.c.bf16 %v487, %v480
        %v607 = vpack.c.bf16 %v488, %v481
        %v608 = vpack.c.bf16 %v489, %v482
        %v609 = vpack.c.bf16 %v490, %v483
        %v610 = vpack.c.bf16 %v491, %v484
        %v611 = vpack.c.bf16 %v492, %v485
        %v612 = vpack.c.bf16 %v493, %v486
        %v613 = vpack.c.bf16 %v501, %v494
        %v614 = vpack.c.bf16 %v502, %v495
        %v615 = vpack.c.bf16 %v503, %v496
        %v616 = vpack.c.bf16 %v504, %v497
        %v617 = vpack.c.bf16 %v505, %v498
        %v618 = vpack.c.bf16 %v506, %v499
        %v619 = vpack.c.bf16 %v507, %v500
        %v620 = vld [vmem:[%s1] sm:$0xff]
        %v621 = vld [vmem:[%s1 + $0x8] sm:$0xff]
        %v622 = vld [vmem:[%s1 + $0x10] sm:$0xff]
        %v623 = vld [vmem:[%s1 + $0x18] sm:$0xff]
        %v624 = vld [vmem:[%s1 + $0x20] sm:$0xff]
        %v625 = vld [vmem:[%s1 + $0x28] sm:$0xff]
        %v626 = vld [vmem:[%s1 + $0x30] sm:$0xff]
        %v627 = vld [vmem:[%s1 + $0x38] sm:$0xff]
        %v628 = vld [vmem:[%s1 + $0x40] sm:$0xff]
        %v629 = vld [vmem:[%s1 + $0x48] sm:$0xff]
        %v630 = vld [vmem:[%s1 + $0x50] sm:$0xff]
        %v631 = vld [vmem:[%s1 + $0x58] sm:$0xff]
        %v632 = vld [vmem:[%s1 + $0x60] sm:$0xff]
        %v633 = vld [vmem:[%s1 + $0x68] sm:$0xff]
        %v634 = vld [vmem:[%s1 + $0x70] sm:$0xff]
        %v635 = vld [vmem:[%s1 + $0x78] sm:$0xff]
        %v636 = vld [vmem:[%s1 + $0x80] sm:$0xff]
        %v637 = vld [vmem:[%s1 + $0x88] sm:$0xff]
        %v638 = vld [vmem:[%s1 + $0x90] sm:$0xff]
        %v639 = vld [vmem:[%s1 + $0x98] sm:$0xff]
        %v640 = vld [vmem:[%s1 + $0xa0] sm:$0xff]
        %v641 = vld [vmem:[%s1 + $0xa8] sm:$0xff]
        %v642 = vld [vmem:[%s1 + $0xb0] sm:$0xff]
        %v643 = vld [vmem:[%s1 + $0xb8] sm:$0xff]
        %v644 = vld [vmem:[%s1 + $0xc0] sm:$0xff]
        %v645 = vld [vmem:[%s1 + $0xc8] sm:$0xff]
        %v646 = vld [vmem:[%s1 + $0xd0] sm:$0xff]
        %v647 = vld [vmem:[%s1 + $0xd8] sm:$0xff]
        %v648 = vld [vmem:[%s1 + $0xe0] sm:$0xff]
        %v649 = vld [vmem:[%s1 + $0xe8] sm:$0xff]
        %v650 = vld [vmem:[%s1 + $0xf0] sm:$0xff]
        %v651 = vld [vmem:[%s1 + $0xf8] sm:$0xff]
        %v652 = vld [vmem:[%s1 + $0x100] sm:$0xff]
        %v653 = vld [vmem:[%s1 + $0x108] sm:$0xff]
        %v654 = vld [vmem:[%s1 + $0x110] sm:$0xff]
        %v655 = vld [vmem:[%s1 + $0x118] sm:$0xff]
        %v656 = vld [vmem:[%s1 + $0x120] sm:$0xff]
        %v657 = vld [vmem:[%s1 + $0x128] sm:$0xff]
        %v658 = vld [vmem:[%s1 + $0x130] sm:$0xff]
        %v659 = vld [vmem:[%s1 + $0x138] sm:$0xff]
        %v660 = vld [vmem:[%s1 + $0x140] sm:$0xff]
        %v661 = vld [vmem:[%s1 + $0x148] sm:$0xff]
        %v662 = vld [vmem:[%s1 + $0x150] sm:$0xff]
        %v663 = vld [vmem:[%s1 + $0x158] sm:$0xff]
        %v664 = vld [vmem:[%s1 + $0x160] sm:$0xff]
        %v665 = vld [vmem:[%s1 + $0x168] sm:$0xff]
        %v666 = vld [vmem:[%s1 + $0x170] sm:$0xff]
        %v667 = vld [vmem:[%s1 + $0x178] sm:$0xff]
        %v668 = vld [vmem:[%s1 + $0x180] sm:$0xff]
        %v669 = vld [vmem:[%s1 + $0x188] sm:$0xff]
        %v670 = vld [vmem:[%s1 + $0x190] sm:$0xff]
        %v671 = vld [vmem:[%s1 + $0x198] sm:$0xff]
        %v672 = vld [vmem:[%s1 + $0x1a0] sm:$0xff]
        %v673 = vld [vmem:[%s1 + $0x1a8] sm:$0xff]
        %v674 = vld [vmem:[%s1 + $0x1b0] sm:$0xff]
        %v675 = vld [vmem:[%s1 + $0x1b8] sm:$0xff]
        %v676 = vld [vmem:[%s1 + $0x1c0] sm:$0xff]
        %v677 = vld [vmem:[%s1 + $0x1c8] sm:$0xff]
        %v678 = vld [vmem:[%s1 + $0x1d0] sm:$0xff]
        %v679 = vld [vmem:[%s1 + $0x1d8] sm:$0xff]
        %v680 = vld [vmem:[%s1 + $0x1e0] sm:$0xff]
        %v681 = vld [vmem:[%s1 + $0x1e8] sm:$0xff]
        %v682 = vld [vmem:[%s1 + $0x1f0] sm:$0xff]
        %v683 = vld [vmem:[%s1 + $0x1f8] sm:$0xff]
        %v684 = vld [vmem:[%s1 + $0x200] sm:$0xff]
        %v685 = vld [vmem:[%s1 + $0x208] sm:$0xff]
        %v686 = vld [vmem:[%s1 + $0x210] sm:$0xff]
        %v687 = vld [vmem:[%s1 + $0x218] sm:$0xff]
        %v688 = vld [vmem:[%s1 + $0x220] sm:$0xff]
        %v689 = vld [vmem:[%s1 + $0x228] sm:$0xff]
        %v690 = vld [vmem:[%s1 + $0x230] sm:$0xff]
        %v691 = vld [vmem:[%s1 + $0x238] sm:$0xff]
        %v692 = vld [vmem:[%s1 + $0x240] sm:$0xff]
        %v693 = vld [vmem:[%s1 + $0x248] sm:$0xff]
        %v694 = vld [vmem:[%s1 + $0x250] sm:$0xff]
        %v695 = vld [vmem:[%s1 + $0x258] sm:$0xff]
        %v696 = vld [vmem:[%s1 + $0x260] sm:$0xff]
        %v697 = vld [vmem:[%s1 + $0x268] sm:$0xff]
        %v698 = vld [vmem:[%s1 + $0x270] sm:$0xff]
        %v699 = vld [vmem:[%s1 + $0x278] sm:$0xff]
        %v700 = vld [vmem:[%s1 + $0x280] sm:$0xff]
        %v701 = vld [vmem:[%s1 + $0x288] sm:$0xff]
        %v702 = vld [vmem:[%s1 + $0x290] sm:$0xff]
        %v703 = vld [vmem:[%s1 + $0x298] sm:$0xff]
        %v704 = vld [vmem:[%s1 + $0x2a0] sm:$0xff]
        %v705 = vld [vmem:[%s1 + $0x2a8] sm:$0xff]
        %v706 = vld [vmem:[%s1 + $0x2b0] sm:$0xff]
        %v707 = vld [vmem:[%s1 + $0x2b8] sm:$0xff]
        %v708 = vld [vmem:[%s1 + $0x2c0] sm:$0xff]
        %v709 = vld [vmem:[%s1 + $0x2c8] sm:$0xff]
        %v710 = vld [vmem:[%s1 + $0x2d0] sm:$0xff]
        %v711 = vld [vmem:[%s1 + $0x2d8] sm:$0xff]
        %v712 = vld [vmem:[%s1 + $0x2e0] sm:$0xff]
        %v713 = vld [vmem:[%s1 + $0x2e8] sm:$0xff]
        %v714 = vld [vmem:[%s1 + $0x2f0] sm:$0xff]
        %v715 = vld [vmem:[%s1 + $0x2f8] sm:$0xff]
        %v716 = vld [vmem:[%s1 + $0x300] sm:$0xff]
        %v717 = vld [vmem:[%s1 + $0x308] sm:$0xff]
        %v718 = vld [vmem:[%s1 + $0x310] sm:$0xff]
        %v719 = vld [vmem:[%s1 + $0x318] sm:$0xff]
        %v720 = vld [vmem:[%s1 + $0x320] sm:$0xff]
        %v721 = vld [vmem:[%s1 + $0x328] sm:$0xff]
        %v722 = vld [vmem:[%s1 + $0x330] sm:$0xff]
        %v723 = vld [vmem:[%s1 + $0x338] sm:$0xff]
        %v724 = vld [vmem:[%s1 + $0x340] sm:$0xff]
        %v725 = vld [vmem:[%s1 + $0x348] sm:$0xff]
        %v726 = vld [vmem:[%s1 + $0x350] sm:$0xff]
        %v727 = vld [vmem:[%s1 + $0x358] sm:$0xff]
        %v728 = vld [vmem:[%s1 + $0x360] sm:$0xff]
        %v729 = vld [vmem:[%s1 + $0x368] sm:$0xff]
        %v730 = vld [vmem:[%s1 + $0x370] sm:$0xff]
        %v731 = vld [vmem:[%s1 + $0x378] sm:$0xff]
        %v732 = vld [vmem:[%s1 + $0x380] sm:$0xff]
        %v733 = vld [vmem:[%s1 + $0x388] sm:$0xff]
        %v734 = vld [vmem:[%s1 + $0x390] sm:$0xff]
        %v735 = vld [vmem:[%s1 + $0x398] sm:$0xff]
        %v736 = vld [vmem:[%s1 + $0x3a0] sm:$0xff]
        %v737 = vld [vmem:[%s1 + $0x3a8] sm:$0xff]
        %v738 = vld [vmem:[%s1 + $0x3b0] sm:$0xff]
        %v739 = vld [vmem:[%s1 + $0x3b8] sm:$0xff]
        %v740 = vld [vmem:[%s1 + $0x3c0] sm:$0xff]
        %v741 = vld [vmem:[%s1 + $0x3c8] sm:$0xff]
        %v742 = vld [vmem:[%s1 + $0x3d0] sm:$0xff]
        %v743 = vld [vmem:[%s1 + $0x3d8] sm:$0xff]
        %v744 = vld [vmem:[%s1 + $0x3e0] sm:$0xff]
        %v745 = vld [vmem:[%s1 + $0x3e8] sm:$0xff]
        %v746 = vld [vmem:[%s1 + $0x3f0] sm:$0xff]
        %v747 = vld [vmem:[%s1 + $0x3f8] sm:$0xff]
        %v748 = vld [vmem:[%s1 + $0x400] sm:$0xff]
        %v749 = vld [vmem:[%s1 + $0x408] sm:$0xff]
        %v750 = vld [vmem:[%s1 + $0x410] sm:$0xff]
        %v751 = vld [vmem:[%s1 + $0x418] sm:$0xff]
        %v752 = vld [vmem:[%s1 + $0x420] sm:$0xff]
        %v753 = vld [vmem:[%s1 + $0x428] sm:$0xff]
        %v754 = vld [vmem:[%s1 + $0x430] sm:$0xff]
        %v755 = vld [vmem:[%s1 + $0x438] sm:$0xff]
        %v756 = vld [vmem:[%s1 + $0x440] sm:$0xff]
        %v757 = vld [vmem:[%s1 + $0x448] sm:$0xff]
        %v758 = vld [vmem:[%s1 + $0x450] sm:$0xff]
        %v759 = vld [vmem:[%s1 + $0x458] sm:$0xff]
        %v760 = vld [vmem:[%s1 + $0x460] sm:$0xff]
        %v761 = vld [vmem:[%s1 + $0x468] sm:$0xff]
        %v762 = vld [vmem:[%s1 + $0x470] sm:$0xff]
        %v763 = vld [vmem:[%s1 + $0x478] sm:$0xff]
        %v764 = vld [vmem:[%s1 + $0x480] sm:$0xff]
        %v765 = vld [vmem:[%s1 + $0x488] sm:$0xff]
        %v766 = vld [vmem:[%s1 + $0x490] sm:$0xff]
        %v767 = vld [vmem:[%s1 + $0x498] sm:$0xff]
        %v768 = vld [vmem:[%s1 + $0x4a0] sm:$0xff]
        %v769 = vld [vmem:[%s1 + $0x4a8] sm:$0xff]
        %v770 = vld [vmem:[%s1 + $0x4b0] sm:$0xff]
        %v771 = vld [vmem:[%s1 + $0x4b8] sm:$0xff]
        %v772 = vld [vmem:[%s1 + $0x4c0] sm:$0xff]
        %v773 = vld [vmem:[%s1 + $0x4c8] sm:$0xff]
        %v774 = vld [vmem:[%s1 + $0x4d0] sm:$0xff]
        %v775 = vld [vmem:[%s1 + $0x4d8] sm:$0xff]
        %v776 = vld [vmem:[%s1 + $0x4e0] sm:$0xff]
        %v777 = vld [vmem:[%s1 + $0x4e8] sm:$0xff]
        %v778 = vld [vmem:[%s1 + $0x4f0] sm:$0xff]
        %v779 = vld [vmem:[%s1 + $0x4f8] sm:$0xff]
        %v780 = vld [vmem:[%s1 + $0x500] sm:$0xff]
        %v781 = vld [vmem:[%s1 + $0x508] sm:$0xff]
        %v782 = vld [vmem:[%s1 + $0x510] sm:$0xff]
        %v783 = vld [vmem:[%s1 + $0x518] sm:$0xff]
        %v784 = vld [vmem:[%s1 + $0x520] sm:$0xff]
        %v785 = vld [vmem:[%s1 + $0x528] sm:$0xff]
        %v786 = vld [vmem:[%s1 + $0x530] sm:$0xff]
        %v787 = vld [vmem:[%s1 + $0x538] sm:$0xff]
        %v788 = vld [vmem:[%s1 + $0x540] sm:$0xff]
        %v789 = vld [vmem:[%s1 + $0x548] sm:$0xff]
        %v790 = vld [vmem:[%s1 + $0x550] sm:$0xff]
        %v791 = vld [vmem:[%s1 + $0x558] sm:$0xff]
        %v792 = vld [vmem:[%s1 + $0x560] sm:$0xff]
        %v793 = vld [vmem:[%s1 + $0x568] sm:$0xff]
        %v794 = vld [vmem:[%s1 + $0x570] sm:$0xff]
        %v795 = vld [vmem:[%s1 + $0x578] sm:$0xff]
        %v796 = vld [vmem:[%s1 + $0x580] sm:$0xff]
        %v797 = vld [vmem:[%s1 + $0x588] sm:$0xff]
        %v798 = vld [vmem:[%s1 + $0x590] sm:$0xff]
        %v799 = vld [vmem:[%s1 + $0x598] sm:$0xff]
        %v800 = vld [vmem:[%s1 + $0x5a0] sm:$0xff]
        %v801 = vld [vmem:[%s1 + $0x5a8] sm:$0xff]
        %v802 = vld [vmem:[%s1 + $0x5b0] sm:$0xff]
        %v803 = vld [vmem:[%s1 + $0x5b8] sm:$0xff]
        %v804 = vld [vmem:[%s1 + $0x5c0] sm:$0xff]
        %v805 = vld [vmem:[%s1 + $0x5c8] sm:$0xff]
        %v806 = vld [vmem:[%s1 + $0x5d0] sm:$0xff]
        %v807 = vld [vmem:[%s1 + $0x5d8] sm:$0xff]
        %v808 = vld [vmem:[%s1 + $0x5e0] sm:$0xff]
        %v809 = vld [vmem:[%s1 + $0x5e8] sm:$0xff]
        %v810 = vld [vmem:[%s1 + $0x5f0] sm:$0xff]
        %v811 = vld [vmem:[%s1 + $0x5f8] sm:$0xff]
        %v812 = vld [vmem:[%s1 + $0x600] sm:$0xff]
        %v813 = vld [vmem:[%s1 + $0x608] sm:$0xff]
        %v814 = vld [vmem:[%s1 + $0x610] sm:$0xff]
        %v815 = vld [vmem:[%s1 + $0x618] sm:$0xff]
        %v816 = vld [vmem:[%s1 + $0x620] sm:$0xff]
        %v817 = vld [vmem:[%s1 + $0x628] sm:$0xff]
        %v818 = vld [vmem:[%s1 + $0x630] sm:$0xff]
        %v819 = vld [vmem:[%s1 + $0x638] sm:$0xff]
        %v820 = vld [vmem:[%s1 + $0x640] sm:$0xff]
        %v821 = vld [vmem:[%s1 + $0x648] sm:$0xff]
        %v822 = vld [vmem:[%s1 + $0x650] sm:$0xff]
        %v823 = vld [vmem:[%s1 + $0x658] sm:$0xff]
        %v824 = vld [vmem:[%s1 + $0x660] sm:$0xff]
        %v825 = vld [vmem:[%s1 + $0x668] sm:$0xff]
        %v826 = vld [vmem:[%s1 + $0x670] sm:$0xff]
        %v827 = vld [vmem:[%s1 + $0x678] sm:$0xff]
        %v828 = vld [vmem:[%s1 + $0x680] sm:$0xff]
        %v829 = vld [vmem:[%s1 + $0x688] sm:$0xff]
        %v830 = vld [vmem:[%s1 + $0x690] sm:$0xff]
        %v831 = vld [vmem:[%s1 + $0x698] sm:$0xff]
        %v832 = vld [vmem:[%s1 + $0x6a0] sm:$0xff]
        %v833 = vld [vmem:[%s1 + $0x6a8] sm:$0xff]
        %v834 = vld [vmem:[%s1 + $0x6b0] sm:$0xff]
        %v835 = vld [vmem:[%s1 + $0x6b8] sm:$0xff]
        %v836 = vld [vmem:[%s1 + $0x6c0] sm:$0xff]
        %v837 = vld [vmem:[%s1 + $0x6c8] sm:$0xff]
        %v838 = vld [vmem:[%s1 + $0x6d0] sm:$0xff]
        %v839 = vld [vmem:[%s1 + $0x6d8] sm:$0xff]
        %v840 = vld [vmem:[%s1 + $0x6e0] sm:$0xff]
        %v841 = vld [vmem:[%s1 + $0x6e8] sm:$0xff]
        %v842 = vld [vmem:[%s1 + $0x6f0] sm:$0xff]
        %v843 = vld [vmem:[%s1 + $0x6f8] sm:$0xff]
        %v844 = vld [vmem:[%s1 + $0x700] sm:$0xff]
        %v845 = vld [vmem:[%s1 + $0x708] sm:$0xff]
        %v846 = vld [vmem:[%s1 + $0x710] sm:$0xff]
        %v847 = vld [vmem:[%s1 + $0x718] sm:$0xff]
        %v848 = vld [vmem:[%s1 + $0x720] sm:$0xff]
        %v849 = vld [vmem:[%s1 + $0x728] sm:$0xff]
        %v850 = vld [vmem:[%s1 + $0x730] sm:$0xff]
        %v851 = vld [vmem:[%s1 + $0x738] sm:$0xff]
        %v852 = vld [vmem:[%s1 + $0x740] sm:$0xff]
        %v853 = vld [vmem:[%s1 + $0x748] sm:$0xff]
        %v854 = vld [vmem:[%s1 + $0x750] sm:$0xff]
        %v855 = vld [vmem:[%s1 + $0x758] sm:$0xff]
        %v856 = vld [vmem:[%s1 + $0x760] sm:$0xff]
        %v857 = vld [vmem:[%s1 + $0x768] sm:$0xff]
        %v858 = vld [vmem:[%s1 + $0x770] sm:$0xff]
        %v859 = vld [vmem:[%s1 + $0x778] sm:$0xff]
        %v860 = vld [vmem:[%s1 + $0x780] sm:$0xff]
        %v861 = vld [vmem:[%s1 + $0x788] sm:$0xff]
        %v862 = vld [vmem:[%s1 + $0x790] sm:$0xff]
        %v863 = vld [vmem:[%s1 + $0x798] sm:$0xff]
        %v864 = vld [vmem:[%s1 + $0x7a0] sm:$0xff]
        %v865 = vld [vmem:[%s1 + $0x7a8] sm:$0xff]
        %v866 = vld [vmem:[%s1 + $0x7b0] sm:$0xff]
        %v867 = vld [vmem:[%s1 + $0x7b8] sm:$0xff]
        %v868 = vld [vmem:[%s1 + $0x7c0] sm:$0xff]
        %v869 = vld [vmem:[%s1 + $0x7c8] sm:$0xff]
        %v870 = vld [vmem:[%s1 + $0x7d0] sm:$0xff]
        %v871 = vld [vmem:[%s1 + $0x7d8] sm:$0xff]
        %v872 = vld [vmem:[%s1 + $0x7e0] sm:$0xff]
        %v873 = vld [vmem:[%s1 + $0x7e8] sm:$0xff]
        %v874 = vld [vmem:[%s1 + $0x7f0] sm:$0xff]
        %v875 = vld [vmem:[%s1 + $0x7f8] sm:$0xff]
        %v876 = vld [vmem:[%s1 + $0x800] sm:$0xff]
        %v877 = vld [vmem:[%s1 + $0x808] sm:$0xff]
        %v878 = vld [vmem:[%s1 + $0x810] sm:$0xff]
        %v879 = vld [vmem:[%s1 + $0x818] sm:$0xff]
        %v880 = vld [vmem:[%s1 + $0x820] sm:$0xff]
        %v881 = vld [vmem:[%s1 + $0x828] sm:$0xff]
        %v882 = vld [vmem:[%s1 + $0x830] sm:$0xff]
        %v883 = vld [vmem:[%s1 + $0x838] sm:$0xff]
        %v884 = vld [vmem:[%s1 + $0x840] sm:$0xff]
        %v885 = vld [vmem:[%s1 + $0x848] sm:$0xff]
        %v886 = vld [vmem:[%s1 + $0x850] sm:$0xff]
        %v887 = vld [vmem:[%s1 + $0x858] sm:$0xff]
        %v888 = vld [vmem:[%s1 + $0x860] sm:$0xff]
        %v889 = vld [vmem:[%s1 + $0x868] sm:$0xff]
        %v890 = vld [vmem:[%s1 + $0x870] sm:$0xff]
        %v891 = vld [vmem:[%s1 + $0x878] sm:$0xff]
        %v892 = vld [vmem:[%s1 + $0x880] sm:$0xff]
        %v893 = vld [vmem:[%s1 + $0x888] sm:$0xff]
        %v894 = vld [vmem:[%s1 + $0x890] sm:$0xff]
        %v895 = vld [vmem:[%s1 + $0x898] sm:$0xff]
        %v896 = vld [vmem:[%s1 + $0x8a0] sm:$0xff]
        %v897 = vld [vmem:[%s1 + $0x8a8] sm:$0xff]
        %v898 = vld [vmem:[%s1 + $0x8b0] sm:$0xff]
        %v899 = vld [vmem:[%s1 + $0x8b8] sm:$0xff]
        %v900 = vld [vmem:[%s1 + $0x8c0] sm:$0xff]
        %v901 = vld [vmem:[%s1 + $0x8c8] sm:$0xff]
        %v902 = vld [vmem:[%s1 + $0x8d0] sm:$0xff]
        %v903 = vld [vmem:[%s1 + $0x8d8] sm:$0xff]
        %v904 = vld [vmem:[%s1 + $0x8e0] sm:$0xff]
        %v905 = vld [vmem:[%s1 + $0x8e8] sm:$0xff]
        %v906 = vld [vmem:[%s1 + $0x8f0] sm:$0xff]
        %v907 = vld [vmem:[%s1 + $0x8f8] sm:$0xff]
        %v908 = vld [vmem:[%s1 + $0x900] sm:$0xff]
        %v909 = vld [vmem:[%s1 + $0x908] sm:$0xff]
        %v910 = vld [vmem:[%s1 + $0x910] sm:$0xff]
        %v911 = vld [vmem:[%s1 + $0x918] sm:$0xff]
        %v912 = vld [vmem:[%s1 + $0x920] sm:$0xff]
        %v913 = vld [vmem:[%s1 + $0x928] sm:$0xff]
        %v914 = vld [vmem:[%s1 + $0x930] sm:$0xff]
        %v915 = vld [vmem:[%s1 + $0x938] sm:$0xff]
        %v916 = vld [vmem:[%s1 + $0x940] sm:$0xff]
        %v917 = vld [vmem:[%s1 + $0x948] sm:$0xff]
        %v918 = vld [vmem:[%s1 + $0x950] sm:$0xff]
        %v919 = vld [vmem:[%s1 + $0x958] sm:$0xff]
        %v920 = vld [vmem:[%s1 + $0x960] sm:$0xff]
        %v921 = vld [vmem:[%s1 + $0x968] sm:$0xff]
        %v922 = vld [vmem:[%s1 + $0x970] sm:$0xff]
        %v923 = vld [vmem:[%s1 + $0x978] sm:$0xff]
        %v924 = vld [vmem:[%s1 + $0x980] sm:$0xff]
        %v925 = vld [vmem:[%s1 + $0x988] sm:$0xff]
        %v926 = vld [vmem:[%s1 + $0x990] sm:$0xff]
        %v927 = vld [vmem:[%s1 + $0x998] sm:$0xff]
        %v928 = vld [vmem:[%s1 + $0x9a0] sm:$0xff]
        %v929 = vld [vmem:[%s1 + $0x9a8] sm:$0xff]
        %v930 = vld [vmem:[%s1 + $0x9b0] sm:$0xff]
        %v931 = vld [vmem:[%s1 + $0x9b8] sm:$0xff]
        %v932 = vld [vmem:[%s1 + $0x9c0] sm:$0xff]
        %v933 = vld [vmem:[%s1 + $0x9c8] sm:$0xff]
        %v934 = vld [vmem:[%s1 + $0x9d0] sm:$0xff]
        %v935 = vld [vmem:[%s1 + $0x9d8] sm:$0xff]
        %v936 = vld [vmem:[%s1 + $0x9e0] sm:$0xff]
        %v937 = vld [vmem:[%s1 + $0x9e8] sm:$0xff]
        %v938 = vld [vmem:[%s1 + $0x9f0] sm:$0xff]
        %v939 = vld [vmem:[%s1 + $0x9f8] sm:$0xff]
        %v940 = vld [vmem:[%s1 + $0xa00] sm:$0xff]
        %v941 = vld [vmem:[%s1 + $0xa08] sm:$0xff]
        %v942 = vld [vmem:[%s1 + $0xa10] sm:$0xff]
        %v943 = vld [vmem:[%s1 + $0xa18] sm:$0xff]
        %v944 = vld [vmem:[%s1 + $0xa20] sm:$0xff]
        %v945 = vld [vmem:[%s1 + $0xa28] sm:$0xff]
        %v946 = vld [vmem:[%s1 + $0xa30] sm:$0xff]
        %v947 = vld [vmem:[%s1 + $0xa38] sm:$0xff]
        %v948 = vld [vmem:[%s1 + $0xa40] sm:$0xff]
        %v949 = vld [vmem:[%s1 + $0xa48] sm:$0xff]
        %v950 = vld [vmem:[%s1 + $0xa50] sm:$0xff]
        %v951 = vld [vmem:[%s1 + $0xa58] sm:$0xff]
        %v952 = vld [vmem:[%s1 + $0xa60] sm:$0xff]
        %v953 = vld [vmem:[%s1 + $0xa68] sm:$0xff]
        %v954 = vld [vmem:[%s1 + $0xa70] sm:$0xff]
        %v955 = vld [vmem:[%s1 + $0xa78] sm:$0xff]
        %v956 = vld [vmem:[%s1 + $0xa80] sm:$0xff]
        %v957 = vld [vmem:[%s1 + $0xa88] sm:$0xff]
        %v958 = vld [vmem:[%s1 + $0xa90] sm:$0xff]
        %v959 = vld [vmem:[%s1 + $0xa98] sm:$0xff]
        %v960 = vld [vmem:[%s1 + $0xaa0] sm:$0xff]
        %v961 = vld [vmem:[%s1 + $0xaa8] sm:$0xff]
        %v962 = vld [vmem:[%s1 + $0xab0] sm:$0xff]
        %v963 = vld [vmem:[%s1 + $0xab8] sm:$0xff]
        %v964 = vld [vmem:[%s1 + $0xac0] sm:$0xff]
        %v965 = vld [vmem:[%s1 + $0xac8] sm:$0xff]
        %v966 = vld [vmem:[%s1 + $0xad0] sm:$0xff]
        %v967 = vld [vmem:[%s1 + $0xad8] sm:$0xff]
        %v968 = vld [vmem:[%s1 + $0xae0] sm:$0xff]
        %v969 = vld [vmem:[%s1 + $0xae8] sm:$0xff]
        %v970 = vld [vmem:[%s1 + $0xaf0] sm:$0xff]
        %v971 = vld [vmem:[%s1 + $0xaf8] sm:$0xff]
        %v972 = vld [vmem:[%s1 + $0xb00] sm:$0xff]
        %v973 = vld [vmem:[%s1 + $0xb08] sm:$0xff]
        %v974 = vld [vmem:[%s1 + $0xb10] sm:$0xff]
        %v975 = vld [vmem:[%s1 + $0xb18] sm:$0xff]
        %v976 = vld [vmem:[%s1 + $0xb20] sm:$0xff]
        %v977 = vld [vmem:[%s1 + $0xb28] sm:$0xff]
        %v978 = vld [vmem:[%s1 + $0xb30] sm:$0xff]
        %v979 = vld [vmem:[%s1 + $0xb38] sm:$0xff]
        %v980 = vld [vmem:[%s1 + $0xb40] sm:$0xff]
        %v981 = vld [vmem:[%s1 + $0xb48] sm:$0xff]
        %v982 = vld [vmem:[%s1 + $0xb50] sm:$0xff]
        %v983 = vld [vmem:[%s1 + $0xb58] sm:$0xff]
        %v984 = vld [vmem:[%s1 + $0xb60] sm:$0xff]
        %v985 = vld [vmem:[%s1 + $0xb68] sm:$0xff]
        %v986 = vld [vmem:[%s1 + $0xb70] sm:$0xff]
        %v987 = vld [vmem:[%s1 + $0xb78] sm:$0xff]
        %v988 = vld [vmem:[%s1 + $0xb80] sm:$0xff]
        %v989 = vld [vmem:[%s1 + $0xb88] sm:$0xff]
        %v990 = vld [vmem:[%s1 + $0xb90] sm:$0xff]
        %v991 = vld [vmem:[%s1 + $0xb98] sm:$0xff]
        %v992 = vld [vmem:[%s1 + $0xba0] sm:$0xff]
        %v993 = vld [vmem:[%s1 + $0xba8] sm:$0xff]
        %v994 = vld [vmem:[%s1 + $0xbb0] sm:$0xff]
        %v995 = vld [vmem:[%s1 + $0xbb8] sm:$0xff]
        %v996 = vld [vmem:[%s1 + $0xbc0] sm:$0xff]
        %v997 = vld [vmem:[%s1 + $0xbc8] sm:$0xff]
        %v998 = vld [vmem:[%s1 + $0xbd0] sm:$0xff]
        %v999 = vld [vmem:[%s1 + $0xbd8] sm:$0xff]
        %v1000 = vld [vmem:[%s1 + $0xbe0] sm:$0xff]
        %v1001 = vld [vmem:[%s1 + $0xbe8] sm:$0xff]
        %v1002 = vld [vmem:[%s1 + $0xbf0] sm:$0xff]
        %v1003 = vld [vmem:[%s1 + $0xbf8] sm:$0xff]
        %v1004 = vld [vmem:[%s1 + $0xc00] sm:$0xff]
        %v1005 = vld [vmem:[%s1 + $0xc08] sm:$0xff]
        %v1006 = vld [vmem:[%s1 + $0xc10] sm:$0xff]
        %v1007 = vld [vmem:[%s1 + $0xc18] sm:$0xff]
        %v1008 = vld [vmem:[%s1 + $0xc20] sm:$0xff]
        %v1009 = vld [vmem:[%s1 + $0xc28] sm:$0xff]
        %v1010 = vld [vmem:[%s1 + $0xc30] sm:$0xff]
        %v1011 = vld [vmem:[%s1 + $0xc38] sm:$0xff]
        %v1012 = vld [vmem:[%s2] sm:$0xff]
        %v1014 = vlaneseq
        %v1015 = vshrl.u32 %v1014, 7
        %v1016 = vsub.s32 0, %v1015
        %v1017 = vrot.slane %v1012, %v1016
        %v1018 = vlaneseq
        %v1019 = vshrl.u32 %v1018, 7
        %v1020 = vsub.s32 1, %v1019
        %v1021 = vrot.slane %v1012, %v1020
        %v1022 = vlaneseq
        %v1023 = vshrl.u32 %v1022, 7
        %v1024 = vsub.s32 2, %v1023
        %v1025 = vrot.slane %v1012, %v1024
        %v1026 = vlaneseq
        %v1027 = vshrl.u32 %v1026, 7
        %v1028 = vsub.s32 3, %v1027
        %v1029 = vrot.slane %v1012, %v1028
        %v1030 = vlaneseq
        %v1031 = vshrl.u32 %v1030, 7
        %v1032 = vsub.s32 4, %v1031
        %v1033 = vrot.slane %v1012, %v1032
        %v1034 = vlaneseq
        %v1035 = vshrl.u32 %v1034, 7
        %v1036 = vsub.s32 5, %v1035
        %v1037 = vrot.slane %v1012, %v1036
        %v1038 = vlaneseq
        %v1039 = vshrl.u32 %v1038, 7
        %v1040 = vsub.s32 6, %v1039
        %v1041 = vrot.slane %v1012, %v1040
        %v1042 = vlaneseq
        %v1043 = vshrl.u32 %v1042, 7
        %v1044 = vsub.s32 7, %v1043
        %v1045 = vrot.slane %v1012, %v1044
        %v1446 = vunpack.c.l.b16 %v620
        %v1447 = vunpack.c.h.b16 %v620
        %v1448 = vunpack.c.l.b16 %v621
        %v1449 = vunpack.c.h.b16 %v621
        %v1450 = vunpack.c.l.b16 %v622
        %v1451 = vunpack.c.h.b16 %v622
        %v1452 = vunpack.c.l.b16 %v623
        %v1453 = vunpack.c.h.b16 %v623
        %v1454 = vunpack.c.l.b16 %v624
        %v1455 = vunpack.c.h.b16 %v624
        %v1456 = vunpack.c.l.b16 %v625
        %v1457 = vunpack.c.h.b16 %v625
        %v1458 = vunpack.c.l.b16 %v626
        %v1459 = vunpack.c.h.b16 %v626
        %v1460 = vunpack.c.l.b16 %v627
        %v1461 = vunpack.c.h.b16 %v627
        %v1462 = vunpack.c.l.b16 %v628
        %v1463 = vunpack.c.h.b16 %v628
        %v1464 = vunpack.c.l.b16 %v629
        %v1465 = vunpack.c.h.b16 %v629
        %v1466 = vunpack.c.l.b16 %v630
        %v1467 = vunpack.c.h.b16 %v630
        %v1468 = vunpack.c.l.b16 %v631
        %v1469 = vunpack.c.h.b16 %v631
        %v1470 = vunpack.c.l.b16 %v632
        %v1471 = vunpack.c.h.b16 %v632
        %v1472 = vunpack.c.l.b16 %v633
        %v1473 = vunpack.c.h.b16 %v633
        %v1474 = vunpack.c.l.b16 %v634
        %v1475 = vunpack.c.h.b16 %v634
        %v1476 = vunpack.c.l.b16 %v635
        %v1477 = vunpack.c.h.b16 %v635
        %v1478 = vunpack.c.l.b16 %v636
        %v1479 = vunpack.c.h.b16 %v636
        %v1480 = vunpack.c.l.b16 %v637
        %v1481 = vunpack.c.h.b16 %v637
        %v1482 = vunpack.c.l.b16 %v638
        %v1483 = vunpack.c.h.b16 %v638
        %v1484 = vunpack.c.l.b16 %v639
        %v1485 = vunpack.c.h.b16 %v639
        %v1486 = vunpack.c.l.b16 %v640
        %v1487 = vunpack.c.h.b16 %v640
        %v1488 = vunpack.c.l.b16 %v641
        %v1489 = vunpack.c.h.b16 %v641
        %v1490 = vunpack.c.l.b16 %v642
        %v1491 = vunpack.c.h.b16 %v642
        %v1492 = vunpack.c.l.b16 %v643
        %v1493 = vunpack.c.h.b16 %v643
        %v1494 = vunpack.c.l.b16 %v644
        %v1495 = vunpack.c.h.b16 %v644
        %v1496 = vunpack.c.l.b16 %v645
        %v1497 = vunpack.c.h.b16 %v645
        %v1498 = vunpack.c.l.b16 %v646
        %v1499 = vunpack.c.h.b16 %v646
        %v1500 = vunpack.c.l.b16 %v647
        %v1501 = vunpack.c.h.b16 %v647
        %v1502 = vunpack.c.l.b16 %v648
        %v1503 = vunpack.c.h.b16 %v648
        %v1504 = vunpack.c.l.b16 %v649
        %v1505 = vunpack.c.h.b16 %v649
        %v1506 = vunpack.c.l.b16 %v650
        %v1507 = vunpack.c.h.b16 %v650
        %v1508 = vunpack.c.l.b16 %v651
        %v1509 = vunpack.c.h.b16 %v651
        %v1510 = vunpack.c.l.b16 %v652
        %v1511 = vunpack.c.h.b16 %v652
        %v1512 = vunpack.c.l.b16 %v653
        %v1513 = vunpack.c.h.b16 %v653
        %v1514 = vunpack.c.l.b16 %v654
        %v1515 = vunpack.c.h.b16 %v654
        %v1516 = vunpack.c.l.b16 %v655
        %v1517 = vunpack.c.h.b16 %v655
        %v1518 = vunpack.c.l.b16 %v656
        %v1519 = vunpack.c.h.b16 %v656
        %v1520 = vunpack.c.l.b16 %v657
        %v1521 = vunpack.c.h.b16 %v657
        %v1522 = vunpack.c.l.b16 %v658
        %v1523 = vunpack.c.h.b16 %v658
        %v1524 = vunpack.c.l.b16 %v659
        %v1525 = vunpack.c.h.b16 %v659
        %v1526 = vunpack.c.l.b16 %v660
        %v1527 = vunpack.c.h.b16 %v660
        %v1528 = vunpack.c.l.b16 %v661
        %v1529 = vunpack.c.h.b16 %v661
        %v1530 = vunpack.c.l.b16 %v662
        %v1531 = vunpack.c.h.b16 %v662
        %v1532 = vunpack.c.l.b16 %v663
        %v1533 = vunpack.c.h.b16 %v663
        %v1534 = vunpack.c.l.b16 %v664
        %v1535 = vunpack.c.h.b16 %v664
        %v1536 = vunpack.c.l.b16 %v665
        %v1537 = vunpack.c.h.b16 %v665
        %v1538 = vunpack.c.l.b16 %v666
        %v1539 = vunpack.c.h.b16 %v666
        %v1540 = vunpack.c.l.b16 %v667
        %v1541 = vunpack.c.h.b16 %v667
        %v1542 = vunpack.c.l.b16 %v668
        %v1543 = vunpack.c.h.b16 %v668
        %v1544 = vunpack.c.l.b16 %v669
        %v1545 = vunpack.c.h.b16 %v669
        %v1546 = vunpack.c.l.b16 %v670
        %v1547 = vunpack.c.h.b16 %v670
        %v1548 = vunpack.c.l.b16 %v671
        %v1549 = vunpack.c.h.b16 %v671
        %v1550 = vunpack.c.l.b16 %v672
        %v1551 = vunpack.c.h.b16 %v672
        %v1552 = vunpack.c.l.b16 %v673
        %v1553 = vunpack.c.h.b16 %v673
        %v1554 = vunpack.c.l.b16 %v674
        %v1555 = vunpack.c.h.b16 %v674
        %v1556 = vunpack.c.l.b16 %v675
        %v1557 = vunpack.c.h.b16 %v675
        %v1558 = vunpack.c.l.b16 %v676
        %v1559 = vunpack.c.h.b16 %v676
        %v1560 = vunpack.c.l.b16 %v677
        %v1561 = vunpack.c.h.b16 %v677
        %v1562 = vunpack.c.l.b16 %v678
        %v1563 = vunpack.c.h.b16 %v678
        %v1564 = vunpack.c.l.b16 %v679
        %v1565 = vunpack.c.h.b16 %v679
        %v1566 = vunpack.c.l.b16 %v680
        %v1567 = vunpack.c.h.b16 %v680
        %v1568 = vunpack.c.l.b16 %v681
        %v1569 = vunpack.c.h.b16 %v681
        %v1570 = vunpack.c.l.b16 %v682
        %v1571 = vunpack.c.h.b16 %v682
        %v1572 = vunpack.c.l.b16 %v683
        %v1573 = vunpack.c.h.b16 %v683
        %v1574 = vunpack.c.l.b16 %v684
        %v1575 = vunpack.c.h.b16 %v684
        %v1576 = vunpack.c.l.b16 %v685
        %v1577 = vunpack.c.h.b16 %v685
        %v1578 = vunpack.c.l.b16 %v686
        %v1579 = vunpack.c.h.b16 %v686
        %v1580 = vunpack.c.l.b16 %v687
        %v1581 = vunpack.c.h.b16 %v687
        %v1582 = vunpack.c.l.b16 %v688
        %v1583 = vunpack.c.h.b16 %v688
        %v1584 = vunpack.c.l.b16 %v689
        %v1585 = vunpack.c.h.b16 %v689
        %v1586 = vunpack.c.l.b16 %v690
        %v1587 = vunpack.c.h.b16 %v690
        %v1588 = vunpack.c.l.b16 %v691
        %v1589 = vunpack.c.h.b16 %v691
        %v1590 = vunpack.c.l.b16 %v692
        %v1591 = vunpack.c.h.b16 %v692
        %v1592 = vunpack.c.l.b16 %v693
        %v1593 = vunpack.c.h.b16 %v693
        %v1594 = vunpack.c.l.b16 %v694
        %v1595 = vunpack.c.h.b16 %v694
        %v1596 = vunpack.c.l.b16 %v695
        %v1597 = vunpack.c.h.b16 %v695
        %v1598 = vunpack.c.l.b16 %v696
        %v1599 = vunpack.c.h.b16 %v696
        %v1600 = vunpack.c.l.b16 %v697
        %v1601 = vunpack.c.h.b16 %v697
        %v1602 = vunpack.c.l.b16 %v698
        %v1603 = vunpack.c.h.b16 %v698
        %v1604 = vunpack.c.l.b16 %v699
        %v1605 = vunpack.c.h.b16 %v699
        %v1606 = vunpack.c.l.b16 %v700
        %v1607 = vunpack.c.h.b16 %v700
        %v1608 = vunpack.c.l.b16 %v701
        %v1609 = vunpack.c.h.b16 %v701
        %v1610 = vunpack.c.l.b16 %v702
        %v1611 = vunpack.c.h.b16 %v702
        %v1612 = vunpack.c.l.b16 %v703
        %v1613 = vunpack.c.h.b16 %v703
        %v1614 = vunpack.c.l.b16 %v704
        %v1615 = vunpack.c.h.b16 %v704
        %v1616 = vunpack.c.l.b16 %v705
        %v1617 = vunpack.c.h.b16 %v705
        %v1618 = vunpack.c.l.b16 %v706
        %v1619 = vunpack.c.h.b16 %v706
        %v1620 = vunpack.c.l.b16 %v707
        %v1621 = vunpack.c.h.b16 %v707
        %v1622 = vunpack.c.l.b16 %v708
        %v1623 = vunpack.c.h.b16 %v708
        %v1624 = vunpack.c.l.b16 %v709
        %v1625 = vunpack.c.h.b16 %v709
        %v1626 = vunpack.c.l.b16 %v710
        %v1627 = vunpack.c.h.b16 %v710
        %v1628 = vunpack.c.l.b16 %v711
        %v1629 = vunpack.c.h.b16 %v711
        %v1630 = vunpack.c.l.b16 %v712
        %v1631 = vunpack.c.h.b16 %v712
        %v1632 = vunpack.c.l.b16 %v713
        %v1633 = vunpack.c.h.b16 %v713
        %v1634 = vunpack.c.l.b16 %v714
        %v1635 = vunpack.c.h.b16 %v714
        %v1636 = vunpack.c.l.b16 %v715
        %v1637 = vunpack.c.h.b16 %v715
        %v1638 = vunpack.c.l.b16 %v716
        %v1639 = vunpack.c.h.b16 %v716
        %v1640 = vunpack.c.l.b16 %v717
        %v1641 = vunpack.c.h.b16 %v717
        %v1642 = vunpack.c.l.b16 %v718
        %v1643 = vunpack.c.h.b16 %v718
        %v1644 = vunpack.c.l.b16 %v719
        %v1645 = vunpack.c.h.b16 %v719
        %v1646 = vunpack.c.l.b16 %v720
        %v1647 = vunpack.c.h.b16 %v720
        %v1648 = vunpack.c.l.b16 %v721
        %v1649 = vunpack.c.h.b16 %v721
        %v1650 = vunpack.c.l.b16 %v722
        %v1651 = vunpack.c.h.b16 %v722
        %v1652 = vunpack.c.l.b16 %v723
        %v1653 = vunpack.c.h.b16 %v723
        %v1654 = vunpack.c.l.b16 %v724
        %v1655 = vunpack.c.h.b16 %v724
        %v1656 = vunpack.c.l.b16 %v725
        %v1657 = vunpack.c.h.b16 %v725
        %v1658 = vunpack.c.l.b16 %v726
        %v1659 = vunpack.c.h.b16 %v726
        %v1660 = vunpack.c.l.b16 %v727
        %v1661 = vunpack.c.h.b16 %v727
        %v1662 = vunpack.c.l.b16 %v728
        %v1663 = vunpack.c.h.b16 %v728
        %v1664 = vunpack.c.l.b16 %v729
        %v1665 = vunpack.c.h.b16 %v729
        %v1666 = vunpack.c.l.b16 %v730
        %v1667 = vunpack.c.h.b16 %v730
        %v1668 = vunpack.c.l.b16 %v731
        %v1669 = vunpack.c.h.b16 %v731
        %v1670 = vunpack.c.l.b16 %v732
        %v1671 = vunpack.c.h.b16 %v732
        %v1672 = vunpack.c.l.b16 %v733
        %v1673 = vunpack.c.h.b16 %v733
        %v1674 = vunpack.c.l.b16 %v734
        %v1675 = vunpack.c.h.b16 %v734
        %v1676 = vunpack.c.l.b16 %v735
        %v1677 = vunpack.c.h.b16 %v735
        %v1678 = vunpack.c.l.b16 %v736
        %v1679 = vunpack.c.h.b16 %v736
        %v1680 = vunpack.c.l.b16 %v737
        %v1681 = vunpack.c.h.b16 %v737
        %v1682 = vunpack.c.l.b16 %v738
        %v1683 = vunpack.c.h.b16 %v738
        %v1684 = vunpack.c.l.b16 %v739
        %v1685 = vunpack.c.h.b16 %v739
        %v1686 = vunpack.c.l.b16 %v740
        %v1687 = vunpack.c.h.b16 %v740
        %v1688 = vunpack.c.l.b16 %v741
        %v1689 = vunpack.c.h.b16 %v741
        %v1690 = vunpack.c.l.b16 %v742
        %v1691 = vunpack.c.h.b16 %v742
        %v1692 = vunpack.c.l.b16 %v743
        %v1693 = vunpack.c.h.b16 %v743
        %v1694 = vunpack.c.l.b16 %v744
        %v1695 = vunpack.c.h.b16 %v744
        %v1696 = vunpack.c.l.b16 %v745
        %v1697 = vunpack.c.h.b16 %v745
        %v1698 = vunpack.c.l.b16 %v746
        %v1699 = vunpack.c.h.b16 %v746
        %v1700 = vunpack.c.l.b16 %v747
        %v1701 = vunpack.c.h.b16 %v747
        %v1702 = vunpack.c.l.b16 %v748
        %v1703 = vunpack.c.h.b16 %v748
        %v1704 = vunpack.c.l.b16 %v749
        %v1705 = vunpack.c.h.b16 %v749
        %v1706 = vunpack.c.l.b16 %v750
        %v1707 = vunpack.c.h.b16 %v750
        %v1708 = vunpack.c.l.b16 %v751
        %v1709 = vunpack.c.h.b16 %v751
        %v1710 = vunpack.c.l.b16 %v752
        %v1711 = vunpack.c.h.b16 %v752
        %v1712 = vunpack.c.l.b16 %v753
        %v1713 = vunpack.c.h.b16 %v753
        %v1714 = vunpack.c.l.b16 %v754
        %v1715 = vunpack.c.h.b16 %v754
        %v1716 = vunpack.c.l.b16 %v755
        %v1717 = vunpack.c.h.b16 %v755
        %v1718 = vunpack.c.l.b16 %v756
        %v1719 = vunpack.c.h.b16 %v756
        %v1720 = vunpack.c.l.b16 %v757
        %v1721 = vunpack.c.h.b16 %v757
        %v1722 = vunpack.c.l.b16 %v758
        %v1723 = vunpack.c.h.b16 %v758
        %v1724 = vunpack.c.l.b16 %v759
        %v1725 = vunpack.c.h.b16 %v759
        %v1726 = vunpack.c.l.b16 %v760
        %v1727 = vunpack.c.h.b16 %v760
        %v1728 = vunpack.c.l.b16 %v761
        %v1729 = vunpack.c.h.b16 %v761
        %v1730 = vunpack.c.l.b16 %v762
        %v1731 = vunpack.c.h.b16 %v762
        %v1732 = vunpack.c.l.b16 %v763
        %v1733 = vunpack.c.h.b16 %v763
        %v1734 = vunpack.c.l.b16 %v764
        %v1735 = vunpack.c.h.b16 %v764
        %v1736 = vunpack.c.l.b16 %v765
        %v1737 = vunpack.c.h.b16 %v765
        %v1738 = vunpack.c.l.b16 %v766
        %v1739 = vunpack.c.h.b16 %v766
        %v1740 = vunpack.c.l.b16 %v767
        %v1741 = vunpack.c.h.b16 %v767
        %v1742 = vunpack.c.l.b16 %v768
        %v1743 = vunpack.c.h.b16 %v768
        %v1744 = vunpack.c.l.b16 %v769
        %v1745 = vunpack.c.h.b16 %v769
        %v1746 = vunpack.c.l.b16 %v770
        %v1747 = vunpack.c.h.b16 %v770
        %v1748 = vunpack.c.l.b16 %v771
        %v1749 = vunpack.c.h.b16 %v771
        %v1750 = vunpack.c.l.b16 %v772
        %v1751 = vunpack.c.h.b16 %v772
        %v1752 = vunpack.c.l.b16 %v773
        %v1753 = vunpack.c.h.b16 %v773
        %v1754 = vunpack.c.l.b16 %v774
        %v1755 = vunpack.c.h.b16 %v774
        %v1756 = vunpack.c.l.b16 %v775
        %v1757 = vunpack.c.h.b16 %v775
        %v1758 = vunpack.c.l.b16 %v776
        %v1759 = vunpack.c.h.b16 %v776
        %v1760 = vunpack.c.l.b16 %v777
        %v1761 = vunpack.c.h.b16 %v777
        %v1762 = vunpack.c.l.b16 %v778
        %v1763 = vunpack.c.h.b16 %v778
        %v1764 = vunpack.c.l.b16 %v779
        %v1765 = vunpack.c.h.b16 %v779
        %v1766 = vunpack.c.l.b16 %v780
        %v1767 = vunpack.c.h.b16 %v780
        %v1768 = vunpack.c.l.b16 %v781
        %v1769 = vunpack.c.h.b16 %v781
        %v1770 = vunpack.c.l.b16 %v782
        %v1771 = vunpack.c.h.b16 %v782
        %v1772 = vunpack.c.l.b16 %v783
        %v1773 = vunpack.c.h.b16 %v783
        %v1774 = vunpack.c.l.b16 %v784
        %v1775 = vunpack.c.h.b16 %v784
        %v1776 = vunpack.c.l.b16 %v785
        %v1777 = vunpack.c.h.b16 %v785
        %v1778 = vunpack.c.l.b16 %v786
        %v1779 = vunpack.c.h.b16 %v786
        %v1780 = vunpack.c.l.b16 %v787
        %v1781 = vunpack.c.h.b16 %v787
        %v1782 = vunpack.c.l.b16 %v788
        %v1783 = vunpack.c.h.b16 %v788
        %v1784 = vunpack.c.l.b16 %v789
        %v1785 = vunpack.c.h.b16 %v789
        %v1786 = vunpack.c.l.b16 %v790
        %v1787 = vunpack.c.h.b16 %v790
        %v1788 = vunpack.c.l.b16 %v791
        %v1789 = vunpack.c.h.b16 %v791
        %v1790 = vunpack.c.l.b16 %v792
        %v1791 = vunpack.c.h.b16 %v792
        %v1792 = vunpack.c.l.b16 %v793
        %v1793 = vunpack.c.h.b16 %v793
        %v1794 = vunpack.c.l.b16 %v794
        %v1795 = vunpack.c.h.b16 %v794
        %v1796 = vunpack.c.l.b16 %v795
        %v1797 = vunpack.c.h.b16 %v795
        %v1798 = vunpack.c.l.b16 %v796
        %v1799 = vunpack.c.h.b16 %v796
        %v1800 = vunpack.c.l.b16 %v797
        %v1801 = vunpack.c.h.b16 %v797
        %v1802 = vunpack.c.l.b16 %v798
        %v1803 = vunpack.c.h.b16 %v798
        %v1804 = vunpack.c.l.b16 %v799
        %v1805 = vunpack.c.h.b16 %v799
        %v1806 = vunpack.c.l.b16 %v800
        %v1807 = vunpack.c.h.b16 %v800
        %v1808 = vunpack.c.l.b16 %v801
        %v1809 = vunpack.c.h.b16 %v801
        %v1810 = vunpack.c.l.b16 %v802
        %v1811 = vunpack.c.h.b16 %v802
        %v1812 = vunpack.c.l.b16 %v803
        %v1813 = vunpack.c.h.b16 %v803
        %v1814 = vunpack.c.l.b16 %v804
        %v1815 = vunpack.c.h.b16 %v804
        %v1816 = vunpack.c.l.b16 %v805
        %v1817 = vunpack.c.h.b16 %v805
        %v1818 = vunpack.c.l.b16 %v806
        %v1819 = vunpack.c.h.b16 %v806
        %v1820 = vunpack.c.l.b16 %v807
        %v1821 = vunpack.c.h.b16 %v807
        %v1822 = vunpack.c.l.b16 %v808
        %v1823 = vunpack.c.h.b16 %v808
        %v1824 = vunpack.c.l.b16 %v809
        %v1825 = vunpack.c.h.b16 %v809
        %v1826 = vunpack.c.l.b16 %v810
        %v1827 = vunpack.c.h.b16 %v810
        %v1828 = vunpack.c.l.b16 %v811
        %v1829 = vunpack.c.h.b16 %v811
        %v1830 = vunpack.c.l.b16 %v812
        %v1831 = vunpack.c.h.b16 %v812
        %v1832 = vunpack.c.l.b16 %v813
        %v1833 = vunpack.c.h.b16 %v813
        %v1834 = vunpack.c.l.b16 %v814
        %v1835 = vunpack.c.h.b16 %v814
        %v1836 = vunpack.c.l.b16 %v815
        %v1837 = vunpack.c.h.b16 %v815
        %v1838 = vunpack.c.l.b16 %v816
        %v1839 = vunpack.c.h.b16 %v816
        %v1840 = vunpack.c.l.b16 %v817
        %v1841 = vunpack.c.h.b16 %v817
        %v1842 = vunpack.c.l.b16 %v818
        %v1843 = vunpack.c.h.b16 %v818
        %v1844 = vunpack.c.l.b16 %v819
        %v1845 = vunpack.c.h.b16 %v819
        %v1846 = vunpack.c.l.b16 %v820
        %v1847 = vunpack.c.h.b16 %v820
        %v1848 = vunpack.c.l.b16 %v821
        %v1849 = vunpack.c.h.b16 %v821
        %v1850 = vunpack.c.l.b16 %v822
        %v1851 = vunpack.c.h.b16 %v822
        %v1852 = vunpack.c.l.b16 %v823
        %v1853 = vunpack.c.h.b16 %v823
        %v1854 = vunpack.c.l.b16 %v824
        %v1855 = vunpack.c.h.b16 %v824
        %v1856 = vunpack.c.l.b16 %v825
        %v1857 = vunpack.c.h.b16 %v825
        %v1858 = vunpack.c.l.b16 %v826
        %v1859 = vunpack.c.h.b16 %v826
        %v1860 = vunpack.c.l.b16 %v827
        %v1861 = vunpack.c.h.b16 %v827
        %v1862 = vunpack.c.l.b16 %v828
        %v1863 = vunpack.c.h.b16 %v828
        %v1864 = vunpack.c.l.b16 %v829
        %v1865 = vunpack.c.h.b16 %v829
        %v1866 = vunpack.c.l.b16 %v830
        %v1867 = vunpack.c.h.b16 %v830
        %v1868 = vunpack.c.l.b16 %v831
        %v1869 = vunpack.c.h.b16 %v831
        %v1870 = vunpack.c.l.b16 %v832
        %v1871 = vunpack.c.h.b16 %v832
        %v1872 = vunpack.c.l.b16 %v833
        %v1873 = vunpack.c.h.b16 %v833
        %v1874 = vunpack.c.l.b16 %v834
        %v1875 = vunpack.c.h.b16 %v834
        %v1876 = vunpack.c.l.b16 %v835
        %v1877 = vunpack.c.h.b16 %v835
        %v1878 = vunpack.c.l.b16 %v836
        %v1879 = vunpack.c.h.b16 %v836
        %v1880 = vunpack.c.l.b16 %v837
        %v1881 = vunpack.c.h.b16 %v837
        %v1882 = vunpack.c.l.b16 %v838
        %v1883 = vunpack.c.h.b16 %v838
        %v1884 = vunpack.c.l.b16 %v839
        %v1885 = vunpack.c.h.b16 %v839
        %v1886 = vunpack.c.l.b16 %v840
        %v1887 = vunpack.c.h.b16 %v840
        %v1888 = vunpack.c.l.b16 %v841
        %v1889 = vunpack.c.h.b16 %v841
        %v1890 = vunpack.c.l.b16 %v842
        %v1891 = vunpack.c.h.b16 %v842
        %v1892 = vunpack.c.l.b16 %v843
        %v1893 = vunpack.c.h.b16 %v843
        %v1894 = vunpack.c.l.b16 %v844
        %v1895 = vunpack.c.h.b16 %v844
        %v1896 = vunpack.c.l.b16 %v845
        %v1897 = vunpack.c.h.b16 %v845
        %v1898 = vunpack.c.l.b16 %v846
        %v1899 = vunpack.c.h.b16 %v846
        %v1900 = vunpack.c.l.b16 %v847
        %v1901 = vunpack.c.h.b16 %v847
        %v1902 = vunpack.c.l.b16 %v848
        %v1903 = vunpack.c.h.b16 %v848
        %v1904 = vunpack.c.l.b16 %v849
        %v1905 = vunpack.c.h.b16 %v849
        %v1906 = vunpack.c.l.b16 %v850
        %v1907 = vunpack.c.h.b16 %v850
        %v1908 = vunpack.c.l.b16 %v851
        %v1909 = vunpack.c.h.b16 %v851
        %v1910 = vunpack.c.l.b16 %v852
        %v1911 = vunpack.c.h.b16 %v852
        %v1912 = vunpack.c.l.b16 %v853
        %v1913 = vunpack.c.h.b16 %v853
        %v1914 = vunpack.c.l.b16 %v854
        %v1915 = vunpack.c.h.b16 %v854
        %v1916 = vunpack.c.l.b16 %v855
        %v1917 = vunpack.c.h.b16 %v855
        %v1918 = vunpack.c.l.b16 %v856
        %v1919 = vunpack.c.h.b16 %v856
        %v1920 = vunpack.c.l.b16 %v857
        %v1921 = vunpack.c.h.b16 %v857
        %v1922 = vunpack.c.l.b16 %v858
        %v1923 = vunpack.c.h.b16 %v858
        %v1924 = vunpack.c.l.b16 %v859
        %v1925 = vunpack.c.h.b16 %v859
        %v1926 = vunpack.c.l.b16 %v860
        %v1927 = vunpack.c.h.b16 %v860
        %v1928 = vunpack.c.l.b16 %v861
        %v1929 = vunpack.c.h.b16 %v861
        %v1930 = vunpack.c.l.b16 %v862
        %v1931 = vunpack.c.h.b16 %v862
        %v1932 = vunpack.c.l.b16 %v863
        %v1933 = vunpack.c.h.b16 %v863
        %v1934 = vunpack.c.l.b16 %v864
        %v1935 = vunpack.c.h.b16 %v864
        %v1936 = vunpack.c.l.b16 %v865
        %v1937 = vunpack.c.h.b16 %v865
        %v1938 = vunpack.c.l.b16 %v866
        %v1939 = vunpack.c.h.b16 %v866
        %v1940 = vunpack.c.l.b16 %v867
        %v1941 = vunpack.c.h.b16 %v867
        %v1942 = vunpack.c.l.b16 %v868
        %v1943 = vunpack.c.h.b16 %v868
        %v1944 = vunpack.c.l.b16 %v869
        %v1945 = vunpack.c.h.b16 %v869
        %v1946 = vunpack.c.l.b16 %v870
        %v1947 = vunpack.c.h.b16 %v870
        %v1948 = vunpack.c.l.b16 %v871
        %v1949 = vunpack.c.h.b16 %v871
        %v1950 = vunpack.c.l.b16 %v872
        %v1951 = vunpack.c.h.b16 %v872
        %v1952 = vunpack.c.l.b16 %v873
        %v1953 = vunpack.c.h.b16 %v873
        %v1954 = vunpack.c.l.b16 %v874
        %v1955 = vunpack.c.h.b16 %v874
        %v1956 = vunpack.c.l.b16 %v875
        %v1957 = vunpack.c.h.b16 %v875
        %v1958 = vunpack.c.l.b16 %v876
        %v1959 = vunpack.c.h.b16 %v876
        %v1960 = vunpack.c.l.b16 %v877
        %v1961 = vunpack.c.h.b16 %v877
        %v1962 = vunpack.c.l.b16 %v878
        %v1963 = vunpack.c.h.b16 %v878
        %v1964 = vunpack.c.l.b16 %v879
        %v1965 = vunpack.c.h.b16 %v879
        %v1966 = vunpack.c.l.b16 %v880
        %v1967 = vunpack.c.h.b16 %v880
        %v1968 = vunpack.c.l.b16 %v881
        %v1969 = vunpack.c.h.b16 %v881
        %v1970 = vunpack.c.l.b16 %v882
        %v1971 = vunpack.c.h.b16 %v882
        %v1972 = vunpack.c.l.b16 %v883
        %v1973 = vunpack.c.h.b16 %v883
        %v1974 = vunpack.c.l.b16 %v884
        %v1975 = vunpack.c.h.b16 %v884
        %v1976 = vunpack.c.l.b16 %v885
        %v1977 = vunpack.c.h.b16 %v885
        %v1978 = vunpack.c.l.b16 %v886
        %v1979 = vunpack.c.h.b16 %v886
        %v1980 = vunpack.c.l.b16 %v887
        %v1981 = vunpack.c.h.b16 %v887
        %v1982 = vunpack.c.l.b16 %v888
        %v1983 = vunpack.c.h.b16 %v888
        %v1984 = vunpack.c.l.b16 %v889
        %v1985 = vunpack.c.h.b16 %v889
        %v1986 = vunpack.c.l.b16 %v890
        %v1987 = vunpack.c.h.b16 %v890
        %v1988 = vunpack.c.l.b16 %v891
        %v1989 = vunpack.c.h.b16 %v891
        %v1990 = vunpack.c.l.b16 %v892
        %v1991 = vunpack.c.h.b16 %v892
        %v1992 = vunpack.c.l.b16 %v893
        %v1993 = vunpack.c.h.b16 %v893
        %v1994 = vunpack.c.l.b16 %v894
        %v1995 = vunpack.c.h.b16 %v894
        %v1996 = vunpack.c.l.b16 %v895
        %v1997 = vunpack.c.h.b16 %v895
        %v1998 = vunpack.c.l.b16 %v896
        %v1999 = vunpack.c.h.b16 %v896
        %v2000 = vunpack.c.l.b16 %v897
        %v2001 = vunpack.c.h.b16 %v897
        %v2002 = vunpack.c.l.b16 %v898
        %v2003 = vunpack.c.h.b16 %v898
        %v2004 = vunpack.c.l.b16 %v899
        %v2005 = vunpack.c.h.b16 %v899
        %v2006 = vunpack.c.l.b16 %v900
        %v2007 = vunpack.c.h.b16 %v900
        %v2008 = vunpack.c.l.b16 %v901
        %v2009 = vunpack.c.h.b16 %v901
        %v2010 = vunpack.c.l.b16 %v902
        %v2011 = vunpack.c.h.b16 %v902
        %v2012 = vunpack.c.l.b16 %v903
        %v2013 = vunpack.c.h.b16 %v903
        %v2014 = vunpack.c.l.b16 %v904
        %v2015 = vunpack.c.h.b16 %v904
        %v2016 = vunpack.c.l.b16 %v905
        %v2017 = vunpack.c.h.b16 %v905
        %v2018 = vunpack.c.l.b16 %v906
        %v2019 = vunpack.c.h.b16 %v906
        %v2020 = vunpack.c.l.b16 %v907
        %v2021 = vunpack.c.h.b16 %v907
        %v2022 = vunpack.c.l.b16 %v908
        %v2023 = vunpack.c.h.b16 %v908
        %v2024 = vunpack.c.l.b16 %v909
        %v2025 = vunpack.c.h.b16 %v909
        %v2026 = vunpack.c.l.b16 %v910
        %v2027 = vunpack.c.h.b16 %v910
        %v2028 = vunpack.c.l.b16 %v911
        %v2029 = vunpack.c.h.b16 %v911
        %v2030 = vunpack.c.l.b16 %v912
        %v2031 = vunpack.c.h.b16 %v912
        %v2032 = vunpack.c.l.b16 %v913
        %v2033 = vunpack.c.h.b16 %v913
        %v2034 = vunpack.c.l.b16 %v914
        %v2035 = vunpack.c.h.b16 %v914
        %v2036 = vunpack.c.l.b16 %v915
        %v2037 = vunpack.c.h.b16 %v915
        %v2038 = vunpack.c.l.b16 %v916
        %v2039 = vunpack.c.h.b16 %v916
        %v2040 = vunpack.c.l.b16 %v917
        %v2041 = vunpack.c.h.b16 %v917
        %v2042 = vunpack.c.l.b16 %v918
        %v2043 = vunpack.c.h.b16 %v918
        %v2044 = vunpack.c.l.b16 %v919
        %v2045 = vunpack.c.h.b16 %v919
        %v2046 = vunpack.c.l.b16 %v920
        %v2047 = vunpack.c.h.b16 %v920
        %v2048 = vunpack.c.l.b16 %v921
        %v2049 = vunpack.c.h.b16 %v921
        %v2050 = vunpack.c.l.b16 %v922
        %v2051 = vunpack.c.h.b16 %v922
        %v2052 = vunpack.c.l.b16 %v923
        %v2053 = vunpack.c.h.b16 %v923
        %v2054 = vunpack.c.l.b16 %v924
        %v2055 = vunpack.c.h.b16 %v924
        %v2056 = vunpack.c.l.b16 %v925
        %v2057 = vunpack.c.h.b16 %v925
        %v2058 = vunpack.c.l.b16 %v926
        %v2059 = vunpack.c.h.b16 %v926
        %v2060 = vunpack.c.l.b16 %v927
        %v2061 = vunpack.c.h.b16 %v927
        %v2062 = vunpack.c.l.b16 %v928
        %v2063 = vunpack.c.h.b16 %v928
        %v2064 = vunpack.c.l.b16 %v929
        %v2065 = vunpack.c.h.b16 %v929
        %v2066 = vunpack.c.l.b16 %v930
        %v2067 = vunpack.c.h.b16 %v930
        %v2068 = vunpack.c.l.b16 %v931
        %v2069 = vunpack.c.h.b16 %v931
        %v2070 = vunpack.c.l.b16 %v932
        %v2071 = vunpack.c.h.b16 %v932
        %v2072 = vunpack.c.l.b16 %v933
        %v2073 = vunpack.c.h.b16 %v933
        %v2074 = vunpack.c.l.b16 %v934
        %v2075 = vunpack.c.h.b16 %v934
        %v2076 = vunpack.c.l.b16 %v935
        %v2077 = vunpack.c.h.b16 %v935
        %v2078 = vunpack.c.l.b16 %v936
        %v2079 = vunpack.c.h.b16 %v936
        %v2080 = vunpack.c.l.b16 %v937
        %v2081 = vunpack.c.h.b16 %v937
        %v2082 = vunpack.c.l.b16 %v938
        %v2083 = vunpack.c.h.b16 %v938
        %v2084 = vunpack.c.l.b16 %v939
        %v2085 = vunpack.c.h.b16 %v939
        %v2086 = vunpack.c.l.b16 %v940
        %v2087 = vunpack.c.h.b16 %v940
        %v2088 = vunpack.c.l.b16 %v941
        %v2089 = vunpack.c.h.b16 %v941
        %v2090 = vunpack.c.l.b16 %v942
        %v2091 = vunpack.c.h.b16 %v942
        %v2092 = vunpack.c.l.b16 %v943
        %v2093 = vunpack.c.h.b16 %v943
        %v2094 = vunpack.c.l.b16 %v944
        %v2095 = vunpack.c.h.b16 %v944
        %v2096 = vunpack.c.l.b16 %v945
        %v2097 = vunpack.c.h.b16 %v945
        %v2098 = vunpack.c.l.b16 %v946
        %v2099 = vunpack.c.h.b16 %v946
        %v2100 = vunpack.c.l.b16 %v947
        %v2101 = vunpack.c.h.b16 %v947
        %v2102 = vunpack.c.l.b16 %v948
        %v2103 = vunpack.c.h.b16 %v948
        %v2104 = vunpack.c.l.b16 %v949
        %v2105 = vunpack.c.h.b16 %v949
        %v2106 = vunpack.c.l.b16 %v950
        %v2107 = vunpack.c.h.b16 %v950
        %v2108 = vunpack.c.l.b16 %v951
        %v2109 = vunpack.c.h.b16 %v951
        %v2110 = vunpack.c.l.b16 %v952
        %v2111 = vunpack.c.h.b16 %v952
        %v2112 = vunpack.c.l.b16 %v953
        %v2113 = vunpack.c.h.b16 %v953
        %v2114 = vunpack.c.l.b16 %v954
        %v2115 = vunpack.c.h.b16 %v954
        %v2116 = vunpack.c.l.b16 %v955
        %v2117 = vunpack.c.h.b16 %v955
        %v2118 = vunpack.c.l.b16 %v956
        %v2119 = vunpack.c.h.b16 %v956
        %v2120 = vunpack.c.l.b16 %v957
        %v2121 = vunpack.c.h.b16 %v957
        %v2122 = vunpack.c.l.b16 %v958
        %v2123 = vunpack.c.h.b16 %v958
        %v2124 = vunpack.c.l.b16 %v959
        %v2125 = vunpack.c.h.b16 %v959
        %v2126 = vunpack.c.l.b16 %v960
        %v2127 = vunpack.c.h.b16 %v960
        %v2128 = vunpack.c.l.b16 %v961
        %v2129 = vunpack.c.h.b16 %v961
        %v2130 = vunpack.c.l.b16 %v962
        %v2131 = vunpack.c.h.b16 %v962
        %v2132 = vunpack.c.l.b16 %v963
        %v2133 = vunpack.c.h.b16 %v963
        %v2134 = vunpack.c.l.b16 %v964
        %v2135 = vunpack.c.h.b16 %v964
        %v2136 = vunpack.c.l.b16 %v965
        %v2137 = vunpack.c.h.b16 %v965
        %v2138 = vunpack.c.l.b16 %v966
        %v2139 = vunpack.c.h.b16 %v966
        %v2140 = vunpack.c.l.b16 %v967
        %v2141 = vunpack.c.h.b16 %v967
        %v2142 = vunpack.c.l.b16 %v968
        %v2143 = vunpack.c.h.b16 %v968
        %v2144 = vunpack.c.l.b16 %v969
        %v2145 = vunpack.c.h.b16 %v969
        %v2146 = vunpack.c.l.b16 %v970
        %v2147 = vunpack.c.h.b16 %v970
        %v2148 = vunpack.c.l.b16 %v971
        %v2149 = vunpack.c.h.b16 %v971
        %v2150 = vunpack.c.l.b16 %v972
        %v2151 = vunpack.c.h.b16 %v972
        %v2152 = vunpack.c.l.b16 %v973
        %v2153 = vunpack.c.h.b16 %v973
        %v2154 = vunpack.c.l.b16 %v974
        %v2155 = vunpack.c.h.b16 %v974
        %v2156 = vunpack.c.l.b16 %v975
        %v2157 = vunpack.c.h.b16 %v975
        %v2158 = vunpack.c.l.b16 %v976
        %v2159 = vunpack.c.h.b16 %v976
        %v2160 = vunpack.c.l.b16 %v977
        %v2161 = vunpack.c.h.b16 %v977
        %v2162 = vunpack.c.l.b16 %v978
        %v2163 = vunpack.c.h.b16 %v978
        %v2164 = vunpack.c.l.b16 %v979
        %v2165 = vunpack.c.h.b16 %v979
        %v2166 = vunpack.c.l.b16 %v980
        %v2167 = vunpack.c.h.b16 %v980
        %v2168 = vunpack.c.l.b16 %v981
        %v2169 = vunpack.c.h.b16 %v981
        %v2170 = vunpack.c.l.b16 %v982
        %v2171 = vunpack.c.h.b16 %v982
        %v2172 = vunpack.c.l.b16 %v983
        %v2173 = vunpack.c.h.b16 %v983
        %v2174 = vunpack.c.l.b16 %v984
        %v2175 = vunpack.c.h.b16 %v984
        %v2176 = vunpack.c.l.b16 %v985
        %v2177 = vunpack.c.h.b16 %v985
        %v2178 = vunpack.c.l.b16 %v986
        %v2179 = vunpack.c.h.b16 %v986
        %v2180 = vunpack.c.l.b16 %v987
        %v2181 = vunpack.c.h.b16 %v987
        %v2182 = vunpack.c.l.b16 %v988
        %v2183 = vunpack.c.h.b16 %v988
        %v2184 = vunpack.c.l.b16 %v989
        %v2185 = vunpack.c.h.b16 %v989
        %v2186 = vunpack.c.l.b16 %v990
        %v2187 = vunpack.c.h.b16 %v990
        %v2188 = vunpack.c.l.b16 %v991
        %v2189 = vunpack.c.h.b16 %v991
        %v2190 = vunpack.c.l.b16 %v992
        %v2191 = vunpack.c.h.b16 %v992
        %v2192 = vunpack.c.l.b16 %v993
        %v2193 = vunpack.c.h.b16 %v993
        %v2194 = vunpack.c.l.b16 %v994
        %v2195 = vunpack.c.h.b16 %v994
        %v2196 = vunpack.c.l.b16 %v995
        %v2197 = vunpack.c.h.b16 %v995
        %v2198 = vunpack.c.l.b16 %v996
        %v2199 = vunpack.c.h.b16 %v996
        %v2200 = vunpack.c.l.b16 %v997
        %v2201 = vunpack.c.h.b16 %v997
        %v2202 = vunpack.c.l.b16 %v998
        %v2203 = vunpack.c.h.b16 %v998
        %v2204 = vunpack.c.l.b16 %v999
        %v2205 = vunpack.c.h.b16 %v999
        %v2206 = vunpack.c.l.b16 %v1000
        %v2207 = vunpack.c.h.b16 %v1000
        %v2208 = vunpack.c.l.b16 %v1001
        %v2209 = vunpack.c.h.b16 %v1001
        %v2210 = vunpack.c.l.b16 %v1002
        %v2211 = vunpack.c.h.b16 %v1002
        %v2212 = vunpack.c.l.b16 %v1003
        %v2213 = vunpack.c.h.b16 %v1003
        %v2214 = vunpack.c.l.b16 %v1004
        %v2215 = vunpack.c.h.b16 %v1004
        %v2216 = vunpack.c.l.b16 %v1005
        %v2217 = vunpack.c.h.b16 %v1005
        %v2218 = vunpack.c.l.b16 %v1006
        %v2219 = vunpack.c.h.b16 %v1006
        %v2220 = vunpack.c.l.b16 %v1007
        %v2221 = vunpack.c.h.b16 %v1007
        %v2222 = vunpack.c.l.b16 %v1008
        %v2223 = vunpack.c.h.b16 %v1008
        %v2224 = vunpack.c.l.b16 %v1009
        %v2225 = vunpack.c.h.b16 %v1009
        %v2226 = vunpack.c.l.b16 %v1010
        %v2227 = vunpack.c.h.b16 %v1010
        %v2228 = vunpack.c.l.b16 %v1011
        %v2229 = vunpack.c.h.b16 %v1011
        %v2230 = vpack.c.b16 %v1454, %v1446
        %v2231 = vpack.c.b16 %v1455, %v1447
        %v2232 = vpack.c.b16 %v1456, %v1448
        %v2233 = vpack.c.b16 %v1457, %v1449
        %v2234 = vpack.c.b16 %v1458, %v1450
        %v2235 = vpack.c.b16 %v1459, %v1451
        %v2236 = vpack.c.b16 %v1460, %v1452
        %v2237 = vpack.c.b16 %v1461, %v1453
        %v2238 = vpack.c.b16 %v1470, %v1462
        %v2239 = vpack.c.b16 %v1471, %v1463
        %v2240 = vpack.c.b16 %v1472, %v1464
        %v2241 = vpack.c.b16 %v1473, %v1465
        %v2242 = vpack.c.b16 %v1474, %v1466
        %v2243 = vpack.c.b16 %v1475, %v1467
        %v2244 = vpack.c.b16 %v1476, %v1468
        %v2245 = vpack.c.b16 %v1477, %v1469
        %v2246 = vpack.c.b16 %v1486, %v1478
        %v2247 = vpack.c.b16 %v1487, %v1479
        %v2248 = vpack.c.b16 %v1488, %v1480
        %v2249 = vpack.c.b16 %v1489, %v1481
        %v2250 = vpack.c.b16 %v1490, %v1482
        %v2251 = vpack.c.b16 %v1491, %v1483
        %v2252 = vpack.c.b16 %v1492, %v1484
        %v2253 = vpack.c.b16 %v1493, %v1485
        %v2254 = vpack.c.b16 %v1502, %v1494
        %v2255 = vpack.c.b16 %v1503, %v1495
        %v2256 = vpack.c.b16 %v1504, %v1496
        %v2257 = vpack.c.b16 %v1505, %v1497
        %v2258 = vpack.c.b16 %v1506, %v1498
        %v2259 = vpack.c.b16 %v1507, %v1499
        %v2260 = vpack.c.b16 %v1508, %v1500
        %v2261 = vpack.c.b16 %v1509, %v1501
        %v2262 = vpack.c.b16 %v1518, %v1510
        %v2263 = vpack.c.b16 %v1519, %v1511
        %v2264 = vpack.c.b16 %v1520, %v1512
        %v2265 = vpack.c.b16 %v1521, %v1513
        %v2266 = vpack.c.b16 %v1522, %v1514
        %v2267 = vpack.c.b16 %v1523, %v1515
        %v2268 = vpack.c.b16 %v1524, %v1516
        %v2269 = vpack.c.b16 %v1525, %v1517
        %v2270 = vpack.c.b16 %v1534, %v1526
        %v2271 = vpack.c.b16 %v1535, %v1527
        %v2272 = vpack.c.b16 %v1536, %v1528
        %v2273 = vpack.c.b16 %v1537, %v1529
        %v2274 = vpack.c.b16 %v1538, %v1530
        %v2275 = vpack.c.b16 %v1539, %v1531
        %v2276 = vpack.c.b16 %v1540, %v1532
        %v2277 = vpack.c.b16 %v1541, %v1533
        %v2278 = vpack.c.b16 %v1550, %v1542
        %v2279 = vpack.c.b16 %v1551, %v1543
        %v2280 = vpack.c.b16 %v1552, %v1544
        %v2281 = vpack.c.b16 %v1553, %v1545
        %v2282 = vpack.c.b16 %v1554, %v1546
        %v2283 = vpack.c.b16 %v1555, %v1547
        %v2284 = vpack.c.b16 %v1556, %v1548
        %v2285 = vpack.c.b16 %v1557, %v1549
        %v2286 = vpack.c.b16 %v1566, %v1558
        %v2287 = vpack.c.b16 %v1567, %v1559
        %v2288 = vpack.c.b16 %v1568, %v1560
        %v2289 = vpack.c.b16 %v1569, %v1561
        %v2290 = vpack.c.b16 %v1570, %v1562
        %v2291 = vpack.c.b16 %v1571, %v1563
        %v2292 = vpack.c.b16 %v1572, %v1564
        %v2293 = vpack.c.b16 %v1573, %v1565
        %v2294 = vpack.c.b16 %v1582, %v1574
        %v2295 = vpack.c.b16 %v1583, %v1575
        %v2296 = vpack.c.b16 %v1584, %v1576
        %v2297 = vpack.c.b16 %v1585, %v1577
        %v2298 = vpack.c.b16 %v1586, %v1578
        %v2299 = vpack.c.b16 %v1587, %v1579
        %v2300 = vpack.c.b16 %v1588, %v1580
        %v2301 = vpack.c.b16 %v1589, %v1581
        %v2302 = vpack.c.b16 %v1598, %v1590
        %v2303 = vpack.c.b16 %v1599, %v1591
        %v2304 = vpack.c.b16 %v1600, %v1592
        %v2305 = vpack.c.b16 %v1601, %v1593
        %v2306 = vpack.c.b16 %v1602, %v1594
        %v2307 = vpack.c.b16 %v1603, %v1595
        %v2308 = vpack.c.b16 %v1604, %v1596
        %v2309 = vpack.c.b16 %v1605, %v1597
        %v2310 = vpack.c.b16 %v1614, %v1606
        %v2311 = vpack.c.b16 %v1615, %v1607
        %v2312 = vpack.c.b16 %v1616, %v1608
        %v2313 = vpack.c.b16 %v1617, %v1609
        %v2314 = vpack.c.b16 %v1618, %v1610
        %v2315 = vpack.c.b16 %v1619, %v1611
        %v2316 = vpack.c.b16 %v1620, %v1612
        %v2317 = vpack.c.b16 %v1621, %v1613
        %v2318 = vpack.c.b16 %v1630, %v1622
        %v2319 = vpack.c.b16 %v1631, %v1623
        %v2320 = vpack.c.b16 %v1632, %v1624
        %v2321 = vpack.c.b16 %v1633, %v1625
        %v2322 = vpack.c.b16 %v1634, %v1626
        %v2323 = vpack.c.b16 %v1635, %v1627
        %v2324 = vpack.c.b16 %v1636, %v1628
        %v2325 = vpack.c.b16 %v1637, %v1629
        %v2326 = vpack.c.b16 %v1646, %v1638
        %v2327 = vpack.c.b16 %v1647, %v1639
        %v2328 = vpack.c.b16 %v1648, %v1640
        %v2329 = vpack.c.b16 %v1649, %v1641
        %v2330 = vpack.c.b16 %v1650, %v1642
        %v2331 = vpack.c.b16 %v1651, %v1643
        %v2332 = vpack.c.b16 %v1652, %v1644
        %v2333 = vpack.c.b16 %v1653, %v1645
        %v2334 = vpack.c.b16 %v1662, %v1654
        %v2335 = vpack.c.b16 %v1663, %v1655
        %v2336 = vpack.c.b16 %v1664, %v1656
        %v2337 = vpack.c.b16 %v1665, %v1657
        %v2338 = vpack.c.b16 %v1666, %v1658
        %v2339 = vpack.c.b16 %v1667, %v1659
        %v2340 = vpack.c.b16 %v1668, %v1660
        %v2341 = vpack.c.b16 %v1669, %v1661
        %v2342 = vpack.c.b16 %v1678, %v1670
        %v2343 = vpack.c.b16 %v1679, %v1671
        %v2344 = vpack.c.b16 %v1680, %v1672
        %v2345 = vpack.c.b16 %v1681, %v1673
        %v2346 = vpack.c.b16 %v1682, %v1674
        %v2347 = vpack.c.b16 %v1683, %v1675
        %v2348 = vpack.c.b16 %v1684, %v1676
        %v2349 = vpack.c.b16 %v1685, %v1677
        %v2350 = vpack.c.b16 %v1694, %v1686
        %v2351 = vpack.c.b16 %v1695, %v1687
        %v2352 = vpack.c.b16 %v1696, %v1688
        %v2353 = vpack.c.b16 %v1697, %v1689
        %v2354 = vpack.c.b16 %v1698, %v1690
        %v2355 = vpack.c.b16 %v1699, %v1691
        %v2356 = vpack.c.b16 %v1700, %v1692
        %v2357 = vpack.c.b16 %v1701, %v1693
        %v2358 = vpack.c.b16 %v1710, %v1702
        %v2359 = vpack.c.b16 %v1711, %v1703
        %v2360 = vpack.c.b16 %v1712, %v1704
        %v2361 = vpack.c.b16 %v1713, %v1705
        %v2362 = vpack.c.b16 %v1714, %v1706
        %v2363 = vpack.c.b16 %v1715, %v1707
        %v2364 = vpack.c.b16 %v1716, %v1708
        %v2365 = vpack.c.b16 %v1717, %v1709
        %v2366 = vpack.c.b16 %v1726, %v1718
        %v2367 = vpack.c.b16 %v1727, %v1719
        %v2368 = vpack.c.b16 %v1728, %v1720
        %v2369 = vpack.c.b16 %v1729, %v1721
        %v2370 = vpack.c.b16 %v1730, %v1722
        %v2371 = vpack.c.b16 %v1731, %v1723
        %v2372 = vpack.c.b16 %v1732, %v1724
        %v2373 = vpack.c.b16 %v1733, %v1725
        %v2374 = vpack.c.b16 %v1742, %v1734
        %v2375 = vpack.c.b16 %v1743, %v1735
        %v2376 = vpack.c.b16 %v1744, %v1736
        %v2377 = vpack.c.b16 %v1745, %v1737
        %v2378 = vpack.c.b16 %v1746, %v1738
        %v2379 = vpack.c.b16 %v1747, %v1739
        %v2380 = vpack.c.b16 %v1748, %v1740
        %v2381 = vpack.c.b16 %v1749, %v1741
        %v2382 = vpack.c.b16 %v1758, %v1750
        %v2383 = vpack.c.b16 %v1759, %v1751
        %v2384 = vpack.c.b16 %v1760, %v1752
        %v2385 = vpack.c.b16 %v1761, %v1753
        %v2386 = vpack.c.b16 %v1762, %v1754
        %v2387 = vpack.c.b16 %v1763, %v1755
        %v2388 = vpack.c.b16 %v1764, %v1756
        %v2389 = vpack.c.b16 %v1765, %v1757
        %v2390 = vpack.c.b16 %v1774, %v1766
        %v2391 = vpack.c.b16 %v1775, %v1767
        %v2392 = vpack.c.b16 %v1776, %v1768
        %v2393 = vpack.c.b16 %v1777, %v1769
        %v2394 = vpack.c.b16 %v1778, %v1770
        %v2395 = vpack.c.b16 %v1779, %v1771
        %v2396 = vpack.c.b16 %v1780, %v1772
        %v2397 = vpack.c.b16 %v1781, %v1773
        %v2398 = vpack.c.b16 %v1790, %v1782
        %v2399 = vpack.c.b16 %v1791, %v1783
        %v2400 = vpack.c.b16 %v1792, %v1784
        %v2401 = vpack.c.b16 %v1793, %v1785
        %v2402 = vpack.c.b16 %v1794, %v1786
        %v2403 = vpack.c.b16 %v1795, %v1787
        %v2404 = vpack.c.b16 %v1796, %v1788
        %v2405 = vpack.c.b16 %v1797, %v1789
        %v2406 = vpack.c.b16 %v1806, %v1798
        %v2407 = vpack.c.b16 %v1807, %v1799
        %v2408 = vpack.c.b16 %v1808, %v1800
        %v2409 = vpack.c.b16 %v1809, %v1801
        %v2410 = vpack.c.b16 %v1810, %v1802
        %v2411 = vpack.c.b16 %v1811, %v1803
        %v2412 = vpack.c.b16 %v1812, %v1804
        %v2413 = vpack.c.b16 %v1813, %v1805
        %v2414 = vpack.c.b16 %v1822, %v1814
        %v2415 = vpack.c.b16 %v1823, %v1815
        %v2416 = vpack.c.b16 %v1824, %v1816
        %v2417 = vpack.c.b16 %v1825, %v1817
        %v2418 = vpack.c.b16 %v1826, %v1818
        %v2419 = vpack.c.b16 %v1827, %v1819
        %v2420 = vpack.c.b16 %v1828, %v1820
        %v2421 = vpack.c.b16 %v1829, %v1821
        %v2422 = vpack.c.b16 %v1838, %v1830
        %v2423 = vpack.c.b16 %v1839, %v1831
        %v2424 = vpack.c.b16 %v1840, %v1832
        %v2425 = vpack.c.b16 %v1841, %v1833
        %v2426 = vpack.c.b16 %v1842, %v1834
        %v2427 = vpack.c.b16 %v1843, %v1835
        %v2428 = vpack.c.b16 %v1844, %v1836
        %v2429 = vpack.c.b16 %v1845, %v1837
        %v2430 = vpack.c.b16 %v1854, %v1846
        %v2431 = vpack.c.b16 %v1855, %v1847
        %v2432 = vpack.c.b16 %v1856, %v1848
        %v2433 = vpack.c.b16 %v1857, %v1849
        %v2434 = vpack.c.b16 %v1858, %v1850
        %v2435 = vpack.c.b16 %v1859, %v1851
        %v2436 = vpack.c.b16 %v1860, %v1852
        %v2437 = vpack.c.b16 %v1861, %v1853
        %v2438 = vpack.c.b16 %v1870, %v1862
        %v2439 = vpack.c.b16 %v1871, %v1863
        %v2440 = vpack.c.b16 %v1872, %v1864
        %v2441 = vpack.c.b16 %v1873, %v1865
        %v2442 = vpack.c.b16 %v1874, %v1866
        %v2443 = vpack.c.b16 %v1875, %v1867
        %v2444 = vpack.c.b16 %v1876, %v1868
        %v2445 = vpack.c.b16 %v1877, %v1869
        %v2446 = vpack.c.b16 %v1886, %v1878
        %v2447 = vpack.c.b16 %v1887, %v1879
        %v2448 = vpack.c.b16 %v1888, %v1880
        %v2449 = vpack.c.b16 %v1889, %v1881
        %v2450 = vpack.c.b16 %v1890, %v1882
        %v2451 = vpack.c.b16 %v1891, %v1883
        %v2452 = vpack.c.b16 %v1892, %v1884
        %v2453 = vpack.c.b16 %v1893, %v1885
        %v2454 = vpack.c.b16 %v1902, %v1894
        %v2455 = vpack.c.b16 %v1903, %v1895
        %v2456 = vpack.c.b16 %v1904, %v1896
        %v2457 = vpack.c.b16 %v1905, %v1897
        %v2458 = vpack.c.b16 %v1906, %v1898
        %v2459 = vpack.c.b16 %v1907, %v1899
        %v2460 = vpack.c.b16 %v1908, %v1900
        %v2461 = vpack.c.b16 %v1909, %v1901
        %v2462 = vpack.c.b16 %v1918, %v1910
        %v2463 = vpack.c.b16 %v1919, %v1911
        %v2464 = vpack.c.b16 %v1920, %v1912
        %v2465 = vpack.c.b16 %v1921, %v1913
        %v2466 = vpack.c.b16 %v1922, %v1914
        %v2467 = vpack.c.b16 %v1923, %v1915
        %v2468 = vpack.c.b16 %v1924, %v1916
        %v2469 = vpack.c.b16 %v1925, %v1917
        %v2470 = vpack.c.b16 %v1934, %v1926
        %v2471 = vpack.c.b16 %v1935, %v1927
        %v2472 = vpack.c.b16 %v1936, %v1928
        %v2473 = vpack.c.b16 %v1937, %v1929
        %v2474 = vpack.c.b16 %v1938, %v1930
        %v2475 = vpack.c.b16 %v1939, %v1931
        %v2476 = vpack.c.b16 %v1940, %v1932
        %v2477 = vpack.c.b16 %v1941, %v1933
        %v2478 = vpack.c.b16 %v1950, %v1942
        %v2479 = vpack.c.b16 %v1951, %v1943
        %v2480 = vpack.c.b16 %v1952, %v1944
        %v2481 = vpack.c.b16 %v1953, %v1945
        %v2482 = vpack.c.b16 %v1954, %v1946
        %v2483 = vpack.c.b16 %v1955, %v1947
        %v2484 = vpack.c.b16 %v1956, %v1948
        %v2485 = vpack.c.b16 %v1957, %v1949
        %v2486 = vpack.c.b16 %v1966, %v1958
        %v2487 = vpack.c.b16 %v1967, %v1959
        %v2488 = vpack.c.b16 %v1968, %v1960
        %v2489 = vpack.c.b16 %v1969, %v1961
        %v2490 = vpack.c.b16 %v1970, %v1962
        %v2491 = vpack.c.b16 %v1971, %v1963
        %v2492 = vpack.c.b16 %v1972, %v1964
        %v2493 = vpack.c.b16 %v1973, %v1965
        %v2494 = vpack.c.b16 %v1982, %v1974
        %v2495 = vpack.c.b16 %v1983, %v1975
        %v2496 = vpack.c.b16 %v1984, %v1976
        %v2497 = vpack.c.b16 %v1985, %v1977
        %v2498 = vpack.c.b16 %v1986, %v1978
        %v2499 = vpack.c.b16 %v1987, %v1979
        %v2500 = vpack.c.b16 %v1988, %v1980
        %v2501 = vpack.c.b16 %v1989, %v1981
        %v2502 = vpack.c.b16 %v1998, %v1990
        %v2503 = vpack.c.b16 %v1999, %v1991
        %v2504 = vpack.c.b16 %v2000, %v1992
        %v2505 = vpack.c.b16 %v2001, %v1993
        %v2506 = vpack.c.b16 %v2002, %v1994
        %v2507 = vpack.c.b16 %v2003, %v1995
        %v2508 = vpack.c.b16 %v2004, %v1996
        %v2509 = vpack.c.b16 %v2005, %v1997
        %v2510 = vpack.c.b16 %v2014, %v2006
        %v2511 = vpack.c.b16 %v2015, %v2007
        %v2512 = vpack.c.b16 %v2016, %v2008
        %v2513 = vpack.c.b16 %v2017, %v2009
        %v2514 = vpack.c.b16 %v2018, %v2010
        %v2515 = vpack.c.b16 %v2019, %v2011
        %v2516 = vpack.c.b16 %v2020, %v2012
        %v2517 = vpack.c.b16 %v2021, %v2013
        %v2518 = vpack.c.b16 %v2030, %v2022
        %v2519 = vpack.c.b16 %v2031, %v2023
        %v2520 = vpack.c.b16 %v2032, %v2024
        %v2521 = vpack.c.b16 %v2033, %v2025
        %v2522 = vpack.c.b16 %v2034, %v2026
        %v2523 = vpack.c.b16 %v2035, %v2027
        %v2524 = vpack.c.b16 %v2036, %v2028
        %v2525 = vpack.c.b16 %v2037, %v2029
        %v2526 = vpack.c.b16 %v2046, %v2038
        %v2527 = vpack.c.b16 %v2047, %v2039
        %v2528 = vpack.c.b16 %v2048, %v2040
        %v2529 = vpack.c.b16 %v2049, %v2041
        %v2530 = vpack.c.b16 %v2050, %v2042
        %v2531 = vpack.c.b16 %v2051, %v2043
        %v2532 = vpack.c.b16 %v2052, %v2044
        %v2533 = vpack.c.b16 %v2053, %v2045
        %v2534 = vpack.c.b16 %v2062, %v2054
        %v2535 = vpack.c.b16 %v2063, %v2055
        %v2536 = vpack.c.b16 %v2064, %v2056
        %v2537 = vpack.c.b16 %v2065, %v2057
        %v2538 = vpack.c.b16 %v2066, %v2058
        %v2539 = vpack.c.b16 %v2067, %v2059
        %v2540 = vpack.c.b16 %v2068, %v2060
        %v2541 = vpack.c.b16 %v2069, %v2061
        %v2542 = vpack.c.b16 %v2078, %v2070
        %v2543 = vpack.c.b16 %v2079, %v2071
        %v2544 = vpack.c.b16 %v2080, %v2072
        %v2545 = vpack.c.b16 %v2081, %v2073
        %v2546 = vpack.c.b16 %v2082, %v2074
        %v2547 = vpack.c.b16 %v2083, %v2075
        %v2548 = vpack.c.b16 %v2084, %v2076
        %v2549 = vpack.c.b16 %v2085, %v2077
        %v2550 = vpack.c.b16 %v2094, %v2086
        %v2551 = vpack.c.b16 %v2095, %v2087
        %v2552 = vpack.c.b16 %v2096, %v2088
        %v2553 = vpack.c.b16 %v2097, %v2089
        %v2554 = vpack.c.b16 %v2098, %v2090
        %v2555 = vpack.c.b16 %v2099, %v2091
        %v2556 = vpack.c.b16 %v2100, %v2092
        %v2557 = vpack.c.b16 %v2101, %v2093
        %v2558 = vpack.c.b16 %v2110, %v2102
        %v2559 = vpack.c.b16 %v2111, %v2103
        %v2560 = vpack.c.b16 %v2112, %v2104
        %v2561 = vpack.c.b16 %v2113, %v2105
        %v2562 = vpack.c.b16 %v2114, %v2106
        %v2563 = vpack.c.b16 %v2115, %v2107
        %v2564 = vpack.c.b16 %v2116, %v2108
        %v2565 = vpack.c.b16 %v2117, %v2109
        %v2566 = vpack.c.b16 %v2126, %v2118
        %v2567 = vpack.c.b16 %v2127, %v2119
        %v2568 = vpack.c.b16 %v2128, %v2120
        %v2569 = vpack.c.b16 %v2129, %v2121
        %v2570 = vpack.c.b16 %v2130, %v2122
        %v2571 = vpack.c.b16 %v2131, %v2123
        %v2572 = vpack.c.b16 %v2132, %v2124
        %v2573 = vpack.c.b16 %v2133, %v2125
        %v2574 = vpack.c.b16 %v2142, %v2134
        %v2575 = vpack.c.b16 %v2143, %v2135
        %v2576 = vpack.c.b16 %v2144, %v2136
        %v2577 = vpack.c.b16 %v2145, %v2137
        %v2578 = vpack.c.b16 %v2146, %v2138
        %v2579 = vpack.c.b16 %v2147, %v2139
        %v2580 = vpack.c.b16 %v2148, %v2140
        %v2581 = vpack.c.b16 %v2149, %v2141
        %v2582 = vpack.c.b16 %v2158, %v2150
        %v2583 = vpack.c.b16 %v2159, %v2151
        %v2584 = vpack.c.b16 %v2160, %v2152
        %v2585 = vpack.c.b16 %v2161, %v2153
        %v2586 = vpack.c.b16 %v2162, %v2154
        %v2587 = vpack.c.b16 %v2163, %v2155
        %v2588 = vpack.c.b16 %v2164, %v2156
        %v2589 = vpack.c.b16 %v2165, %v2157
        %v2590 = vpack.c.b16 %v2174, %v2166
        %v2591 = vpack.c.b16 %v2175, %v2167
        %v2592 = vpack.c.b16 %v2176, %v2168
        %v2593 = vpack.c.b16 %v2177, %v2169
        %v2594 = vpack.c.b16 %v2178, %v2170
        %v2595 = vpack.c.b16 %v2179, %v2171
        %v2596 = vpack.c.b16 %v2180, %v2172
        %v2597 = vpack.c.b16 %v2181, %v2173
        %v2598 = vpack.c.b16 %v2190, %v2182
        %v2599 = vpack.c.b16 %v2191, %v2183
        %v2600 = vpack.c.b16 %v2192, %v2184
        %v2601 = vpack.c.b16 %v2193, %v2185
        %v2602 = vpack.c.b16 %v2194, %v2186
        %v2603 = vpack.c.b16 %v2195, %v2187
        %v2604 = vpack.c.b16 %v2196, %v2188
        %v2605 = vpack.c.b16 %v2197, %v2189
        %v2606 = vpack.c.b16 %v2206, %v2198
        %v2607 = vpack.c.b16 %v2207, %v2199
        %v2608 = vpack.c.b16 %v2208, %v2200
        %v2609 = vpack.c.b16 %v2209, %v2201
        %v2610 = vpack.c.b16 %v2210, %v2202
        %v2611 = vpack.c.b16 %v2211, %v2203
        %v2612 = vpack.c.b16 %v2212, %v2204
        %v2613 = vpack.c.b16 %v2213, %v2205
        %v2614 = vpack.c.b16 %v2222, %v2214
        %v2615 = vpack.c.b16 %v2223, %v2215
        %v2616 = vpack.c.b16 %v2224, %v2216
        %v2617 = vpack.c.b16 %v2225, %v2217
        %v2618 = vpack.c.b16 %v2226, %v2218
        %v2619 = vpack.c.b16 %v2227, %v2219
        %v2620 = vpack.c.b16 %v2228, %v2220
        %v2621 = vpack.c.b16 %v2229, %v2221
        %vm3014 = vcmask 130048
        %v3016 = vsel %vm3014, %v514, 0
        %v3019 = vsel %vm3014, %v521, 0
        %v3022 = vsel %vm3014, %v528, 0
        %v3025 = vsel %vm3014, %v535, 0
        %v3028 = vsel %vm3014, %v542, 0
        %v3031 = vsel %vm3014, %v549, 0
        %v3034 = vsel %vm3014, %v556, 0
        %v3037 = vsel %vm3014, %v563, 0
        %v3040 = vsel %vm3014, %v570, 0
        %v3043 = vsel %vm3014, %v577, 0
        %v3046 = vsel %vm3014, %v584, 0
        %v3049 = vsel %vm3014, %v591, 0
        %v3052 = vsel %vm3014, %v598, 0
        %v3055 = vsel %vm3014, %v605, 0
        %v3058 = vsel %vm3014, %v612, 0
        %v3061 = vsel %vm3014, %v619, 0
        %3063 = vmatprep.subr.bf16.mxu0 %v2231
        %3064 = vmatpush1.bf16.msra.mxu0 %v2230
        %3065 = vmatprep.subr.bf16.mxu0 %v2239
        %3066 = vmatpush1.bf16.msra.mxu0 %v2238
        %3067 = vmatprep.subr.bf16.mxu0 %v2247
        %3068 = vmatpush1.bf16.msra.mxu0 %v2246
        %3069 = vmatprep.subr.bf16.mxu0 %v2255
        %3070 = vmatpush1.bf16.msra.mxu0 %v2254
        %3071 = vmatprep.subr.bf16.mxu0 %v2263
        %3072 = vmatpush1.bf16.msra.mxu0 %v2262
        %3073 = vmatprep.subr.bf16.mxu0 %v2271
        %3074 = vmatpush1.bf16.msra.mxu0 %v2270
        %3075 = vmatprep.subr.bf16.mxu0 %v2279
        %3076 = vmatpush1.bf16.msra.mxu0 %v2278
        %3077 = vmatprep.subr.bf16.mxu0 %v2287
        %3078 = vmatpush1.bf16.msra.mxu0 %v2286
        %3079 = vmatprep.subr.bf16.mxu0 %v2295
        %3080 = vmatpush1.bf16.msra.mxu0 %v2294
        %3081 = vmatprep.subr.bf16.mxu0 %v2303
        %3082 = vmatpush1.bf16.msra.mxu0 %v2302
        %3083 = vmatprep.subr.bf16.mxu0 %v2311
        %3084 = vmatpush1.bf16.msra.mxu0 %v2310
        %3085 = vmatprep.subr.bf16.mxu0 %v2319
        %3086 = vmatpush1.bf16.msra.mxu0 %v2318
        %3087 = vmatprep.subr.bf16.mxu0 %v2327
        %3088 = vmatpush1.bf16.msra.mxu0 %v2326
        %3089 = vmatprep.subr.bf16.mxu0 %v2335
        %3090 = vmatpush1.bf16.msra.mxu0 %v2334
        %3091 = vmatprep.subr.bf16.mxu0 %v2343
        %3092 = vmatpush1.bf16.msra.mxu0 %v2342
        %3093 = vmatprep.subr.bf16.mxu0 %v2351
        %3094 = vmatpush1.bf16.msra.mxu0 %v2350
        %3095 = vmatprep.mubr.bf16.mxu0 %v509
        %3096 = vmatmul.mubr.bf16.gmra.mrb[0].mxu0 %v508
        %v3097 = vpop.f32.mrb[0].mxu0
        %v3098 = vadd.f32 %v1017, %v3097
        %v3099 = vpop.f32.mrb[0].mxu0
        %v3100 = vadd.f32 %v1021, %v3099
        %v3101 = vpop.f32.mrb[0].mxu0
        %v3102 = vadd.f32 %v1017, %v3101
        %v3103 = vpop.f32.mrb[0].mxu0
        %v3104 = vadd.f32 %v1021, %v3103
        %3105 = vmatprep.mubr.bf16.mxu0 %v516
        %3106 = vmatmul.mubr.bf16.gmra.mrb[0].mxu0 %v515
        %v3107 = vpop.f32.mrb[0].mxu0
        %v3108 = vadd.f32 %v1017, %v3107
        %v3109 = vpop.f32.mrb[0].mxu0
        %v3110 = vadd.f32 %v1021, %v3109
        %v3111 = vpop.f32.mrb[0].mxu0
        %v3112 = vadd.f32 %v1017, %v3111
        %v3113 = vpop.f32.mrb[0].mxu0
        %v3114 = vadd.f32 %v1021, %v3113
        %3115 = vmatprep.mubr.bf16.mxu0 %v523
        %3116 = vmatmul.mubr.bf16.gmra.mrb[0].mxu0 %v522
        %v3117 = vpop.f32.mrb[0].mxu0
        %v3118 = vadd.f32 %v1017, %v3117
        %v3119 = vpop.f32.mrb[0].mxu0
        %v3120 = vadd.f32 %v1021, %v3119
        %v3121 = vpop.f32.mrb[0].mxu0
        %v3122 = vadd.f32 %v1017, %v3121
        %v3123 = vpop.f32.mrb[0].mxu0
        %v3124 = vadd.f32 %v1021, %v3123
        %3125 = vmatprep.mubr.bf16.mxu0 %v530
        %3126 = vmatmul.mubr.bf16.gmra.mrb[0].mxu0 %v529
        %v3127 = vpop.f32.mrb[0].mxu0
        %v3128 = vadd.f32 %v1017, %v3127
        %v3129 = vpop.f32.mrb[0].mxu0
        %v3130 = vadd.f32 %v1021, %v3129
        %v3131 = vpop.f32.mrb[0].mxu0
        %v3132 = vadd.f32 %v1017, %v3131
        %v3133 = vpop.f32.mrb[0].mxu0
        %v3134 = vadd.f32 %v1021, %v3133
        %3135 = vmatprep.mubr.bf16.mxu0 %v537
        %3136 = vmatmul.mubr.bf16.gmra.mrb[0].mxu0 %v536
        %v3137 = vpop.f32.mrb[0].mxu0
        %v3138 = vadd.f32 %v1017, %v3137
        %v3139 = vpop.f32.mrb[0].mxu0
        %v3140 = vadd.f32 %v1021, %v3139
        %v3141 = vpop.f32.mrb[0].mxu0
        %v3142 = vadd.f32 %v1017, %v3141
        %v3143 = vpop.f32.mrb[0].mxu0
        %v3144 = vadd.f32 %v1021, %v3143
        %3145 = vmatprep.mubr.bf16.mxu0 %v544
        %3146 = vmatmul.mubr.bf16.gmra.mrb[0].mxu0 %v543
        %v3147 = vpop.f32.mrb[0].mxu0
        %v3148 = vadd.f32 %v1017, %v3147
        %v3149 = vpop.f32.mrb[0].mxu0
        %v3150 = vadd.f32 %v1021, %v3149
        %v3151 = vpop.f32.mrb[0].mxu0
        %v3152 = vadd.f32 %v1017, %v3151
        %v3153 = vpop.f32.mrb[0].mxu0
        %v3154 = vadd.f32 %v1021, %v3153
        %3155 = vmatprep.mubr.bf16.mxu0 %v551
        %3156 = vmatmul.mubr.bf16.gmra.mrb[0].mxu0 %v550
        %v3157 = vpop.f32.mrb[0].mxu0
        %v3158 = vadd.f32 %v1017, %v3157
        %v3159 = vpop.f32.mrb[0].mxu0
        %v3160 = vadd.f32 %v1021, %v3159
        %v3161 = vpop.f32.mrb[0].mxu0
        %v3162 = vadd.f32 %v1017, %v3161
        %v3163 = vpop.f32.mrb[0].mxu0
        %v3164 = vadd.f32 %v1021, %v3163
        %3165 = vmatprep.mubr.bf16.mxu0 %v558
        %3166 = vmatmul.mubr.bf16.gmra.mrb[0].mxu0 %v557
        %v3167 = vpop.f32.mrb[0].mxu0
        %v3168 = vadd.f32 %v1017, %v3167
        %v3169 = vpop.f32.mrb[0].mxu0
        %v3170 = vadd.f32 %v1021, %v3169
        %v3171 = vpop.f32.mrb[0].mxu0
        %v3172 = vadd.f32 %v1017, %v3171
        %v3173 = vpop.f32.mrb[0].mxu0
        %v3174 = vadd.f32 %v1021, %v3173
        %3175 = vmatprep.mubr.bf16.mxu0 %v565
        %3176 = vmatmul.mubr.bf16.gmra.mrb[0].mxu0 %v564
        %v3177 = vpop.f32.mrb[0].mxu0
        %v3178 = vadd.f32 %v1017, %v3177
        %v3179 = vpop.f32.mrb[0].mxu0
        %v3180 = vadd.f32 %v1021, %v3179
        %v3181 = vpop.f32.mrb[0].mxu0
        %v3182 = vadd.f32 %v1017, %v3181
        %v3183 = vpop.f32.mrb[0].mxu0
        %v3184 = vadd.f32 %v1021, %v3183
        %3185 = vmatprep.mubr.bf16.mxu0 %v572
        %3186 = vmatmul.mubr.bf16.gmra.mrb[0].mxu0 %v571
        %v3187 = vpop.f32.mrb[0].mxu0
        %v3188 = vadd.f32 %v1017, %v3187
        %v3189 = vpop.f32.mrb[0].mxu0
        %v3190 = vadd.f32 %v1021, %v3189
        %v3191 = vpop.f32.mrb[0].mxu0
        %v3192 = vadd.f32 %v1017, %v3191
        %v3193 = vpop.f32.mrb[0].mxu0
        %v3194 = vadd.f32 %v1021, %v3193
        %3195 = vmatprep.mubr.bf16.mxu0 %v579
        %3196 = vmatmul.mubr.bf16.gmra.mrb[0].mxu0 %v578
        %v3197 = vpop.f32.mrb[0].mxu0
        %v3198 = vadd.f32 %v1017, %v3197
        %v3199 = vpop.f32.mrb[0].mxu0
        %v3200 = vadd.f32 %v1021, %v3199
        %v3201 = vpop.f32.mrb[0].mxu0
        %v3202 = vadd.f32 %v1017, %v3201
        %v3203 = vpop.f32.mrb[0].mxu0
        %v3204 = vadd.f32 %v1021, %v3203
        %3205 = vmatprep.mubr.bf16.mxu0 %v586
        %3206 = vmatmul.mubr.bf16.gmra.mrb[0].mxu0 %v585
        %v3207 = vpop.f32.mrb[0].mxu0
        %v3208 = vadd.f32 %v1017, %v3207
        %v3209 = vpop.f32.mrb[0].mxu0
        %v3210 = vadd.f32 %v1021, %v3209
        %v3211 = vpop.f32.mrb[0].mxu0
        %v3212 = vadd.f32 %v1017, %v3211
        %v3213 = vpop.f32.mrb[0].mxu0
        %v3214 = vadd.f32 %v1021, %v3213
        %3215 = vmatprep.mubr.bf16.mxu0 %v593
        %3216 = vmatmul.mubr.bf16.gmra.mrb[0].mxu0 %v592
        %v3217 = vpop.f32.mrb[0].mxu0
        %v3218 = vadd.f32 %v1017, %v3217
        %v3219 = vpop.f32.mrb[0].mxu0
        %v3220 = vadd.f32 %v1021, %v3219
        %v3221 = vpop.f32.mrb[0].mxu0
        %v3222 = vadd.f32 %v1017, %v3221
        %v3223 = vpop.f32.mrb[0].mxu0
        %v3224 = vadd.f32 %v1021, %v3223
        %3225 = vmatprep.mubr.bf16.mxu0 %v600
        %3226 = vmatmul.mubr.bf16.gmra.mrb[0].mxu0 %v599
        %v3227 = vpop.f32.mrb[0].mxu0
        %v3228 = vadd.f32 %v1017, %v3227
        %v3229 = vpop.f32.mrb[0].mxu0
        %v3230 = vadd.f32 %v1021, %v3229
        %v3231 = vpop.f32.mrb[0].mxu0
        %v3232 = vadd.f32 %v1017, %v3231
        %v3233 = vpop.f32.mrb[0].mxu0
        %v3234 = vadd.f32 %v1021, %v3233
        %3235 = vmatprep.mubr.bf16.mxu0 %v607
        %3236 = vmatmul.mubr.bf16.gmra.mrb[0].mxu0 %v606
        %v3237 = vpop.f32.mrb[0].mxu0
        %v3238 = vadd.f32 %v1017, %v3237
        %v3239 = vpop.f32.mrb[0].mxu0
        %v3240 = vadd.f32 %v1021, %v3239
        %v3241 = vpop.f32.mrb[0].mxu0
        %v3242 = vadd.f32 %v1017, %v3241
        %v3243 = vpop.f32.mrb[0].mxu0
        %v3244 = vadd.f32 %v1021, %v3243
        %3245 = vmatprep.mubr.bf16.mxu0 %v614
        %3246 = vmatmul.mubr.bf16.gmra.mrb[0].mxu0 %v613
        %v3247 = vpop.f32.mrb[0].mxu0
        %v3248 = vadd.f32 %v1017, %v3247
        %v3249 = vpop.f32.mrb[0].mxu0
        %v3250 = vadd.f32 %v1021, %v3249
        %v3251 = vpop.f32.mrb[0].mxu0
        %v3252 = vadd.f32 %v1017, %v3251
        %v3253 = vpop.f32.mrb[0].mxu0
        %v3254 = vadd.f32 %v1021, %v3253
        %3255 = vdwg.mxu0
        %3256 = vmatprep.subr.bf16.mxu0 %v2359
        %3257 = vmatpush1.bf16.msra.mxu0 %v2358
        %3258 = vmatprep.subr.bf16.mxu0 %v2367
        %3259 = vmatpush1.bf16.msra.mxu0 %v2366
        %3260 = vmatprep.subr.bf16.mxu0 %v2375
        %3261 = vmatpush1.bf16.msra.mxu0 %v2374
        %3262 = vmatprep.subr.bf16.mxu0 %v2383
        %3263 = vmatpush1.bf16.msra.mxu0 %v2382
        %3264 = vmatprep.subr.bf16.mxu0 %v2391
        %3265 = vmatpush1.bf16.msra.mxu0 %v2390
        %3266 = vmatprep.subr.bf16.mxu0 %v2399
        %3267 = vmatpush1.bf16.msra.mxu0 %v2398
        %3268 = vmatprep.subr.bf16.mxu0 %v2407
        %3269 = vmatpush1.bf16.msra.mxu0 %v2406
        %3270 = vmatprep.subr.bf16.mxu0 %v2415
        %3271 = vmatpush1.bf16.msra.mxu0 %v2414
        %3272 = vmatprep.subr.bf16.mxu0 %v2423
        %3273 = vmatpush1.bf16.msra.mxu0 %v2422
        %3274 = vmatprep.subr.bf16.mxu0 %v2431
        %3275 = vmatpush1.bf16.msra.mxu0 %v2430
        %3276 = vmatprep.subr.bf16.mxu0 %v2439
        %3277 = vmatpush1.bf16.msra.mxu0 %v2438
        %3278 = vmatprep.subr.bf16.mxu0 %v2447
        %3279 = vmatpush1.bf16.msra.mxu0 %v2446
        %3280 = vmatprep.subr.bf16.mxu0 %v2455
        %3281 = vmatpush1.bf16.msra.mxu0 %v2454
        %3282 = vmatprep.subr.bf16.mxu0 %v2463
        %3283 = vmatpush1.bf16.msra.mxu0 %v2462
        %3284 = vmatprep.subr.bf16.mxu0 %v2471
        %3285 = vmatpush1.bf16.msra.mxu0 %v2470
        %3286 = vmatprep.subr.bf16.mxu0 %v2479
        %3287 = vmatpush1.bf16.msra.mxu0 %v2478
        %3288 = vmatprep.mubr.bf16.mxu0 %v511
        %3289 = vmatmul.mubr.bf16.gmra.mrb[0].mxu0 %v510
        %v3290 = vpop.f32.mrb[0].mxu0
        %v3291 = vadd.f32 %v3098, %v3290
        %v3292 = vpop.f32.mrb[0].mxu0
        %v3293 = vadd.f32 %v3100, %v3292
        %v3294 = vpop.f32.mrb[0].mxu0
        %v3295 = vadd.f32 %v3102, %v3294
        %v3296 = vpop.f32.mrb[0].mxu0
        %v3297 = vadd.f32 %v3104, %v3296
        %3298 = vmatprep.mubr.bf16.mxu0 %v518
        %3299 = vmatmul.mubr.bf16.gmra.mrb[0].mxu0 %v517
        %v3300 = vpop.f32.mrb[0].mxu0
        %v3301 = vadd.f32 %v3108, %v3300
        %v3302 = vpop.f32.mrb[0].mxu0
        %v3303 = vadd.f32 %v3110, %v3302
        %v3304 = vpop.f32.mrb[0].mxu0
        %v3305 = vadd.f32 %v3112, %v3304
        %v3306 = vpop.f32.mrb[0].mxu0
        %v3307 = vadd.f32 %v3114, %v3306
        %3308 = vmatprep.mubr.bf16.mxu0 %v525
        %3309 = vmatmul.mubr.bf16.gmra.mrb[0].mxu0 %v524
        %v3310 = vpop.f32.mrb[0].mxu0
        %v3311 = vadd.f32 %v3118, %v3310
        %v3312 = vpop.f32.mrb[0].mxu0
        %v3313 = vadd.f32 %v3120, %v3312
        %v3314 = vpop.f32.mrb[0].mxu0
        %v3315 = vadd.f32 %v3122, %v3314
        %v3316 = vpop.f32.mrb[0].mxu0
        %v3317 = vadd.f32 %v3124, %v3316
        %3318 = vmatprep.mubr.bf16.mxu0 %v532
        %3319 = vmatmul.mubr.bf16.gmra.mrb[0].mxu0 %v531
        %v3320 = vpop.f32.mrb[0].mxu0
        %v3321 = vadd.f32 %v3128, %v3320
        %v3322 = vpop.f32.mrb[0].mxu0
        %v3323 = vadd.f32 %v3130, %v3322
        %v3324 = vpop.f32.mrb[0].mxu0
        %v3325 = vadd.f32 %v3132, %v3324
        %v3326 = vpop.f32.mrb[0].mxu0
        %v3327 = vadd.f32 %v3134, %v3326
        %3328 = vmatprep.mubr.bf16.mxu0 %v539
        %3329 = vmatmul.mubr.bf16.gmra.mrb[0].mxu0 %v538
        %v3330 = vpop.f32.mrb[0].mxu0
        %v3331 = vadd.f32 %v3138, %v3330
        %v3332 = vpop.f32.mrb[0].mxu0
        %v3333 = vadd.f32 %v3140, %v3332
        %v3334 = vpop.f32.mrb[0].mxu0
        %v3335 = vadd.f32 %v3142, %v3334
        %v3336 = vpop.f32.mrb[0].mxu0
        %v3337 = vadd.f32 %v3144, %v3336
        %3338 = vmatprep.mubr.bf16.mxu0 %v546
        %3339 = vmatmul.mubr.bf16.gmra.mrb[0].mxu0 %v545
        %v3340 = vpop.f32.mrb[0].mxu0
        %v3341 = vadd.f32 %v3148, %v3340
        %v3342 = vpop.f32.mrb[0].mxu0
        %v3343 = vadd.f32 %v3150, %v3342
        %v3344 = vpop.f32.mrb[0].mxu0
        %v3345 = vadd.f32 %v3152, %v3344
        %v3346 = vpop.f32.mrb[0].mxu0
        %v3347 = vadd.f32 %v3154, %v3346
        %3348 = vmatprep.mubr.bf16.mxu0 %v553
        %3349 = vmatmul.mubr.bf16.gmra.mrb[0].mxu0 %v552
        %v3350 = vpop.f32.mrb[0].mxu0
        %v3351 = vadd.f32 %v3158, %v3350
        %v3352 = vpop.f32.mrb[0].mxu0
        %v3353 = vadd.f32 %v3160, %v3352
        %v3354 = vpop.f32.mrb[0].mxu0
        %v3355 = vadd.f32 %v3162, %v3354
        %v3356 = vpop.f32.mrb[0].mxu0
        %v3357 = vadd.f32 %v3164, %v3356
        %3358 = vmatprep.mubr.bf16.mxu0 %v560
        %3359 = vmatmul.mubr.bf16.gmra.mrb[0].mxu0 %v559
        %v3360 = vpop.f32.mrb[0].mxu0
        %v3361 = vadd.f32 %v3168, %v3360
        %v3362 = vpop.f32.mrb[0].mxu0
        %v3363 = vadd.f32 %v3170, %v3362
        %v3364 = vpop.f32.mrb[0].mxu0
        %v3365 = vadd.f32 %v3172, %v3364
        %v3366 = vpop.f32.mrb[0].mxu0
        %v3367 = vadd.f32 %v3174, %v3366
        %3368 = vmatprep.mubr.bf16.mxu0 %v567
        %3369 = vmatmul.mubr.bf16.gmra.mrb[0].mxu0 %v566
        %v3370 = vpop.f32.mrb[0].mxu0
        %v3371 = vadd.f32 %v3178, %v3370
        %v3372 = vpop.f32.mrb[0].mxu0
        %v3373 = vadd.f32 %v3180, %v3372
        %v3374 = vpop.f32.mrb[0].mxu0
        %v3375 = vadd.f32 %v3182, %v3374
        %v3376 = vpop.f32.mrb[0].mxu0
        %v3377 = vadd.f32 %v3184, %v3376
        %3378 = vmatprep.mubr.bf16.mxu0 %v574
        %3379 = vmatmul.mubr.bf16.gmra.mrb[0].mxu0 %v573
        %v3380 = vpop.f32.mrb[0].mxu0
        %v3381 = vadd.f32 %v3188, %v3380
        %v3382 = vpop.f32.mrb[0].mxu0
        %v3383 = vadd.f32 %v3190, %v3382
        %v3384 = vpop.f32.mrb[0].mxu0
        %v3385 = vadd.f32 %v3192, %v3384
        %v3386 = vpop.f32.mrb[0].mxu0
        %v3387 = vadd.f32 %v3194, %v3386
        %3388 = vmatprep.mubr.bf16.mxu0 %v581
        %3389 = vmatmul.mubr.bf16.gmra.mrb[0].mxu0 %v580
        %v3390 = vpop.f32.mrb[0].mxu0
        %v3391 = vadd.f32 %v3198, %v3390
        %v3392 = vpop.f32.mrb[0].mxu0
        %v3393 = vadd.f32 %v3200, %v3392
        %v3394 = vpop.f32.mrb[0].mxu0
        %v3395 = vadd.f32 %v3202, %v3394
        %v3396 = vpop.f32.mrb[0].mxu0
        %v3397 = vadd.f32 %v3204, %v3396
        %3398 = vmatprep.mubr.bf16.mxu0 %v588
        %3399 = vmatmul.mubr.bf16.gmra.mrb[0].mxu0 %v587
        %v3400 = vpop.f32.mrb[0].mxu0
        %v3401 = vadd.f32 %v3208, %v3400
        %v3402 = vpop.f32.mrb[0].mxu0
        %v3403 = vadd.f32 %v3210, %v3402
        %v3404 = vpop.f32.mrb[0].mxu0
        %v3405 = vadd.f32 %v3212, %v3404
        %v3406 = vpop.f32.mrb[0].mxu0
        %v3407 = vadd.f32 %v3214, %v3406
        %3408 = vmatprep.mubr.bf16.mxu0 %v595
        %3409 = vmatmul.mubr.bf16.gmra.mrb[0].mxu0 %v594
        %v3410 = vpop.f32.mrb[0].mxu0
        %v3411 = vadd.f32 %v3218, %v3410
        %v3412 = vpop.f32.mrb[0].mxu0
        %v3413 = vadd.f32 %v3220, %v3412
        %v3414 = vpop.f32.mrb[0].mxu0
        %v3415 = vadd.f32 %v3222, %v3414
        %v3416 = vpop.f32.mrb[0].mxu0
        %v3417 = vadd.f32 %v3224, %v3416
        %3418 = vmatprep.mubr.bf16.mxu0 %v602
        %3419 = vmatmul.mubr.bf16.gmra.mrb[0].mxu0 %v601
        %v3420 = vpop.f32.mrb[0].mxu0
        %v3421 = vadd.f32 %v3228, %v3420
        %v3422 = vpop.f32.mrb[0].mxu0
        %v3423 = vadd.f32 %v3230, %v3422
        %v3424 = vpop.f32.mrb[0].mxu0
        %v3425 = vadd.f32 %v3232, %v3424
        %v3426 = vpop.f32.mrb[0].mxu0
        %v3427 = vadd.f32 %v3234, %v3426
        %3428 = vmatprep.mubr.bf16.mxu0 %v609
        %3429 = vmatmul.mubr.bf16.gmra.mrb[0].mxu0 %v608
        %v3430 = vpop.f32.mrb[0].mxu0
        %v3431 = vadd.f32 %v3238, %v3430
        %v3432 = vpop.f32.mrb[0].mxu0
        %v3433 = vadd.f32 %v3240, %v3432
        %v3434 = vpop.f32.mrb[0].mxu0
        %v3435 = vadd.f32 %v3242, %v3434
        %v3436 = vpop.f32.mrb[0].mxu0
        %v3437 = vadd.f32 %v3244, %v3436
        %3438 = vmatprep.mubr.bf16.mxu0 %v616
        %3439 = vmatmul.mubr.bf16.gmra.mrb[0].mxu0 %v615
        %v3440 = vpop.f32.mrb[0].mxu0
        %v3441 = vadd.f32 %v3248, %v3440
        %v3442 = vpop.f32.mrb[0].mxu0
        %v3443 = vadd.f32 %v3250, %v3442
        %v3444 = vpop.f32.mrb[0].mxu0
        %v3445 = vadd.f32 %v3252, %v3444
        %v3446 = vpop.f32.mrb[0].mxu0
        %v3447 = vadd.f32 %v3254, %v3446
        %3448 = vdwg.mxu0
        %3449 = vmatprep.subr.bf16.mxu0 %v2487
        %3450 = vmatpush1.bf16.msra.mxu0 %v2486
        %3451 = vmatprep.subr.bf16.mxu0 %v2495
        %3452 = vmatpush1.bf16.msra.mxu0 %v2494
        %3453 = vmatprep.subr.bf16.mxu0 %v2503
        %3454 = vmatpush1.bf16.msra.mxu0 %v2502
        %3455 = vmatprep.subr.bf16.mxu0 %v2511
        %3456 = vmatpush1.bf16.msra.mxu0 %v2510
        %3457 = vmatprep.subr.bf16.mxu0 %v2519
        %3458 = vmatpush1.bf16.msra.mxu0 %v2518
        %3459 = vmatprep.subr.bf16.mxu0 %v2527
        %3460 = vmatpush1.bf16.msra.mxu0 %v2526
        %3461 = vmatprep.subr.bf16.mxu0 %v2535
        %3462 = vmatpush1.bf16.msra.mxu0 %v2534
        %3463 = vmatprep.subr.bf16.mxu0 %v2543
        %3464 = vmatpush1.bf16.msra.mxu0 %v2542
        %3465 = vmatprep.subr.bf16.mxu0 %v2551
        %3466 = vmatpush1.bf16.msra.mxu0 %v2550
        %3467 = vmatprep.subr.bf16.mxu0 %v2559
        %3468 = vmatpush1.bf16.msra.mxu0 %v2558
        %3469 = vmatprep.subr.bf16.mxu0 %v2567
        %3470 = vmatpush1.bf16.msra.mxu0 %v2566
        %3471 = vmatprep.subr.bf16.mxu0 %v2575
        %3472 = vmatpush1.bf16.msra.mxu0 %v2574
        %3473 = vmatprep.subr.bf16.mxu0 %v2583
        %3474 = vmatpush1.bf16.msra.mxu0 %v2582
        %3475 = vmatprep.subr.bf16.mxu0 %v2591
        %3476 = vmatpush1.bf16.msra.mxu0 %v2590
        %3477 = vmatprep.subr.bf16.mxu0 %v2599
        %3478 = vmatpush1.bf16.msra.mxu0 %v2598
        %3479 = vmatprep.subr.bf16.mxu0 %v2607
        %3480 = vmatpush1.bf16.msra.mxu0 %v2606
        %3481 = vmatprep.mubr.bf16.mxu0 %v513
        %3482 = vmatmul.mubr.bf16.gmra.mrb[0].mxu0 %v512
        %v3483 = vpop.f32.mrb[0].mxu0
        %v3484 = vadd.f32 %v3291, %v3483
        %v3485 = vpop.f32.mrb[0].mxu0
        %v3486 = vadd.f32 %v3293, %v3485
        %v3487 = vpop.f32.mrb[0].mxu0
        %v3488 = vadd.f32 %v3295, %v3487
        %v3489 = vpop.f32.mrb[0].mxu0
        %v3490 = vadd.f32 %v3297, %v3489
        %3491 = vmatprep.mubr.bf16.mxu0 %v520
        %3492 = vmatmul.mubr.bf16.gmra.mrb[0].mxu0 %v519
        %v3493 = vpop.f32.mrb[0].mxu0
        %v3494 = vadd.f32 %v3301, %v3493
        %v3495 = vpop.f32.mrb[0].mxu0
        %v3496 = vadd.f32 %v3303, %v3495
        %v3497 = vpop.f32.mrb[0].mxu0
        %v3498 = vadd.f32 %v3305, %v3497
        %v3499 = vpop.f32.mrb[0].mxu0
        %v3500 = vadd.f32 %v3307, %v3499
        %3501 = vmatprep.mubr.bf16.mxu0 %v527
        %3502 = vmatmul.mubr.bf16.gmra.mrb[0].mxu0 %v526
        %v3503 = vpop.f32.mrb[0].mxu0
        %v3504 = vadd.f32 %v3311, %v3503
        %v3505 = vpop.f32.mrb[0].mxu0
        %v3506 = vadd.f32 %v3313, %v3505
        %v3507 = vpop.f32.mrb[0].mxu0
        %v3508 = vadd.f32 %v3315, %v3507
        %v3509 = vpop.f32.mrb[0].mxu0
        %v3510 = vadd.f32 %v3317, %v3509
        %3511 = vmatprep.mubr.bf16.mxu0 %v534
        %3512 = vmatmul.mubr.bf16.gmra.mrb[0].mxu0 %v533
        %v3513 = vpop.f32.mrb[0].mxu0
        %v3514 = vadd.f32 %v3321, %v3513
        %v3515 = vpop.f32.mrb[0].mxu0
        %v3516 = vadd.f32 %v3323, %v3515
        %v3517 = vpop.f32.mrb[0].mxu0
        %v3518 = vadd.f32 %v3325, %v3517
        %v3519 = vpop.f32.mrb[0].mxu0
        %v3520 = vadd.f32 %v3327, %v3519
        %3521 = vmatprep.mubr.bf16.mxu0 %v541
        %3522 = vmatmul.mubr.bf16.gmra.mrb[0].mxu0 %v540
        %v3523 = vpop.f32.mrb[0].mxu0
        %v3524 = vadd.f32 %v3331, %v3523
        %v3525 = vpop.f32.mrb[0].mxu0
        %v3526 = vadd.f32 %v3333, %v3525
        %v3527 = vpop.f32.mrb[0].mxu0
        %v3528 = vadd.f32 %v3335, %v3527
        %v3529 = vpop.f32.mrb[0].mxu0
        %v3530 = vadd.f32 %v3337, %v3529
        %3531 = vmatprep.mubr.bf16.mxu0 %v548
        %3532 = vmatmul.mubr.bf16.gmra.mrb[0].mxu0 %v547
        %v3533 = vpop.f32.mrb[0].mxu0
        %v3534 = vadd.f32 %v3341, %v3533
        %v3535 = vpop.f32.mrb[0].mxu0
        %v3536 = vadd.f32 %v3343, %v3535
        %v3537 = vpop.f32.mrb[0].mxu0
        %v3538 = vadd.f32 %v3345, %v3537
        %v3539 = vpop.f32.mrb[0].mxu0
        %v3540 = vadd.f32 %v3347, %v3539
        %3541 = vmatprep.mubr.bf16.mxu0 %v555
        %3542 = vmatmul.mubr.bf16.gmra.mrb[0].mxu0 %v554
        %v3543 = vpop.f32.mrb[0].mxu0
        %v3544 = vadd.f32 %v3351, %v3543
        %v3545 = vpop.f32.mrb[0].mxu0
        %v3546 = vadd.f32 %v3353, %v3545
        %v3547 = vpop.f32.mrb[0].mxu0
        %v3548 = vadd.f32 %v3355, %v3547
        %v3549 = vpop.f32.mrb[0].mxu0
        %v3550 = vadd.f32 %v3357, %v3549
        %3551 = vmatprep.mubr.bf16.mxu0 %v562
        %3552 = vmatmul.mubr.bf16.gmra.mrb[0].mxu0 %v561
        %v3553 = vpop.f32.mrb[0].mxu0
        %v3554 = vadd.f32 %v3361, %v3553
        %v3555 = vpop.f32.mrb[0].mxu0
        %v3556 = vadd.f32 %v3363, %v3555
        %v3557 = vpop.f32.mrb[0].mxu0
        %v3558 = vadd.f32 %v3365, %v3557
        %v3559 = vpop.f32.mrb[0].mxu0
        %v3560 = vadd.f32 %v3367, %v3559
        %3561 = vmatprep.mubr.bf16.mxu0 %v569
        %3562 = vmatmul.mubr.bf16.gmra.mrb[0].mxu0 %v568
        %v3563 = vpop.f32.mrb[0].mxu0
        %v3564 = vadd.f32 %v3371, %v3563
        %v3565 = vpop.f32.mrb[0].mxu0
        %v3566 = vadd.f32 %v3373, %v3565
        %v3567 = vpop.f32.mrb[0].mxu0
        %v3568 = vadd.f32 %v3375, %v3567
        %v3569 = vpop.f32.mrb[0].mxu0
        %v3570 = vadd.f32 %v3377, %v3569
        %3571 = vmatprep.mubr.bf16.mxu0 %v576
        %3572 = vmatmul.mubr.bf16.gmra.mrb[0].mxu0 %v575
        %v3573 = vpop.f32.mrb[0].mxu0
        %v3574 = vadd.f32 %v3381, %v3573
        %v3575 = vpop.f32.mrb[0].mxu0
        %v3576 = vadd.f32 %v3383, %v3575
        %v3577 = vpop.f32.mrb[0].mxu0
        %v3578 = vadd.f32 %v3385, %v3577
        %v3579 = vpop.f32.mrb[0].mxu0
        %v3580 = vadd.f32 %v3387, %v3579
        %3581 = vmatprep.mubr.bf16.mxu0 %v583
        %3582 = vmatmul.mubr.bf16.gmra.mrb[0].mxu0 %v582
        %v3583 = vpop.f32.mrb[0].mxu0
        %v3584 = vadd.f32 %v3391, %v3583
        %v3585 = vpop.f32.mrb[0].mxu0
        %v3586 = vadd.f32 %v3393, %v3585
        %v3587 = vpop.f32.mrb[0].mxu0
        %v3588 = vadd.f32 %v3395, %v3587
        %v3589 = vpop.f32.mrb[0].mxu0
        %v3590 = vadd.f32 %v3397, %v3589
        %3591 = vmatprep.mubr.bf16.mxu0 %v590
        %3592 = vmatmul.mubr.bf16.gmra.mrb[0].mxu0 %v589
        %v3593 = vpop.f32.mrb[0].mxu0
        %v3594 = vadd.f32 %v3401, %v3593
        %v3595 = vpop.f32.mrb[0].mxu0
        %v3596 = vadd.f32 %v3403, %v3595
        %v3597 = vpop.f32.mrb[0].mxu0
        %v3598 = vadd.f32 %v3405, %v3597
        %v3599 = vpop.f32.mrb[0].mxu0
        %v3600 = vadd.f32 %v3407, %v3599
        %3601 = vmatprep.mubr.bf16.mxu0 %v597
        %3602 = vmatmul.mubr.bf16.gmra.mrb[0].mxu0 %v596
        %v3603 = vpop.f32.mrb[0].mxu0
        %v3604 = vadd.f32 %v3411, %v3603
        %v3605 = vpop.f32.mrb[0].mxu0
        %v3606 = vadd.f32 %v3413, %v3605
        %v3607 = vpop.f32.mrb[0].mxu0
        %v3608 = vadd.f32 %v3415, %v3607
        %v3609 = vpop.f32.mrb[0].mxu0
        %v3610 = vadd.f32 %v3417, %v3609
        %3611 = vmatprep.mubr.bf16.mxu0 %v604
        %3612 = vmatmul.mubr.bf16.gmra.mrb[0].mxu0 %v603
        %v3613 = vpop.f32.mrb[0].mxu0
        %v3614 = vadd.f32 %v3421, %v3613
        %v3615 = vpop.f32.mrb[0].mxu0
        %v3616 = vadd.f32 %v3423, %v3615
        %v3617 = vpop.f32.mrb[0].mxu0
        %v3618 = vadd.f32 %v3425, %v3617
        %v3619 = vpop.f32.mrb[0].mxu0
        %v3620 = vadd.f32 %v3427, %v3619
        %3621 = vmatprep.mubr.bf16.mxu0 %v611
        %3622 = vmatmul.mubr.bf16.gmra.mrb[0].mxu0 %v610
        %v3623 = vpop.f32.mrb[0].mxu0
        %v3624 = vadd.f32 %v3431, %v3623
        %v3625 = vpop.f32.mrb[0].mxu0
        %v3626 = vadd.f32 %v3433, %v3625
        %v3627 = vpop.f32.mrb[0].mxu0
        %v3628 = vadd.f32 %v3435, %v3627
        %v3629 = vpop.f32.mrb[0].mxu0
        %v3630 = vadd.f32 %v3437, %v3629
        %3631 = vmatprep.mubr.bf16.mxu0 %v618
        %3632 = vmatmul.mubr.bf16.gmra.mrb[0].mxu0 %v617
        %v3633 = vpop.f32.mrb[0].mxu0
        %v3634 = vadd.f32 %v3441, %v3633
        %v3635 = vpop.f32.mrb[0].mxu0
        %v3636 = vadd.f32 %v3443, %v3635
        %v3637 = vpop.f32.mrb[0].mxu0
        %v3638 = vadd.f32 %v3445, %v3637
        %v3639 = vpop.f32.mrb[0].mxu0
        %v3640 = vadd.f32 %v3447, %v3639
        %3641 = vdwg.mxu0
        %3642 = vmatprep.subr.bf16.mxu0 %v2615
        %3643 = vmatpush1.bf16.msra.mxu0 %v2614
        %3644 = vmatprep.subr.bf16.mxu0 0
        %3645 = vmatpush1.bf16.msra.mxu0 0
        %3646 = vmatprep.subr.bf16.mxu0 0
        %3647 = vmatpush1.bf16.msra.mxu0 0
        %3648 = vmatprep.subr.bf16.mxu0 0
        %3649 = vmatpush1.bf16.msra.mxu0 0
        %3650 = vmatprep.subr.bf16.mxu0 0
        %3651 = vmatpush1.bf16.msra.mxu0 0
        %3652 = vmatprep.subr.bf16.mxu0 0
        %3653 = vmatpush1.bf16.msra.mxu0 0
        %3654 = vmatprep.subr.bf16.mxu0 0
        %3655 = vmatpush1.bf16.msra.mxu0 0
        %3656 = vmatprep.subr.bf16.mxu0 0
        %3657 = vmatpush1.bf16.msra.mxu0 0
        %3658 = vmatprep.subr.bf16.mxu0 0
        %3659 = vmatpush1.bf16.msra.mxu0 0
        %3660 = vmatprep.subr.bf16.mxu0 0
        %3661 = vmatpush1.bf16.msra.mxu0 0
        %3662 = vmatprep.subr.bf16.mxu0 0
        %3663 = vmatpush1.bf16.msra.mxu0 0
        %3664 = vmatprep.subr.bf16.mxu0 0
        %3665 = vmatpush1.bf16.msra.mxu0 0
        %3666 = vmatprep.subr.bf16.mxu0 0
        %3667 = vmatpush1.bf16.msra.mxu0 0
        %3668 = vmatprep.subr.bf16.mxu0 0
        %3669 = vmatpush1.bf16.msra.mxu0 0
        %3670 = vmatprep.subr.bf16.mxu0 0
        %3671 = vmatpush1.bf16.msra.mxu0 0
        %3672 = vmatprep.subr.bf16.mxu0 0
        %3673 = vmatpush1.bf16.msra.mxu0 0
        %3674 = vmatprep.mubr.bf16.mxu0 0
        %3675 = vmatmul.mubr.bf16.gmra.mrb[0].mxu0 %v3016
        %v3676 = vpop.f32.mrb[0].mxu0
        %v3677 = vadd.f32 %v3484, %v3676
        %v3678 = vpop.f32.mrb[0].mxu0
        %v3679 = vadd.f32 %v3486, %v3678
        %v3680 = vpop.f32.mrb[0].mxu0
        %v3681 = vadd.f32 %v3488, %v3680
        %v3682 = vpop.f32.mrb[0].mxu0
        %v3683 = vadd.f32 %v3490, %v3682
        %3684 = vmatprep.mubr.bf16.mxu0 0
        %3685 = vmatmul.mubr.bf16.gmra.mrb[0].mxu0 %v3019
        %v3686 = vpop.f32.mrb[0].mxu0
        %v3687 = vadd.f32 %v3494, %v3686
        %v3688 = vpop.f32.mrb[0].mxu0
        %v3689 = vadd.f32 %v3496, %v3688
        %v3690 = vpop.f32.mrb[0].mxu0
        %v3691 = vadd.f32 %v3498, %v3690
        %v3692 = vpop.f32.mrb[0].mxu0
        %v3693 = vadd.f32 %v3500, %v3692
        %3694 = vmatprep.mubr.bf16.mxu0 0
        %3695 = vmatmul.mubr.bf16.gmra.mrb[0].mxu0 %v3022
        %v3696 = vpop.f32.mrb[0].mxu0
        %v3697 = vadd.f32 %v3504, %v3696
        %v3698 = vpop.f32.mrb[0].mxu0
        %v3699 = vadd.f32 %v3506, %v3698
        %v3700 = vpop.f32.mrb[0].mxu0
        %v3701 = vadd.f32 %v3508, %v3700
        %v3702 = vpop.f32.mrb[0].mxu0
        %v3703 = vadd.f32 %v3510, %v3702
        %3704 = vmatprep.mubr.bf16.mxu0 0
        %3705 = vmatmul.mubr.bf16.gmra.mrb[0].mxu0 %v3025
        %v3706 = vpop.f32.mrb[0].mxu0
        %v3707 = vadd.f32 %v3514, %v3706
        %v3708 = vpop.f32.mrb[0].mxu0
        %v3709 = vadd.f32 %v3516, %v3708
        %v3710 = vpop.f32.mrb[0].mxu0
        %v3711 = vadd.f32 %v3518, %v3710
        %v3712 = vpop.f32.mrb[0].mxu0
        %v3713 = vadd.f32 %v3520, %v3712
        %3714 = vmatprep.mubr.bf16.mxu0 0
        %3715 = vmatmul.mubr.bf16.gmra.mrb[0].mxu0 %v3028
        %v3716 = vpop.f32.mrb[0].mxu0
        %v3717 = vadd.f32 %v3524, %v3716
        %v3718 = vpop.f32.mrb[0].mxu0
        %v3719 = vadd.f32 %v3526, %v3718
        %v3720 = vpop.f32.mrb[0].mxu0
        %v3721 = vadd.f32 %v3528, %v3720
        %v3722 = vpop.f32.mrb[0].mxu0
        %v3723 = vadd.f32 %v3530, %v3722
        %3724 = vmatprep.mubr.bf16.mxu0 0
        %3725 = vmatmul.mubr.bf16.gmra.mrb[0].mxu0 %v3031
        %v3726 = vpop.f32.mrb[0].mxu0
        %v3727 = vadd.f32 %v3534, %v3726
        %v3728 = vpop.f32.mrb[0].mxu0
        %v3729 = vadd.f32 %v3536, %v3728
        %v3730 = vpop.f32.mrb[0].mxu0
        %v3731 = vadd.f32 %v3538, %v3730
        %v3732 = vpop.f32.mrb[0].mxu0
        %v3733 = vadd.f32 %v3540, %v3732
        %3734 = vmatprep.mubr.bf16.mxu0 0
        %3735 = vmatmul.mubr.bf16.gmra.mrb[0].mxu0 %v3034
        %v3736 = vpop.f32.mrb[0].mxu0
        %v3737 = vadd.f32 %v3544, %v3736
        %v3738 = vpop.f32.mrb[0].mxu0
        %v3739 = vadd.f32 %v3546, %v3738
        %v3740 = vpop.f32.mrb[0].mxu0
        %v3741 = vadd.f32 %v3548, %v3740
        %v3742 = vpop.f32.mrb[0].mxu0
        %v3743 = vadd.f32 %v3550, %v3742
        %3744 = vmatprep.mubr.bf16.mxu0 0
        %3745 = vmatmul.mubr.bf16.gmra.mrb[0].mxu0 %v3037
        %v3746 = vpop.f32.mrb[0].mxu0
        %v3747 = vadd.f32 %v3554, %v3746
        %v3748 = vpop.f32.mrb[0].mxu0
        %v3749 = vadd.f32 %v3556, %v3748
        %v3750 = vpop.f32.mrb[0].mxu0
        %v3751 = vadd.f32 %v3558, %v3750
        %v3752 = vpop.f32.mrb[0].mxu0
        %v3753 = vadd.f32 %v3560, %v3752
        %3754 = vmatprep.mubr.bf16.mxu0 0
        %3755 = vmatmul.mubr.bf16.gmra.mrb[0].mxu0 %v3040
        %v3756 = vpop.f32.mrb[0].mxu0
        %v3757 = vadd.f32 %v3564, %v3756
        %v3758 = vpop.f32.mrb[0].mxu0
        %v3759 = vadd.f32 %v3566, %v3758
        %v3760 = vpop.f32.mrb[0].mxu0
        %v3761 = vadd.f32 %v3568, %v3760
        %v3762 = vpop.f32.mrb[0].mxu0
        %v3763 = vadd.f32 %v3570, %v3762
        %3764 = vmatprep.mubr.bf16.mxu0 0
        %3765 = vmatmul.mubr.bf16.gmra.mrb[0].mxu0 %v3043
        %v3766 = vpop.f32.mrb[0].mxu0
        %v3767 = vadd.f32 %v3574, %v3766
        %v3768 = vpop.f32.mrb[0].mxu0
        %v3769 = vadd.f32 %v3576, %v3768
        %v3770 = vpop.f32.mrb[0].mxu0
        %v3771 = vadd.f32 %v3578, %v3770
        %v3772 = vpop.f32.mrb[0].mxu0
        %v3773 = vadd.f32 %v3580, %v3772
        %3774 = vmatprep.mubr.bf16.mxu0 0
        %3775 = vmatmul.mubr.bf16.gmra.mrb[0].mxu0 %v3046
        %v3776 = vpop.f32.mrb[0].mxu0
        %v3777 = vadd.f32 %v3584, %v3776
        %v3778 = vpop.f32.mrb[0].mxu0
        %v3779 = vadd.f32 %v3586, %v3778
        %v3780 = vpop.f32.mrb[0].mxu0
        %v3781 = vadd.f32 %v3588, %v3780
        %v3782 = vpop.f32.mrb[0].mxu0
        %v3783 = vadd.f32 %v3590, %v3782
        %3784 = vmatprep.mubr.bf16.mxu0 0
        %3785 = vmatmul.mubr.bf16.gmra.mrb[0].mxu0 %v3049
        %v3786 = vpop.f32.mrb[0].mxu0
        %v3787 = vadd.f32 %v3594, %v3786
        %v3788 = vpop.f32.mrb[0].mxu0
        %v3789 = vadd.f32 %v3596, %v3788
        %v3790 = vpop.f32.mrb[0].mxu0
        %v3791 = vadd.f32 %v3598, %v3790
        %v3792 = vpop.f32.mrb[0].mxu0
        %v3793 = vadd.f32 %v3600, %v3792
        %3794 = vmatprep.mubr.bf16.mxu0 0
        %3795 = vmatmul.mubr.bf16.gmra.mrb[0].mxu0 %v3052
        %v3796 = vpop.f32.mrb[0].mxu0
        %v3797 = vadd.f32 %v3604, %v3796
        %v3798 = vpop.f32.mrb[0].mxu0
        %v3799 = vadd.f32 %v3606, %v3798
        %v3800 = vpop.f32.mrb[0].mxu0
        %v3801 = vadd.f32 %v3608, %v3800
        %v3802 = vpop.f32.mrb[0].mxu0
        %v3803 = vadd.f32 %v3610, %v3802
        %3804 = vmatprep.mubr.bf16.mxu0 0
        %3805 = vmatmul.mubr.bf16.gmra.mrb[0].mxu0 %v3055
        %v3806 = vpop.f32.mrb[0].mxu0
        %v3807 = vadd.f32 %v3614, %v3806
        %v3808 = vpop.f32.mrb[0].mxu0
        %v3809 = vadd.f32 %v3616, %v3808
        %v3810 = vpop.f32.mrb[0].mxu0
        %v3811 = vadd.f32 %v3618, %v3810
        %v3812 = vpop.f32.mrb[0].mxu0
        %v3813 = vadd.f32 %v3620, %v3812
        %3814 = vmatprep.mubr.bf16.mxu0 0
        %3815 = vmatmul.mubr.bf16.gmra.mrb[0].mxu0 %v3058
        %v3816 = vpop.f32.mrb[0].mxu0
        %v3817 = vadd.f32 %v3624, %v3816
        %v3818 = vpop.f32.mrb[0].mxu0
        %v3819 = vadd.f32 %v3626, %v3818
        %v3820 = vpop.f32.mrb[0].mxu0
        %v3821 = vadd.f32 %v3628, %v3820
        %v3822 = vpop.f32.mrb[0].mxu0
        %v3823 = vadd.f32 %v3630, %v3822
        %3824 = vmatprep.mubr.bf16.mxu0 0
        %3825 = vmatmul.mubr.bf16.gmra.mrb[0].mxu0 %v3061
        %v3826 = vpop.f32.mrb[0].mxu0
        %v3827 = vadd.f32 %v3634, %v3826
        %v3828 = vpop.f32.mrb[0].mxu0
        %v3829 = vadd.f32 %v3636, %v3828
        %v3830 = vpop.f32.mrb[0].mxu0
        %v3831 = vadd.f32 %v3638, %v3830
        %v3832 = vpop.f32.mrb[0].mxu0
        %v3833 = vadd.f32 %v3640, %v3832
        %3834 = vdwg.mxu0
        %3835 = vmatprep.subr.bf16.mxu0 %v2233
        %3836 = vmatpush1.bf16.msra.mxu0 %v2232
        %3837 = vmatprep.subr.bf16.mxu0 %v2241
        %3838 = vmatpush1.bf16.msra.mxu0 %v2240
        %3839 = vmatprep.subr.bf16.mxu0 %v2249
        %3840 = vmatpush1.bf16.msra.mxu0 %v2248
        %3841 = vmatprep.subr.bf16.mxu0 %v2257
        %3842 = vmatpush1.bf16.msra.mxu0 %v2256
        %3843 = vmatprep.subr.bf16.mxu0 %v2265
        %3844 = vmatpush1.bf16.msra.mxu0 %v2264
        %3845 = vmatprep.subr.bf16.mxu0 %v2273
        %3846 = vmatpush1.bf16.msra.mxu0 %v2272
        %3847 = vmatprep.subr.bf16.mxu0 %v2281
        %3848 = vmatpush1.bf16.msra.mxu0 %v2280
        %3849 = vmatprep.subr.bf16.mxu0 %v2289
        %3850 = vmatpush1.bf16.msra.mxu0 %v2288
        %3851 = vmatprep.subr.bf16.mxu0 %v2297
        %3852 = vmatpush1.bf16.msra.mxu0 %v2296
        %3853 = vmatprep.subr.bf16.mxu0 %v2305
        %3854 = vmatpush1.bf16.msra.mxu0 %v2304
        %3855 = vmatprep.subr.bf16.mxu0 %v2313
        %3856 = vmatpush1.bf16.msra.mxu0 %v2312
        %3857 = vmatprep.subr.bf16.mxu0 %v2321
        %3858 = vmatpush1.bf16.msra.mxu0 %v2320
        %3859 = vmatprep.subr.bf16.mxu0 %v2329
        %3860 = vmatpush1.bf16.msra.mxu0 %v2328
        %3861 = vmatprep.subr.bf16.mxu0 %v2337
        %3862 = vmatpush1.bf16.msra.mxu0 %v2336
        %3863 = vmatprep.subr.bf16.mxu0 %v2345
        %3864 = vmatpush1.bf16.msra.mxu0 %v2344
        %3865 = vmatprep.subr.bf16.mxu0 %v2353
        %3866 = vmatpush1.bf16.msra.mxu0 %v2352
        %3867 = vmatprep.mubr.bf16.mxu0 %v509
        %3868 = vmatmul.mubr.bf16.gmra.mrb[0].mxu0 %v508
        %v3869 = vpop.f32.mrb[0].mxu0
        %v3870 = vadd.f32 %v1025, %v3869
        %v3871 = vpop.f32.mrb[0].mxu0
        %v3872 = vadd.f32 %v1029, %v3871
        %v3873 = vpop.f32.mrb[0].mxu0
        %v3874 = vadd.f32 %v1025, %v3873
        %v3875 = vpop.f32.mrb[0].mxu0
        %v3876 = vadd.f32 %v1029, %v3875
        %3877 = vmatprep.mubr.bf16.mxu0 %v516
        %3878 = vmatmul.mubr.bf16.gmra.mrb[0].mxu0 %v515
        %v3879 = vpop.f32.mrb[0].mxu0
        %v3880 = vadd.f32 %v1025, %v3879
        %v3881 = vpop.f32.mrb[0].mxu0
        %v3882 = vadd.f32 %v1029, %v3881
        %v3883 = vpop.f32.mrb[0].mxu0
        %v3884 = vadd.f32 %v1025, %v3883
        %v3885 = vpop.f32.mrb[0].mxu0
        %v3886 = vadd.f32 %v1029, %v3885
        %3887 = vmatprep.mubr.bf16.mxu0 %v523
        %3888 = vmatmul.mubr.bf16.gmra.mrb[0].mxu0 %v522
        %v3889 = vpop.f32.mrb[0].mxu0
        %v3890 = vadd.f32 %v1025, %v3889
        %v3891 = vpop.f32.mrb[0].mxu0
        %v3892 = vadd.f32 %v1029, %v3891
        %v3893 = vpop.f32.mrb[0].mxu0
        %v3894 = vadd.f32 %v1025, %v3893
        %v3895 = vpop.f32.mrb[0].mxu0
        %v3896 = vadd.f32 %v1029, %v3895
        %3897 = vmatprep.mubr.bf16.mxu0 %v530
        %3898 = vmatmul.mubr.bf16.gmra.mrb[0].mxu0 %v529
        %v3899 = vpop.f32.mrb[0].mxu0
        %v3900 = vadd.f32 %v1025, %v3899
        %v3901 = vpop.f32.mrb[0].mxu0
        %v3902 = vadd.f32 %v1029, %v3901
        %v3903 = vpop.f32.mrb[0].mxu0
        %v3904 = vadd.f32 %v1025, %v3903
        %v3905 = vpop.f32.mrb[0].mxu0
        %v3906 = vadd.f32 %v1029, %v3905
        %3907 = vmatprep.mubr.bf16.mxu0 %v537
        %3908 = vmatmul.mubr.bf16.gmra.mrb[0].mxu0 %v536
        %v3909 = vpop.f32.mrb[0].mxu0
        %v3910 = vadd.f32 %v1025, %v3909
        %v3911 = vpop.f32.mrb[0].mxu0
        %v3912 = vadd.f32 %v1029, %v3911
        %v3913 = vpop.f32.mrb[0].mxu0
        %v3914 = vadd.f32 %v1025, %v3913
        %v3915 = vpop.f32.mrb[0].mxu0
        %v3916 = vadd.f32 %v1029, %v3915
        %3917 = vmatprep.mubr.bf16.mxu0 %v544
        %3918 = vmatmul.mubr.bf16.gmra.mrb[0].mxu0 %v543
        %v3919 = vpop.f32.mrb[0].mxu0
        %v3920 = vadd.f32 %v1025, %v3919
        %v3921 = vpop.f32.mrb[0].mxu0
        %v3922 = vadd.f32 %v1029, %v3921
        %v3923 = vpop.f32.mrb[0].mxu0
        %v3924 = vadd.f32 %v1025, %v3923
        %v3925 = vpop.f32.mrb[0].mxu0
        %v3926 = vadd.f32 %v1029, %v3925
        %3927 = vmatprep.mubr.bf16.mxu0 %v551
        %3928 = vmatmul.mubr.bf16.gmra.mrb[0].mxu0 %v550
        %v3929 = vpop.f32.mrb[0].mxu0
        %v3930 = vadd.f32 %v1025, %v3929
        %v3931 = vpop.f32.mrb[0].mxu0
        %v3932 = vadd.f32 %v1029, %v3931
        %v3933 = vpop.f32.mrb[0].mxu0
        %v3934 = vadd.f32 %v1025, %v3933
        %v3935 = vpop.f32.mrb[0].mxu0
        %v3936 = vadd.f32 %v1029, %v3935
        %3937 = vmatprep.mubr.bf16.mxu0 %v558
        %3938 = vmatmul.mubr.bf16.gmra.mrb[0].mxu0 %v557
        %v3939 = vpop.f32.mrb[0].mxu0
        %v3940 = vadd.f32 %v1025, %v3939
        %v3941 = vpop.f32.mrb[0].mxu0
        %v3942 = vadd.f32 %v1029, %v3941
        %v3943 = vpop.f32.mrb[0].mxu0
        %v3944 = vadd.f32 %v1025, %v3943
        %v3945 = vpop.f32.mrb[0].mxu0
        %v3946 = vadd.f32 %v1029, %v3945
        %3947 = vmatprep.mubr.bf16.mxu0 %v565
        %3948 = vmatmul.mubr.bf16.gmra.mrb[0].mxu0 %v564
        %v3949 = vpop.f32.mrb[0].mxu0
        %v3950 = vadd.f32 %v1025, %v3949
        %v3951 = vpop.f32.mrb[0].mxu0
        %v3952 = vadd.f32 %v1029, %v3951
        %v3953 = vpop.f32.mrb[0].mxu0
        %v3954 = vadd.f32 %v1025, %v3953
        %v3955 = vpop.f32.mrb[0].mxu0
        %v3956 = vadd.f32 %v1029, %v3955
        %3957 = vmatprep.mubr.bf16.mxu0 %v572
        %3958 = vmatmul.mubr.bf16.gmra.mrb[0].mxu0 %v571
        %v3959 = vpop.f32.mrb[0].mxu0
        %v3960 = vadd.f32 %v1025, %v3959
        %v3961 = vpop.f32.mrb[0].mxu0
        %v3962 = vadd.f32 %v1029, %v3961
        %v3963 = vpop.f32.mrb[0].mxu0
        %v3964 = vadd.f32 %v1025, %v3963
        %v3965 = vpop.f32.mrb[0].mxu0
        %v3966 = vadd.f32 %v1029, %v3965
        %3967 = vmatprep.mubr.bf16.mxu0 %v579
        %3968 = vmatmul.mubr.bf16.gmra.mrb[0].mxu0 %v578
        %v3969 = vpop.f32.mrb[0].mxu0
        %v3970 = vadd.f32 %v1025, %v3969
        %v3971 = vpop.f32.mrb[0].mxu0
        %v3972 = vadd.f32 %v1029, %v3971
        %v3973 = vpop.f32.mrb[0].mxu0
        %v3974 = vadd.f32 %v1025, %v3973
        %v3975 = vpop.f32.mrb[0].mxu0
        %v3976 = vadd.f32 %v1029, %v3975
        %3977 = vmatprep.mubr.bf16.mxu0 %v586
        %3978 = vmatmul.mubr.bf16.gmra.mrb[0].mxu0 %v585
        %v3979 = vpop.f32.mrb[0].mxu0
        %v3980 = vadd.f32 %v1025, %v3979
        %v3981 = vpop.f32.mrb[0].mxu0
        %v3982 = vadd.f32 %v1029, %v3981
        %v3983 = vpop.f32.mrb[0].mxu0
        %v3984 = vadd.f32 %v1025, %v3983
        %v3985 = vpop.f32.mrb[0].mxu0
        %v3986 = vadd.f32 %v1029, %v3985
        %3987 = vmatprep.mubr.bf16.mxu0 %v593
        %3988 = vmatmul.mubr.bf16.gmra.mrb[0].mxu0 %v592
        %v3989 = vpop.f32.mrb[0].mxu0
        %v3990 = vadd.f32 %v1025, %v3989
        %v3991 = vpop.f32.mrb[0].mxu0
        %v3992 = vadd.f32 %v1029, %v3991
        %v3993 = vpop.f32.mrb[0].mxu0
        %v3994 = vadd.f32 %v1025, %v3993
        %v3995 = vpop.f32.mrb[0].mxu0
        %v3996 = vadd.f32 %v1029, %v3995
        %3997 = vmatprep.mubr.bf16.mxu0 %v600
        %3998 = vmatmul.mubr.bf16.gmra.mrb[0].mxu0 %v599
        %v3999 = vpop.f32.mrb[0].mxu0
        %v4000 = vadd.f32 %v1025, %v3999
        %v4001 = vpop.f32.mrb[0].mxu0
        %v4002 = vadd.f32 %v1029, %v4001
        %v4003 = vpop.f32.mrb[0].mxu0
        %v4004 = vadd.f32 %v1025, %v4003
        %v4005 = vpop.f32.mrb[0].mxu0
        %v4006 = vadd.f32 %v1029, %v4005
        %4007 = vmatprep.mubr.bf16.mxu0 %v607
        %4008 = vmatmul.mubr.bf16.gmra.mrb[0].mxu0 %v606
        %v4009 = vpop.f32.mrb[0].mxu0
        %v4010 = vadd.f32 %v1025, %v4009
        %v4011 = vpop.f32.mrb[0].mxu0
        %v4012 = vadd.f32 %v1029, %v4011
        %v4013 = vpop.f32.mrb[0].mxu0
        %v4014 = vadd.f32 %v1025, %v4013
        %v4015 = vpop.f32.mrb[0].mxu0
        %v4016 = vadd.f32 %v1029, %v4015
        %4017 = vmatprep.mubr.bf16.mxu0 %v614
        %4018 = vmatmul.mubr.bf16.gmra.mrb[0].mxu0 %v613
        %v4019 = vpop.f32.mrb[0].mxu0
        %v4020 = vadd.f32 %v1025, %v4019
        %v4021 = vpop.f32.mrb[0].mxu0
        %v4022 = vadd.f32 %v1029, %v4021
        %v4023 = vpop.f32.mrb[0].mxu0
        %v4024 = vadd.f32 %v1025, %v4023
        %v4025 = vpop.f32.mrb[0].mxu0
        %v4026 = vadd.f32 %v1029, %v4025
        %4027 = vdwg.mxu0
        %4028 = vmatprep.subr.bf16.mxu0 %v2361
        %4029 = vmatpush1.bf16.msra.mxu0 %v2360
        %4030 = vmatprep.subr.bf16.mxu0 %v2369
        %4031 = vmatpush1.bf16.msra.mxu0 %v2368
        %4032 = vmatprep.subr.bf16.mxu0 %v2377
        %4033 = vmatpush1.bf16.msra.mxu0 %v2376
        %4034 = vmatprep.subr.bf16.mxu0 %v2385
        %4035 = vmatpush1.bf16.msra.mxu0 %v2384
        %4036 = vmatprep.subr.bf16.mxu0 %v2393
        %4037 = vmatpush1.bf16.msra.mxu0 %v2392
        %4038 = vmatprep.subr.bf16.mxu0 %v2401
        %4039 = vmatpush1.bf16.msra.mxu0 %v2400
        %4040 = vmatprep.subr.bf16.mxu0 %v2409
        %4041 = vmatpush1.bf16.msra.mxu0 %v2408
        %4042 = vmatprep.subr.bf16.mxu0 %v2417
        %4043 = vmatpush1.bf16.msra.mxu0 %v2416
        %4044 = vmatprep.subr.bf16.mxu0 %v2425
        %4045 = vmatpush1.bf16.msra.mxu0 %v2424
        %4046 = vmatprep.subr.bf16.mxu0 %v2433
        %4047 = vmatpush1.bf16.msra.mxu0 %v2432
        %4048 = vmatprep.subr.bf16.mxu0 %v2441
        %4049 = vmatpush1.bf16.msra.mxu0 %v2440
        %4050 = vmatprep.subr.bf16.mxu0 %v2449
        %4051 = vmatpush1.bf16.msra.mxu0 %v2448
        %4052 = vmatprep.subr.bf16.mxu0 %v2457
        %4053 = vmatpush1.bf16.msra.mxu0 %v2456
        %4054 = vmatprep.subr.bf16.mxu0 %v2465
        %4055 = vmatpush1.bf16.msra.mxu0 %v2464
        %4056 = vmatprep.subr.bf16.mxu0 %v2473
        %4057 = vmatpush1.bf16.msra.mxu0 %v2472
        %4058 = vmatprep.subr.bf16.mxu0 %v2481
        %4059 = vmatpush1.bf16.msra.mxu0 %v2480
        %4060 = vmatprep.mubr.bf16.mxu0 %v511
        %4061 = vmatmul.mubr.bf16.gmra.mrb[0].mxu0 %v510
        %v4062 = vpop.f32.mrb[0].mxu0
        %v4063 = vadd.f32 %v3870, %v4062
        %v4064 = vpop.f32.mrb[0].mxu0
        %v4065 = vadd.f32 %v3872, %v4064
        %v4066 = vpop.f32.mrb[0].mxu0
        %v4067 = vadd.f32 %v3874, %v4066
        %v4068 = vpop.f32.mrb[0].mxu0
        %v4069 = vadd.f32 %v3876, %v4068
        %4070 = vmatprep.mubr.bf16.mxu0 %v518
        %4071 = vmatmul.mubr.bf16.gmra.mrb[0].mxu0 %v517
        %v4072 = vpop.f32.mrb[0].mxu0
        %v4073 = vadd.f32 %v3880, %v4072
        %v4074 = vpop.f32.mrb[0].mxu0
        %v4075 = vadd.f32 %v3882, %v4074
        %v4076 = vpop.f32.mrb[0].mxu0
        %v4077 = vadd.f32 %v3884, %v4076
        %v4078 = vpop.f32.mrb[0].mxu0
        %v4079 = vadd.f32 %v3886, %v4078
        %4080 = vmatprep.mubr.bf16.mxu0 %v525
        %4081 = vmatmul.mubr.bf16.gmra.mrb[0].mxu0 %v524
        %v4082 = vpop.f32.mrb[0].mxu0
        %v4083 = vadd.f32 %v3890, %v4082
        %v4084 = vpop.f32.mrb[0].mxu0
        %v4085 = vadd.f32 %v3892, %v4084
        %v4086 = vpop.f32.mrb[0].mxu0
        %v4087 = vadd.f32 %v3894, %v4086
        %v4088 = vpop.f32.mrb[0].mxu0
        %v4089 = vadd.f32 %v3896, %v4088
        %4090 = vmatprep.mubr.bf16.mxu0 %v532
        %4091 = vmatmul.mubr.bf16.gmra.mrb[0].mxu0 %v531
        %v4092 = vpop.f32.mrb[0].mxu0
        %v4093 = vadd.f32 %v3900, %v4092
        %v4094 = vpop.f32.mrb[0].mxu0
        %v4095 = vadd.f32 %v3902, %v4094
        %v4096 = vpop.f32.mrb[0].mxu0
        %v4097 = vadd.f32 %v3904, %v4096
        %v4098 = vpop.f32.mrb[0].mxu0
        %v4099 = vadd.f32 %v3906, %v4098
        %4100 = vmatprep.mubr.bf16.mxu0 %v539
        %4101 = vmatmul.mubr.bf16.gmra.mrb[0].mxu0 %v538
        %v4102 = vpop.f32.mrb[0].mxu0
        %v4103 = vadd.f32 %v3910, %v4102
        %v4104 = vpop.f32.mrb[0].mxu0
        %v4105 = vadd.f32 %v3912, %v4104
        %v4106 = vpop.f32.mrb[0].mxu0
        %v4107 = vadd.f32 %v3914, %v4106
        %v4108 = vpop.f32.mrb[0].mxu0
        %v4109 = vadd.f32 %v3916, %v4108
        %4110 = vmatprep.mubr.bf16.mxu0 %v546
        %4111 = vmatmul.mubr.bf16.gmra.mrb[0].mxu0 %v545
        %v4112 = vpop.f32.mrb[0].mxu0
        %v4113 = vadd.f32 %v3920, %v4112
        %v4114 = vpop.f32.mrb[0].mxu0
        %v4115 = vadd.f32 %v3922, %v4114
        %v4116 = vpop.f32.mrb[0].mxu0
        %v4117 = vadd.f32 %v3924, %v4116
        %v4118 = vpop.f32.mrb[0].mxu0
        %v4119 = vadd.f32 %v3926, %v4118
        %4120 = vmatprep.mubr.bf16.mxu0 %v553
        %4121 = vmatmul.mubr.bf16.gmra.mrb[0].mxu0 %v552
        %v4122 = vpop.f32.mrb[0].mxu0
        %v4123 = vadd.f32 %v3930, %v4122
        %v4124 = vpop.f32.mrb[0].mxu0
        %v4125 = vadd.f32 %v3932, %v4124
        %v4126 = vpop.f32.mrb[0].mxu0
        %v4127 = vadd.f32 %v3934, %v4126
        %v4128 = vpop.f32.mrb[0].mxu0
        %v4129 = vadd.f32 %v3936, %v4128
        %4130 = vmatprep.mubr.bf16.mxu0 %v560
        %4131 = vmatmul.mubr.bf16.gmra.mrb[0].mxu0 %v559
        %v4132 = vpop.f32.mrb[0].mxu0
        %v4133 = vadd.f32 %v3940, %v4132
        %v4134 = vpop.f32.mrb[0].mxu0
        %v4135 = vadd.f32 %v3942, %v4134
        %v4136 = vpop.f32.mrb[0].mxu0
        %v4137 = vadd.f32 %v3944, %v4136
        %v4138 = vpop.f32.mrb[0].mxu0
        %v4139 = vadd.f32 %v3946, %v4138
        %4140 = vmatprep.mubr.bf16.mxu0 %v567
        %4141 = vmatmul.mubr.bf16.gmra.mrb[0].mxu0 %v566
        %v4142 = vpop.f32.mrb[0].mxu0
        %v4143 = vadd.f32 %v3950, %v4142
        %v4144 = vpop.f32.mrb[0].mxu0
        %v4145 = vadd.f32 %v3952, %v4144
        %v4146 = vpop.f32.mrb[0].mxu0
        %v4147 = vadd.f32 %v3954, %v4146
        %v4148 = vpop.f32.mrb[0].mxu0
        %v4149 = vadd.f32 %v3956, %v4148
        %4150 = vmatprep.mubr.bf16.mxu0 %v574
        %4151 = vmatmul.mubr.bf16.gmra.mrb[0].mxu0 %v573
        %v4152 = vpop.f32.mrb[0].mxu0
        %v4153 = vadd.f32 %v3960, %v4152
        %v4154 = vpop.f32.mrb[0].mxu0
        %v4155 = vadd.f32 %v3962, %v4154
        %v4156 = vpop.f32.mrb[0].mxu0
        %v4157 = vadd.f32 %v3964, %v4156
        %v4158 = vpop.f32.mrb[0].mxu0
        %v4159 = vadd.f32 %v3966, %v4158
        %4160 = vmatprep.mubr.bf16.mxu0 %v581
        %4161 = vmatmul.mubr.bf16.gmra.mrb[0].mxu0 %v580
        %v4162 = vpop.f32.mrb[0].mxu0
        %v4163 = vadd.f32 %v3970, %v4162
        %v4164 = vpop.f32.mrb[0].mxu0
        %v4165 = vadd.f32 %v3972, %v4164
        %v4166 = vpop.f32.mrb[0].mxu0
        %v4167 = vadd.f32 %v3974, %v4166
        %v4168 = vpop.f32.mrb[0].mxu0
        %v4169 = vadd.f32 %v3976, %v4168
        %4170 = vmatprep.mubr.bf16.mxu0 %v588
        %4171 = vmatmul.mubr.bf16.gmra.mrb[0].mxu0 %v587
        %v4172 = vpop.f32.mrb[0].mxu0
        %v4173 = vadd.f32 %v3980, %v4172
        %v4174 = vpop.f32.mrb[0].mxu0
        %v4175 = vadd.f32 %v3982, %v4174
        %v4176 = vpop.f32.mrb[0].mxu0
        %v4177 = vadd.f32 %v3984, %v4176
        %v4178 = vpop.f32.mrb[0].mxu0
        %v4179 = vadd.f32 %v3986, %v4178
        %4180 = vmatprep.mubr.bf16.mxu0 %v595
        %4181 = vmatmul.mubr.bf16.gmra.mrb[0].mxu0 %v594
        %v4182 = vpop.f32.mrb[0].mxu0
        %v4183 = vadd.f32 %v3990, %v4182
        %v4184 = vpop.f32.mrb[0].mxu0
        %v4185 = vadd.f32 %v3992, %v4184
        %v4186 = vpop.f32.mrb[0].mxu0
        %v4187 = vadd.f32 %v3994, %v4186
        %v4188 = vpop.f32.mrb[0].mxu0
        %v4189 = vadd.f32 %v3996, %v4188
        %4190 = vmatprep.mubr.bf16.mxu0 %v602
        %4191 = vmatmul.mubr.bf16.gmra.mrb[0].mxu0 %v601
        %v4192 = vpop.f32.mrb[0].mxu0
        %v4193 = vadd.f32 %v4000, %v4192
        %v4194 = vpop.f32.mrb[0].mxu0
        %v4195 = vadd.f32 %v4002, %v4194
        %v4196 = vpop.f32.mrb[0].mxu0
        %v4197 = vadd.f32 %v4004, %v4196
        %v4198 = vpop.f32.mrb[0].mxu0
        %v4199 = vadd.f32 %v4006, %v4198
        %4200 = vmatprep.mubr.bf16.mxu0 %v609
        %4201 = vmatmul.mubr.bf16.gmra.mrb[0].mxu0 %v608
        %v4202 = vpop.f32.mrb[0].mxu0
        %v4203 = vadd.f32 %v4010, %v4202
        %v4204 = vpop.f32.mrb[0].mxu0
        %v4205 = vadd.f32 %v4012, %v4204
        %v4206 = vpop.f32.mrb[0].mxu0
        %v4207 = vadd.f32 %v4014, %v4206
        %v4208 = vpop.f32.mrb[0].mxu0
        %v4209 = vadd.f32 %v4016, %v4208
        %4210 = vmatprep.mubr.bf16.mxu0 %v616
        %4211 = vmatmul.mubr.bf16.gmra.mrb[0].mxu0 %v615
        %v4212 = vpop.f32.mrb[0].mxu0
        %v4213 = vadd.f32 %v4020, %v4212
        %v4214 = vpop.f32.mrb[0].mxu0
        %v4215 = vadd.f32 %v4022, %v4214
        %v4216 = vpop.f32.mrb[0].mxu0
        %v4217 = vadd.f32 %v4024, %v4216
        %v4218 = vpop.f32.mrb[0].mxu0
        %v4219 = vadd.f32 %v4026, %v4218
        %4220 = vdwg.mxu0
        %4221 = vmatprep.subr.bf16.mxu0 %v2489
        %4222 = vmatpush1.bf16.msra.mxu0 %v2488
        %4223 = vmatprep.subr.bf16.mxu0 %v2497
        %4224 = vmatpush1.bf16.msra.mxu0 %v2496
        %4225 = vmatprep.subr.bf16.mxu0 %v2505
        %4226 = vmatpush1.bf16.msra.mxu0 %v2504
        %4227 = vmatprep.subr.bf16.mxu0 %v2513
        %4228 = vmatpush1.bf16.msra.mxu0 %v2512
        %4229 = vmatprep.subr.bf16.mxu0 %v2521
        %4230 = vmatpush1.bf16.msra.mxu0 %v2520
        %4231 = vmatprep.subr.bf16.mxu0 %v2529
        %4232 = vmatpush1.bf16.msra.mxu0 %v2528
        %4233 = vmatprep.subr.bf16.mxu0 %v2537
        %4234 = vmatpush1.bf16.msra.mxu0 %v2536
        %4235 = vmatprep.subr.bf16.mxu0 %v2545
        %4236 = vmatpush1.bf16.msra.mxu0 %v2544
        %4237 = vmatprep.subr.bf16.mxu0 %v2553
        %4238 = vmatpush1.bf16.msra.mxu0 %v2552
        %4239 = vmatprep.subr.bf16.mxu0 %v2561
        %4240 = vmatpush1.bf16.msra.mxu0 %v2560
        %4241 = vmatprep.subr.bf16.mxu0 %v2569
        %4242 = vmatpush1.bf16.msra.mxu0 %v2568
        %4243 = vmatprep.subr.bf16.mxu0 %v2577
        %4244 = vmatpush1.bf16.msra.mxu0 %v2576
        %4245 = vmatprep.subr.bf16.mxu0 %v2585
        %4246 = vmatpush1.bf16.msra.mxu0 %v2584
        %4247 = vmatprep.subr.bf16.mxu0 %v2593
        %4248 = vmatpush1.bf16.msra.mxu0 %v2592
        %4249 = vmatprep.subr.bf16.mxu0 %v2601
        %4250 = vmatpush1.bf16.msra.mxu0 %v2600
        %4251 = vmatprep.subr.bf16.mxu0 %v2609
        %4252 = vmatpush1.bf16.msra.mxu0 %v2608
        %4253 = vmatprep.mubr.bf16.mxu0 %v513
        %4254 = vmatmul.mubr.bf16.gmra.mrb[0].mxu0 %v512
        %v4255 = vpop.f32.mrb[0].mxu0
        %v4256 = vadd.f32 %v4063, %v4255
        %v4257 = vpop.f32.mrb[0].mxu0
        %v4258 = vadd.f32 %v4065, %v4257
        %v4259 = vpop.f32.mrb[0].mxu0
        %v4260 = vadd.f32 %v4067, %v4259
        %v4261 = vpop.f32.mrb[0].mxu0
        %v4262 = vadd.f32 %v4069, %v4261
        %4263 = vmatprep.mubr.bf16.mxu0 %v520
        %4264 = vmatmul.mubr.bf16.gmra.mrb[0].mxu0 %v519
        %v4265 = vpop.f32.mrb[0].mxu0
        %v4266 = vadd.f32 %v4073, %v4265
        %v4267 = vpop.f32.mrb[0].mxu0
        %v4268 = vadd.f32 %v4075, %v4267
        %v4269 = vpop.f32.mrb[0].mxu0
        %v4270 = vadd.f32 %v4077, %v4269
        %v4271 = vpop.f32.mrb[0].mxu0
        %v4272 = vadd.f32 %v4079, %v4271
        %4273 = vmatprep.mubr.bf16.mxu0 %v527
        %4274 = vmatmul.mubr.bf16.gmra.mrb[0].mxu0 %v526
        %v4275 = vpop.f32.mrb[0].mxu0
        %v4276 = vadd.f32 %v4083, %v4275
        %v4277 = vpop.f32.mrb[0].mxu0
        %v4278 = vadd.f32 %v4085, %v4277
        %v4279 = vpop.f32.mrb[0].mxu0
        %v4280 = vadd.f32 %v4087, %v4279
        %v4281 = vpop.f32.mrb[0].mxu0
        %v4282 = vadd.f32 %v4089, %v4281
        %4283 = vmatprep.mubr.bf16.mxu0 %v534
        %4284 = vmatmul.mubr.bf16.gmra.mrb[0].mxu0 %v533
        %v4285 = vpop.f32.mrb[0].mxu0
        %v4286 = vadd.f32 %v4093, %v4285
        %v4287 = vpop.f32.mrb[0].mxu0
        %v4288 = vadd.f32 %v4095, %v4287
        %v4289 = vpop.f32.mrb[0].mxu0
        %v4290 = vadd.f32 %v4097, %v4289
        %v4291 = vpop.f32.mrb[0].mxu0
        %v4292 = vadd.f32 %v4099, %v4291
        %4293 = vmatprep.mubr.bf16.mxu0 %v541
        %4294 = vmatmul.mubr.bf16.gmra.mrb[0].mxu0 %v540
        %v4295 = vpop.f32.mrb[0].mxu0
        %v4296 = vadd.f32 %v4103, %v4295
        %v4297 = vpop.f32.mrb[0].mxu0
        %v4298 = vadd.f32 %v4105, %v4297
        %v4299 = vpop.f32.mrb[0].mxu0
        %v4300 = vadd.f32 %v4107, %v4299
        %v4301 = vpop.f32.mrb[0].mxu0
        %v4302 = vadd.f32 %v4109, %v4301
        %4303 = vmatprep.mubr.bf16.mxu0 %v548
        %4304 = vmatmul.mubr.bf16.gmra.mrb[0].mxu0 %v547
        %v4305 = vpop.f32.mrb[0].mxu0
        %v4306 = vadd.f32 %v4113, %v4305
        %v4307 = vpop.f32.mrb[0].mxu0
        %v4308 = vadd.f32 %v4115, %v4307
        %v4309 = vpop.f32.mrb[0].mxu0
        %v4310 = vadd.f32 %v4117, %v4309
        %v4311 = vpop.f32.mrb[0].mxu0
        %v4312 = vadd.f32 %v4119, %v4311
        %4313 = vmatprep.mubr.bf16.mxu0 %v555
        %4314 = vmatmul.mubr.bf16.gmra.mrb[0].mxu0 %v554
        %v4315 = vpop.f32.mrb[0].mxu0
        %v4316 = vadd.f32 %v4123, %v4315
        %v4317 = vpop.f32.mrb[0].mxu0
        %v4318 = vadd.f32 %v4125, %v4317
        %v4319 = vpop.f32.mrb[0].mxu0
        %v4320 = vadd.f32 %v4127, %v4319
        %v4321 = vpop.f32.mrb[0].mxu0
        %v4322 = vadd.f32 %v4129, %v4321
        %4323 = vmatprep.mubr.bf16.mxu0 %v562
        %4324 = vmatmul.mubr.bf16.gmra.mrb[0].mxu0 %v561
        %v4325 = vpop.f32.mrb[0].mxu0
        %v4326 = vadd.f32 %v4133, %v4325
        %v4327 = vpop.f32.mrb[0].mxu0
        %v4328 = vadd.f32 %v4135, %v4327
        %v4329 = vpop.f32.mrb[0].mxu0
        %v4330 = vadd.f32 %v4137, %v4329
        %v4331 = vpop.f32.mrb[0].mxu0
        %v4332 = vadd.f32 %v4139, %v4331
        %4333 = vmatprep.mubr.bf16.mxu0 %v569
        %4334 = vmatmul.mubr.bf16.gmra.mrb[0].mxu0 %v568
        %v4335 = vpop.f32.mrb[0].mxu0
        %v4336 = vadd.f32 %v4143, %v4335
        %v4337 = vpop.f32.mrb[0].mxu0
        %v4338 = vadd.f32 %v4145, %v4337
        %v4339 = vpop.f32.mrb[0].mxu0
        %v4340 = vadd.f32 %v4147, %v4339
        %v4341 = vpop.f32.mrb[0].mxu0
        %v4342 = vadd.f32 %v4149, %v4341
        %4343 = vmatprep.mubr.bf16.mxu0 %v576
        %4344 = vmatmul.mubr.bf16.gmra.mrb[0].mxu0 %v575
        %v4345 = vpop.f32.mrb[0].mxu0
        %v4346 = vadd.f32 %v4153, %v4345
        %v4347 = vpop.f32.mrb[0].mxu0
        %v4348 = vadd.f32 %v4155, %v4347
        %v4349 = vpop.f32.mrb[0].mxu0
        %v4350 = vadd.f32 %v4157, %v4349
        %v4351 = vpop.f32.mrb[0].mxu0
        %v4352 = vadd.f32 %v4159, %v4351
        %4353 = vmatprep.mubr.bf16.mxu0 %v583
        %4354 = vmatmul.mubr.bf16.gmra.mrb[0].mxu0 %v582
        %v4355 = vpop.f32.mrb[0].mxu0
        %v4356 = vadd.f32 %v4163, %v4355
        %v4357 = vpop.f32.mrb[0].mxu0
        %v4358 = vadd.f32 %v4165, %v4357
        %v4359 = vpop.f32.mrb[0].mxu0
        %v4360 = vadd.f32 %v4167, %v4359
        %v4361 = vpop.f32.mrb[0].mxu0
        %v4362 = vadd.f32 %v4169, %v4361
        %4363 = vmatprep.mubr.bf16.mxu0 %v590
        %4364 = vmatmul.mubr.bf16.gmra.mrb[0].mxu0 %v589
        %v4365 = vpop.f32.mrb[0].mxu0
        %v4366 = vadd.f32 %v4173, %v4365
        %v4367 = vpop.f32.mrb[0].mxu0
        %v4368 = vadd.f32 %v4175, %v4367
        %v4369 = vpop.f32.mrb[0].mxu0
        %v4370 = vadd.f32 %v4177, %v4369
        %v4371 = vpop.f32.mrb[0].mxu0
        %v4372 = vadd.f32 %v4179, %v4371
        %4373 = vmatprep.mubr.bf16.mxu0 %v597
        %4374 = vmatmul.mubr.bf16.gmra.mrb[0].mxu0 %v596
        %v4375 = vpop.f32.mrb[0].mxu0
        %v4376 = vadd.f32 %v4183, %v4375
        %v4377 = vpop.f32.mrb[0].mxu0
        %v4378 = vadd.f32 %v4185, %v4377
        %v4379 = vpop.f32.mrb[0].mxu0
        %v4380 = vadd.f32 %v4187, %v4379
        %v4381 = vpop.f32.mrb[0].mxu0
        %v4382 = vadd.f32 %v4189, %v4381
        %4383 = vmatprep.mubr.bf16.mxu0 %v604
        %4384 = vmatmul.mubr.bf16.gmra.mrb[0].mxu0 %v603
        %v4385 = vpop.f32.mrb[0].mxu0
        %v4386 = vadd.f32 %v4193, %v4385
        %v4387 = vpop.f32.mrb[0].mxu0
        %v4388 = vadd.f32 %v4195, %v4387
        %v4389 = vpop.f32.mrb[0].mxu0
        %v4390 = vadd.f32 %v4197, %v4389
        %v4391 = vpop.f32.mrb[0].mxu0
        %v4392 = vadd.f32 %v4199, %v4391
        %4393 = vmatprep.mubr.bf16.mxu0 %v611
        %4394 = vmatmul.mubr.bf16.gmra.mrb[0].mxu0 %v610
        %v4395 = vpop.f32.mrb[0].mxu0
        %v4396 = vadd.f32 %v4203, %v4395
        %v4397 = vpop.f32.mrb[0].mxu0
        %v4398 = vadd.f32 %v4205, %v4397
        %v4399 = vpop.f32.mrb[0].mxu0
        %v4400 = vadd.f32 %v4207, %v4399
        %v4401 = vpop.f32.mrb[0].mxu0
        %v4402 = vadd.f32 %v4209, %v4401
        %4403 = vmatprep.mubr.bf16.mxu0 %v618
        %4404 = vmatmul.mubr.bf16.gmra.mrb[0].mxu0 %v617
        %v4405 = vpop.f32.mrb[0].mxu0
        %v4406 = vadd.f32 %v4213, %v4405
        %v4407 = vpop.f32.mrb[0].mxu0
        %v4408 = vadd.f32 %v4215, %v4407
        %v4409 = vpop.f32.mrb[0].mxu0
        %v4410 = vadd.f32 %v4217, %v4409
        %v4411 = vpop.f32.mrb[0].mxu0
        %v4412 = vadd.f32 %v4219, %v4411
        %4413 = vdwg.mxu0
        %4414 = vmatprep.subr.bf16.mxu0 %v2617
        %4415 = vmatpush1.bf16.msra.mxu0 %v2616
        %4416 = vmatprep.subr.bf16.mxu0 0
        %4417 = vmatpush1.bf16.msra.mxu0 0
        %4418 = vmatprep.subr.bf16.mxu0 0
        %4419 = vmatpush1.bf16.msra.mxu0 0
        %4420 = vmatprep.subr.bf16.mxu0 0
        %4421 = vmatpush1.bf16.msra.mxu0 0
        %4422 = vmatprep.subr.bf16.mxu0 0
        %4423 = vmatpush1.bf16.msra.mxu0 0
        %4424 = vmatprep.subr.bf16.mxu0 0
        %4425 = vmatpush1.bf16.msra.mxu0 0
        %4426 = vmatprep.subr.bf16.mxu0 0
        %4427 = vmatpush1.bf16.msra.mxu0 0
        %4428 = vmatprep.subr.bf16.mxu0 0
        %4429 = vmatpush1.bf16.msra.mxu0 0
        %4430 = vmatprep.subr.bf16.mxu0 0
        %4431 = vmatpush1.bf16.msra.mxu0 0
        %4432 = vmatprep.subr.bf16.mxu0 0
        %4433 = vmatpush1.bf16.msra.mxu0 0
        %4434 = vmatprep.subr.bf16.mxu0 0
        %4435 = vmatpush1.bf16.msra.mxu0 0
        %4436 = vmatprep.subr.bf16.mxu0 0
        %4437 = vmatpush1.bf16.msra.mxu0 0
        %4438 = vmatprep.subr.bf16.mxu0 0
        %4439 = vmatpush1.bf16.msra.mxu0 0
        %4440 = vmatprep.subr.bf16.mxu0 0
        %4441 = vmatpush1.bf16.msra.mxu0 0
        %4442 = vmatprep.subr.bf16.mxu0 0
        %4443 = vmatpush1.bf16.msra.mxu0 0
        %4444 = vmatprep.subr.bf16.mxu0 0
        %4445 = vmatpush1.bf16.msra.mxu0 0
        %4446 = vmatprep.mubr.bf16.mxu0 0
        %4447 = vmatmul.mubr.bf16.gmra.mrb[0].mxu0 %v3016
        %v4448 = vpop.f32.mrb[0].mxu0
        %v4449 = vadd.f32 %v4256, %v4448
        %v4450 = vpop.f32.mrb[0].mxu0
        %v4451 = vadd.f32 %v4258, %v4450
        %v4452 = vpop.f32.mrb[0].mxu0
        %v4453 = vadd.f32 %v4260, %v4452
        %v4454 = vpop.f32.mrb[0].mxu0
        %v4455 = vadd.f32 %v4262, %v4454
        %4456 = vmatprep.mubr.bf16.mxu0 0
        %4457 = vmatmul.mubr.bf16.gmra.mrb[0].mxu0 %v3019
        %v4458 = vpop.f32.mrb[0].mxu0
        %v4459 = vadd.f32 %v4266, %v4458
        %v4460 = vpop.f32.mrb[0].mxu0
        %v4461 = vadd.f32 %v4268, %v4460
        %v4462 = vpop.f32.mrb[0].mxu0
        %v4463 = vadd.f32 %v4270, %v4462
        %v4464 = vpop.f32.mrb[0].mxu0
        %v4465 = vadd.f32 %v4272, %v4464
        %4466 = vmatprep.mubr.bf16.mxu0 0
        %4467 = vmatmul.mubr.bf16.gmra.mrb[0].mxu0 %v3022
        %v4468 = vpop.f32.mrb[0].mxu0
        %v4469 = vadd.f32 %v4276, %v4468
        %v4470 = vpop.f32.mrb[0].mxu0
        %v4471 = vadd.f32 %v4278, %v4470
        %v4472 = vpop.f32.mrb[0].mxu0
        %v4473 = vadd.f32 %v4280, %v4472
        %v4474 = vpop.f32.mrb[0].mxu0
        %v4475 = vadd.f32 %v4282, %v4474
        %4476 = vmatprep.mubr.bf16.mxu0 0
        %4477 = vmatmul.mubr.bf16.gmra.mrb[0].mxu0 %v3025
        %v4478 = vpop.f32.mrb[0].mxu0
        %v4479 = vadd.f32 %v4286, %v4478
        %v4480 = vpop.f32.mrb[0].mxu0
        %v4481 = vadd.f32 %v4288, %v4480
        %v4482 = vpop.f32.mrb[0].mxu0
        %v4483 = vadd.f32 %v4290, %v4482
        %v4484 = vpop.f32.mrb[0].mxu0
        %v4485 = vadd.f32 %v4292, %v4484
        %4486 = vmatprep.mubr.bf16.mxu0 0
        %4487 = vmatmul.mubr.bf16.gmra.mrb[0].mxu0 %v3028
        %v4488 = vpop.f32.mrb[0].mxu0
        %v4489 = vadd.f32 %v4296, %v4488
        %v4490 = vpop.f32.mrb[0].mxu0
        %v4491 = vadd.f32 %v4298, %v4490
        %v4492 = vpop.f32.mrb[0].mxu0
        %v4493 = vadd.f32 %v4300, %v4492
        %v4494 = vpop.f32.mrb[0].mxu0
        %v4495 = vadd.f32 %v4302, %v4494
        %4496 = vmatprep.mubr.bf16.mxu0 0
        %4497 = vmatmul.mubr.bf16.gmra.mrb[0].mxu0 %v3031
        %v4498 = vpop.f32.mrb[0].mxu0
        %v4499 = vadd.f32 %v4306, %v4498
        %v4500 = vpop.f32.mrb[0].mxu0
        %v4501 = vadd.f32 %v4308, %v4500
        %v4502 = vpop.f32.mrb[0].mxu0
        %v4503 = vadd.f32 %v4310, %v4502
        %v4504 = vpop.f32.mrb[0].mxu0
        %v4505 = vadd.f32 %v4312, %v4504
        %4506 = vmatprep.mubr.bf16.mxu0 0
        %4507 = vmatmul.mubr.bf16.gmra.mrb[0].mxu0 %v3034
        %v4508 = vpop.f32.mrb[0].mxu0
        %v4509 = vadd.f32 %v4316, %v4508
        %v4510 = vpop.f32.mrb[0].mxu0
        %v4511 = vadd.f32 %v4318, %v4510
        %v4512 = vpop.f32.mrb[0].mxu0
        %v4513 = vadd.f32 %v4320, %v4512
        %v4514 = vpop.f32.mrb[0].mxu0
        %v4515 = vadd.f32 %v4322, %v4514
        %4516 = vmatprep.mubr.bf16.mxu0 0
        %4517 = vmatmul.mubr.bf16.gmra.mrb[0].mxu0 %v3037
        %v4518 = vpop.f32.mrb[0].mxu0
        %v4519 = vadd.f32 %v4326, %v4518
        %v4520 = vpop.f32.mrb[0].mxu0
        %v4521 = vadd.f32 %v4328, %v4520
        %v4522 = vpop.f32.mrb[0].mxu0
        %v4523 = vadd.f32 %v4330, %v4522
        %v4524 = vpop.f32.mrb[0].mxu0
        %v4525 = vadd.f32 %v4332, %v4524
        %4526 = vmatprep.mubr.bf16.mxu0 0
        %4527 = vmatmul.mubr.bf16.gmra.mrb[0].mxu0 %v3040
        %v4528 = vpop.f32.mrb[0].mxu0
        %v4529 = vadd.f32 %v4336, %v4528
        %v4530 = vpop.f32.mrb[0].mxu0
        %v4531 = vadd.f32 %v4338, %v4530
        %v4532 = vpop.f32.mrb[0].mxu0
        %v4533 = vadd.f32 %v4340, %v4532
        %v4534 = vpop.f32.mrb[0].mxu0
        %v4535 = vadd.f32 %v4342, %v4534
        %4536 = vmatprep.mubr.bf16.mxu0 0
        %4537 = vmatmul.mubr.bf16.gmra.mrb[0].mxu0 %v3043
        %v4538 = vpop.f32.mrb[0].mxu0
        %v4539 = vadd.f32 %v4346, %v4538
        %v4540 = vpop.f32.mrb[0].mxu0
        %v4541 = vadd.f32 %v4348, %v4540
        %v4542 = vpop.f32.mrb[0].mxu0
        %v4543 = vadd.f32 %v4350, %v4542
        %v4544 = vpop.f32.mrb[0].mxu0
        %v4545 = vadd.f32 %v4352, %v4544
        %4546 = vmatprep.mubr.bf16.mxu0 0
        %4547 = vmatmul.mubr.bf16.gmra.mrb[0].mxu0 %v3046
        %v4548 = vpop.f32.mrb[0].mxu0
        %v4549 = vadd.f32 %v4356, %v4548
        %v4550 = vpop.f32.mrb[0].mxu0
        %v4551 = vadd.f32 %v4358, %v4550
        %v4552 = vpop.f32.mrb[0].mxu0
        %v4553 = vadd.f32 %v4360, %v4552
        %v4554 = vpop.f32.mrb[0].mxu0
        %v4555 = vadd.f32 %v4362, %v4554
        %4556 = vmatprep.mubr.bf16.mxu0 0
        %4557 = vmatmul.mubr.bf16.gmra.mrb[0].mxu0 %v3049
        %v4558 = vpop.f32.mrb[0].mxu0
        %v4559 = vadd.f32 %v4366, %v4558
        %v4560 = vpop.f32.mrb[0].mxu0
        %v4561 = vadd.f32 %v4368, %v4560
        %v4562 = vpop.f32.mrb[0].mxu0
        %v4563 = vadd.f32 %v4370, %v4562
        %v4564 = vpop.f32.mrb[0].mxu0
        %v4565 = vadd.f32 %v4372, %v4564
        %4566 = vmatprep.mubr.bf16.mxu0 0
        %4567 = vmatmul.mubr.bf16.gmra.mrb[0].mxu0 %v3052
        %v4568 = vpop.f32.mrb[0].mxu0
        %v4569 = vadd.f32 %v4376, %v4568
        %v4570 = vpop.f32.mrb[0].mxu0
        %v4571 = vadd.f32 %v4378, %v4570
        %v4572 = vpop.f32.mrb[0].mxu0
        %v4573 = vadd.f32 %v4380, %v4572
        %v4574 = vpop.f32.mrb[0].mxu0
        %v4575 = vadd.f32 %v4382, %v4574
        %4576 = vmatprep.mubr.bf16.mxu0 0
        %4577 = vmatmul.mubr.bf16.gmra.mrb[0].mxu0 %v3055
        %v4578 = vpop.f32.mrb[0].mxu0
        %v4579 = vadd.f32 %v4386, %v4578
        %v4580 = vpop.f32.mrb[0].mxu0
        %v4581 = vadd.f32 %v4388, %v4580
        %v4582 = vpop.f32.mrb[0].mxu0
        %v4583 = vadd.f32 %v4390, %v4582
        %v4584 = vpop.f32.mrb[0].mxu0
        %v4585 = vadd.f32 %v4392, %v4584
        %4586 = vmatprep.mubr.bf16.mxu0 0
        %4587 = vmatmul.mubr.bf16.gmra.mrb[0].mxu0 %v3058
        %v4588 = vpop.f32.mrb[0].mxu0
        %v4589 = vadd.f32 %v4396, %v4588
        %v4590 = vpop.f32.mrb[0].mxu0
        %v4591 = vadd.f32 %v4398, %v4590
        %v4592 = vpop.f32.mrb[0].mxu0
        %v4593 = vadd.f32 %v4400, %v4592
        %v4594 = vpop.f32.mrb[0].mxu0
        %v4595 = vadd.f32 %v4402, %v4594
        %4596 = vmatprep.mubr.bf16.mxu0 0
        %4597 = vmatmul.mubr.bf16.gmra.mrb[0].mxu0 %v3061
        %v4598 = vpop.f32.mrb[0].mxu0
        %v4599 = vadd.f32 %v4406, %v4598
        %v4600 = vpop.f32.mrb[0].mxu0
        %v4601 = vadd.f32 %v4408, %v4600
        %v4602 = vpop.f32.mrb[0].mxu0
        %v4603 = vadd.f32 %v4410, %v4602
        %v4604 = vpop.f32.mrb[0].mxu0
        %v4605 = vadd.f32 %v4412, %v4604
        %4606 = vdwg.mxu0
        %4607 = vmatprep.subr.bf16.mxu0 %v2235
        %4608 = vmatpush1.bf16.msra.mxu0 %v2234
        %4609 = vmatprep.subr.bf16.mxu0 %v2243
        %4610 = vmatpush1.bf16.msra.mxu0 %v2242
        %4611 = vmatprep.subr.bf16.mxu0 %v2251
        %4612 = vmatpush1.bf16.msra.mxu0 %v2250
        %4613 = vmatprep.subr.bf16.mxu0 %v2259
        %4614 = vmatpush1.bf16.msra.mxu0 %v2258
        %4615 = vmatprep.subr.bf16.mxu0 %v2267
        %4616 = vmatpush1.bf16.msra.mxu0 %v2266
        %4617 = vmatprep.subr.bf16.mxu0 %v2275
        %4618 = vmatpush1.bf16.msra.mxu0 %v2274
        %4619 = vmatprep.subr.bf16.mxu0 %v2283
        %4620 = vmatpush1.bf16.msra.mxu0 %v2282
        %4621 = vmatprep.subr.bf16.mxu0 %v2291
        %4622 = vmatpush1.bf16.msra.mxu0 %v2290
        %4623 = vmatprep.subr.bf16.mxu0 %v2299
        %4624 = vmatpush1.bf16.msra.mxu0 %v2298
        %4625 = vmatprep.subr.bf16.mxu0 %v2307
        %4626 = vmatpush1.bf16.msra.mxu0 %v2306
        %4627 = vmatprep.subr.bf16.mxu0 %v2315
        %4628 = vmatpush1.bf16.msra.mxu0 %v2314
        %4629 = vmatprep.subr.bf16.mxu0 %v2323
        %4630 = vmatpush1.bf16.msra.mxu0 %v2322
        %4631 = vmatprep.subr.bf16.mxu0 %v2331
        %4632 = vmatpush1.bf16.msra.mxu0 %v2330
        %4633 = vmatprep.subr.bf16.mxu0 %v2339
        %4634 = vmatpush1.bf16.msra.mxu0 %v2338
        %4635 = vmatprep.subr.bf16.mxu0 %v2347
        %4636 = vmatpush1.bf16.msra.mxu0 %v2346
        %4637 = vmatprep.subr.bf16.mxu0 %v2355
        %4638 = vmatpush1.bf16.msra.mxu0 %v2354
        %4639 = vmatprep.mubr.bf16.mxu0 %v509
        %4640 = vmatmul.mubr.bf16.gmra.mrb[0].mxu0 %v508
        %v4641 = vpop.f32.mrb[0].mxu0
        %v4642 = vadd.f32 %v1033, %v4641
        %v4643 = vpop.f32.mrb[0].mxu0
        %v4644 = vadd.f32 %v1037, %v4643
        %v4645 = vpop.f32.mrb[0].mxu0
        %v4646 = vadd.f32 %v1033, %v4645
        %v4647 = vpop.f32.mrb[0].mxu0
        %v4648 = vadd.f32 %v1037, %v4647
        %4649 = vmatprep.mubr.bf16.mxu0 %v516
        %4650 = vmatmul.mubr.bf16.gmra.mrb[0].mxu0 %v515
        %v4651 = vpop.f32.mrb[0].mxu0
        %v4652 = vadd.f32 %v1033, %v4651
        %v4653 = vpop.f32.mrb[0].mxu0
        %v4654 = vadd.f32 %v1037, %v4653
        %v4655 = vpop.f32.mrb[0].mxu0
        %v4656 = vadd.f32 %v1033, %v4655
        %v4657 = vpop.f32.mrb[0].mxu0
        %v4658 = vadd.f32 %v1037, %v4657
        %4659 = vmatprep.mubr.bf16.mxu0 %v523
        %4660 = vmatmul.mubr.bf16.gmra.mrb[0].mxu0 %v522
        %v4661 = vpop.f32.mrb[0].mxu0
        %v4662 = vadd.f32 %v1033, %v4661
        %v4663 = vpop.f32.mrb[0].mxu0
        %v4664 = vadd.f32 %v1037, %v4663
        %v4665 = vpop.f32.mrb[0].mxu0
        %v4666 = vadd.f32 %v1033, %v4665
        %v4667 = vpop.f32.mrb[0].mxu0
        %v4668 = vadd.f32 %v1037, %v4667
        %4669 = vmatprep.mubr.bf16.mxu0 %v530
        %4670 = vmatmul.mubr.bf16.gmra.mrb[0].mxu0 %v529
        %v4671 = vpop.f32.mrb[0].mxu0
        %v4672 = vadd.f32 %v1033, %v4671
        %v4673 = vpop.f32.mrb[0].mxu0
        %v4674 = vadd.f32 %v1037, %v4673
        %v4675 = vpop.f32.mrb[0].mxu0
        %v4676 = vadd.f32 %v1033, %v4675
        %v4677 = vpop.f32.mrb[0].mxu0
        %v4678 = vadd.f32 %v1037, %v4677
        %4679 = vmatprep.mubr.bf16.mxu0 %v537
        %4680 = vmatmul.mubr.bf16.gmra.mrb[0].mxu0 %v536
        %v4681 = vpop.f32.mrb[0].mxu0
        %v4682 = vadd.f32 %v1033, %v4681
        %v4683 = vpop.f32.mrb[0].mxu0
        %v4684 = vadd.f32 %v1037, %v4683
        %v4685 = vpop.f32.mrb[0].mxu0
        %v4686 = vadd.f32 %v1033, %v4685
        %v4687 = vpop.f32.mrb[0].mxu0
        %v4688 = vadd.f32 %v1037, %v4687
        %4689 = vmatprep.mubr.bf16.mxu0 %v544
        %4690 = vmatmul.mubr.bf16.gmra.mrb[0].mxu0 %v543
        %v4691 = vpop.f32.mrb[0].mxu0
        %v4692 = vadd.f32 %v1033, %v4691
        %v4693 = vpop.f32.mrb[0].mxu0
        %v4694 = vadd.f32 %v1037, %v4693
        %v4695 = vpop.f32.mrb[0].mxu0
        %v4696 = vadd.f32 %v1033, %v4695
        %v4697 = vpop.f32.mrb[0].mxu0
        %v4698 = vadd.f32 %v1037, %v4697
        %4699 = vmatprep.mubr.bf16.mxu0 %v551
        %4700 = vmatmul.mubr.bf16.gmra.mrb[0].mxu0 %v550
        %v4701 = vpop.f32.mrb[0].mxu0
        %v4702 = vadd.f32 %v1033, %v4701
        %v4703 = vpop.f32.mrb[0].mxu0
        %v4704 = vadd.f32 %v1037, %v4703
        %v4705 = vpop.f32.mrb[0].mxu0
        %v4706 = vadd.f32 %v1033, %v4705
        %v4707 = vpop.f32.mrb[0].mxu0
        %v4708 = vadd.f32 %v1037, %v4707
        %4709 = vmatprep.mubr.bf16.mxu0 %v558
        %4710 = vmatmul.mubr.bf16.gmra.mrb[0].mxu0 %v557
        %v4711 = vpop.f32.mrb[0].mxu0
        %v4712 = vadd.f32 %v1033, %v4711
        %v4713 = vpop.f32.mrb[0].mxu0
        %v4714 = vadd.f32 %v1037, %v4713
        %v4715 = vpop.f32.mrb[0].mxu0
        %v4716 = vadd.f32 %v1033, %v4715
        %v4717 = vpop.f32.mrb[0].mxu0
        %v4718 = vadd.f32 %v1037, %v4717
        %4719 = vmatprep.mubr.bf16.mxu0 %v565
        %4720 = vmatmul.mubr.bf16.gmra.mrb[0].mxu0 %v564
        %v4721 = vpop.f32.mrb[0].mxu0
        %v4722 = vadd.f32 %v1033, %v4721
        %v4723 = vpop.f32.mrb[0].mxu0
        %v4724 = vadd.f32 %v1037, %v4723
        %v4725 = vpop.f32.mrb[0].mxu0
        %v4726 = vadd.f32 %v1033, %v4725
        %v4727 = vpop.f32.mrb[0].mxu0
        %v4728 = vadd.f32 %v1037, %v4727
        %4729 = vmatprep.mubr.bf16.mxu0 %v572
        %4730 = vmatmul.mubr.bf16.gmra.mrb[0].mxu0 %v571
        %v4731 = vpop.f32.mrb[0].mxu0
        %v4732 = vadd.f32 %v1033, %v4731
        %v4733 = vpop.f32.mrb[0].mxu0
        %v4734 = vadd.f32 %v1037, %v4733
        %v4735 = vpop.f32.mrb[0].mxu0
        %v4736 = vadd.f32 %v1033, %v4735
        %v4737 = vpop.f32.mrb[0].mxu0
        %v4738 = vadd.f32 %v1037, %v4737
        %4739 = vmatprep.mubr.bf16.mxu0 %v579
        %4740 = vmatmul.mubr.bf16.gmra.mrb[0].mxu0 %v578
        %v4741 = vpop.f32.mrb[0].mxu0
        %v4742 = vadd.f32 %v1033, %v4741
        %v4743 = vpop.f32.mrb[0].mxu0
        %v4744 = vadd.f32 %v1037, %v4743
        %v4745 = vpop.f32.mrb[0].mxu0
        %v4746 = vadd.f32 %v1033, %v4745
        %v4747 = vpop.f32.mrb[0].mxu0
        %v4748 = vadd.f32 %v1037, %v4747
        %4749 = vmatprep.mubr.bf16.mxu0 %v586
        %4750 = vmatmul.mubr.bf16.gmra.mrb[0].mxu0 %v585
        %v4751 = vpop.f32.mrb[0].mxu0
        %v4752 = vadd.f32 %v1033, %v4751
        %v4753 = vpop.f32.mrb[0].mxu0
        %v4754 = vadd.f32 %v1037, %v4753
        %v4755 = vpop.f32.mrb[0].mxu0
        %v4756 = vadd.f32 %v1033, %v4755
        %v4757 = vpop.f32.mrb[0].mxu0
        %v4758 = vadd.f32 %v1037, %v4757
        %4759 = vmatprep.mubr.bf16.mxu0 %v593
        %4760 = vmatmul.mubr.bf16.gmra.mrb[0].mxu0 %v592
        %v4761 = vpop.f32.mrb[0].mxu0
        %v4762 = vadd.f32 %v1033, %v4761
        %v4763 = vpop.f32.mrb[0].mxu0
        %v4764 = vadd.f32 %v1037, %v4763
        %v4765 = vpop.f32.mrb[0].mxu0
        %v4766 = vadd.f32 %v1033, %v4765
        %v4767 = vpop.f32.mrb[0].mxu0
        %v4768 = vadd.f32 %v1037, %v4767
        %4769 = vmatprep.mubr.bf16.mxu0 %v600
        %4770 = vmatmul.mubr.bf16.gmra.mrb[0].mxu0 %v599
        %v4771 = vpop.f32.mrb[0].mxu0
        %v4772 = vadd.f32 %v1033, %v4771
        %v4773 = vpop.f32.mrb[0].mxu0
        %v4774 = vadd.f32 %v1037, %v4773
        %v4775 = vpop.f32.mrb[0].mxu0
        %v4776 = vadd.f32 %v1033, %v4775
        %v4777 = vpop.f32.mrb[0].mxu0
        %v4778 = vadd.f32 %v1037, %v4777
        %4779 = vmatprep.mubr.bf16.mxu0 %v607
        %4780 = vmatmul.mubr.bf16.gmra.mrb[0].mxu0 %v606
        %v4781 = vpop.f32.mrb[0].mxu0
        %v4782 = vadd.f32 %v1033, %v4781
        %v4783 = vpop.f32.mrb[0].mxu0
        %v4784 = vadd.f32 %v1037, %v4783
        %v4785 = vpop.f32.mrb[0].mxu0
        %v4786 = vadd.f32 %v1033, %v4785
        %v4787 = vpop.f32.mrb[0].mxu0
        %v4788 = vadd.f32 %v1037, %v4787
        %4789 = vmatprep.mubr.bf16.mxu0 %v614
        %4790 = vmatmul.mubr.bf16.gmra.mrb[0].mxu0 %v613
        %v4791 = vpop.f32.mrb[0].mxu0
        %v4792 = vadd.f32 %v1033, %v4791
        %v4793 = vpop.f32.mrb[0].mxu0
        %v4794 = vadd.f32 %v1037, %v4793
        %v4795 = vpop.f32.mrb[0].mxu0
        %v4796 = vadd.f32 %v1033, %v4795
        %v4797 = vpop.f32.mrb[0].mxu0
        %v4798 = vadd.f32 %v1037, %v4797
        %4799 = vdwg.mxu0
        %4800 = vmatprep.subr.bf16.mxu0 %v2363
        %4801 = vmatpush1.bf16.msra.mxu0 %v2362
        %4802 = vmatprep.subr.bf16.mxu0 %v2371
        %4803 = vmatpush1.bf16.msra.mxu0 %v2370
        %4804 = vmatprep.subr.bf16.mxu0 %v2379
        %4805 = vmatpush1.bf16.msra.mxu0 %v2378
        %4806 = vmatprep.subr.bf16.mxu0 %v2387
        %4807 = vmatpush1.bf16.msra.mxu0 %v2386
        %4808 = vmatprep.subr.bf16.mxu0 %v2395
        %4809 = vmatpush1.bf16.msra.mxu0 %v2394
        %4810 = vmatprep.subr.bf16.mxu0 %v2403
        %4811 = vmatpush1.bf16.msra.mxu0 %v2402
        %4812 = vmatprep.subr.bf16.mxu0 %v2411
        %4813 = vmatpush1.bf16.msra.mxu0 %v2410
        %4814 = vmatprep.subr.bf16.mxu0 %v2419
        %4815 = vmatpush1.bf16.msra.mxu0 %v2418
        %4816 = vmatprep.subr.bf16.mxu0 %v2427
        %4817 = vmatpush1.bf16.msra.mxu0 %v2426
        %4818 = vmatprep.subr.bf16.mxu0 %v2435
        %4819 = vmatpush1.bf16.msra.mxu0 %v2434
        %4820 = vmatprep.subr.bf16.mxu0 %v2443
        %4821 = vmatpush1.bf16.msra.mxu0 %v2442
        %4822 = vmatprep.subr.bf16.mxu0 %v2451
        %4823 = vmatpush1.bf16.msra.mxu0 %v2450
        %4824 = vmatprep.subr.bf16.mxu0 %v2459
        %4825 = vmatpush1.bf16.msra.mxu0 %v2458
        %4826 = vmatprep.subr.bf16.mxu0 %v2467
        %4827 = vmatpush1.bf16.msra.mxu0 %v2466
        %4828 = vmatprep.subr.bf16.mxu0 %v2475
        %4829 = vmatpush1.bf16.msra.mxu0 %v2474
        %4830 = vmatprep.subr.bf16.mxu0 %v2483
        %4831 = vmatpush1.bf16.msra.mxu0 %v2482
        %4832 = vmatprep.mubr.bf16.mxu0 %v511
        %4833 = vmatmul.mubr.bf16.gmra.mrb[0].mxu0 %v510
        %v4834 = vpop.f32.mrb[0].mxu0
        %v4835 = vadd.f32 %v4642, %v4834
        %v4836 = vpop.f32.mrb[0].mxu0
        %v4837 = vadd.f32 %v4644, %v4836
        %v4838 = vpop.f32.mrb[0].mxu0
        %v4839 = vadd.f32 %v4646, %v4838
        %v4840 = vpop.f32.mrb[0].mxu0
        %v4841 = vadd.f32 %v4648, %v4840
        %4842 = vmatprep.mubr.bf16.mxu0 %v518
        %4843 = vmatmul.mubr.bf16.gmra.mrb[0].mxu0 %v517
        %v4844 = vpop.f32.mrb[0].mxu0
        %v4845 = vadd.f32 %v4652, %v4844
        %v4846 = vpop.f32.mrb[0].mxu0
        %v4847 = vadd.f32 %v4654, %v4846
        %v4848 = vpop.f32.mrb[0].mxu0
        %v4849 = vadd.f32 %v4656, %v4848
        %v4850 = vpop.f32.mrb[0].mxu0
        %v4851 = vadd.f32 %v4658, %v4850
        %4852 = vmatprep.mubr.bf16.mxu0 %v525
        %4853 = vmatmul.mubr.bf16.gmra.mrb[0].mxu0 %v524
        %v4854 = vpop.f32.mrb[0].mxu0
        %v4855 = vadd.f32 %v4662, %v4854
        %v4856 = vpop.f32.mrb[0].mxu0
        %v4857 = vadd.f32 %v4664, %v4856
        %v4858 = vpop.f32.mrb[0].mxu0
        %v4859 = vadd.f32 %v4666, %v4858
        %v4860 = vpop.f32.mrb[0].mxu0
        %v4861 = vadd.f32 %v4668, %v4860
        %4862 = vmatprep.mubr.bf16.mxu0 %v532
        %4863 = vmatmul.mubr.bf16.gmra.mrb[0].mxu0 %v531
        %v4864 = vpop.f32.mrb[0].mxu0
        %v4865 = vadd.f32 %v4672, %v4864
        %v4866 = vpop.f32.mrb[0].mxu0
        %v4867 = vadd.f32 %v4674, %v4866
        %v4868 = vpop.f32.mrb[0].mxu0
        %v4869 = vadd.f32 %v4676, %v4868
        %v4870 = vpop.f32.mrb[0].mxu0
        %v4871 = vadd.f32 %v4678, %v4870
        %4872 = vmatprep.mubr.bf16.mxu0 %v539
        %4873 = vmatmul.mubr.bf16.gmra.mrb[0].mxu0 %v538
        %v4874 = vpop.f32.mrb[0].mxu0
        %v4875 = vadd.f32 %v4682, %v4874
        %v4876 = vpop.f32.mrb[0].mxu0
        %v4877 = vadd.f32 %v4684, %v4876
        %v4878 = vpop.f32.mrb[0].mxu0
        %v4879 = vadd.f32 %v4686, %v4878
        %v4880 = vpop.f32.mrb[0].mxu0
        %v4881 = vadd.f32 %v4688, %v4880
        %4882 = vmatprep.mubr.bf16.mxu0 %v546
        %4883 = vmatmul.mubr.bf16.gmra.mrb[0].mxu0 %v545
        %v4884 = vpop.f32.mrb[0].mxu0
        %v4885 = vadd.f32 %v4692, %v4884
        %v4886 = vpop.f32.mrb[0].mxu0
        %v4887 = vadd.f32 %v4694, %v4886
        %v4888 = vpop.f32.mrb[0].mxu0
        %v4889 = vadd.f32 %v4696, %v4888
        %v4890 = vpop.f32.mrb[0].mxu0
        %v4891 = vadd.f32 %v4698, %v4890
        %4892 = vmatprep.mubr.bf16.mxu0 %v553
        %4893 = vmatmul.mubr.bf16.gmra.mrb[0].mxu0 %v552
        %v4894 = vpop.f32.mrb[0].mxu0
        %v4895 = vadd.f32 %v4702, %v4894
        %v4896 = vpop.f32.mrb[0].mxu0
        %v4897 = vadd.f32 %v4704, %v4896
        %v4898 = vpop.f32.mrb[0].mxu0
        %v4899 = vadd.f32 %v4706, %v4898
        %v4900 = vpop.f32.mrb[0].mxu0
        %v4901 = vadd.f32 %v4708, %v4900
        %4902 = vmatprep.mubr.bf16.mxu0 %v560
        %4903 = vmatmul.mubr.bf16.gmra.mrb[0].mxu0 %v559
        %v4904 = vpop.f32.mrb[0].mxu0
        %v4905 = vadd.f32 %v4712, %v4904
        %v4906 = vpop.f32.mrb[0].mxu0
        %v4907 = vadd.f32 %v4714, %v4906
        %v4908 = vpop.f32.mrb[0].mxu0
        %v4909 = vadd.f32 %v4716, %v4908
        %v4910 = vpop.f32.mrb[0].mxu0
        %v4911 = vadd.f32 %v4718, %v4910
        %4912 = vmatprep.mubr.bf16.mxu0 %v567
        %4913 = vmatmul.mubr.bf16.gmra.mrb[0].mxu0 %v566
        %v4914 = vpop.f32.mrb[0].mxu0
        %v4915 = vadd.f32 %v4722, %v4914
        %v4916 = vpop.f32.mrb[0].mxu0
        %v4917 = vadd.f32 %v4724, %v4916
        %v4918 = vpop.f32.mrb[0].mxu0
        %v4919 = vadd.f32 %v4726, %v4918
        %v4920 = vpop.f32.mrb[0].mxu0
        %v4921 = vadd.f32 %v4728, %v4920
        %4922 = vmatprep.mubr.bf16.mxu0 %v574
        %4923 = vmatmul.mubr.bf16.gmra.mrb[0].mxu0 %v573
        %v4924 = vpop.f32.mrb[0].mxu0
        %v4925 = vadd.f32 %v4732, %v4924
        %v4926 = vpop.f32.mrb[0].mxu0
        %v4927 = vadd.f32 %v4734, %v4926
        %v4928 = vpop.f32.mrb[0].mxu0
        %v4929 = vadd.f32 %v4736, %v4928
        %v4930 = vpop.f32.mrb[0].mxu0
        %v4931 = vadd.f32 %v4738, %v4930
        %4932 = vmatprep.mubr.bf16.mxu0 %v581
        %4933 = vmatmul.mubr.bf16.gmra.mrb[0].mxu0 %v580
        %v4934 = vpop.f32.mrb[0].mxu0
        %v4935 = vadd.f32 %v4742, %v4934
        %v4936 = vpop.f32.mrb[0].mxu0
        %v4937 = vadd.f32 %v4744, %v4936
        %v4938 = vpop.f32.mrb[0].mxu0
        %v4939 = vadd.f32 %v4746, %v4938
        %v4940 = vpop.f32.mrb[0].mxu0
        %v4941 = vadd.f32 %v4748, %v4940
        %4942 = vmatprep.mubr.bf16.mxu0 %v588
        %4943 = vmatmul.mubr.bf16.gmra.mrb[0].mxu0 %v587
        %v4944 = vpop.f32.mrb[0].mxu0
        %v4945 = vadd.f32 %v4752, %v4944
        %v4946 = vpop.f32.mrb[0].mxu0
        %v4947 = vadd.f32 %v4754, %v4946
        %v4948 = vpop.f32.mrb[0].mxu0
        %v4949 = vadd.f32 %v4756, %v4948
        %v4950 = vpop.f32.mrb[0].mxu0
        %v4951 = vadd.f32 %v4758, %v4950
        %4952 = vmatprep.mubr.bf16.mxu0 %v595
        %4953 = vmatmul.mubr.bf16.gmra.mrb[0].mxu0 %v594
        %v4954 = vpop.f32.mrb[0].mxu0
        %v4955 = vadd.f32 %v4762, %v4954
        %v4956 = vpop.f32.mrb[0].mxu0
        %v4957 = vadd.f32 %v4764, %v4956
        %v4958 = vpop.f32.mrb[0].mxu0
        %v4959 = vadd.f32 %v4766, %v4958
        %v4960 = vpop.f32.mrb[0].mxu0
        %v4961 = vadd.f32 %v4768, %v4960
        %4962 = vmatprep.mubr.bf16.mxu0 %v602
        %4963 = vmatmul.mubr.bf16.gmra.mrb[0].mxu0 %v601
        %v4964 = vpop.f32.mrb[0].mxu0
        %v4965 = vadd.f32 %v4772, %v4964
        %v4966 = vpop.f32.mrb[0].mxu0
        %v4967 = vadd.f32 %v4774, %v4966
        %v4968 = vpop.f32.mrb[0].mxu0
        %v4969 = vadd.f32 %v4776, %v4968
        %v4970 = vpop.f32.mrb[0].mxu0
        %v4971 = vadd.f32 %v4778, %v4970
        %4972 = vmatprep.mubr.bf16.mxu0 %v609
        %4973 = vmatmul.mubr.bf16.gmra.mrb[0].mxu0 %v608
        %v4974 = vpop.f32.mrb[0].mxu0
        %v4975 = vadd.f32 %v4782, %v4974
        %v4976 = vpop.f32.mrb[0].mxu0
        %v4977 = vadd.f32 %v4784, %v4976
        %v4978 = vpop.f32.mrb[0].mxu0
        %v4979 = vadd.f32 %v4786, %v4978
        %v4980 = vpop.f32.mrb[0].mxu0
        %v4981 = vadd.f32 %v4788, %v4980
        %4982 = vmatprep.mubr.bf16.mxu0 %v616
        %4983 = vmatmul.mubr.bf16.gmra.mrb[0].mxu0 %v615
        %v4984 = vpop.f32.mrb[0].mxu0
        %v4985 = vadd.f32 %v4792, %v4984
        %v4986 = vpop.f32.mrb[0].mxu0
        %v4987 = vadd.f32 %v4794, %v4986
        %v4988 = vpop.f32.mrb[0].mxu0
        %v4989 = vadd.f32 %v4796, %v4988
        %v4990 = vpop.f32.mrb[0].mxu0
        %v4991 = vadd.f32 %v4798, %v4990
        %4992 = vdwg.mxu0
        %4993 = vmatprep.subr.bf16.mxu0 %v2491
        %4994 = vmatpush1.bf16.msra.mxu0 %v2490
        %4995 = vmatprep.subr.bf16.mxu0 %v2499
        %4996 = vmatpush1.bf16.msra.mxu0 %v2498
        %4997 = vmatprep.subr.bf16.mxu0 %v2507
        %4998 = vmatpush1.bf16.msra.mxu0 %v2506
        %4999 = vmatprep.subr.bf16.mxu0 %v2515
        %5000 = vmatpush1.bf16.msra.mxu0 %v2514
        %5001 = vmatprep.subr.bf16.mxu0 %v2523
        %5002 = vmatpush1.bf16.msra.mxu0 %v2522
        %5003 = vmatprep.subr.bf16.mxu0 %v2531
        %5004 = vmatpush1.bf16.msra.mxu0 %v2530
        %5005 = vmatprep.subr.bf16.mxu0 %v2539
        %5006 = vmatpush1.bf16.msra.mxu0 %v2538
        %5007 = vmatprep.subr.bf16.mxu0 %v2547
        %5008 = vmatpush1.bf16.msra.mxu0 %v2546
        %5009 = vmatprep.subr.bf16.mxu0 %v2555
        %5010 = vmatpush1.bf16.msra.mxu0 %v2554
        %5011 = vmatprep.subr.bf16.mxu0 %v2563
        %5012 = vmatpush1.bf16.msra.mxu0 %v2562
        %5013 = vmatprep.subr.bf16.mxu0 %v2571
        %5014 = vmatpush1.bf16.msra.mxu0 %v2570
        %5015 = vmatprep.subr.bf16.mxu0 %v2579
        %5016 = vmatpush1.bf16.msra.mxu0 %v2578
        %5017 = vmatprep.subr.bf16.mxu0 %v2587
        %5018 = vmatpush1.bf16.msra.mxu0 %v2586
        %5019 = vmatprep.subr.bf16.mxu0 %v2595
        %5020 = vmatpush1.bf16.msra.mxu0 %v2594
        %5021 = vmatprep.subr.bf16.mxu0 %v2603
        %5022 = vmatpush1.bf16.msra.mxu0 %v2602
        %5023 = vmatprep.subr.bf16.mxu0 %v2611
        %5024 = vmatpush1.bf16.msra.mxu0 %v2610
        %5025 = vmatprep.mubr.bf16.mxu0 %v513
        %5026 = vmatmul.mubr.bf16.gmra.mrb[0].mxu0 %v512
        %v5027 = vpop.f32.mrb[0].mxu0
        %v5028 = vadd.f32 %v4835, %v5027
        %v5029 = vpop.f32.mrb[0].mxu0
        %v5030 = vadd.f32 %v4837, %v5029
        %v5031 = vpop.f32.mrb[0].mxu0
        %v5032 = vadd.f32 %v4839, %v5031
        %v5033 = vpop.f32.mrb[0].mxu0
        %v5034 = vadd.f32 %v4841, %v5033
        %5035 = vmatprep.mubr.bf16.mxu0 %v520
        %5036 = vmatmul.mubr.bf16.gmra.mrb[0].mxu0 %v519
        %v5037 = vpop.f32.mrb[0].mxu0
        %v5038 = vadd.f32 %v4845, %v5037
        %v5039 = vpop.f32.mrb[0].mxu0
        %v5040 = vadd.f32 %v4847, %v5039
        %v5041 = vpop.f32.mrb[0].mxu0
        %v5042 = vadd.f32 %v4849, %v5041
        %v5043 = vpop.f32.mrb[0].mxu0
        %v5044 = vadd.f32 %v4851, %v5043
        %5045 = vmatprep.mubr.bf16.mxu0 %v527
        %5046 = vmatmul.mubr.bf16.gmra.mrb[0].mxu0 %v526
        %v5047 = vpop.f32.mrb[0].mxu0
        %v5048 = vadd.f32 %v4855, %v5047
        %v5049 = vpop.f32.mrb[0].mxu0
        %v5050 = vadd.f32 %v4857, %v5049
        %v5051 = vpop.f32.mrb[0].mxu0
        %v5052 = vadd.f32 %v4859, %v5051
        %v5053 = vpop.f32.mrb[0].mxu0
        %v5054 = vadd.f32 %v4861, %v5053
        %5055 = vmatprep.mubr.bf16.mxu0 %v534
        %5056 = vmatmul.mubr.bf16.gmra.mrb[0].mxu0 %v533
        %v5057 = vpop.f32.mrb[0].mxu0
        %v5058 = vadd.f32 %v4865, %v5057
        %v5059 = vpop.f32.mrb[0].mxu0
        %v5060 = vadd.f32 %v4867, %v5059
        %v5061 = vpop.f32.mrb[0].mxu0
        %v5062 = vadd.f32 %v4869, %v5061
        %v5063 = vpop.f32.mrb[0].mxu0
        %v5064 = vadd.f32 %v4871, %v5063
        %5065 = vmatprep.mubr.bf16.mxu0 %v541
        %5066 = vmatmul.mubr.bf16.gmra.mrb[0].mxu0 %v540
        %v5067 = vpop.f32.mrb[0].mxu0
        %v5068 = vadd.f32 %v4875, %v5067
        %v5069 = vpop.f32.mrb[0].mxu0
        %v5070 = vadd.f32 %v4877, %v5069
        %v5071 = vpop.f32.mrb[0].mxu0
        %v5072 = vadd.f32 %v4879, %v5071
        %v5073 = vpop.f32.mrb[0].mxu0
        %v5074 = vadd.f32 %v4881, %v5073
        %5075 = vmatprep.mubr.bf16.mxu0 %v548
        %5076 = vmatmul.mubr.bf16.gmra.mrb[0].mxu0 %v547
        %v5077 = vpop.f32.mrb[0].mxu0
        %v5078 = vadd.f32 %v4885, %v5077
        %v5079 = vpop.f32.mrb[0].mxu0
        %v5080 = vadd.f32 %v4887, %v5079
        %v5081 = vpop.f32.mrb[0].mxu0
        %v5082 = vadd.f32 %v4889, %v5081
        %v5083 = vpop.f32.mrb[0].mxu0
        %v5084 = vadd.f32 %v4891, %v5083
        %5085 = vmatprep.mubr.bf16.mxu0 %v555
        %5086 = vmatmul.mubr.bf16.gmra.mrb[0].mxu0 %v554
        %v5087 = vpop.f32.mrb[0].mxu0
        %v5088 = vadd.f32 %v4895, %v5087
        %v5089 = vpop.f32.mrb[0].mxu0
        %v5090 = vadd.f32 %v4897, %v5089
        %v5091 = vpop.f32.mrb[0].mxu0
        %v5092 = vadd.f32 %v4899, %v5091
        %v5093 = vpop.f32.mrb[0].mxu0
        %v5094 = vadd.f32 %v4901, %v5093
        %5095 = vmatprep.mubr.bf16.mxu0 %v562
        %5096 = vmatmul.mubr.bf16.gmra.mrb[0].mxu0 %v561
        %v5097 = vpop.f32.mrb[0].mxu0
        %v5098 = vadd.f32 %v4905, %v5097
        %v5099 = vpop.f32.mrb[0].mxu0
        %v5100 = vadd.f32 %v4907, %v5099
        %v5101 = vpop.f32.mrb[0].mxu0
        %v5102 = vadd.f32 %v4909, %v5101
        %v5103 = vpop.f32.mrb[0].mxu0
        %v5104 = vadd.f32 %v4911, %v5103
        %5105 = vmatprep.mubr.bf16.mxu0 %v569
        %5106 = vmatmul.mubr.bf16.gmra.mrb[0].mxu0 %v568
        %v5107 = vpop.f32.mrb[0].mxu0
        %v5108 = vadd.f32 %v4915, %v5107
        %v5109 = vpop.f32.mrb[0].mxu0
        %v5110 = vadd.f32 %v4917, %v5109
        %v5111 = vpop.f32.mrb[0].mxu0
        %v5112 = vadd.f32 %v4919, %v5111
        %v5113 = vpop.f32.mrb[0].mxu0
        %v5114 = vadd.f32 %v4921, %v5113
        %5115 = vmatprep.mubr.bf16.mxu0 %v576
        %5116 = vmatmul.mubr.bf16.gmra.mrb[0].mxu0 %v575
        %v5117 = vpop.f32.mrb[0].mxu0
        %v5118 = vadd.f32 %v4925, %v5117
        %v5119 = vpop.f32.mrb[0].mxu0
        %v5120 = vadd.f32 %v4927, %v5119
        %v5121 = vpop.f32.mrb[0].mxu0
        %v5122 = vadd.f32 %v4929, %v5121
        %v5123 = vpop.f32.mrb[0].mxu0
        %v5124 = vadd.f32 %v4931, %v5123
        %5125 = vmatprep.mubr.bf16.mxu0 %v583
        %5126 = vmatmul.mubr.bf16.gmra.mrb[0].mxu0 %v582
        %v5127 = vpop.f32.mrb[0].mxu0
        %v5128 = vadd.f32 %v4935, %v5127
        %v5129 = vpop.f32.mrb[0].mxu0
        %v5130 = vadd.f32 %v4937, %v5129
        %v5131 = vpop.f32.mrb[0].mxu0
        %v5132 = vadd.f32 %v4939, %v5131
        %v5133 = vpop.f32.mrb[0].mxu0
        %v5134 = vadd.f32 %v4941, %v5133
        %5135 = vmatprep.mubr.bf16.mxu0 %v590
        %5136 = vmatmul.mubr.bf16.gmra.mrb[0].mxu0 %v589
        %v5137 = vpop.f32.mrb[0].mxu0
        %v5138 = vadd.f32 %v4945, %v5137
        %v5139 = vpop.f32.mrb[0].mxu0
        %v5140 = vadd.f32 %v4947, %v5139
        %v5141 = vpop.f32.mrb[0].mxu0
        %v5142 = vadd.f32 %v4949, %v5141
        %v5143 = vpop.f32.mrb[0].mxu0
        %v5144 = vadd.f32 %v4951, %v5143
        %5145 = vmatprep.mubr.bf16.mxu0 %v597
        %5146 = vmatmul.mubr.bf16.gmra.mrb[0].mxu0 %v596
        %v5147 = vpop.f32.mrb[0].mxu0
        %v5148 = vadd.f32 %v4955, %v5147
        %v5149 = vpop.f32.mrb[0].mxu0
        %v5150 = vadd.f32 %v4957, %v5149
        %v5151 = vpop.f32.mrb[0].mxu0
        %v5152 = vadd.f32 %v4959, %v5151
        %v5153 = vpop.f32.mrb[0].mxu0
        %v5154 = vadd.f32 %v4961, %v5153
        %5155 = vmatprep.mubr.bf16.mxu0 %v604
        %5156 = vmatmul.mubr.bf16.gmra.mrb[0].mxu0 %v603
        %v5157 = vpop.f32.mrb[0].mxu0
        %v5158 = vadd.f32 %v4965, %v5157
        %v5159 = vpop.f32.mrb[0].mxu0
        %v5160 = vadd.f32 %v4967, %v5159
        %v5161 = vpop.f32.mrb[0].mxu0
        %v5162 = vadd.f32 %v4969, %v5161
        %v5163 = vpop.f32.mrb[0].mxu0
        %v5164 = vadd.f32 %v4971, %v5163
        %5165 = vmatprep.mubr.bf16.mxu0 %v611
        %5166 = vmatmul.mubr.bf16.gmra.mrb[0].mxu0 %v610
        %v5167 = vpop.f32.mrb[0].mxu0
        %v5168 = vadd.f32 %v4975, %v5167
        %v5169 = vpop.f32.mrb[0].mxu0
        %v5170 = vadd.f32 %v4977, %v5169
        %v5171 = vpop.f32.mrb[0].mxu0
        %v5172 = vadd.f32 %v4979, %v5171
        %v5173 = vpop.f32.mrb[0].mxu0
        %v5174 = vadd.f32 %v4981, %v5173
        %5175 = vmatprep.mubr.bf16.mxu0 %v618
        %5176 = vmatmul.mubr.bf16.gmra.mrb[0].mxu0 %v617
        %v5177 = vpop.f32.mrb[0].mxu0
        %v5178 = vadd.f32 %v4985, %v5177
        %v5179 = vpop.f32.mrb[0].mxu0
        %v5180 = vadd.f32 %v4987, %v5179
        %v5181 = vpop.f32.mrb[0].mxu0
        %v5182 = vadd.f32 %v4989, %v5181
        %v5183 = vpop.f32.mrb[0].mxu0
        %v5184 = vadd.f32 %v4991, %v5183
        %5185 = vdwg.mxu0
        %5186 = vmatprep.subr.bf16.mxu0 %v2619
        %5187 = vmatpush1.bf16.msra.mxu0 %v2618
        %5188 = vmatprep.subr.bf16.mxu0 0
        %5189 = vmatpush1.bf16.msra.mxu0 0
        %5190 = vmatprep.subr.bf16.mxu0 0
        %5191 = vmatpush1.bf16.msra.mxu0 0
        %5192 = vmatprep.subr.bf16.mxu0 0
        %5193 = vmatpush1.bf16.msra.mxu0 0
        %5194 = vmatprep.subr.bf16.mxu0 0
        %5195 = vmatpush1.bf16.msra.mxu0 0
        %5196 = vmatprep.subr.bf16.mxu0 0
        %5197 = vmatpush1.bf16.msra.mxu0 0
        %5198 = vmatprep.subr.bf16.mxu0 0
        %5199 = vmatpush1.bf16.msra.mxu0 0
        %5200 = vmatprep.subr.bf16.mxu0 0
        %5201 = vmatpush1.bf16.msra.mxu0 0
        %5202 = vmatprep.subr.bf16.mxu0 0
        %5203 = vmatpush1.bf16.msra.mxu0 0
        %5204 = vmatprep.subr.bf16.mxu0 0
        %5205 = vmatpush1.bf16.msra.mxu0 0
        %5206 = vmatprep.subr.bf16.mxu0 0
        %5207 = vmatpush1.bf16.msra.mxu0 0
        %5208 = vmatprep.subr.bf16.mxu0 0
        %5209 = vmatpush1.bf16.msra.mxu0 0
        %5210 = vmatprep.subr.bf16.mxu0 0
        %5211 = vmatpush1.bf16.msra.mxu0 0
        %5212 = vmatprep.subr.bf16.mxu0 0
        %5213 = vmatpush1.bf16.msra.mxu0 0
        %5214 = vmatprep.subr.bf16.mxu0 0
        %5215 = vmatpush1.bf16.msra.mxu0 0
        %5216 = vmatprep.subr.bf16.mxu0 0
        %5217 = vmatpush1.bf16.msra.mxu0 0
        %5218 = vmatprep.mubr.bf16.mxu0 0
        %5219 = vmatmul.mubr.bf16.gmra.mrb[0].mxu0 %v3016
        %v5220 = vpop.f32.mrb[0].mxu0
        %v5221 = vadd.f32 %v5028, %v5220
        %v5222 = vpop.f32.mrb[0].mxu0
        %v5223 = vadd.f32 %v5030, %v5222
        %v5224 = vpop.f32.mrb[0].mxu0
        %v5225 = vadd.f32 %v5032, %v5224
        %v5226 = vpop.f32.mrb[0].mxu0
        %v5227 = vadd.f32 %v5034, %v5226
        %5228 = vmatprep.mubr.bf16.mxu0 0
        %5229 = vmatmul.mubr.bf16.gmra.mrb[0].mxu0 %v3019
        %v5230 = vpop.f32.mrb[0].mxu0
        %v5231 = vadd.f32 %v5038, %v5230
        %v5232 = vpop.f32.mrb[0].mxu0
        %v5233 = vadd.f32 %v5040, %v5232
        %v5234 = vpop.f32.mrb[0].mxu0
        %v5235 = vadd.f32 %v5042, %v5234
        %v5236 = vpop.f32.mrb[0].mxu0
        %v5237 = vadd.f32 %v5044, %v5236
        %5238 = vmatprep.mubr.bf16.mxu0 0
        %5239 = vmatmul.mubr.bf16.gmra.mrb[0].mxu0 %v3022
        %v5240 = vpop.f32.mrb[0].mxu0
        %v5241 = vadd.f32 %v5048, %v5240
        %v5242 = vpop.f32.mrb[0].mxu0
        %v5243 = vadd.f32 %v5050, %v5242
        %v5244 = vpop.f32.mrb[0].mxu0
        %v5245 = vadd.f32 %v5052, %v5244
        %v5246 = vpop.f32.mrb[0].mxu0
        %v5247 = vadd.f32 %v5054, %v5246
        %5248 = vmatprep.mubr.bf16.mxu0 0
        %5249 = vmatmul.mubr.bf16.gmra.mrb[0].mxu0 %v3025
        %v5250 = vpop.f32.mrb[0].mxu0
        %v5251 = vadd.f32 %v5058, %v5250
        %v5252 = vpop.f32.mrb[0].mxu0
        %v5253 = vadd.f32 %v5060, %v5252
        %v5254 = vpop.f32.mrb[0].mxu0
        %v5255 = vadd.f32 %v5062, %v5254
        %v5256 = vpop.f32.mrb[0].mxu0
        %v5257 = vadd.f32 %v5064, %v5256
        %5258 = vmatprep.mubr.bf16.mxu0 0
        %5259 = vmatmul.mubr.bf16.gmra.mrb[0].mxu0 %v3028
        %v5260 = vpop.f32.mrb[0].mxu0
        %v5261 = vadd.f32 %v5068, %v5260
        %v5262 = vpop.f32.mrb[0].mxu0
        %v5263 = vadd.f32 %v5070, %v5262
        %v5264 = vpop.f32.mrb[0].mxu0
        %v5265 = vadd.f32 %v5072, %v5264
        %v5266 = vpop.f32.mrb[0].mxu0
        %v5267 = vadd.f32 %v5074, %v5266
        %5268 = vmatprep.mubr.bf16.mxu0 0
        %5269 = vmatmul.mubr.bf16.gmra.mrb[0].mxu0 %v3031
        %v5270 = vpop.f32.mrb[0].mxu0
        %v5271 = vadd.f32 %v5078, %v5270
        %v5272 = vpop.f32.mrb[0].mxu0
        %v5273 = vadd.f32 %v5080, %v5272
        %v5274 = vpop.f32.mrb[0].mxu0
        %v5275 = vadd.f32 %v5082, %v5274
        %v5276 = vpop.f32.mrb[0].mxu0
        %v5277 = vadd.f32 %v5084, %v5276
        %5278 = vmatprep.mubr.bf16.mxu0 0
        %5279 = vmatmul.mubr.bf16.gmra.mrb[0].mxu0 %v3034
        %v5280 = vpop.f32.mrb[0].mxu0
        %v5281 = vadd.f32 %v5088, %v5280
        %v5282 = vpop.f32.mrb[0].mxu0
        %v5283 = vadd.f32 %v5090, %v5282
        %v5284 = vpop.f32.mrb[0].mxu0
        %v5285 = vadd.f32 %v5092, %v5284
        %v5286 = vpop.f32.mrb[0].mxu0
        %v5287 = vadd.f32 %v5094, %v5286
        %5288 = vmatprep.mubr.bf16.mxu0 0
        %5289 = vmatmul.mubr.bf16.gmra.mrb[0].mxu0 %v3037
        %v5290 = vpop.f32.mrb[0].mxu0
        %v5291 = vadd.f32 %v5098, %v5290
        %v5292 = vpop.f32.mrb[0].mxu0
        %v5293 = vadd.f32 %v5100, %v5292
        %v5294 = vpop.f32.mrb[0].mxu0
        %v5295 = vadd.f32 %v5102, %v5294
        %v5296 = vpop.f32.mrb[0].mxu0
        %v5297 = vadd.f32 %v5104, %v5296
        %5298 = vmatprep.mubr.bf16.mxu0 0
        %5299 = vmatmul.mubr.bf16.gmra.mrb[0].mxu0 %v3040
        %v5300 = vpop.f32.mrb[0].mxu0
        %v5301 = vadd.f32 %v5108, %v5300
        %v5302 = vpop.f32.mrb[0].mxu0
        %v5303 = vadd.f32 %v5110, %v5302
        %v5304 = vpop.f32.mrb[0].mxu0
        %v5305 = vadd.f32 %v5112, %v5304
        %v5306 = vpop.f32.mrb[0].mxu0
        %v5307 = vadd.f32 %v5114, %v5306
        %5308 = vmatprep.mubr.bf16.mxu0 0
        %5309 = vmatmul.mubr.bf16.gmra.mrb[0].mxu0 %v3043
        %v5310 = vpop.f32.mrb[0].mxu0
        %v5311 = vadd.f32 %v5118, %v5310
        %v5312 = vpop.f32.mrb[0].mxu0
        %v5313 = vadd.f32 %v5120, %v5312
        %v5314 = vpop.f32.mrb[0].mxu0
        %v5315 = vadd.f32 %v5122, %v5314
        %v5316 = vpop.f32.mrb[0].mxu0
        %v5317 = vadd.f32 %v5124, %v5316
        %5318 = vmatprep.mubr.bf16.mxu0 0
        %5319 = vmatmul.mubr.bf16.gmra.mrb[0].mxu0 %v3046
        %v5320 = vpop.f32.mrb[0].mxu0
        %v5321 = vadd.f32 %v5128, %v5320
        %v5322 = vpop.f32.mrb[0].mxu0
        %v5323 = vadd.f32 %v5130, %v5322
        %v5324 = vpop.f32.mrb[0].mxu0
        %v5325 = vadd.f32 %v5132, %v5324
        %v5326 = vpop.f32.mrb[0].mxu0
        %v5327 = vadd.f32 %v5134, %v5326
        %5328 = vmatprep.mubr.bf16.mxu0 0
        %5329 = vmatmul.mubr.bf16.gmra.mrb[0].mxu0 %v3049
        %v5330 = vpop.f32.mrb[0].mxu0
        %v5331 = vadd.f32 %v5138, %v5330
        %v5332 = vpop.f32.mrb[0].mxu0
        %v5333 = vadd.f32 %v5140, %v5332
        %v5334 = vpop.f32.mrb[0].mxu0
        %v5335 = vadd.f32 %v5142, %v5334
        %v5336 = vpop.f32.mrb[0].mxu0
        %v5337 = vadd.f32 %v5144, %v5336
        %5338 = vmatprep.mubr.bf16.mxu0 0
        %5339 = vmatmul.mubr.bf16.gmra.mrb[0].mxu0 %v3052
        %v5340 = vpop.f32.mrb[0].mxu0
        %v5341 = vadd.f32 %v5148, %v5340
        %v5342 = vpop.f32.mrb[0].mxu0
        %v5343 = vadd.f32 %v5150, %v5342
        %v5344 = vpop.f32.mrb[0].mxu0
        %v5345 = vadd.f32 %v5152, %v5344
        %v5346 = vpop.f32.mrb[0].mxu0
        %v5347 = vadd.f32 %v5154, %v5346
        %5348 = vmatprep.mubr.bf16.mxu0 0
        %5349 = vmatmul.mubr.bf16.gmra.mrb[0].mxu0 %v3055
        %v5350 = vpop.f32.mrb[0].mxu0
        %v5351 = vadd.f32 %v5158, %v5350
        %v5352 = vpop.f32.mrb[0].mxu0
        %v5353 = vadd.f32 %v5160, %v5352
        %v5354 = vpop.f32.mrb[0].mxu0
        %v5355 = vadd.f32 %v5162, %v5354
        %v5356 = vpop.f32.mrb[0].mxu0
        %v5357 = vadd.f32 %v5164, %v5356
        %5358 = vmatprep.mubr.bf16.mxu0 0
        %5359 = vmatmul.mubr.bf16.gmra.mrb[0].mxu0 %v3058
        %v5360 = vpop.f32.mrb[0].mxu0
        %v5361 = vadd.f32 %v5168, %v5360
        %v5362 = vpop.f32.mrb[0].mxu0
        %v5363 = vadd.f32 %v5170, %v5362
        %v5364 = vpop.f32.mrb[0].mxu0
        %v5365 = vadd.f32 %v5172, %v5364
        %v5366 = vpop.f32.mrb[0].mxu0
        %v5367 = vadd.f32 %v5174, %v5366
        %5368 = vmatprep.mubr.bf16.mxu0 0
        %5369 = vmatmul.mubr.bf16.gmra.mrb[0].mxu0 %v3061
        %v5370 = vpop.f32.mrb[0].mxu0
        %v5371 = vadd.f32 %v5178, %v5370
        %v5372 = vpop.f32.mrb[0].mxu0
        %v5373 = vadd.f32 %v5180, %v5372
        %v5374 = vpop.f32.mrb[0].mxu0
        %v5375 = vadd.f32 %v5182, %v5374
        %v5376 = vpop.f32.mrb[0].mxu0
        %v5377 = vadd.f32 %v5184, %v5376
        %5378 = vdwg.mxu0
        %5379 = vmatprep.subr.bf16.mxu0 %v2237
        %5380 = vmatpush1.bf16.msra.mxu0 %v2236
        %5381 = vmatprep.subr.bf16.mxu0 %v2245
        %5382 = vmatpush1.bf16.msra.mxu0 %v2244
        %5383 = vmatprep.subr.bf16.mxu0 %v2253
        %5384 = vmatpush1.bf16.msra.mxu0 %v2252
        %5385 = vmatprep.subr.bf16.mxu0 %v2261
        %5386 = vmatpush1.bf16.msra.mxu0 %v2260
        %5387 = vmatprep.subr.bf16.mxu0 %v2269
        %5388 = vmatpush1.bf16.msra.mxu0 %v2268
        %5389 = vmatprep.subr.bf16.mxu0 %v2277
        %5390 = vmatpush1.bf16.msra.mxu0 %v2276
        %5391 = vmatprep.subr.bf16.mxu0 %v2285
        %5392 = vmatpush1.bf16.msra.mxu0 %v2284
        %5393 = vmatprep.subr.bf16.mxu0 %v2293
        %5394 = vmatpush1.bf16.msra.mxu0 %v2292
        %5395 = vmatprep.subr.bf16.mxu0 %v2301
        %5396 = vmatpush1.bf16.msra.mxu0 %v2300
        %5397 = vmatprep.subr.bf16.mxu0 %v2309
        %5398 = vmatpush1.bf16.msra.mxu0 %v2308
        %5399 = vmatprep.subr.bf16.mxu0 %v2317
        %5400 = vmatpush1.bf16.msra.mxu0 %v2316
        %5401 = vmatprep.subr.bf16.mxu0 %v2325
        %5402 = vmatpush1.bf16.msra.mxu0 %v2324
        %5403 = vmatprep.subr.bf16.mxu0 %v2333
        %5404 = vmatpush1.bf16.msra.mxu0 %v2332
        %5405 = vmatprep.subr.bf16.mxu0 %v2341
        %5406 = vmatpush1.bf16.msra.mxu0 %v2340
        %5407 = vmatprep.subr.bf16.mxu0 %v2349
        %5408 = vmatpush1.bf16.msra.mxu0 %v2348
        %5409 = vmatprep.subr.bf16.mxu0 %v2357
        %5410 = vmatpush1.bf16.msra.mxu0 %v2356
        %5411 = vmatprep.mubr.bf16.mxu0 %v509
        %5412 = vmatmul.mubr.bf16.gmra.mrb[0].mxu0 %v508
        %v5413 = vpop.f32.mrb[0].mxu0
        %v5414 = vadd.f32 %v1041, %v5413
        %v5415 = vpop.f32.mrb[0].mxu0
        %v5416 = vadd.f32 %v1045, %v5415
        %v5417 = vpop.f32.mrb[0].mxu0
        %v5418 = vadd.f32 %v1041, %v5417
        %v5419 = vpop.f32.mrb[0].mxu0
        %v5420 = vadd.f32 %v1045, %v5419
        %5421 = vmatprep.mubr.bf16.mxu0 %v516
        %5422 = vmatmul.mubr.bf16.gmra.mrb[0].mxu0 %v515
        %v5423 = vpop.f32.mrb[0].mxu0
        %v5424 = vadd.f32 %v1041, %v5423
        %v5425 = vpop.f32.mrb[0].mxu0
        %v5426 = vadd.f32 %v1045, %v5425
        %v5427 = vpop.f32.mrb[0].mxu0
        %v5428 = vadd.f32 %v1041, %v5427
        %v5429 = vpop.f32.mrb[0].mxu0
        %v5430 = vadd.f32 %v1045, %v5429
        %5431 = vmatprep.mubr.bf16.mxu0 %v523
        %5432 = vmatmul.mubr.bf16.gmra.mrb[0].mxu0 %v522
        %v5433 = vpop.f32.mrb[0].mxu0
        %v5434 = vadd.f32 %v1041, %v5433
        %v5435 = vpop.f32.mrb[0].mxu0
        %v5436 = vadd.f32 %v1045, %v5435
        %v5437 = vpop.f32.mrb[0].mxu0
        %v5438 = vadd.f32 %v1041, %v5437
        %v5439 = vpop.f32.mrb[0].mxu0
        %v5440 = vadd.f32 %v1045, %v5439
        %5441 = vmatprep.mubr.bf16.mxu0 %v530
        %5442 = vmatmul.mubr.bf16.gmra.mrb[0].mxu0 %v529
        %v5443 = vpop.f32.mrb[0].mxu0
        %v5444 = vadd.f32 %v1041, %v5443
        %v5445 = vpop.f32.mrb[0].mxu0
        %v5446 = vadd.f32 %v1045, %v5445
        %v5447 = vpop.f32.mrb[0].mxu0
        %v5448 = vadd.f32 %v1041, %v5447
        %v5449 = vpop.f32.mrb[0].mxu0
        %v5450 = vadd.f32 %v1045, %v5449
        %5451 = vmatprep.mubr.bf16.mxu0 %v537
        %5452 = vmatmul.mubr.bf16.gmra.mrb[0].mxu0 %v536
        %v5453 = vpop.f32.mrb[0].mxu0
        %v5454 = vadd.f32 %v1041, %v5453
        %v5455 = vpop.f32.mrb[0].mxu0
        %v5456 = vadd.f32 %v1045, %v5455
        %v5457 = vpop.f32.mrb[0].mxu0
        %v5458 = vadd.f32 %v1041, %v5457
        %v5459 = vpop.f32.mrb[0].mxu0
        %v5460 = vadd.f32 %v1045, %v5459
        %5461 = vmatprep.mubr.bf16.mxu0 %v544
        %5462 = vmatmul.mubr.bf16.gmra.mrb[0].mxu0 %v543
        %v5463 = vpop.f32.mrb[0].mxu0
        %v5464 = vadd.f32 %v1041, %v5463
        %v5465 = vpop.f32.mrb[0].mxu0
        %v5466 = vadd.f32 %v1045, %v5465
        %v5467 = vpop.f32.mrb[0].mxu0
        %v5468 = vadd.f32 %v1041, %v5467
        %v5469 = vpop.f32.mrb[0].mxu0
        %v5470 = vadd.f32 %v1045, %v5469
        %5471 = vmatprep.mubr.bf16.mxu0 %v551
        %5472 = vmatmul.mubr.bf16.gmra.mrb[0].mxu0 %v550
        %v5473 = vpop.f32.mrb[0].mxu0
        %v5474 = vadd.f32 %v1041, %v5473
        %v5475 = vpop.f32.mrb[0].mxu0
        %v5476 = vadd.f32 %v1045, %v5475
        %v5477 = vpop.f32.mrb[0].mxu0
        %v5478 = vadd.f32 %v1041, %v5477
        %v5479 = vpop.f32.mrb[0].mxu0
        %v5480 = vadd.f32 %v1045, %v5479
        %5481 = vmatprep.mubr.bf16.mxu0 %v558
        %5482 = vmatmul.mubr.bf16.gmra.mrb[0].mxu0 %v557
        %v5483 = vpop.f32.mrb[0].mxu0
        %v5484 = vadd.f32 %v1041, %v5483
        %v5485 = vpop.f32.mrb[0].mxu0
        %v5486 = vadd.f32 %v1045, %v5485
        %v5487 = vpop.f32.mrb[0].mxu0
        %v5488 = vadd.f32 %v1041, %v5487
        %v5489 = vpop.f32.mrb[0].mxu0
        %v5490 = vadd.f32 %v1045, %v5489
        %5491 = vmatprep.mubr.bf16.mxu0 %v565
        %5492 = vmatmul.mubr.bf16.gmra.mrb[0].mxu0 %v564
        %v5493 = vpop.f32.mrb[0].mxu0
        %v5494 = vadd.f32 %v1041, %v5493
        %v5495 = vpop.f32.mrb[0].mxu0
        %v5496 = vadd.f32 %v1045, %v5495
        %v5497 = vpop.f32.mrb[0].mxu0
        %v5498 = vadd.f32 %v1041, %v5497
        %v5499 = vpop.f32.mrb[0].mxu0
        %v5500 = vadd.f32 %v1045, %v5499
        %5501 = vmatprep.mubr.bf16.mxu0 %v572
        %5502 = vmatmul.mubr.bf16.gmra.mrb[0].mxu0 %v571
        %v5503 = vpop.f32.mrb[0].mxu0
        %v5504 = vadd.f32 %v1041, %v5503
        %v5505 = vpop.f32.mrb[0].mxu0
        %v5506 = vadd.f32 %v1045, %v5505
        %v5507 = vpop.f32.mrb[0].mxu0
        %v5508 = vadd.f32 %v1041, %v5507
        %v5509 = vpop.f32.mrb[0].mxu0
        %v5510 = vadd.f32 %v1045, %v5509
        %5511 = vmatprep.mubr.bf16.mxu0 %v579
        %5512 = vmatmul.mubr.bf16.gmra.mrb[0].mxu0 %v578
        %v5513 = vpop.f32.mrb[0].mxu0
        %v5514 = vadd.f32 %v1041, %v5513
        %v5515 = vpop.f32.mrb[0].mxu0
        %v5516 = vadd.f32 %v1045, %v5515
        %v5517 = vpop.f32.mrb[0].mxu0
        %v5518 = vadd.f32 %v1041, %v5517
        %v5519 = vpop.f32.mrb[0].mxu0
        %v5520 = vadd.f32 %v1045, %v5519
        %5521 = vmatprep.mubr.bf16.mxu0 %v586
        %5522 = vmatmul.mubr.bf16.gmra.mrb[0].mxu0 %v585
        %v5523 = vpop.f32.mrb[0].mxu0
        %v5524 = vadd.f32 %v1041, %v5523
        %v5525 = vpop.f32.mrb[0].mxu0
        %v5526 = vadd.f32 %v1045, %v5525
        %v5527 = vpop.f32.mrb[0].mxu0
        %v5528 = vadd.f32 %v1041, %v5527
        %v5529 = vpop.f32.mrb[0].mxu0
        %v5530 = vadd.f32 %v1045, %v5529
        %5531 = vmatprep.mubr.bf16.mxu0 %v593
        %5532 = vmatmul.mubr.bf16.gmra.mrb[0].mxu0 %v592
        %v5533 = vpop.f32.mrb[0].mxu0
        %v5534 = vadd.f32 %v1041, %v5533
        %v5535 = vpop.f32.mrb[0].mxu0
        %v5536 = vadd.f32 %v1045, %v5535
        %v5537 = vpop.f32.mrb[0].mxu0
        %v5538 = vadd.f32 %v1041, %v5537
        %v5539 = vpop.f32.mrb[0].mxu0
        %v5540 = vadd.f32 %v1045, %v5539
        %5541 = vmatprep.mubr.bf16.mxu0 %v600
        %5542 = vmatmul.mubr.bf16.gmra.mrb[0].mxu0 %v599
        %v5543 = vpop.f32.mrb[0].mxu0
        %v5544 = vadd.f32 %v1041, %v5543
        %v5545 = vpop.f32.mrb[0].mxu0
        %v5546 = vadd.f32 %v1045, %v5545
        %v5547 = vpop.f32.mrb[0].mxu0
        %v5548 = vadd.f32 %v1041, %v5547
        %v5549 = vpop.f32.mrb[0].mxu0
        %v5550 = vadd.f32 %v1045, %v5549
        %5551 = vmatprep.mubr.bf16.mxu0 %v607
        %5552 = vmatmul.mubr.bf16.gmra.mrb[0].mxu0 %v606
        %v5553 = vpop.f32.mrb[0].mxu0
        %v5554 = vadd.f32 %v1041, %v5553
        %v5555 = vpop.f32.mrb[0].mxu0
        %v5556 = vadd.f32 %v1045, %v5555
        %v5557 = vpop.f32.mrb[0].mxu0
        %v5558 = vadd.f32 %v1041, %v5557
        %v5559 = vpop.f32.mrb[0].mxu0
        %v5560 = vadd.f32 %v1045, %v5559
        %5561 = vmatprep.mubr.bf16.mxu0 %v614
        %5562 = vmatmul.mubr.bf16.gmra.mrb[0].mxu0 %v613
        %v5563 = vpop.f32.mrb[0].mxu0
        %v5564 = vadd.f32 %v1041, %v5563
        %v5565 = vpop.f32.mrb[0].mxu0
        %v5566 = vadd.f32 %v1045, %v5565
        %v5567 = vpop.f32.mrb[0].mxu0
        %v5568 = vadd.f32 %v1041, %v5567
        %v5569 = vpop.f32.mrb[0].mxu0
        %v5570 = vadd.f32 %v1045, %v5569
        %5571 = vdwg.mxu0
        %5572 = vmatprep.subr.bf16.mxu0 %v2365
        %5573 = vmatpush1.bf16.msra.mxu0 %v2364
        %5574 = vmatprep.subr.bf16.mxu0 %v2373
        %5575 = vmatpush1.bf16.msra.mxu0 %v2372
        %5576 = vmatprep.subr.bf16.mxu0 %v2381
        %5577 = vmatpush1.bf16.msra.mxu0 %v2380
        %5578 = vmatprep.subr.bf16.mxu0 %v2389
        %5579 = vmatpush1.bf16.msra.mxu0 %v2388
        %5580 = vmatprep.subr.bf16.mxu0 %v2397
        %5581 = vmatpush1.bf16.msra.mxu0 %v2396
        %5582 = vmatprep.subr.bf16.mxu0 %v2405
        %5583 = vmatpush1.bf16.msra.mxu0 %v2404
        %5584 = vmatprep.subr.bf16.mxu0 %v2413
        %5585 = vmatpush1.bf16.msra.mxu0 %v2412
        %5586 = vmatprep.subr.bf16.mxu0 %v2421
        %5587 = vmatpush1.bf16.msra.mxu0 %v2420
        %5588 = vmatprep.subr.bf16.mxu0 %v2429
        %5589 = vmatpush1.bf16.msra.mxu0 %v2428
        %5590 = vmatprep.subr.bf16.mxu0 %v2437
        %5591 = vmatpush1.bf16.msra.mxu0 %v2436
        %5592 = vmatprep.subr.bf16.mxu0 %v2445
        %5593 = vmatpush1.bf16.msra.mxu0 %v2444
        %5594 = vmatprep.subr.bf16.mxu0 %v2453
        %5595 = vmatpush1.bf16.msra.mxu0 %v2452
        %5596 = vmatprep.subr.bf16.mxu0 %v2461
        %5597 = vmatpush1.bf16.msra.mxu0 %v2460
        %5598 = vmatprep.subr.bf16.mxu0 %v2469
        %5599 = vmatpush1.bf16.msra.mxu0 %v2468
        %5600 = vmatprep.subr.bf16.mxu0 %v2477
        %5601 = vmatpush1.bf16.msra.mxu0 %v2476
        %5602 = vmatprep.subr.bf16.mxu0 %v2485
        %5603 = vmatpush1.bf16.msra.mxu0 %v2484
        %5604 = vmatprep.mubr.bf16.mxu0 %v511
        %5605 = vmatmul.mubr.bf16.gmra.mrb[0].mxu0 %v510
        %v5606 = vpop.f32.mrb[0].mxu0
        %v5607 = vadd.f32 %v5414, %v5606
        %v5608 = vpop.f32.mrb[0].mxu0
        %v5609 = vadd.f32 %v5416, %v5608
        %v5610 = vpop.f32.mrb[0].mxu0
        %v5611 = vadd.f32 %v5418, %v5610
        %v5612 = vpop.f32.mrb[0].mxu0
        %v5613 = vadd.f32 %v5420, %v5612
        %5614 = vmatprep.mubr.bf16.mxu0 %v518
        %5615 = vmatmul.mubr.bf16.gmra.mrb[0].mxu0 %v517
        %v5616 = vpop.f32.mrb[0].mxu0
        %v5617 = vadd.f32 %v5424, %v5616
        %v5618 = vpop.f32.mrb[0].mxu0
        %v5619 = vadd.f32 %v5426, %v5618
        %v5620 = vpop.f32.mrb[0].mxu0
        %v5621 = vadd.f32 %v5428, %v5620
        %v5622 = vpop.f32.mrb[0].mxu0
        %v5623 = vadd.f32 %v5430, %v5622
        %5624 = vmatprep.mubr.bf16.mxu0 %v525
        %5625 = vmatmul.mubr.bf16.gmra.mrb[0].mxu0 %v524
        %v5626 = vpop.f32.mrb[0].mxu0
        %v5627 = vadd.f32 %v5434, %v5626
        %v5628 = vpop.f32.mrb[0].mxu0
        %v5629 = vadd.f32 %v5436, %v5628
        %v5630 = vpop.f32.mrb[0].mxu0
        %v5631 = vadd.f32 %v5438, %v5630
        %v5632 = vpop.f32.mrb[0].mxu0
        %v5633 = vadd.f32 %v5440, %v5632
        %5634 = vmatprep.mubr.bf16.mxu0 %v532
        %5635 = vmatmul.mubr.bf16.gmra.mrb[0].mxu0 %v531
        %v5636 = vpop.f32.mrb[0].mxu0
        %v5637 = vadd.f32 %v5444, %v5636
        %v5638 = vpop.f32.mrb[0].mxu0
        %v5639 = vadd.f32 %v5446, %v5638
        %v5640 = vpop.f32.mrb[0].mxu0
        %v5641 = vadd.f32 %v5448, %v5640
        %v5642 = vpop.f32.mrb[0].mxu0
        %v5643 = vadd.f32 %v5450, %v5642
        %5644 = vmatprep.mubr.bf16.mxu0 %v539
        %5645 = vmatmul.mubr.bf16.gmra.mrb[0].mxu0 %v538
        %v5646 = vpop.f32.mrb[0].mxu0
        %v5647 = vadd.f32 %v5454, %v5646
        %v5648 = vpop.f32.mrb[0].mxu0
        %v5649 = vadd.f32 %v5456, %v5648
        %v5650 = vpop.f32.mrb[0].mxu0
        %v5651 = vadd.f32 %v5458, %v5650
        %v5652 = vpop.f32.mrb[0].mxu0
        %v5653 = vadd.f32 %v5460, %v5652
        %5654 = vmatprep.mubr.bf16.mxu0 %v546
        %5655 = vmatmul.mubr.bf16.gmra.mrb[0].mxu0 %v545
        %v5656 = vpop.f32.mrb[0].mxu0
        %v5657 = vadd.f32 %v5464, %v5656
        %v5658 = vpop.f32.mrb[0].mxu0
        %v5659 = vadd.f32 %v5466, %v5658
        %v5660 = vpop.f32.mrb[0].mxu0
        %v5661 = vadd.f32 %v5468, %v5660
        %v5662 = vpop.f32.mrb[0].mxu0
        %v5663 = vadd.f32 %v5470, %v5662
        %5664 = vmatprep.mubr.bf16.mxu0 %v553
        %5665 = vmatmul.mubr.bf16.gmra.mrb[0].mxu0 %v552
        %v5666 = vpop.f32.mrb[0].mxu0
        %v5667 = vadd.f32 %v5474, %v5666
        %v5668 = vpop.f32.mrb[0].mxu0
        %v5669 = vadd.f32 %v5476, %v5668
        %v5670 = vpop.f32.mrb[0].mxu0
        %v5671 = vadd.f32 %v5478, %v5670
        %v5672 = vpop.f32.mrb[0].mxu0
        %v5673 = vadd.f32 %v5480, %v5672
        %5674 = vmatprep.mubr.bf16.mxu0 %v560
        %5675 = vmatmul.mubr.bf16.gmra.mrb[0].mxu0 %v559
        %v5676 = vpop.f32.mrb[0].mxu0
        %v5677 = vadd.f32 %v5484, %v5676
        %v5678 = vpop.f32.mrb[0].mxu0
        %v5679 = vadd.f32 %v5486, %v5678
        %v5680 = vpop.f32.mrb[0].mxu0
        %v5681 = vadd.f32 %v5488, %v5680
        %v5682 = vpop.f32.mrb[0].mxu0
        %v5683 = vadd.f32 %v5490, %v5682
        %5684 = vmatprep.mubr.bf16.mxu0 %v567
        %5685 = vmatmul.mubr.bf16.gmra.mrb[0].mxu0 %v566
        %v5686 = vpop.f32.mrb[0].mxu0
        %v5687 = vadd.f32 %v5494, %v5686
        %v5688 = vpop.f32.mrb[0].mxu0
        %v5689 = vadd.f32 %v5496, %v5688
        %v5690 = vpop.f32.mrb[0].mxu0
        %v5691 = vadd.f32 %v5498, %v5690
        %v5692 = vpop.f32.mrb[0].mxu0
        %v5693 = vadd.f32 %v5500, %v5692
        %5694 = vmatprep.mubr.bf16.mxu0 %v574
        %5695 = vmatmul.mubr.bf16.gmra.mrb[0].mxu0 %v573
        %v5696 = vpop.f32.mrb[0].mxu0
        %v5697 = vadd.f32 %v5504, %v5696
        %v5698 = vpop.f32.mrb[0].mxu0
        %v5699 = vadd.f32 %v5506, %v5698
        %v5700 = vpop.f32.mrb[0].mxu0
        %v5701 = vadd.f32 %v5508, %v5700
        %v5702 = vpop.f32.mrb[0].mxu0
        %v5703 = vadd.f32 %v5510, %v5702
        %5704 = vmatprep.mubr.bf16.mxu0 %v581
        %5705 = vmatmul.mubr.bf16.gmra.mrb[0].mxu0 %v580
        %v5706 = vpop.f32.mrb[0].mxu0
        %v5707 = vadd.f32 %v5514, %v5706
        %v5708 = vpop.f32.mrb[0].mxu0
        %v5709 = vadd.f32 %v5516, %v5708
        %v5710 = vpop.f32.mrb[0].mxu0
        %v5711 = vadd.f32 %v5518, %v5710
        %v5712 = vpop.f32.mrb[0].mxu0
        %v5713 = vadd.f32 %v5520, %v5712
        %5714 = vmatprep.mubr.bf16.mxu0 %v588
        %5715 = vmatmul.mubr.bf16.gmra.mrb[0].mxu0 %v587
        %v5716 = vpop.f32.mrb[0].mxu0
        %v5717 = vadd.f32 %v5524, %v5716
        %v5718 = vpop.f32.mrb[0].mxu0
        %v5719 = vadd.f32 %v5526, %v5718
        %v5720 = vpop.f32.mrb[0].mxu0
        %v5721 = vadd.f32 %v5528, %v5720
        %v5722 = vpop.f32.mrb[0].mxu0
        %v5723 = vadd.f32 %v5530, %v5722
        %5724 = vmatprep.mubr.bf16.mxu0 %v595
        %5725 = vmatmul.mubr.bf16.gmra.mrb[0].mxu0 %v594
        %v5726 = vpop.f32.mrb[0].mxu0
        %v5727 = vadd.f32 %v5534, %v5726
        %v5728 = vpop.f32.mrb[0].mxu0
        %v5729 = vadd.f32 %v5536, %v5728
        %v5730 = vpop.f32.mrb[0].mxu0
        %v5731 = vadd.f32 %v5538, %v5730
        %v5732 = vpop.f32.mrb[0].mxu0
        %v5733 = vadd.f32 %v5540, %v5732
        %5734 = vmatprep.mubr.bf16.mxu0 %v602
        %5735 = vmatmul.mubr.bf16.gmra.mrb[0].mxu0 %v601
        %v5736 = vpop.f32.mrb[0].mxu0
        %v5737 = vadd.f32 %v5544, %v5736
        %v5738 = vpop.f32.mrb[0].mxu0
        %v5739 = vadd.f32 %v5546, %v5738
        %v5740 = vpop.f32.mrb[0].mxu0
        %v5741 = vadd.f32 %v5548, %v5740
        %v5742 = vpop.f32.mrb[0].mxu0
        %v5743 = vadd.f32 %v5550, %v5742
        %5744 = vmatprep.mubr.bf16.mxu0 %v609
        %5745 = vmatmul.mubr.bf16.gmra.mrb[0].mxu0 %v608
        %v5746 = vpop.f32.mrb[0].mxu0
        %v5747 = vadd.f32 %v5554, %v5746
        %v5748 = vpop.f32.mrb[0].mxu0
        %v5749 = vadd.f32 %v5556, %v5748
        %v5750 = vpop.f32.mrb[0].mxu0
        %v5751 = vadd.f32 %v5558, %v5750
        %v5752 = vpop.f32.mrb[0].mxu0
        %v5753 = vadd.f32 %v5560, %v5752
        %5754 = vmatprep.mubr.bf16.mxu0 %v616
        %5755 = vmatmul.mubr.bf16.gmra.mrb[0].mxu0 %v615
        %v5756 = vpop.f32.mrb[0].mxu0
        %v5757 = vadd.f32 %v5564, %v5756
        %v5758 = vpop.f32.mrb[0].mxu0
        %v5759 = vadd.f32 %v5566, %v5758
        %v5760 = vpop.f32.mrb[0].mxu0
        %v5761 = vadd.f32 %v5568, %v5760
        %v5762 = vpop.f32.mrb[0].mxu0
        %v5763 = vadd.f32 %v5570, %v5762
        %5764 = vdwg.mxu0
        %5765 = vmatprep.subr.bf16.mxu0 %v2493
        %5766 = vmatpush1.bf16.msra.mxu0 %v2492
        %5767 = vmatprep.subr.bf16.mxu0 %v2501
        %5768 = vmatpush1.bf16.msra.mxu0 %v2500
        %5769 = vmatprep.subr.bf16.mxu0 %v2509
        %5770 = vmatpush1.bf16.msra.mxu0 %v2508
        %5771 = vmatprep.subr.bf16.mxu0 %v2517
        %5772 = vmatpush1.bf16.msra.mxu0 %v2516
        %5773 = vmatprep.subr.bf16.mxu0 %v2525
        %5774 = vmatpush1.bf16.msra.mxu0 %v2524
        %5775 = vmatprep.subr.bf16.mxu0 %v2533
        %5776 = vmatpush1.bf16.msra.mxu0 %v2532
        %5777 = vmatprep.subr.bf16.mxu0 %v2541
        %5778 = vmatpush1.bf16.msra.mxu0 %v2540
        %5779 = vmatprep.subr.bf16.mxu0 %v2549
        %5780 = vmatpush1.bf16.msra.mxu0 %v2548
        %5781 = vmatprep.subr.bf16.mxu0 %v2557
        %5782 = vmatpush1.bf16.msra.mxu0 %v2556
        %5783 = vmatprep.subr.bf16.mxu0 %v2565
        %5784 = vmatpush1.bf16.msra.mxu0 %v2564
        %5785 = vmatprep.subr.bf16.mxu0 %v2573
        %5786 = vmatpush1.bf16.msra.mxu0 %v2572
        %5787 = vmatprep.subr.bf16.mxu0 %v2581
        %5788 = vmatpush1.bf16.msra.mxu0 %v2580
        %5789 = vmatprep.subr.bf16.mxu0 %v2589
        %5790 = vmatpush1.bf16.msra.mxu0 %v2588
        %5791 = vmatprep.subr.bf16.mxu0 %v2597
        %5792 = vmatpush1.bf16.msra.mxu0 %v2596
        %5793 = vmatprep.subr.bf16.mxu0 %v2605
        %5794 = vmatpush1.bf16.msra.mxu0 %v2604
        %5795 = vmatprep.subr.bf16.mxu0 %v2613
        %5796 = vmatpush1.bf16.msra.mxu0 %v2612
        %5797 = vmatprep.mubr.bf16.mxu0 %v513
        %5798 = vmatmul.mubr.bf16.gmra.mrb[0].mxu0 %v512
        %v5799 = vpop.f32.mrb[0].mxu0
        %v5800 = vadd.f32 %v5607, %v5799
        %v5801 = vpop.f32.mrb[0].mxu0
        %v5802 = vadd.f32 %v5609, %v5801
        %v5803 = vpop.f32.mrb[0].mxu0
        %v5804 = vadd.f32 %v5611, %v5803
        %v5805 = vpop.f32.mrb[0].mxu0
        %v5806 = vadd.f32 %v5613, %v5805
        %5807 = vmatprep.mubr.bf16.mxu0 %v520
        %5808 = vmatmul.mubr.bf16.gmra.mrb[0].mxu0 %v519
        %v5809 = vpop.f32.mrb[0].mxu0
        %v5810 = vadd.f32 %v5617, %v5809
        %v5811 = vpop.f32.mrb[0].mxu0
        %v5812 = vadd.f32 %v5619, %v5811
        %v5813 = vpop.f32.mrb[0].mxu0
        %v5814 = vadd.f32 %v5621, %v5813
        %v5815 = vpop.f32.mrb[0].mxu0
        %v5816 = vadd.f32 %v5623, %v5815
        %5817 = vmatprep.mubr.bf16.mxu0 %v527
        %5818 = vmatmul.mubr.bf16.gmra.mrb[0].mxu0 %v526
        %v5819 = vpop.f32.mrb[0].mxu0
        %v5820 = vadd.f32 %v5627, %v5819
        %v5821 = vpop.f32.mrb[0].mxu0
        %v5822 = vadd.f32 %v5629, %v5821
        %v5823 = vpop.f32.mrb[0].mxu0
        %v5824 = vadd.f32 %v5631, %v5823
        %v5825 = vpop.f32.mrb[0].mxu0
        %v5826 = vadd.f32 %v5633, %v5825
        %5827 = vmatprep.mubr.bf16.mxu0 %v534
        %5828 = vmatmul.mubr.bf16.gmra.mrb[0].mxu0 %v533
        %v5829 = vpop.f32.mrb[0].mxu0
        %v5830 = vadd.f32 %v5637, %v5829
        %v5831 = vpop.f32.mrb[0].mxu0
        %v5832 = vadd.f32 %v5639, %v5831
        %v5833 = vpop.f32.mrb[0].mxu0
        %v5834 = vadd.f32 %v5641, %v5833
        %v5835 = vpop.f32.mrb[0].mxu0
        %v5836 = vadd.f32 %v5643, %v5835
        %5837 = vmatprep.mubr.bf16.mxu0 %v541
        %5838 = vmatmul.mubr.bf16.gmra.mrb[0].mxu0 %v540
        %v5839 = vpop.f32.mrb[0].mxu0
        %v5840 = vadd.f32 %v5647, %v5839
        %v5841 = vpop.f32.mrb[0].mxu0
        %v5842 = vadd.f32 %v5649, %v5841
        %v5843 = vpop.f32.mrb[0].mxu0
        %v5844 = vadd.f32 %v5651, %v5843
        %v5845 = vpop.f32.mrb[0].mxu0
        %v5846 = vadd.f32 %v5653, %v5845
        %5847 = vmatprep.mubr.bf16.mxu0 %v548
        %5848 = vmatmul.mubr.bf16.gmra.mrb[0].mxu0 %v547
        %v5849 = vpop.f32.mrb[0].mxu0
        %v5850 = vadd.f32 %v5657, %v5849
        %v5851 = vpop.f32.mrb[0].mxu0
        %v5852 = vadd.f32 %v5659, %v5851
        %v5853 = vpop.f32.mrb[0].mxu0
        %v5854 = vadd.f32 %v5661, %v5853
        %v5855 = vpop.f32.mrb[0].mxu0
        %v5856 = vadd.f32 %v5663, %v5855
        %5857 = vmatprep.mubr.bf16.mxu0 %v555
        %5858 = vmatmul.mubr.bf16.gmra.mrb[0].mxu0 %v554
        %v5859 = vpop.f32.mrb[0].mxu0
        %v5860 = vadd.f32 %v5667, %v5859
        %v5861 = vpop.f32.mrb[0].mxu0
        %v5862 = vadd.f32 %v5669, %v5861
        %v5863 = vpop.f32.mrb[0].mxu0
        %v5864 = vadd.f32 %v5671, %v5863
        %v5865 = vpop.f32.mrb[0].mxu0
        %v5866 = vadd.f32 %v5673, %v5865
        %5867 = vmatprep.mubr.bf16.mxu0 %v562
        %5868 = vmatmul.mubr.bf16.gmra.mrb[0].mxu0 %v561
        %v5869 = vpop.f32.mrb[0].mxu0
        %v5870 = vadd.f32 %v5677, %v5869
        %v5871 = vpop.f32.mrb[0].mxu0
        %v5872 = vadd.f32 %v5679, %v5871
        %v5873 = vpop.f32.mrb[0].mxu0
        %v5874 = vadd.f32 %v5681, %v5873
        %v5875 = vpop.f32.mrb[0].mxu0
        %v5876 = vadd.f32 %v5683, %v5875
        %5877 = vmatprep.mubr.bf16.mxu0 %v569
        %5878 = vmatmul.mubr.bf16.gmra.mrb[0].mxu0 %v568
        %v5879 = vpop.f32.mrb[0].mxu0
        %v5880 = vadd.f32 %v5687, %v5879
        %v5881 = vpop.f32.mrb[0].mxu0
        %v5882 = vadd.f32 %v5689, %v5881
        %v5883 = vpop.f32.mrb[0].mxu0
        %v5884 = vadd.f32 %v5691, %v5883
        %v5885 = vpop.f32.mrb[0].mxu0
        %v5886 = vadd.f32 %v5693, %v5885
        %5887 = vmatprep.mubr.bf16.mxu0 %v576
        %5888 = vmatmul.mubr.bf16.gmra.mrb[0].mxu0 %v575
        %v5889 = vpop.f32.mrb[0].mxu0
        %v5890 = vadd.f32 %v5697, %v5889
        %v5891 = vpop.f32.mrb[0].mxu0
        %v5892 = vadd.f32 %v5699, %v5891
        %v5893 = vpop.f32.mrb[0].mxu0
        %v5894 = vadd.f32 %v5701, %v5893
        %v5895 = vpop.f32.mrb[0].mxu0
        %v5896 = vadd.f32 %v5703, %v5895
        %5897 = vmatprep.mubr.bf16.mxu0 %v583
        %5898 = vmatmul.mubr.bf16.gmra.mrb[0].mxu0 %v582
        %v5899 = vpop.f32.mrb[0].mxu0
        %v5900 = vadd.f32 %v5707, %v5899
        %v5901 = vpop.f32.mrb[0].mxu0
        %v5902 = vadd.f32 %v5709, %v5901
        %v5903 = vpop.f32.mrb[0].mxu0
        %v5904 = vadd.f32 %v5711, %v5903
        %v5905 = vpop.f32.mrb[0].mxu0
        %v5906 = vadd.f32 %v5713, %v5905
        %5907 = vmatprep.mubr.bf16.mxu0 %v590
        %5908 = vmatmul.mubr.bf16.gmra.mrb[0].mxu0 %v589
        %v5909 = vpop.f32.mrb[0].mxu0
        %v5910 = vadd.f32 %v5717, %v5909
        %v5911 = vpop.f32.mrb[0].mxu0
        %v5912 = vadd.f32 %v5719, %v5911
        %v5913 = vpop.f32.mrb[0].mxu0
        %v5914 = vadd.f32 %v5721, %v5913
        %v5915 = vpop.f32.mrb[0].mxu0
        %v5916 = vadd.f32 %v5723, %v5915
        %5917 = vmatprep.mubr.bf16.mxu0 %v597
        %5918 = vmatmul.mubr.bf16.gmra.mrb[0].mxu0 %v596
        %v5919 = vpop.f32.mrb[0].mxu0
        %v5920 = vadd.f32 %v5727, %v5919
        %v5921 = vpop.f32.mrb[0].mxu0
        %v5922 = vadd.f32 %v5729, %v5921
        %v5923 = vpop.f32.mrb[0].mxu0
        %v5924 = vadd.f32 %v5731, %v5923
        %v5925 = vpop.f32.mrb[0].mxu0
        %v5926 = vadd.f32 %v5733, %v5925
        %5927 = vmatprep.mubr.bf16.mxu0 %v604
        %5928 = vmatmul.mubr.bf16.gmra.mrb[0].mxu0 %v603
        %v5929 = vpop.f32.mrb[0].mxu0
        %v5930 = vadd.f32 %v5737, %v5929
        %v5931 = vpop.f32.mrb[0].mxu0
        %v5932 = vadd.f32 %v5739, %v5931
        %v5933 = vpop.f32.mrb[0].mxu0
        %v5934 = vadd.f32 %v5741, %v5933
        %v5935 = vpop.f32.mrb[0].mxu0
        %v5936 = vadd.f32 %v5743, %v5935
        %5937 = vmatprep.mubr.bf16.mxu0 %v611
        %5938 = vmatmul.mubr.bf16.gmra.mrb[0].mxu0 %v610
        %v5939 = vpop.f32.mrb[0].mxu0
        %v5940 = vadd.f32 %v5747, %v5939
        %v5941 = vpop.f32.mrb[0].mxu0
        %v5942 = vadd.f32 %v5749, %v5941
        %v5943 = vpop.f32.mrb[0].mxu0
        %v5944 = vadd.f32 %v5751, %v5943
        %v5945 = vpop.f32.mrb[0].mxu0
        %v5946 = vadd.f32 %v5753, %v5945
        %5947 = vmatprep.mubr.bf16.mxu0 %v618
        %5948 = vmatmul.mubr.bf16.gmra.mrb[0].mxu0 %v617
        %v5949 = vpop.f32.mrb[0].mxu0
        %v5950 = vadd.f32 %v5757, %v5949
        %v5951 = vpop.f32.mrb[0].mxu0
        %v5952 = vadd.f32 %v5759, %v5951
        %v5953 = vpop.f32.mrb[0].mxu0
        %v5954 = vadd.f32 %v5761, %v5953
        %v5955 = vpop.f32.mrb[0].mxu0
        %v5956 = vadd.f32 %v5763, %v5955
        %5957 = vdwg.mxu0
        %5958 = vmatprep.subr.bf16.mxu0 %v2621
        %5959 = vmatpush1.bf16.msra.mxu0 %v2620
        %5960 = vmatprep.subr.bf16.mxu0 0
        %5961 = vmatpush1.bf16.msra.mxu0 0
        %5962 = vmatprep.subr.bf16.mxu0 0
        %5963 = vmatpush1.bf16.msra.mxu0 0
        %5964 = vmatprep.subr.bf16.mxu0 0
        %5965 = vmatpush1.bf16.msra.mxu0 0
        %5966 = vmatprep.subr.bf16.mxu0 0
        %5967 = vmatpush1.bf16.msra.mxu0 0
        %5968 = vmatprep.subr.bf16.mxu0 0
        %5969 = vmatpush1.bf16.msra.mxu0 0
        %5970 = vmatprep.subr.bf16.mxu0 0
        %5971 = vmatpush1.bf16.msra.mxu0 0
        %5972 = vmatprep.subr.bf16.mxu0 0
        %5973 = vmatpush1.bf16.msra.mxu0 0
        %5974 = vmatprep.subr.bf16.mxu0 0
        %5975 = vmatpush1.bf16.msra.mxu0 0
        %5976 = vmatprep.subr.bf16.mxu0 0
        %5977 = vmatpush1.bf16.msra.mxu0 0
        %5978 = vmatprep.subr.bf16.mxu0 0
        %5979 = vmatpush1.bf16.msra.mxu0 0
        %5980 = vmatprep.subr.bf16.mxu0 0
        %5981 = vmatpush1.bf16.msra.mxu0 0
        %5982 = vmatprep.subr.bf16.mxu0 0
        %5983 = vmatpush1.bf16.msra.mxu0 0
        %5984 = vmatprep.subr.bf16.mxu0 0
        %5985 = vmatpush1.bf16.msra.mxu0 0
        %5986 = vmatprep.subr.bf16.mxu0 0
        %5987 = vmatpush1.bf16.msra.mxu0 0
        %5988 = vmatprep.subr.bf16.mxu0 0
        %5989 = vmatpush1.bf16.msra.mxu0 0
        %5990 = vmatprep.mubr.bf16.mxu0 0
        %5991 = vmatmul.mubr.bf16.gmra.mrb[0].mxu0 %v3016
        %v5992 = vpop.f32.mrb[0].mxu0
        %v5993 = vadd.f32 %v5800, %v5992
        %v5994 = vpop.f32.mrb[0].mxu0
        %v5995 = vadd.f32 %v5802, %v5994
        %v5996 = vpop.f32.mrb[0].mxu0
        %v5997 = vadd.f32 %v5804, %v5996
        %v5998 = vpop.f32.mrb[0].mxu0
        %v5999 = vadd.f32 %v5806, %v5998
        %6000 = vmatprep.mubr.bf16.mxu0 0
        %6001 = vmatmul.mubr.bf16.gmra.mrb[0].mxu0 %v3019
        %v6002 = vpop.f32.mrb[0].mxu0
        %v6003 = vadd.f32 %v5810, %v6002
        %v6004 = vpop.f32.mrb[0].mxu0
        %v6005 = vadd.f32 %v5812, %v6004
        %v6006 = vpop.f32.mrb[0].mxu0
        %v6007 = vadd.f32 %v5814, %v6006
        %v6008 = vpop.f32.mrb[0].mxu0
        %v6009 = vadd.f32 %v5816, %v6008
        %6010 = vmatprep.mubr.bf16.mxu0 0
        %6011 = vmatmul.mubr.bf16.gmra.mrb[0].mxu0 %v3022
        %v6012 = vpop.f32.mrb[0].mxu0
        %v6013 = vadd.f32 %v5820, %v6012
        %v6014 = vpop.f32.mrb[0].mxu0
        %v6015 = vadd.f32 %v5822, %v6014
        %v6016 = vpop.f32.mrb[0].mxu0
        %v6017 = vadd.f32 %v5824, %v6016
        %v6018 = vpop.f32.mrb[0].mxu0
        %v6019 = vadd.f32 %v5826, %v6018
        %6020 = vmatprep.mubr.bf16.mxu0 0
        %6021 = vmatmul.mubr.bf16.gmra.mrb[0].mxu0 %v3025
        %v6022 = vpop.f32.mrb[0].mxu0
        %v6023 = vadd.f32 %v5830, %v6022
        %v6024 = vpop.f32.mrb[0].mxu0
        %v6025 = vadd.f32 %v5832, %v6024
        %v6026 = vpop.f32.mrb[0].mxu0
        %v6027 = vadd.f32 %v5834, %v6026
        %v6028 = vpop.f32.mrb[0].mxu0
        %v6029 = vadd.f32 %v5836, %v6028
        %6030 = vmatprep.mubr.bf16.mxu0 0
        %6031 = vmatmul.mubr.bf16.gmra.mrb[0].mxu0 %v3028
        %v6032 = vpop.f32.mrb[0].mxu0
        %v6033 = vadd.f32 %v5840, %v6032
        %v6034 = vpop.f32.mrb[0].mxu0
        %v6035 = vadd.f32 %v5842, %v6034
        %v6036 = vpop.f32.mrb[0].mxu0
        %v6037 = vadd.f32 %v5844, %v6036
        %v6038 = vpop.f32.mrb[0].mxu0
        %v6039 = vadd.f32 %v5846, %v6038
        %6040 = vmatprep.mubr.bf16.mxu0 0
        %6041 = vmatmul.mubr.bf16.gmra.mrb[0].mxu0 %v3031
        %v6042 = vpop.f32.mrb[0].mxu0
        %v6043 = vadd.f32 %v5850, %v6042
        %v6044 = vpop.f32.mrb[0].mxu0
        %v6045 = vadd.f32 %v5852, %v6044
        %v6046 = vpop.f32.mrb[0].mxu0
        %v6047 = vadd.f32 %v5854, %v6046
        %v6048 = vpop.f32.mrb[0].mxu0
        %v6049 = vadd.f32 %v5856, %v6048
        %6050 = vmatprep.mubr.bf16.mxu0 0
        %6051 = vmatmul.mubr.bf16.gmra.mrb[0].mxu0 %v3034
        %v6052 = vpop.f32.mrb[0].mxu0
        %v6053 = vadd.f32 %v5860, %v6052
        %v6054 = vpop.f32.mrb[0].mxu0
        %v6055 = vadd.f32 %v5862, %v6054
        %v6056 = vpop.f32.mrb[0].mxu0
        %v6057 = vadd.f32 %v5864, %v6056
        %v6058 = vpop.f32.mrb[0].mxu0
        %v6059 = vadd.f32 %v5866, %v6058
        %6060 = vmatprep.mubr.bf16.mxu0 0
        %6061 = vmatmul.mubr.bf16.gmra.mrb[0].mxu0 %v3037
        %v6062 = vpop.f32.mrb[0].mxu0
        %v6063 = vadd.f32 %v5870, %v6062
        %v6064 = vpop.f32.mrb[0].mxu0
        %v6065 = vadd.f32 %v5872, %v6064
        %v6066 = vpop.f32.mrb[0].mxu0
        %v6067 = vadd.f32 %v5874, %v6066
        %v6068 = vpop.f32.mrb[0].mxu0
        %v6069 = vadd.f32 %v5876, %v6068
        %6070 = vmatprep.mubr.bf16.mxu0 0
        %6071 = vmatmul.mubr.bf16.gmra.mrb[0].mxu0 %v3040
        %v6072 = vpop.f32.mrb[0].mxu0
        %v6073 = vadd.f32 %v5880, %v6072
        %v6074 = vpop.f32.mrb[0].mxu0
        %v6075 = vadd.f32 %v5882, %v6074
        %v6076 = vpop.f32.mrb[0].mxu0
        %v6077 = vadd.f32 %v5884, %v6076
        %v6078 = vpop.f32.mrb[0].mxu0
        %v6079 = vadd.f32 %v5886, %v6078
        %6080 = vmatprep.mubr.bf16.mxu0 0
        %6081 = vmatmul.mubr.bf16.gmra.mrb[0].mxu0 %v3043
        %v6082 = vpop.f32.mrb[0].mxu0
        %v6083 = vadd.f32 %v5890, %v6082
        %v6084 = vpop.f32.mrb[0].mxu0
        %v6085 = vadd.f32 %v5892, %v6084
        %v6086 = vpop.f32.mrb[0].mxu0
        %v6087 = vadd.f32 %v5894, %v6086
        %v6088 = vpop.f32.mrb[0].mxu0
        %v6089 = vadd.f32 %v5896, %v6088
        %6090 = vmatprep.mubr.bf16.mxu0 0
        %6091 = vmatmul.mubr.bf16.gmra.mrb[0].mxu0 %v3046
        %v6092 = vpop.f32.mrb[0].mxu0
        %v6093 = vadd.f32 %v5900, %v6092
        %v6094 = vpop.f32.mrb[0].mxu0
        %v6095 = vadd.f32 %v5902, %v6094
        %v6096 = vpop.f32.mrb[0].mxu0
        %v6097 = vadd.f32 %v5904, %v6096
        %v6098 = vpop.f32.mrb[0].mxu0
        %v6099 = vadd.f32 %v5906, %v6098
        %6100 = vmatprep.mubr.bf16.mxu0 0
        %6101 = vmatmul.mubr.bf16.gmra.mrb[0].mxu0 %v3049
        %v6102 = vpop.f32.mrb[0].mxu0
        %v6103 = vadd.f32 %v5910, %v6102
        %v6104 = vpop.f32.mrb[0].mxu0
        %v6105 = vadd.f32 %v5912, %v6104
        %v6106 = vpop.f32.mrb[0].mxu0
        %v6107 = vadd.f32 %v5914, %v6106
        %v6108 = vpop.f32.mrb[0].mxu0
        %v6109 = vadd.f32 %v5916, %v6108
        %6110 = vmatprep.mubr.bf16.mxu0 0
        %6111 = vmatmul.mubr.bf16.gmra.mrb[0].mxu0 %v3052
        %v6112 = vpop.f32.mrb[0].mxu0
        %v6113 = vadd.f32 %v5920, %v6112
        %v6114 = vpop.f32.mrb[0].mxu0
        %v6115 = vadd.f32 %v5922, %v6114
        %v6116 = vpop.f32.mrb[0].mxu0
        %v6117 = vadd.f32 %v5924, %v6116
        %v6118 = vpop.f32.mrb[0].mxu0
        %v6119 = vadd.f32 %v5926, %v6118
        %6120 = vmatprep.mubr.bf16.mxu0 0
        %6121 = vmatmul.mubr.bf16.gmra.mrb[0].mxu0 %v3055
        %v6122 = vpop.f32.mrb[0].mxu0
        %v6123 = vadd.f32 %v5930, %v6122
        %v6124 = vpop.f32.mrb[0].mxu0
        %v6125 = vadd.f32 %v5932, %v6124
        %v6126 = vpop.f32.mrb[0].mxu0
        %v6127 = vadd.f32 %v5934, %v6126
        %v6128 = vpop.f32.mrb[0].mxu0
        %v6129 = vadd.f32 %v5936, %v6128
        %6130 = vmatprep.mubr.bf16.mxu0 0
        %6131 = vmatmul.mubr.bf16.gmra.mrb[0].mxu0 %v3058
        %v6132 = vpop.f32.mrb[0].mxu0
        %v6133 = vadd.f32 %v5940, %v6132
        %v6134 = vpop.f32.mrb[0].mxu0
        %v6135 = vadd.f32 %v5942, %v6134
        %v6136 = vpop.f32.mrb[0].mxu0
        %v6137 = vadd.f32 %v5944, %v6136
        %v6138 = vpop.f32.mrb[0].mxu0
        %v6139 = vadd.f32 %v5946, %v6138
        %6140 = vmatprep.mubr.bf16.mxu0 0
        %6141 = vmatmul.mubr.bf16.gmra.mrb[0].mxu0 %v3061
        %v6142 = vpop.f32.mrb[0].mxu0
        %v6143 = vadd.f32 %v5950, %v6142
        %v6144 = vpop.f32.mrb[0].mxu0
        %v6145 = vadd.f32 %v5952, %v6144
        %v6146 = vpop.f32.mrb[0].mxu0
        %v6147 = vadd.f32 %v5954, %v6146
        %v6148 = vpop.f32.mrb[0].mxu0
        %v6149 = vadd.f32 %v5956, %v6148
        %6150 = vdwg.mxu0
        %v6151 = vmax.f32 %v3677, 0.0
        %v6152 = vmax.f32 %v3679, 0.0
        %v6153 = vmax.f32 %v4449, 0.0
        %v6154 = vmax.f32 %v4451, 0.0
        %v6155 = vmax.f32 %v5221, 0.0
        %v6156 = vmax.f32 %v5223, 0.0
        %v6157 = vmax.f32 %v5993, 0.0
        %v6158 = vmax.f32 %v5995, 0.0
        %v6159 = vmax.f32 %v3681, 0.0
        %v6160 = vmax.f32 %v3683, 0.0
        %v6161 = vmax.f32 %v4453, 0.0
        %v6162 = vmax.f32 %v4455, 0.0
        %v6163 = vmax.f32 %v5225, 0.0
        %v6164 = vmax.f32 %v5227, 0.0
        %v6165 = vmax.f32 %v5997, 0.0
        %v6166 = vmax.f32 %v5999, 0.0
        %v6167 = vmax.f32 %v3687, 0.0
        %v6168 = vmax.f32 %v3689, 0.0
        %v6169 = vmax.f32 %v4459, 0.0
        %v6170 = vmax.f32 %v4461, 0.0
        %v6171 = vmax.f32 %v5231, 0.0
        %v6172 = vmax.f32 %v5233, 0.0
        %v6173 = vmax.f32 %v6003, 0.0
        %v6174 = vmax.f32 %v6005, 0.0
        %v6175 = vmax.f32 %v3691, 0.0
        %v6176 = vmax.f32 %v3693, 0.0
        %v6177 = vmax.f32 %v4463, 0.0
        %v6178 = vmax.f32 %v4465, 0.0
        %v6179 = vmax.f32 %v5235, 0.0
        %v6180 = vmax.f32 %v5237, 0.0
        %v6181 = vmax.f32 %v6007, 0.0
        %v6182 = vmax.f32 %v6009, 0.0
        %v6183 = vmax.f32 %v3697, 0.0
        %v6184 = vmax.f32 %v3699, 0.0
        %v6185 = vmax.f32 %v4469, 0.0
        %v6186 = vmax.f32 %v4471, 0.0
        %v6187 = vmax.f32 %v5241, 0.0
        %v6188 = vmax.f32 %v5243, 0.0
        %v6189 = vmax.f32 %v6013, 0.0
        %v6190 = vmax.f32 %v6015, 0.0
        %v6191 = vmax.f32 %v3701, 0.0
        %v6192 = vmax.f32 %v3703, 0.0
        %v6193 = vmax.f32 %v4473, 0.0
        %v6194 = vmax.f32 %v4475, 0.0
        %v6195 = vmax.f32 %v5245, 0.0
        %v6196 = vmax.f32 %v5247, 0.0
        %v6197 = vmax.f32 %v6017, 0.0
        %v6198 = vmax.f32 %v6019, 0.0
        %v6199 = vmax.f32 %v3707, 0.0
        %v6200 = vmax.f32 %v3709, 0.0
        %v6201 = vmax.f32 %v4479, 0.0
        %v6202 = vmax.f32 %v4481, 0.0
        %v6203 = vmax.f32 %v5251, 0.0
        %v6204 = vmax.f32 %v5253, 0.0
        %v6205 = vmax.f32 %v6023, 0.0
        %v6206 = vmax.f32 %v6025, 0.0
        %v6207 = vmax.f32 %v3711, 0.0
        %v6208 = vmax.f32 %v3713, 0.0
        %v6209 = vmax.f32 %v4483, 0.0
        %v6210 = vmax.f32 %v4485, 0.0
        %v6211 = vmax.f32 %v5255, 0.0
        %v6212 = vmax.f32 %v5257, 0.0
        %v6213 = vmax.f32 %v6027, 0.0
        %v6214 = vmax.f32 %v6029, 0.0
        %v6215 = vmax.f32 %v3717, 0.0
        %v6216 = vmax.f32 %v3719, 0.0
        %v6217 = vmax.f32 %v4489, 0.0
        %v6218 = vmax.f32 %v4491, 0.0
        %v6219 = vmax.f32 %v5261, 0.0
        %v6220 = vmax.f32 %v5263, 0.0
        %v6221 = vmax.f32 %v6033, 0.0
        %v6222 = vmax.f32 %v6035, 0.0
        %v6223 = vmax.f32 %v3721, 0.0
        %v6224 = vmax.f32 %v3723, 0.0
        %v6225 = vmax.f32 %v4493, 0.0
        %v6226 = vmax.f32 %v4495, 0.0
        %v6227 = vmax.f32 %v5265, 0.0
        %v6228 = vmax.f32 %v5267, 0.0
        %v6229 = vmax.f32 %v6037, 0.0
        %v6230 = vmax.f32 %v6039, 0.0
        %v6231 = vmax.f32 %v3727, 0.0
        %v6232 = vmax.f32 %v3729, 0.0
        %v6233 = vmax.f32 %v4499, 0.0
        %v6234 = vmax.f32 %v4501, 0.0
        %v6235 = vmax.f32 %v5271, 0.0
        %v6236 = vmax.f32 %v5273, 0.0
        %v6237 = vmax.f32 %v6043, 0.0
        %v6238 = vmax.f32 %v6045, 0.0
        %v6239 = vmax.f32 %v3731, 0.0
        %v6240 = vmax.f32 %v3733, 0.0
        %v6241 = vmax.f32 %v4503, 0.0
        %v6242 = vmax.f32 %v4505, 0.0
        %v6243 = vmax.f32 %v5275, 0.0
        %v6244 = vmax.f32 %v5277, 0.0
        %v6245 = vmax.f32 %v6047, 0.0
        %v6246 = vmax.f32 %v6049, 0.0
        %v6247 = vmax.f32 %v3737, 0.0
        %v6248 = vmax.f32 %v3739, 0.0
        %v6249 = vmax.f32 %v4509, 0.0
        %v6250 = vmax.f32 %v4511, 0.0
        %v6251 = vmax.f32 %v5281, 0.0
        %v6252 = vmax.f32 %v5283, 0.0
        %v6253 = vmax.f32 %v6053, 0.0
        %v6254 = vmax.f32 %v6055, 0.0
        %v6255 = vmax.f32 %v3741, 0.0
        %v6256 = vmax.f32 %v3743, 0.0
        %v6257 = vmax.f32 %v4513, 0.0
        %v6258 = vmax.f32 %v4515, 0.0
        %v6259 = vmax.f32 %v5285, 0.0
        %v6260 = vmax.f32 %v5287, 0.0
        %v6261 = vmax.f32 %v6057, 0.0
        %v6262 = vmax.f32 %v6059, 0.0
        %v6263 = vmax.f32 %v3747, 0.0
        %v6264 = vmax.f32 %v3749, 0.0
        %v6265 = vmax.f32 %v4519, 0.0
        %v6266 = vmax.f32 %v4521, 0.0
        %v6267 = vmax.f32 %v5291, 0.0
        %v6268 = vmax.f32 %v5293, 0.0
        %v6269 = vmax.f32 %v6063, 0.0
        %v6270 = vmax.f32 %v6065, 0.0
        %v6271 = vmax.f32 %v3751, 0.0
        %v6272 = vmax.f32 %v3753, 0.0
        %v6273 = vmax.f32 %v4523, 0.0
        %v6274 = vmax.f32 %v4525, 0.0
        %v6275 = vmax.f32 %v5295, 0.0
        %v6276 = vmax.f32 %v5297, 0.0
        %v6277 = vmax.f32 %v6067, 0.0
        %v6278 = vmax.f32 %v6069, 0.0
        %v6279 = vmax.f32 %v3757, 0.0
        %v6280 = vmax.f32 %v3759, 0.0
        %v6281 = vmax.f32 %v4529, 0.0
        %v6282 = vmax.f32 %v4531, 0.0
        %v6283 = vmax.f32 %v5301, 0.0
        %v6284 = vmax.f32 %v5303, 0.0
        %v6285 = vmax.f32 %v6073, 0.0
        %v6286 = vmax.f32 %v6075, 0.0
        %v6287 = vmax.f32 %v3761, 0.0
        %v6288 = vmax.f32 %v3763, 0.0
        %v6289 = vmax.f32 %v4533, 0.0
        %v6290 = vmax.f32 %v4535, 0.0
        %v6291 = vmax.f32 %v5305, 0.0
        %v6292 = vmax.f32 %v5307, 0.0
        %v6293 = vmax.f32 %v6077, 0.0
        %v6294 = vmax.f32 %v6079, 0.0
        %v6295 = vmax.f32 %v3767, 0.0
        %v6296 = vmax.f32 %v3769, 0.0
        %v6297 = vmax.f32 %v4539, 0.0
        %v6298 = vmax.f32 %v4541, 0.0
        %v6299 = vmax.f32 %v5311, 0.0
        %v6300 = vmax.f32 %v5313, 0.0
        %v6301 = vmax.f32 %v6083, 0.0
        %v6302 = vmax.f32 %v6085, 0.0
        %v6303 = vmax.f32 %v3771, 0.0
        %v6304 = vmax.f32 %v3773, 0.0
        %v6305 = vmax.f32 %v4543, 0.0
        %v6306 = vmax.f32 %v4545, 0.0
        %v6307 = vmax.f32 %v5315, 0.0
        %v6308 = vmax.f32 %v5317, 0.0
        %v6309 = vmax.f32 %v6087, 0.0
        %v6310 = vmax.f32 %v6089, 0.0
        %v6311 = vmax.f32 %v3777, 0.0
        %v6312 = vmax.f32 %v3779, 0.0
        %v6313 = vmax.f32 %v4549, 0.0
        %v6314 = vmax.f32 %v4551, 0.0
        %v6315 = vmax.f32 %v5321, 0.0
        %v6316 = vmax.f32 %v5323, 0.0
        %v6317 = vmax.f32 %v6093, 0.0
        %v6318 = vmax.f32 %v6095, 0.0
        %v6319 = vmax.f32 %v3781, 0.0
        %v6320 = vmax.f32 %v3783, 0.0
        %v6321 = vmax.f32 %v4553, 0.0
        %v6322 = vmax.f32 %v4555, 0.0
        %v6323 = vmax.f32 %v5325, 0.0
        %v6324 = vmax.f32 %v5327, 0.0
        %v6325 = vmax.f32 %v6097, 0.0
        %v6326 = vmax.f32 %v6099, 0.0
        %v6327 = vmax.f32 %v3787, 0.0
        %v6328 = vmax.f32 %v3789, 0.0
        %v6329 = vmax.f32 %v4559, 0.0
        %v6330 = vmax.f32 %v4561, 0.0
        %v6331 = vmax.f32 %v5331, 0.0
        %v6332 = vmax.f32 %v5333, 0.0
        %v6333 = vmax.f32 %v6103, 0.0
        %v6334 = vmax.f32 %v6105, 0.0
        %v6335 = vmax.f32 %v3791, 0.0
        %v6336 = vmax.f32 %v3793, 0.0
        %v6337 = vmax.f32 %v4563, 0.0
        %v6338 = vmax.f32 %v4565, 0.0
        %v6339 = vmax.f32 %v5335, 0.0
        %v6340 = vmax.f32 %v5337, 0.0
        %v6341 = vmax.f32 %v6107, 0.0
        %v6342 = vmax.f32 %v6109, 0.0
        %v6343 = vmax.f32 %v3797, 0.0
        %v6344 = vmax.f32 %v3799, 0.0
        %v6345 = vmax.f32 %v4569, 0.0
        %v6346 = vmax.f32 %v4571, 0.0
        %v6347 = vmax.f32 %v5341, 0.0
        %v6348 = vmax.f32 %v5343, 0.0
        %v6349 = vmax.f32 %v6113, 0.0
        %v6350 = vmax.f32 %v6115, 0.0
        %v6351 = vmax.f32 %v3801, 0.0
        %v6352 = vmax.f32 %v3803, 0.0
        %v6353 = vmax.f32 %v4573, 0.0
        %v6354 = vmax.f32 %v4575, 0.0
        %v6355 = vmax.f32 %v5345, 0.0
        %v6356 = vmax.f32 %v5347, 0.0
        %v6357 = vmax.f32 %v6117, 0.0
        %v6358 = vmax.f32 %v6119, 0.0
        %v6359 = vmax.f32 %v3807, 0.0
        %v6360 = vmax.f32 %v3809, 0.0
        %v6361 = vmax.f32 %v4579, 0.0
        %v6362 = vmax.f32 %v4581, 0.0
        %v6363 = vmax.f32 %v5351, 0.0
        %v6364 = vmax.f32 %v5353, 0.0
        %v6365 = vmax.f32 %v6123, 0.0
        %v6366 = vmax.f32 %v6125, 0.0
        %v6367 = vmax.f32 %v3811, 0.0
        %v6368 = vmax.f32 %v3813, 0.0
        %v6369 = vmax.f32 %v4583, 0.0
        %v6370 = vmax.f32 %v4585, 0.0
        %v6371 = vmax.f32 %v5355, 0.0
        %v6372 = vmax.f32 %v5357, 0.0
        %v6373 = vmax.f32 %v6127, 0.0
        %v6374 = vmax.f32 %v6129, 0.0
        %v6375 = vmax.f32 %v3817, 0.0
        %v6376 = vmax.f32 %v3819, 0.0
        %v6377 = vmax.f32 %v4589, 0.0
        %v6378 = vmax.f32 %v4591, 0.0
        %v6379 = vmax.f32 %v5361, 0.0
        %v6380 = vmax.f32 %v5363, 0.0
        %v6381 = vmax.f32 %v6133, 0.0
        %v6382 = vmax.f32 %v6135, 0.0
        %v6383 = vmax.f32 %v3821, 0.0
        %v6384 = vmax.f32 %v3823, 0.0
        %v6385 = vmax.f32 %v4593, 0.0
        %v6386 = vmax.f32 %v4595, 0.0
        %v6387 = vmax.f32 %v5365, 0.0
        %v6388 = vmax.f32 %v5367, 0.0
        %v6389 = vmax.f32 %v6137, 0.0
        %v6390 = vmax.f32 %v6139, 0.0
        %v6391 = vmax.f32 %v3827, 0.0
        %v6392 = vmax.f32 %v3829, 0.0
        %v6393 = vmax.f32 %v4599, 0.0
        %v6394 = vmax.f32 %v4601, 0.0
        %v6395 = vmax.f32 %v5371, 0.0
        %v6396 = vmax.f32 %v5373, 0.0
        %v6397 = vmax.f32 %v6143, 0.0
        %v6398 = vmax.f32 %v6145, 0.0
        %v6399 = vmax.f32 %v3831, 0.0
        %v6400 = vmax.f32 %v3833, 0.0
        %v6401 = vmax.f32 %v4603, 0.0
        %v6402 = vmax.f32 %v4605, 0.0
        %v6403 = vmax.f32 %v5375, 0.0
        %v6404 = vmax.f32 %v5377, 0.0
        %v6405 = vmax.f32 %v6147, 0.0
        %v6406 = vmax.f32 %v6149, 0.0
        %v6407 = vpack.c.bf16 %v6159, %v6151
        %v6408 = vpack.c.bf16 %v6160, %v6152
        %v6409 = vpack.c.bf16 %v6161, %v6153
        %v6410 = vpack.c.bf16 %v6162, %v6154
        %v6411 = vpack.c.bf16 %v6163, %v6155
        %v6412 = vpack.c.bf16 %v6164, %v6156
        %v6413 = vpack.c.bf16 %v6165, %v6157
        %v6414 = vpack.c.bf16 %v6166, %v6158
        %v6415 = vpack.c.bf16 %v6175, %v6167
        %v6416 = vpack.c.bf16 %v6176, %v6168
        %v6417 = vpack.c.bf16 %v6177, %v6169
        %v6418 = vpack.c.bf16 %v6178, %v6170
        %v6419 = vpack.c.bf16 %v6179, %v6171
        %v6420 = vpack.c.bf16 %v6180, %v6172
        %v6421 = vpack.c.bf16 %v6181, %v6173
        %v6422 = vpack.c.bf16 %v6182, %v6174
        %v6423 = vpack.c.bf16 %v6191, %v6183
        %v6424 = vpack.c.bf16 %v6192, %v6184
        %v6425 = vpack.c.bf16 %v6193, %v6185
        %v6426 = vpack.c.bf16 %v6194, %v6186
        %v6427 = vpack.c.bf16 %v6195, %v6187
        %v6428 = vpack.c.bf16 %v6196, %v6188
        %v6429 = vpack.c.bf16 %v6197, %v6189
        %v6430 = vpack.c.bf16 %v6198, %v6190
        %v6431 = vpack.c.bf16 %v6207, %v6199
        %v6432 = vpack.c.bf16 %v6208, %v6200
        %v6433 = vpack.c.bf16 %v6209, %v6201
        %v6434 = vpack.c.bf16 %v6210, %v6202
        %v6435 = vpack.c.bf16 %v6211, %v6203
        %v6436 = vpack.c.bf16 %v6212, %v6204
        %v6437 = vpack.c.bf16 %v6213, %v6205
        %v6438 = vpack.c.bf16 %v6214, %v6206
        %v6439 = vpack.c.bf16 %v6223, %v6215
        %v6440 = vpack.c.bf16 %v6224, %v6216
        %v6441 = vpack.c.bf16 %v6225, %v6217
        %v6442 = vpack.c.bf16 %v6226, %v6218
        %v6443 = vpack.c.bf16 %v6227, %v6219
        %v6444 = vpack.c.bf16 %v6228, %v6220
        %v6445 = vpack.c.bf16 %v6229, %v6221
        %v6446 = vpack.c.bf16 %v6230, %v6222
        %v6447 = vpack.c.bf16 %v6239, %v6231
        %v6448 = vpack.c.bf16 %v6240, %v6232
        %v6449 = vpack.c.bf16 %v6241, %v6233
        %v6450 = vpack.c.bf16 %v6242, %v6234
        %v6451 = vpack.c.bf16 %v6243, %v6235
        %v6452 = vpack.c.bf16 %v6244, %v6236
        %v6453 = vpack.c.bf16 %v6245, %v6237
        %v6454 = vpack.c.bf16 %v6246, %v6238
        %v6455 = vpack.c.bf16 %v6255, %v6247
        %v6456 = vpack.c.bf16 %v6256, %v6248
        %v6457 = vpack.c.bf16 %v6257, %v6249
        %v6458 = vpack.c.bf16 %v6258, %v6250
        %v6459 = vpack.c.bf16 %v6259, %v6251
        %v6460 = vpack.c.bf16 %v6260, %v6252
        %v6461 = vpack.c.bf16 %v6261, %v6253
        %v6462 = vpack.c.bf16 %v6262, %v6254
        %v6463 = vpack.c.bf16 %v6271, %v6263
        %v6464 = vpack.c.bf16 %v6272, %v6264
        %v6465 = vpack.c.bf16 %v6273, %v6265
        %v6466 = vpack.c.bf16 %v6274, %v6266
        %v6467 = vpack.c.bf16 %v6275, %v6267
        %v6468 = vpack.c.bf16 %v6276, %v6268
        %v6469 = vpack.c.bf16 %v6277, %v6269
        %v6470 = vpack.c.bf16 %v6278, %v6270
        %v6471 = vpack.c.bf16 %v6287, %v6279
        %v6472 = vpack.c.bf16 %v6288, %v6280
        %v6473 = vpack.c.bf16 %v6289, %v6281
        %v6474 = vpack.c.bf16 %v6290, %v6282
        %v6475 = vpack.c.bf16 %v6291, %v6283
        %v6476 = vpack.c.bf16 %v6292, %v6284
        %v6477 = vpack.c.bf16 %v6293, %v6285
        %v6478 = vpack.c.bf16 %v6294, %v6286
        %v6479 = vpack.c.bf16 %v6303, %v6295
        %v6480 = vpack.c.bf16 %v6304, %v6296
        %v6481 = vpack.c.bf16 %v6305, %v6297
        %v6482 = vpack.c.bf16 %v6306, %v6298
        %v6483 = vpack.c.bf16 %v6307, %v6299
        %v6484 = vpack.c.bf16 %v6308, %v6300
        %v6485 = vpack.c.bf16 %v6309, %v6301
        %v6486 = vpack.c.bf16 %v6310, %v6302
        %v6487 = vpack.c.bf16 %v6319, %v6311
        %v6488 = vpack.c.bf16 %v6320, %v6312
        %v6489 = vpack.c.bf16 %v6321, %v6313
        %v6490 = vpack.c.bf16 %v6322, %v6314
        %v6491 = vpack.c.bf16 %v6323, %v6315
        %v6492 = vpack.c.bf16 %v6324, %v6316
        %v6493 = vpack.c.bf16 %v6325, %v6317
        %v6494 = vpack.c.bf16 %v6326, %v6318
        %v6495 = vpack.c.bf16 %v6335, %v6327
        %v6496 = vpack.c.bf16 %v6336, %v6328
        %v6497 = vpack.c.bf16 %v6337, %v6329
        %v6498 = vpack.c.bf16 %v6338, %v6330
        %v6499 = vpack.c.bf16 %v6339, %v6331
        %v6500 = vpack.c.bf16 %v6340, %v6332
        %v6501 = vpack.c.bf16 %v6341, %v6333
        %v6502 = vpack.c.bf16 %v6342, %v6334
        %v6503 = vpack.c.bf16 %v6351, %v6343
        %v6504 = vpack.c.bf16 %v6352, %v6344
        %v6505 = vpack.c.bf16 %v6353, %v6345
        %v6506 = vpack.c.bf16 %v6354, %v6346
        %v6507 = vpack.c.bf16 %v6355, %v6347
        %v6508 = vpack.c.bf16 %v6356, %v6348
        %v6509 = vpack.c.bf16 %v6357, %v6349
        %v6510 = vpack.c.bf16 %v6358, %v6350
        %v6511 = vpack.c.bf16 %v6367, %v6359
        %v6512 = vpack.c.bf16 %v6368, %v6360
        %v6513 = vpack.c.bf16 %v6369, %v6361
        %v6514 = vpack.c.bf16 %v6370, %v6362
        %v6515 = vpack.c.bf16 %v6371, %v6363
        %v6516 = vpack.c.bf16 %v6372, %v6364
        %v6517 = vpack.c.bf16 %v6373, %v6365
        %v6518 = vpack.c.bf16 %v6374, %v6366
        %v6519 = vpack.c.bf16 %v6383, %v6375
        %v6520 = vpack.c.bf16 %v6384, %v6376
        %v6521 = vpack.c.bf16 %v6385, %v6377
        %v6522 = vpack.c.bf16 %v6386, %v6378
        %v6523 = vpack.c.bf16 %v6387, %v6379
        %v6524 = vpack.c.bf16 %v6388, %v6380
        %v6525 = vpack.c.bf16 %v6389, %v6381
        %v6526 = vpack.c.bf16 %v6390, %v6382
        %v6527 = vpack.c.bf16 %v6399, %v6391
        %v6528 = vpack.c.bf16 %v6400, %v6392
        %v6529 = vpack.c.bf16 %v6401, %v6393
        %v6530 = vpack.c.bf16 %v6402, %v6394
        %v6531 = vpack.c.bf16 %v6403, %v6395
        %v6532 = vpack.c.bf16 %v6404, %v6396
        %v6533 = vpack.c.bf16 %v6405, %v6397
        %v6534 = vpack.c.bf16 %v6406, %v6398
        %v6535 = vld [vmem:[%s3] sm:$0xff]
        %v6536 = vld [vmem:[%s3 + $0x8] sm:$0xff]
        %v6537 = vld [vmem:[%s3 + $0x10] sm:$0xff]
        %v6538 = vld [vmem:[%s3 + $0x18] sm:$0xff]
        %v6539 = vld [vmem:[%s3 + $0x20] sm:$0xff]
        %v6540 = vld [vmem:[%s3 + $0x28] sm:$0xff]
        %v6541 = vld [vmem:[%s3 + $0x30] sm:$0xff]
        %v6542 = vld [vmem:[%s3 + $0x38] sm:$0xff]
        %v6543 = vld [vmem:[%s3 + $0x40] sm:$0xff]
        %v6544 = vld [vmem:[%s3 + $0x48] sm:$0xff]
        %v6545 = vld [vmem:[%s3 + $0x50] sm:$0xff]
        %v6546 = vld [vmem:[%s3 + $0x58] sm:$0xff]
        %v6547 = vld [vmem:[%s3 + $0x60] sm:$0xff]
        %v6548 = vld [vmem:[%s3 + $0x68] sm:$0xff]
        %v6549 = vld [vmem:[%s3 + $0x70] sm:$0xff]
        %v6550 = vld [vmem:[%s3 + $0x78] sm:$0xff]
        %v6551 = vld [vmem:[%s3 + $0x80] sm:$0xff]
        %v6552 = vld [vmem:[%s3 + $0x88] sm:$0xff]
        %v6553 = vld [vmem:[%s3 + $0x90] sm:$0xff]
        %v6554 = vld [vmem:[%s3 + $0x98] sm:$0xff]
        %v6555 = vld [vmem:[%s3 + $0xa0] sm:$0xff]
        %v6556 = vld [vmem:[%s3 + $0xa8] sm:$0xff]
        %v6557 = vld [vmem:[%s3 + $0xb0] sm:$0xff]
        %v6558 = vld [vmem:[%s3 + $0xb8] sm:$0xff]
        %v6559 = vld [vmem:[%s3 + $0xc0] sm:$0xff]
        %v6560 = vld [vmem:[%s3 + $0xc8] sm:$0xff]
        %v6561 = vld [vmem:[%s3 + $0xd0] sm:$0xff]
        %v6562 = vld [vmem:[%s3 + $0xd8] sm:$0xff]
        %v6563 = vld [vmem:[%s3 + $0xe0] sm:$0xff]
        %v6564 = vld [vmem:[%s3 + $0xe8] sm:$0xff]
        %v6565 = vld [vmem:[%s3 + $0xf0] sm:$0xff]
        %v6566 = vld [vmem:[%s3 + $0xf8] sm:$0xff]
        %v6567 = vld [vmem:[%s3 + $0x100] sm:$0xff]
        %v6568 = vld [vmem:[%s3 + $0x108] sm:$0xff]
        %v6569 = vld [vmem:[%s3 + $0x110] sm:$0xff]
        %v6570 = vld [vmem:[%s3 + $0x118] sm:$0xff]
        %v6571 = vld [vmem:[%s3 + $0x120] sm:$0xff]
        %v6572 = vld [vmem:[%s3 + $0x128] sm:$0xff]
        %v6573 = vld [vmem:[%s3 + $0x130] sm:$0xff]
        %v6574 = vld [vmem:[%s3 + $0x138] sm:$0xff]
        %v6575 = vld [vmem:[%s3 + $0x140] sm:$0xff]
        %v6576 = vld [vmem:[%s3 + $0x148] sm:$0xff]
        %v6577 = vld [vmem:[%s3 + $0x150] sm:$0xff]
        %v6578 = vld [vmem:[%s3 + $0x158] sm:$0xff]
        %v6579 = vld [vmem:[%s3 + $0x160] sm:$0xff]
        %v6580 = vld [vmem:[%s3 + $0x168] sm:$0xff]
        %v6581 = vld [vmem:[%s3 + $0x170] sm:$0xff]
        %v6582 = vld [vmem:[%s3 + $0x178] sm:$0xff]
        %v6583 = vld [vmem:[%s3 + $0x180] sm:$0xff]
        %v6584 = vld [vmem:[%s3 + $0x188] sm:$0xff]
        %v6585 = vld [vmem:[%s3 + $0x190] sm:$0xff]
        %v6586 = vld [vmem:[%s3 + $0x198] sm:$0xff]
        %v6587 = vld [vmem:[%s3 + $0x1a0] sm:$0xff]
        %v6588 = vld [vmem:[%s3 + $0x1a8] sm:$0xff]
        %v6589 = vld [vmem:[%s3 + $0x1b0] sm:$0xff]
        %v6590 = vld [vmem:[%s3 + $0x1b8] sm:$0xff]
        %v6591 = vld [vmem:[%s3 + $0x1c0] sm:$0xff]
        %v6592 = vld [vmem:[%s3 + $0x1c8] sm:$0xff]
        %v6593 = vld [vmem:[%s3 + $0x1d0] sm:$0xff]
        %v6594 = vld [vmem:[%s3 + $0x1d8] sm:$0xff]
        %v6595 = vld [vmem:[%s3 + $0x1e0] sm:$0xff]
        %v6596 = vld [vmem:[%s3 + $0x1e8] sm:$0xff]
        %v6597 = vld [vmem:[%s3 + $0x1f0] sm:$0xff]
        %v6598 = vld [vmem:[%s3 + $0x1f8] sm:$0xff]
        %v6599 = vld [vmem:[%s3 + $0x200] sm:$0xff]
        %v6600 = vld [vmem:[%s3 + $0x208] sm:$0xff]
        %v6601 = vld [vmem:[%s3 + $0x210] sm:$0xff]
        %v6602 = vld [vmem:[%s3 + $0x218] sm:$0xff]
        %v6603 = vld [vmem:[%s3 + $0x220] sm:$0xff]
        %v6604 = vld [vmem:[%s3 + $0x228] sm:$0xff]
        %v6605 = vld [vmem:[%s3 + $0x230] sm:$0xff]
        %v6606 = vld [vmem:[%s3 + $0x238] sm:$0xff]
        %v6607 = vld [vmem:[%s3 + $0x240] sm:$0xff]
        %v6608 = vld [vmem:[%s3 + $0x248] sm:$0xff]
        %v6609 = vld [vmem:[%s3 + $0x250] sm:$0xff]
        %v6610 = vld [vmem:[%s3 + $0x258] sm:$0xff]
        %v6611 = vld [vmem:[%s3 + $0x260] sm:$0xff]
        %v6612 = vld [vmem:[%s3 + $0x268] sm:$0xff]
        %v6613 = vld [vmem:[%s3 + $0x270] sm:$0xff]
        %v6614 = vld [vmem:[%s3 + $0x278] sm:$0xff]
        %v6615 = vld [vmem:[%s3 + $0x280] sm:$0xff]
        %v6616 = vld [vmem:[%s3 + $0x288] sm:$0xff]
        %v6617 = vld [vmem:[%s3 + $0x290] sm:$0xff]
        %v6618 = vld [vmem:[%s3 + $0x298] sm:$0xff]
        %v6619 = vld [vmem:[%s3 + $0x2a0] sm:$0xff]
        %v6620 = vld [vmem:[%s3 + $0x2a8] sm:$0xff]
        %v6621 = vld [vmem:[%s3 + $0x2b0] sm:$0xff]
        %v6622 = vld [vmem:[%s3 + $0x2b8] sm:$0xff]
        %v6623 = vld [vmem:[%s3 + $0x2c0] sm:$0xff]
        %v6624 = vld [vmem:[%s3 + $0x2c8] sm:$0xff]
        %v6625 = vld [vmem:[%s3 + $0x2d0] sm:$0xff]
        %v6626 = vld [vmem:[%s3 + $0x2d8] sm:$0xff]
        %v6627 = vld [vmem:[%s3 + $0x2e0] sm:$0xff]
        %v6628 = vld [vmem:[%s3 + $0x2e8] sm:$0xff]
        %v6629 = vld [vmem:[%s3 + $0x2f0] sm:$0xff]
        %v6630 = vld [vmem:[%s3 + $0x2f8] sm:$0xff]
        %v6631 = vld [vmem:[%s3 + $0x300] sm:$0xff]
        %v6632 = vld [vmem:[%s3 + $0x308] sm:$0xff]
        %v6633 = vld [vmem:[%s3 + $0x310] sm:$0xff]
        %v6634 = vld [vmem:[%s3 + $0x318] sm:$0xff]
        %v6635 = vld [vmem:[%s3 + $0x320] sm:$0xff]
        %v6636 = vld [vmem:[%s3 + $0x328] sm:$0xff]
        %v6637 = vld [vmem:[%s3 + $0x330] sm:$0xff]
        %v6638 = vld [vmem:[%s3 + $0x338] sm:$0xff]
        %v6639 = vld [vmem:[%s3 + $0x340] sm:$0xff]
        %v6640 = vld [vmem:[%s3 + $0x348] sm:$0xff]
        %v6641 = vld [vmem:[%s3 + $0x350] sm:$0xff]
        %v6642 = vld [vmem:[%s3 + $0x358] sm:$0xff]
        %v6643 = vld [vmem:[%s3 + $0x360] sm:$0xff]
        %v6644 = vld [vmem:[%s3 + $0x368] sm:$0xff]
        %v6645 = vld [vmem:[%s3 + $0x370] sm:$0xff]
        %v6646 = vld [vmem:[%s3 + $0x378] sm:$0xff]
        %v6647 = vld [vmem:[%s3 + $0x380] sm:$0xff]
        %v6648 = vld [vmem:[%s3 + $0x388] sm:$0xff]
        %v6649 = vld [vmem:[%s3 + $0x390] sm:$0xff]
        %v6650 = vld [vmem:[%s3 + $0x398] sm:$0xff]
        %v6651 = vld [vmem:[%s3 + $0x3a0] sm:$0xff]
        %v6652 = vld [vmem:[%s3 + $0x3a8] sm:$0xff]
        %v6653 = vld [vmem:[%s3 + $0x3b0] sm:$0xff]
        %v6654 = vld [vmem:[%s3 + $0x3b8] sm:$0xff]
        %v6655 = vld [vmem:[%s3 + $0x3c0] sm:$0xff]
        %v6656 = vld [vmem:[%s3 + $0x3c8] sm:$0xff]
        %v6657 = vld [vmem:[%s3 + $0x3d0] sm:$0xff]
        %v6658 = vld [vmem:[%s3 + $0x3d8] sm:$0xff]
        %v6659 = vld [vmem:[%s3 + $0x3e0] sm:$0xff]
        %v6660 = vld [vmem:[%s3 + $0x3e8] sm:$0xff]
        %v6661 = vld [vmem:[%s3 + $0x3f0] sm:$0xff]
        %v6662 = vld [vmem:[%s3 + $0x3f8] sm:$0xff]
        %v6663 = vld [vmem:[%s3 + $0x400] sm:$0xff]
        %v6664 = vld [vmem:[%s3 + $0x408] sm:$0xff]
        %v6665 = vld [vmem:[%s3 + $0x410] sm:$0xff]
        %v6666 = vld [vmem:[%s3 + $0x418] sm:$0xff]
        %v6667 = vld [vmem:[%s3 + $0x420] sm:$0xff]
        %v6668 = vld [vmem:[%s3 + $0x428] sm:$0xff]
        %v6669 = vld [vmem:[%s3 + $0x430] sm:$0xff]
        %v6670 = vld [vmem:[%s3 + $0x438] sm:$0xff]
        %v6671 = vld [vmem:[%s3 + $0x440] sm:$0xff]
        %v6672 = vld [vmem:[%s3 + $0x448] sm:$0xff]
        %v6673 = vld [vmem:[%s3 + $0x450] sm:$0xff]
        %v6674 = vld [vmem:[%s3 + $0x458] sm:$0xff]
        %v6675 = vld [vmem:[%s3 + $0x460] sm:$0xff]
        %v6676 = vld [vmem:[%s3 + $0x468] sm:$0xff]
        %v6677 = vld [vmem:[%s3 + $0x470] sm:$0xff]
        %v6678 = vld [vmem:[%s3 + $0x478] sm:$0xff]
        %v6679 = vld [vmem:[%s3 + $0x480] sm:$0xff]
        %v6680 = vld [vmem:[%s3 + $0x488] sm:$0xff]
        %v6681 = vld [vmem:[%s3 + $0x490] sm:$0xff]
        %v6682 = vld [vmem:[%s3 + $0x498] sm:$0xff]
        %v6683 = vld [vmem:[%s3 + $0x4a0] sm:$0xff]
        %v6684 = vld [vmem:[%s3 + $0x4a8] sm:$0xff]
        %v6685 = vld [vmem:[%s3 + $0x4b0] sm:$0xff]
        %v6686 = vld [vmem:[%s3 + $0x4b8] sm:$0xff]
        %v6687 = vld [vmem:[%s3 + $0x4c0] sm:$0xff]
        %v6688 = vld [vmem:[%s3 + $0x4c8] sm:$0xff]
        %v6689 = vld [vmem:[%s3 + $0x4d0] sm:$0xff]
        %v6690 = vld [vmem:[%s3 + $0x4d8] sm:$0xff]
        %v6691 = vld [vmem:[%s3 + $0x4e0] sm:$0xff]
        %v6692 = vld [vmem:[%s3 + $0x4e8] sm:$0xff]
        %v6693 = vld [vmem:[%s3 + $0x4f0] sm:$0xff]
        %v6694 = vld [vmem:[%s3 + $0x4f8] sm:$0xff]
        %v6695 = vld [vmem:[%s3 + $0x500] sm:$0xff]
        %v6696 = vld [vmem:[%s3 + $0x508] sm:$0xff]
        %v6697 = vld [vmem:[%s3 + $0x510] sm:$0xff]
        %v6698 = vld [vmem:[%s3 + $0x518] sm:$0xff]
        %v6699 = vld [vmem:[%s3 + $0x520] sm:$0xff]
        %v6700 = vld [vmem:[%s3 + $0x528] sm:$0xff]
        %v6701 = vld [vmem:[%s3 + $0x530] sm:$0xff]
        %v6702 = vld [vmem:[%s3 + $0x538] sm:$0xff]
        %v6703 = vld [vmem:[%s3 + $0x540] sm:$0xff]
        %v6704 = vld [vmem:[%s3 + $0x548] sm:$0xff]
        %v6705 = vld [vmem:[%s3 + $0x550] sm:$0xff]
        %v6706 = vld [vmem:[%s3 + $0x558] sm:$0xff]
        %v6707 = vld [vmem:[%s3 + $0x560] sm:$0xff]
        %v6708 = vld [vmem:[%s3 + $0x568] sm:$0xff]
        %v6709 = vld [vmem:[%s3 + $0x570] sm:$0xff]
        %v6710 = vld [vmem:[%s3 + $0x578] sm:$0xff]
        %v6711 = vld [vmem:[%s3 + $0x580] sm:$0xff]
        %v6712 = vld [vmem:[%s3 + $0x588] sm:$0xff]
        %v6713 = vld [vmem:[%s3 + $0x590] sm:$0xff]
        %v6714 = vld [vmem:[%s3 + $0x598] sm:$0xff]
        %v6715 = vld [vmem:[%s3 + $0x5a0] sm:$0xff]
        %v6716 = vld [vmem:[%s3 + $0x5a8] sm:$0xff]
        %v6717 = vld [vmem:[%s3 + $0x5b0] sm:$0xff]
        %v6718 = vld [vmem:[%s3 + $0x5b8] sm:$0xff]
        %v6719 = vld [vmem:[%s3 + $0x5c0] sm:$0xff]
        %v6720 = vld [vmem:[%s3 + $0x5c8] sm:$0xff]
        %v6721 = vld [vmem:[%s3 + $0x5d0] sm:$0xff]
        %v6722 = vld [vmem:[%s3 + $0x5d8] sm:$0xff]
        %v6723 = vld [vmem:[%s3 + $0x5e0] sm:$0xff]
        %v6724 = vld [vmem:[%s3 + $0x5e8] sm:$0xff]
        %v6725 = vld [vmem:[%s3 + $0x5f0] sm:$0xff]
        %v6726 = vld [vmem:[%s3 + $0x5f8] sm:$0xff]
        %v6727 = vld [vmem:[%s3 + $0x600] sm:$0xff]
        %v6728 = vld [vmem:[%s3 + $0x608] sm:$0xff]
        %v6729 = vld [vmem:[%s3 + $0x610] sm:$0xff]
        %v6730 = vld [vmem:[%s3 + $0x618] sm:$0xff]
        %v6731 = vld [vmem:[%s3 + $0x620] sm:$0xff]
        %v6732 = vld [vmem:[%s3 + $0x628] sm:$0xff]
        %v6733 = vld [vmem:[%s3 + $0x630] sm:$0xff]
        %v6734 = vld [vmem:[%s3 + $0x638] sm:$0xff]
        %v6735 = vld [vmem:[%s3 + $0x640] sm:$0xff]
        %v6736 = vld [vmem:[%s3 + $0x648] sm:$0xff]
        %v6737 = vld [vmem:[%s3 + $0x650] sm:$0xff]
        %v6738 = vld [vmem:[%s3 + $0x658] sm:$0xff]
        %v6739 = vld [vmem:[%s3 + $0x660] sm:$0xff]
        %v6740 = vld [vmem:[%s3 + $0x668] sm:$0xff]
        %v6741 = vld [vmem:[%s3 + $0x670] sm:$0xff]
        %v6742 = vld [vmem:[%s3 + $0x678] sm:$0xff]
        %v6743 = vld [vmem:[%s3 + $0x680] sm:$0xff]
        %v6744 = vld [vmem:[%s3 + $0x688] sm:$0xff]
        %v6745 = vld [vmem:[%s3 + $0x690] sm:$0xff]
        %v6746 = vld [vmem:[%s3 + $0x698] sm:$0xff]
        %v6747 = vld [vmem:[%s3 + $0x6a0] sm:$0xff]
        %v6748 = vld [vmem:[%s3 + $0x6a8] sm:$0xff]
        %v6749 = vld [vmem:[%s3 + $0x6b0] sm:$0xff]
        %v6750 = vld [vmem:[%s3 + $0x6b8] sm:$0xff]
        %v6751 = vld [vmem:[%s3 + $0x6c0] sm:$0xff]
        %v6752 = vld [vmem:[%s3 + $0x6c8] sm:$0xff]
        %v6753 = vld [vmem:[%s3 + $0x6d0] sm:$0xff]
        %v6754 = vld [vmem:[%s3 + $0x6d8] sm:$0xff]
        %v6755 = vld [vmem:[%s3 + $0x6e0] sm:$0xff]
        %v6756 = vld [vmem:[%s3 + $0x6e8] sm:$0xff]
        %v6757 = vld [vmem:[%s3 + $0x6f0] sm:$0xff]
        %v6758 = vld [vmem:[%s3 + $0x6f8] sm:$0xff]
        %v6759 = vld [vmem:[%s3 + $0x700] sm:$0xff]
        %v6760 = vld [vmem:[%s3 + $0x708] sm:$0xff]
        %v6761 = vld [vmem:[%s3 + $0x710] sm:$0xff]
        %v6762 = vld [vmem:[%s3 + $0x718] sm:$0xff]
        %v6763 = vld [vmem:[%s3 + $0x720] sm:$0xff]
        %v6764 = vld [vmem:[%s3 + $0x728] sm:$0xff]
        %v6765 = vld [vmem:[%s3 + $0x730] sm:$0xff]
        %v6766 = vld [vmem:[%s3 + $0x738] sm:$0xff]
        %v6767 = vld [vmem:[%s3 + $0x740] sm:$0xff]
        %v6768 = vld [vmem:[%s3 + $0x748] sm:$0xff]
        %v6769 = vld [vmem:[%s3 + $0x750] sm:$0xff]
        %v6770 = vld [vmem:[%s3 + $0x758] sm:$0xff]
        %v6771 = vld [vmem:[%s3 + $0x760] sm:$0xff]
        %v6772 = vld [vmem:[%s3 + $0x768] sm:$0xff]
        %v6773 = vld [vmem:[%s3 + $0x770] sm:$0xff]
        %v6774 = vld [vmem:[%s3 + $0x778] sm:$0xff]
        %v6775 = vld [vmem:[%s3 + $0x780] sm:$0xff]
        %v6776 = vld [vmem:[%s3 + $0x788] sm:$0xff]
        %v6777 = vld [vmem:[%s3 + $0x790] sm:$0xff]
        %v6778 = vld [vmem:[%s3 + $0x798] sm:$0xff]
        %v6779 = vld [vmem:[%s3 + $0x7a0] sm:$0xff]
        %v6780 = vld [vmem:[%s3 + $0x7a8] sm:$0xff]
        %v6781 = vld [vmem:[%s3 + $0x7b0] sm:$0xff]
        %v6782 = vld [vmem:[%s3 + $0x7b8] sm:$0xff]
        %v6783 = vld [vmem:[%s3 + $0x7c0] sm:$0xff]
        %v6784 = vld [vmem:[%s3 + $0x7c8] sm:$0xff]
        %v6785 = vld [vmem:[%s3 + $0x7d0] sm:$0xff]
        %v6786 = vld [vmem:[%s3 + $0x7d8] sm:$0xff]
        %v6787 = vld [vmem:[%s3 + $0x7e0] sm:$0xff]
        %v6788 = vld [vmem:[%s3 + $0x7e8] sm:$0xff]
        %v6789 = vld [vmem:[%s3 + $0x7f0] sm:$0xff]
        %v6790 = vld [vmem:[%s3 + $0x7f8] sm:$0xff]
        %v6791 = vld [vmem:[%s4] sm:$0xf]
        %v6793 = vlaneseq
        %v6794 = vshrl.u32 %v6793, 7
        %v6795 = vsub.s32 0, %v6794
        %v6796 = vrot.slane %v6791, %v6795
        %v6797 = vlaneseq
        %v6798 = vshrl.u32 %v6797, 7
        %v6799 = vsub.s32 1, %v6798
        %v6800 = vrot.slane %v6791, %v6799
        %v6801 = vlaneseq
        %v6802 = vshrl.u32 %v6801, 7
        %v6803 = vsub.s32 2, %v6802
        %v6804 = vrot.slane %v6791, %v6803
        %v6805 = vlaneseq
        %v6806 = vshrl.u32 %v6805, 7
        %v6807 = vsub.s32 3, %v6806
        %v6808 = vrot.slane %v6791, %v6807
        %v7069 = vunpack.c.l.b16 %v6535
        %v7070 = vunpack.c.h.b16 %v6535
        %v7071 = vunpack.c.l.b16 %v6536
        %v7072 = vunpack.c.h.b16 %v6536
        %v7073 = vunpack.c.l.b16 %v6537
        %v7074 = vunpack.c.h.b16 %v6537
        %v7075 = vunpack.c.l.b16 %v6538
        %v7076 = vunpack.c.h.b16 %v6538
        %v7077 = vunpack.c.l.b16 %v6539
        %v7078 = vunpack.c.h.b16 %v6539
        %v7079 = vunpack.c.l.b16 %v6540
        %v7080 = vunpack.c.h.b16 %v6540
        %v7081 = vunpack.c.l.b16 %v6541
        %v7082 = vunpack.c.h.b16 %v6541
        %v7083 = vunpack.c.l.b16 %v6542
        %v7084 = vunpack.c.h.b16 %v6542
        %v7085 = vunpack.c.l.b16 %v6543
        %v7086 = vunpack.c.h.b16 %v6543
        %v7087 = vunpack.c.l.b16 %v6544
        %v7088 = vunpack.c.h.b16 %v6544
        %v7089 = vunpack.c.l.b16 %v6545
        %v7090 = vunpack.c.h.b16 %v6545
        %v7091 = vunpack.c.l.b16 %v6546
        %v7092 = vunpack.c.h.b16 %v6546
        %v7093 = vunpack.c.l.b16 %v6547
        %v7094 = vunpack.c.h.b16 %v6547
        %v7095 = vunpack.c.l.b16 %v6548
        %v7096 = vunpack.c.h.b16 %v6548
        %v7097 = vunpack.c.l.b16 %v6549
        %v7098 = vunpack.c.h.b16 %v6549
        %v7099 = vunpack.c.l.b16 %v6550
        %v7100 = vunpack.c.h.b16 %v6550
        %v7101 = vunpack.c.l.b16 %v6551
        %v7102 = vunpack.c.h.b16 %v6551
        %v7103 = vunpack.c.l.b16 %v6552
        %v7104 = vunpack.c.h.b16 %v6552
        %v7105 = vunpack.c.l.b16 %v6553
        %v7106 = vunpack.c.h.b16 %v6553
        %v7107 = vunpack.c.l.b16 %v6554
        %v7108 = vunpack.c.h.b16 %v6554
        %v7109 = vunpack.c.l.b16 %v6555
        %v7110 = vunpack.c.h.b16 %v6555
        %v7111 = vunpack.c.l.b16 %v6556
        %v7112 = vunpack.c.h.b16 %v6556
        %v7113 = vunpack.c.l.b16 %v6557
        %v7114 = vunpack.c.h.b16 %v6557
        %v7115 = vunpack.c.l.b16 %v6558
        %v7116 = vunpack.c.h.b16 %v6558
        %v7117 = vunpack.c.l.b16 %v6559
        %v7118 = vunpack.c.h.b16 %v6559
        %v7119 = vunpack.c.l.b16 %v6560
        %v7120 = vunpack.c.h.b16 %v6560
        %v7121 = vunpack.c.l.b16 %v6561
        %v7122 = vunpack.c.h.b16 %v6561
        %v7123 = vunpack.c.l.b16 %v6562
        %v7124 = vunpack.c.h.b16 %v6562
        %v7125 = vunpack.c.l.b16 %v6563
        %v7126 = vunpack.c.h.b16 %v6563
        %v7127 = vunpack.c.l.b16 %v6564
        %v7128 = vunpack.c.h.b16 %v6564
        %v7129 = vunpack.c.l.b16 %v6565
        %v7130 = vunpack.c.h.b16 %v6565
        %v7131 = vunpack.c.l.b16 %v6566
        %v7132 = vunpack.c.h.b16 %v6566
        %v7133 = vunpack.c.l.b16 %v6567
        %v7134 = vunpack.c.h.b16 %v6567
        %v7135 = vunpack.c.l.b16 %v6568
        %v7136 = vunpack.c.h.b16 %v6568
        %v7137 = vunpack.c.l.b16 %v6569
        %v7138 = vunpack.c.h.b16 %v6569
        %v7139 = vunpack.c.l.b16 %v6570
        %v7140 = vunpack.c.h.b16 %v6570
        %v7141 = vunpack.c.l.b16 %v6571
        %v7142 = vunpack.c.h.b16 %v6571
        %v7143 = vunpack.c.l.b16 %v6572
        %v7144 = vunpack.c.h.b16 %v6572
        %v7145 = vunpack.c.l.b16 %v6573
        %v7146 = vunpack.c.h.b16 %v6573
        %v7147 = vunpack.c.l.b16 %v6574
        %v7148 = vunpack.c.h.b16 %v6574
        %v7149 = vunpack.c.l.b16 %v6575
        %v7150 = vunpack.c.h.b16 %v6575
        %v7151 = vunpack.c.l.b16 %v6576
        %v7152 = vunpack.c.h.b16 %v6576
        %v7153 = vunpack.c.l.b16 %v6577
        %v7154 = vunpack.c.h.b16 %v6577
        %v7155 = vunpack.c.l.b16 %v6578
        %v7156 = vunpack.c.h.b16 %v6578
        %v7157 = vunpack.c.l.b16 %v6579
        %v7158 = vunpack.c.h.b16 %v6579
        %v7159 = vunpack.c.l.b16 %v6580
        %v7160 = vunpack.c.h.b16 %v6580
        %v7161 = vunpack.c.l.b16 %v6581
        %v7162 = vunpack.c.h.b16 %v6581
        %v7163 = vunpack.c.l.b16 %v6582
        %v7164 = vunpack.c.h.b16 %v6582
        %v7165 = vunpack.c.l.b16 %v6583
        %v7166 = vunpack.c.h.b16 %v6583
        %v7167 = vunpack.c.l.b16 %v6584
        %v7168 = vunpack.c.h.b16 %v6584
        %v7169 = vunpack.c.l.b16 %v6585
        %v7170 = vunpack.c.h.b16 %v6585
        %v7171 = vunpack.c.l.b16 %v6586
        %v7172 = vunpack.c.h.b16 %v6586
        %v7173 = vunpack.c.l.b16 %v6587
        %v7174 = vunpack.c.h.b16 %v6587
        %v7175 = vunpack.c.l.b16 %v6588
        %v7176 = vunpack.c.h.b16 %v6588
        %v7177 = vunpack.c.l.b16 %v6589
        %v7178 = vunpack.c.h.b16 %v6589
        %v7179 = vunpack.c.l.b16 %v6590
        %v7180 = vunpack.c.h.b16 %v6590
        %v7181 = vunpack.c.l.b16 %v6591
        %v7182 = vunpack.c.h.b16 %v6591
        %v7183 = vunpack.c.l.b16 %v6592
        %v7184 = vunpack.c.h.b16 %v6592
        %v7185 = vunpack.c.l.b16 %v6593
        %v7186 = vunpack.c.h.b16 %v6593
        %v7187 = vunpack.c.l.b16 %v6594
        %v7188 = vunpack.c.h.b16 %v6594
        %v7189 = vunpack.c.l.b16 %v6595
        %v7190 = vunpack.c.h.b16 %v6595
        %v7191 = vunpack.c.l.b16 %v6596
        %v7192 = vunpack.c.h.b16 %v6596
        %v7193 = vunpack.c.l.b16 %v6597
        %v7194 = vunpack.c.h.b16 %v6597
        %v7195 = vunpack.c.l.b16 %v6598
        %v7196 = vunpack.c.h.b16 %v6598
        %v7197 = vunpack.c.l.b16 %v6599
        %v7198 = vunpack.c.h.b16 %v6599
        %v7199 = vunpack.c.l.b16 %v6600
        %v7200 = vunpack.c.h.b16 %v6600
        %v7201 = vunpack.c.l.b16 %v6601
        %v7202 = vunpack.c.h.b16 %v6601
        %v7203 = vunpack.c.l.b16 %v6602
        %v7204 = vunpack.c.h.b16 %v6602
        %v7205 = vunpack.c.l.b16 %v6603
        %v7206 = vunpack.c.h.b16 %v6603
        %v7207 = vunpack.c.l.b16 %v6604
        %v7208 = vunpack.c.h.b16 %v6604
        %v7209 = vunpack.c.l.b16 %v6605
        %v7210 = vunpack.c.h.b16 %v6605
        %v7211 = vunpack.c.l.b16 %v6606
        %v7212 = vunpack.c.h.b16 %v6606
        %v7213 = vunpack.c.l.b16 %v6607
        %v7214 = vunpack.c.h.b16 %v6607
        %v7215 = vunpack.c.l.b16 %v6608
        %v7216 = vunpack.c.h.b16 %v6608
        %v7217 = vunpack.c.l.b16 %v6609
        %v7218 = vunpack.c.h.b16 %v6609
        %v7219 = vunpack.c.l.b16 %v6610
        %v7220 = vunpack.c.h.b16 %v6610
        %v7221 = vunpack.c.l.b16 %v6611
        %v7222 = vunpack.c.h.b16 %v6611
        %v7223 = vunpack.c.l.b16 %v6612
        %v7224 = vunpack.c.h.b16 %v6612
        %v7225 = vunpack.c.l.b16 %v6613
        %v7226 = vunpack.c.h.b16 %v6613
        %v7227 = vunpack.c.l.b16 %v6614
        %v7228 = vunpack.c.h.b16 %v6614
        %v7229 = vunpack.c.l.b16 %v6615
        %v7230 = vunpack.c.h.b16 %v6615
        %v7231 = vunpack.c.l.b16 %v6616
        %v7232 = vunpack.c.h.b16 %v6616
        %v7233 = vunpack.c.l.b16 %v6617
        %v7234 = vunpack.c.h.b16 %v6617
        %v7235 = vunpack.c.l.b16 %v6618
        %v7236 = vunpack.c.h.b16 %v6618
        %v7237 = vunpack.c.l.b16 %v6619
        %v7238 = vunpack.c.h.b16 %v6619
        %v7239 = vunpack.c.l.b16 %v6620
        %v7240 = vunpack.c.h.b16 %v6620
        %v7241 = vunpack.c.l.b16 %v6621
        %v7242 = vunpack.c.h.b16 %v6621
        %v7243 = vunpack.c.l.b16 %v6622
        %v7244 = vunpack.c.h.b16 %v6622
        %v7245 = vunpack.c.l.b16 %v6623
        %v7246 = vunpack.c.h.b16 %v6623
        %v7247 = vunpack.c.l.b16 %v6624
        %v7248 = vunpack.c.h.b16 %v6624
        %v7249 = vunpack.c.l.b16 %v6625
        %v7250 = vunpack.c.h.b16 %v6625
        %v7251 = vunpack.c.l.b16 %v6626
        %v7252 = vunpack.c.h.b16 %v6626
        %v7253 = vunpack.c.l.b16 %v6627
        %v7254 = vunpack.c.h.b16 %v6627
        %v7255 = vunpack.c.l.b16 %v6628
        %v7256 = vunpack.c.h.b16 %v6628
        %v7257 = vunpack.c.l.b16 %v6629
        %v7258 = vunpack.c.h.b16 %v6629
        %v7259 = vunpack.c.l.b16 %v6630
        %v7260 = vunpack.c.h.b16 %v6630
        %v7261 = vunpack.c.l.b16 %v6631
        %v7262 = vunpack.c.h.b16 %v6631
        %v7263 = vunpack.c.l.b16 %v6632
        %v7264 = vunpack.c.h.b16 %v6632
        %v7265 = vunpack.c.l.b16 %v6633
        %v7266 = vunpack.c.h.b16 %v6633
        %v7267 = vunpack.c.l.b16 %v6634
        %v7268 = vunpack.c.h.b16 %v6634
        %v7269 = vunpack.c.l.b16 %v6635
        %v7270 = vunpack.c.h.b16 %v6635
        %v7271 = vunpack.c.l.b16 %v6636
        %v7272 = vunpack.c.h.b16 %v6636
        %v7273 = vunpack.c.l.b16 %v6637
        %v7274 = vunpack.c.h.b16 %v6637
        %v7275 = vunpack.c.l.b16 %v6638
        %v7276 = vunpack.c.h.b16 %v6638
        %v7277 = vunpack.c.l.b16 %v6639
        %v7278 = vunpack.c.h.b16 %v6639
        %v7279 = vunpack.c.l.b16 %v6640
        %v7280 = vunpack.c.h.b16 %v6640
        %v7281 = vunpack.c.l.b16 %v6641
        %v7282 = vunpack.c.h.b16 %v6641
        %v7283 = vunpack.c.l.b16 %v6642
        %v7284 = vunpack.c.h.b16 %v6642
        %v7285 = vunpack.c.l.b16 %v6643
        %v7286 = vunpack.c.h.b16 %v6643
        %v7287 = vunpack.c.l.b16 %v6644
        %v7288 = vunpack.c.h.b16 %v6644
        %v7289 = vunpack.c.l.b16 %v6645
        %v7290 = vunpack.c.h.b16 %v6645
        %v7291 = vunpack.c.l.b16 %v6646
        %v7292 = vunpack.c.h.b16 %v6646
        %v7293 = vunpack.c.l.b16 %v6647
        %v7294 = vunpack.c.h.b16 %v6647
        %v7295 = vunpack.c.l.b16 %v6648
        %v7296 = vunpack.c.h.b16 %v6648
        %v7297 = vunpack.c.l.b16 %v6649
        %v7298 = vunpack.c.h.b16 %v6649
        %v7299 = vunpack.c.l.b16 %v6650
        %v7300 = vunpack.c.h.b16 %v6650
        %v7301 = vunpack.c.l.b16 %v6651
        %v7302 = vunpack.c.h.b16 %v6651
        %v7303 = vunpack.c.l.b16 %v6652
        %v7304 = vunpack.c.h.b16 %v6652
        %v7305 = vunpack.c.l.b16 %v6653
        %v7306 = vunpack.c.h.b16 %v6653
        %v7307 = vunpack.c.l.b16 %v6654
        %v7308 = vunpack.c.h.b16 %v6654
        %v7309 = vunpack.c.l.b16 %v6655
        %v7310 = vunpack.c.h.b16 %v6655
        %v7311 = vunpack.c.l.b16 %v6656
        %v7312 = vunpack.c.h.b16 %v6656
        %v7313 = vunpack.c.l.b16 %v6657
        %v7314 = vunpack.c.h.b16 %v6657
        %v7315 = vunpack.c.l.b16 %v6658
        %v7316 = vunpack.c.h.b16 %v6658
        %v7317 = vunpack.c.l.b16 %v6659
        %v7318 = vunpack.c.h.b16 %v6659
        %v7319 = vunpack.c.l.b16 %v6660
        %v7320 = vunpack.c.h.b16 %v6660
        %v7321 = vunpack.c.l.b16 %v6661
        %v7322 = vunpack.c.h.b16 %v6661
        %v7323 = vunpack.c.l.b16 %v6662
        %v7324 = vunpack.c.h.b16 %v6662
        %v7325 = vunpack.c.l.b16 %v6663
        %v7326 = vunpack.c.h.b16 %v6663
        %v7327 = vunpack.c.l.b16 %v6664
        %v7328 = vunpack.c.h.b16 %v6664
        %v7329 = vunpack.c.l.b16 %v6665
        %v7330 = vunpack.c.h.b16 %v6665
        %v7331 = vunpack.c.l.b16 %v6666
        %v7332 = vunpack.c.h.b16 %v6666
        %v7333 = vunpack.c.l.b16 %v6667
        %v7334 = vunpack.c.h.b16 %v6667
        %v7335 = vunpack.c.l.b16 %v6668
        %v7336 = vunpack.c.h.b16 %v6668
        %v7337 = vunpack.c.l.b16 %v6669
        %v7338 = vunpack.c.h.b16 %v6669
        %v7339 = vunpack.c.l.b16 %v6670
        %v7340 = vunpack.c.h.b16 %v6670
        %v7341 = vunpack.c.l.b16 %v6671
        %v7342 = vunpack.c.h.b16 %v6671
        %v7343 = vunpack.c.l.b16 %v6672
        %v7344 = vunpack.c.h.b16 %v6672
        %v7345 = vunpack.c.l.b16 %v6673
        %v7346 = vunpack.c.h.b16 %v6673
        %v7347 = vunpack.c.l.b16 %v6674
        %v7348 = vunpack.c.h.b16 %v6674
        %v7349 = vunpack.c.l.b16 %v6675
        %v7350 = vunpack.c.h.b16 %v6675
        %v7351 = vunpack.c.l.b16 %v6676
        %v7352 = vunpack.c.h.b16 %v6676
        %v7353 = vunpack.c.l.b16 %v6677
        %v7354 = vunpack.c.h.b16 %v6677
        %v7355 = vunpack.c.l.b16 %v6678
        %v7356 = vunpack.c.h.b16 %v6678
        %v7357 = vunpack.c.l.b16 %v6679
        %v7358 = vunpack.c.h.b16 %v6679
        %v7359 = vunpack.c.l.b16 %v6680
        %v7360 = vunpack.c.h.b16 %v6680
        %v7361 = vunpack.c.l.b16 %v6681
        %v7362 = vunpack.c.h.b16 %v6681
        %v7363 = vunpack.c.l.b16 %v6682
        %v7364 = vunpack.c.h.b16 %v6682
        %v7365 = vunpack.c.l.b16 %v6683
        %v7366 = vunpack.c.h.b16 %v6683
        %v7367 = vunpack.c.l.b16 %v6684
        %v7368 = vunpack.c.h.b16 %v6684
        %v7369 = vunpack.c.l.b16 %v6685
        %v7370 = vunpack.c.h.b16 %v6685
        %v7371 = vunpack.c.l.b16 %v6686
        %v7372 = vunpack.c.h.b16 %v6686
        %v7373 = vunpack.c.l.b16 %v6687
        %v7374 = vunpack.c.h.b16 %v6687
        %v7375 = vunpack.c.l.b16 %v6688
        %v7376 = vunpack.c.h.b16 %v6688
        %v7377 = vunpack.c.l.b16 %v6689
        %v7378 = vunpack.c.h.b16 %v6689
        %v7379 = vunpack.c.l.b16 %v6690
        %v7380 = vunpack.c.h.b16 %v6690
        %v7381 = vunpack.c.l.b16 %v6691
        %v7382 = vunpack.c.h.b16 %v6691
        %v7383 = vunpack.c.l.b16 %v6692
        %v7384 = vunpack.c.h.b16 %v6692
        %v7385 = vunpack.c.l.b16 %v6693
        %v7386 = vunpack.c.h.b16 %v6693
        %v7387 = vunpack.c.l.b16 %v6694
        %v7388 = vunpack.c.h.b16 %v6694
        %v7389 = vunpack.c.l.b16 %v6695
        %v7390 = vunpack.c.h.b16 %v6695
        %v7391 = vunpack.c.l.b16 %v6696
        %v7392 = vunpack.c.h.b16 %v6696
        %v7393 = vunpack.c.l.b16 %v6697
        %v7394 = vunpack.c.h.b16 %v6697
        %v7395 = vunpack.c.l.b16 %v6698
        %v7396 = vunpack.c.h.b16 %v6698
        %v7397 = vunpack.c.l.b16 %v6699
        %v7398 = vunpack.c.h.b16 %v6699
        %v7399 = vunpack.c.l.b16 %v6700
        %v7400 = vunpack.c.h.b16 %v6700
        %v7401 = vunpack.c.l.b16 %v6701
        %v7402 = vunpack.c.h.b16 %v6701
        %v7403 = vunpack.c.l.b16 %v6702
        %v7404 = vunpack.c.h.b16 %v6702
        %v7405 = vunpack.c.l.b16 %v6703
        %v7406 = vunpack.c.h.b16 %v6703
        %v7407 = vunpack.c.l.b16 %v6704
        %v7408 = vunpack.c.h.b16 %v6704
        %v7409 = vunpack.c.l.b16 %v6705
        %v7410 = vunpack.c.h.b16 %v6705
        %v7411 = vunpack.c.l.b16 %v6706
        %v7412 = vunpack.c.h.b16 %v6706
        %v7413 = vunpack.c.l.b16 %v6707
        %v7414 = vunpack.c.h.b16 %v6707
        %v7415 = vunpack.c.l.b16 %v6708
        %v7416 = vunpack.c.h.b16 %v6708
        %v7417 = vunpack.c.l.b16 %v6709
        %v7418 = vunpack.c.h.b16 %v6709
        %v7419 = vunpack.c.l.b16 %v6710
        %v7420 = vunpack.c.h.b16 %v6710
        %v7421 = vunpack.c.l.b16 %v6711
        %v7422 = vunpack.c.h.b16 %v6711
        %v7423 = vunpack.c.l.b16 %v6712
        %v7424 = vunpack.c.h.b16 %v6712
        %v7425 = vunpack.c.l.b16 %v6713
        %v7426 = vunpack.c.h.b16 %v6713
        %v7427 = vunpack.c.l.b16 %v6714
        %v7428 = vunpack.c.h.b16 %v6714
        %v7429 = vunpack.c.l.b16 %v6715
        %v7430 = vunpack.c.h.b16 %v6715
        %v7431 = vunpack.c.l.b16 %v6716
        %v7432 = vunpack.c.h.b16 %v6716
        %v7433 = vunpack.c.l.b16 %v6717
        %v7434 = vunpack.c.h.b16 %v6717
        %v7435 = vunpack.c.l.b16 %v6718
        %v7436 = vunpack.c.h.b16 %v6718
        %v7437 = vunpack.c.l.b16 %v6719
        %v7438 = vunpack.c.h.b16 %v6719
        %v7439 = vunpack.c.l.b16 %v6720
        %v7440 = vunpack.c.h.b16 %v6720
        %v7441 = vunpack.c.l.b16 %v6721
        %v7442 = vunpack.c.h.b16 %v6721
        %v7443 = vunpack.c.l.b16 %v6722
        %v7444 = vunpack.c.h.b16 %v6722
        %v7445 = vunpack.c.l.b16 %v6723
        %v7446 = vunpack.c.h.b16 %v6723
        %v7447 = vunpack.c.l.b16 %v6724
        %v7448 = vunpack.c.h.b16 %v6724
        %v7449 = vunpack.c.l.b16 %v6725
        %v7450 = vunpack.c.h.b16 %v6725
        %v7451 = vunpack.c.l.b16 %v6726
        %v7452 = vunpack.c.h.b16 %v6726
        %v7453 = vunpack.c.l.b16 %v6727
        %v7454 = vunpack.c.h.b16 %v6727
        %v7455 = vunpack.c.l.b16 %v6728
        %v7456 = vunpack.c.h.b16 %v6728
        %v7457 = vunpack.c.l.b16 %v6729
        %v7458 = vunpack.c.h.b16 %v6729
        %v7459 = vunpack.c.l.b16 %v6730
        %v7460 = vunpack.c.h.b16 %v6730
        %v7461 = vunpack.c.l.b16 %v6731
        %v7462 = vunpack.c.h.b16 %v6731
        %v7463 = vunpack.c.l.b16 %v6732
        %v7464 = vunpack.c.h.b16 %v6732
        %v7465 = vunpack.c.l.b16 %v6733
        %v7466 = vunpack.c.h.b16 %v6733
        %v7467 = vunpack.c.l.b16 %v6734
        %v7468 = vunpack.c.h.b16 %v6734
        %v7469 = vunpack.c.l.b16 %v6735
        %v7470 = vunpack.c.h.b16 %v6735
        %v7471 = vunpack.c.l.b16 %v6736
        %v7472 = vunpack.c.h.b16 %v6736
        %v7473 = vunpack.c.l.b16 %v6737
        %v7474 = vunpack.c.h.b16 %v6737
        %v7475 = vunpack.c.l.b16 %v6738
        %v7476 = vunpack.c.h.b16 %v6738
        %v7477 = vunpack.c.l.b16 %v6739
        %v7478 = vunpack.c.h.b16 %v6739
        %v7479 = vunpack.c.l.b16 %v6740
        %v7480 = vunpack.c.h.b16 %v6740
        %v7481 = vunpack.c.l.b16 %v6741
        %v7482 = vunpack.c.h.b16 %v6741
        %v7483 = vunpack.c.l.b16 %v6742
        %v7484 = vunpack.c.h.b16 %v6742
        %v7485 = vunpack.c.l.b16 %v6743
        %v7486 = vunpack.c.h.b16 %v6743
        %v7487 = vunpack.c.l.b16 %v6744
        %v7488 = vunpack.c.h.b16 %v6744
        %v7489 = vunpack.c.l.b16 %v6745
        %v7490 = vunpack.c.h.b16 %v6745
        %v7491 = vunpack.c.l.b16 %v6746
        %v7492 = vunpack.c.h.b16 %v6746
        %v7493 = vunpack.c.l.b16 %v6747
        %v7494 = vunpack.c.h.b16 %v6747
        %v7495 = vunpack.c.l.b16 %v6748
        %v7496 = vunpack.c.h.b16 %v6748
        %v7497 = vunpack.c.l.b16 %v6749
        %v7498 = vunpack.c.h.b16 %v6749
        %v7499 = vunpack.c.l.b16 %v6750
        %v7500 = vunpack.c.h.b16 %v6750
        %v7501 = vunpack.c.l.b16 %v6751
        %v7502 = vunpack.c.h.b16 %v6751
        %v7503 = vunpack.c.l.b16 %v6752
        %v7504 = vunpack.c.h.b16 %v6752
        %v7505 = vunpack.c.l.b16 %v6753
        %v7506 = vunpack.c.h.b16 %v6753
        %v7507 = vunpack.c.l.b16 %v6754
        %v7508 = vunpack.c.h.b16 %v6754
        %v7509 = vunpack.c.l.b16 %v6755
        %v7510 = vunpack.c.h.b16 %v6755
        %v7511 = vunpack.c.l.b16 %v6756
        %v7512 = vunpack.c.h.b16 %v6756
        %v7513 = vunpack.c.l.b16 %v6757
        %v7514 = vunpack.c.h.b16 %v6757
        %v7515 = vunpack.c.l.b16 %v6758
        %v7516 = vunpack.c.h.b16 %v6758
        %v7517 = vunpack.c.l.b16 %v6759
        %v7518 = vunpack.c.h.b16 %v6759
        %v7519 = vunpack.c.l.b16 %v6760
        %v7520 = vunpack.c.h.b16 %v6760
        %v7521 = vunpack.c.l.b16 %v6761
        %v7522 = vunpack.c.h.b16 %v6761
        %v7523 = vunpack.c.l.b16 %v6762
        %v7524 = vunpack.c.h.b16 %v6762
        %v7525 = vunpack.c.l.b16 %v6763
        %v7526 = vunpack.c.h.b16 %v6763
        %v7527 = vunpack.c.l.b16 %v6764
        %v7528 = vunpack.c.h.b16 %v6764
        %v7529 = vunpack.c.l.b16 %v6765
        %v7530 = vunpack.c.h.b16 %v6765
        %v7531 = vunpack.c.l.b16 %v6766
        %v7532 = vunpack.c.h.b16 %v6766
        %v7533 = vunpack.c.l.b16 %v6767
        %v7534 = vunpack.c.h.b16 %v6767
        %v7535 = vunpack.c.l.b16 %v6768
        %v7536 = vunpack.c.h.b16 %v6768
        %v7537 = vunpack.c.l.b16 %v6769
        %v7538 = vunpack.c.h.b16 %v6769
        %v7539 = vunpack.c.l.b16 %v6770
        %v7540 = vunpack.c.h.b16 %v6770
        %v7541 = vunpack.c.l.b16 %v6771
        %v7542 = vunpack.c.h.b16 %v6771
        %v7543 = vunpack.c.l.b16 %v6772
        %v7544 = vunpack.c.h.b16 %v6772
        %v7545 = vunpack.c.l.b16 %v6773
        %v7546 = vunpack.c.h.b16 %v6773
        %v7547 = vunpack.c.l.b16 %v6774
        %v7548 = vunpack.c.h.b16 %v6774
        %v7549 = vunpack.c.l.b16 %v6775
        %v7550 = vunpack.c.h.b16 %v6775
        %v7551 = vunpack.c.l.b16 %v6776
        %v7552 = vunpack.c.h.b16 %v6776
        %v7553 = vunpack.c.l.b16 %v6777
        %v7554 = vunpack.c.h.b16 %v6777
        %v7555 = vunpack.c.l.b16 %v6778
        %v7556 = vunpack.c.h.b16 %v6778
        %v7557 = vunpack.c.l.b16 %v6779
        %v7558 = vunpack.c.h.b16 %v6779
        %v7559 = vunpack.c.l.b16 %v6780
        %v7560 = vunpack.c.h.b16 %v6780
        %v7561 = vunpack.c.l.b16 %v6781
        %v7562 = vunpack.c.h.b16 %v6781
        %v7563 = vunpack.c.l.b16 %v6782
        %v7564 = vunpack.c.h.b16 %v6782
        %v7565 = vunpack.c.l.b16 %v6783
        %v7566 = vunpack.c.h.b16 %v6783
        %v7567 = vunpack.c.l.b16 %v6784
        %v7568 = vunpack.c.h.b16 %v6784
        %v7569 = vunpack.c.l.b16 %v6785
        %v7570 = vunpack.c.h.b16 %v6785
        %v7571 = vunpack.c.l.b16 %v6786
        %v7572 = vunpack.c.h.b16 %v6786
        %v7573 = vunpack.c.l.b16 %v6787
        %v7574 = vunpack.c.h.b16 %v6787
        %v7575 = vunpack.c.l.b16 %v6788
        %v7576 = vunpack.c.h.b16 %v6788
        %v7577 = vunpack.c.l.b16 %v6789
        %v7578 = vunpack.c.h.b16 %v6789
        %v7579 = vunpack.c.l.b16 %v6790
        %v7580 = vunpack.c.h.b16 %v6790
        %v7581 = vpack.c.b16 %v7073, %v7069
        %v7582 = vpack.c.b16 %v7074, %v7070
        %v7583 = vpack.c.b16 %v7075, %v7071
        %v7584 = vpack.c.b16 %v7076, %v7072
        %v7585 = vpack.c.b16 %v7081, %v7077
        %v7586 = vpack.c.b16 %v7082, %v7078
        %v7587 = vpack.c.b16 %v7083, %v7079
        %v7588 = vpack.c.b16 %v7084, %v7080
        %v7589 = vpack.c.b16 %v7089, %v7085
        %v7590 = vpack.c.b16 %v7090, %v7086
        %v7591 = vpack.c.b16 %v7091, %v7087
        %v7592 = vpack.c.b16 %v7092, %v7088
        %v7593 = vpack.c.b16 %v7097, %v7093
        %v7594 = vpack.c.b16 %v7098, %v7094
        %v7595 = vpack.c.b16 %v7099, %v7095
        %v7596 = vpack.c.b16 %v7100, %v7096
        %v7597 = vpack.c.b16 %v7105, %v7101
        %v7598 = vpack.c.b16 %v7106, %v7102
        %v7599 = vpack.c.b16 %v7107, %v7103
        %v7600 = vpack.c.b16 %v7108, %v7104
        %v7601 = vpack.c.b16 %v7113, %v7109
        %v7602 = vpack.c.b16 %v7114, %v7110
        %v7603 = vpack.c.b16 %v7115, %v7111
        %v7604 = vpack.c.b16 %v7116, %v7112
        %v7605 = vpack.c.b16 %v7121, %v7117
        %v7606 = vpack.c.b16 %v7122, %v7118
        %v7607 = vpack.c.b16 %v7123, %v7119
        %v7608 = vpack.c.b16 %v7124, %v7120
        %v7609 = vpack.c.b16 %v7129, %v7125
        %v7610 = vpack.c.b16 %v7130, %v7126
        %v7611 = vpack.c.b16 %v7131, %v7127
        %v7612 = vpack.c.b16 %v7132, %v7128
        %v7613 = vpack.c.b16 %v7137, %v7133
        %v7614 = vpack.c.b16 %v7138, %v7134
        %v7615 = vpack.c.b16 %v7139, %v7135
        %v7616 = vpack.c.b16 %v7140, %v7136
        %v7617 = vpack.c.b16 %v7145, %v7141
        %v7618 = vpack.c.b16 %v7146, %v7142
        %v7619 = vpack.c.b16 %v7147, %v7143
        %v7620 = vpack.c.b16 %v7148, %v7144
        %v7621 = vpack.c.b16 %v7153, %v7149
        %v7622 = vpack.c.b16 %v7154, %v7150
        %v7623 = vpack.c.b16 %v7155, %v7151
        %v7624 = vpack.c.b16 %v7156, %v7152
        %v7625 = vpack.c.b16 %v7161, %v7157
        %v7626 = vpack.c.b16 %v7162, %v7158
        %v7627 = vpack.c.b16 %v7163, %v7159
        %v7628 = vpack.c.b16 %v7164, %v7160
        %v7629 = vpack.c.b16 %v7169, %v7165
        %v7630 = vpack.c.b16 %v7170, %v7166
        %v7631 = vpack.c.b16 %v7171, %v7167
        %v7632 = vpack.c.b16 %v7172, %v7168
        %v7633 = vpack.c.b16 %v7177, %v7173
        %v7634 = vpack.c.b16 %v7178, %v7174
        %v7635 = vpack.c.b16 %v7179, %v7175
        %v7636 = vpack.c.b16 %v7180, %v7176
        %v7637 = vpack.c.b16 %v7185, %v7181
        %v7638 = vpack.c.b16 %v7186, %v7182
        %v7639 = vpack.c.b16 %v7187, %v7183
        %v7640 = vpack.c.b16 %v7188, %v7184
        %v7641 = vpack.c.b16 %v7193, %v7189
        %v7642 = vpack.c.b16 %v7194, %v7190
        %v7643 = vpack.c.b16 %v7195, %v7191
        %v7644 = vpack.c.b16 %v7196, %v7192
        %v7645 = vpack.c.b16 %v7201, %v7197
        %v7646 = vpack.c.b16 %v7202, %v7198
        %v7647 = vpack.c.b16 %v7203, %v7199
        %v7648 = vpack.c.b16 %v7204, %v7200
        %v7649 = vpack.c.b16 %v7209, %v7205
        %v7650 = vpack.c.b16 %v7210, %v7206
        %v7651 = vpack.c.b16 %v7211, %v7207
        %v7652 = vpack.c.b16 %v7212, %v7208
        %v7653 = vpack.c.b16 %v7217, %v7213
        %v7654 = vpack.c.b16 %v7218, %v7214
        %v7655 = vpack.c.b16 %v7219, %v7215
        %v7656 = vpack.c.b16 %v7220, %v7216
        %v7657 = vpack.c.b16 %v7225, %v7221
        %v7658 = vpack.c.b16 %v7226, %v7222
        %v7659 = vpack.c.b16 %v7227, %v7223
        %v7660 = vpack.c.b16 %v7228, %v7224
        %v7661 = vpack.c.b16 %v7233, %v7229
        %v7662 = vpack.c.b16 %v7234, %v7230
        %v7663 = vpack.c.b16 %v7235, %v7231
        %v7664 = vpack.c.b16 %v7236, %v7232
        %v7665 = vpack.c.b16 %v7241, %v7237
        %v7666 = vpack.c.b16 %v7242, %v7238
        %v7667 = vpack.c.b16 %v7243, %v7239
        %v7668 = vpack.c.b16 %v7244, %v7240
        %v7669 = vpack.c.b16 %v7249, %v7245
        %v7670 = vpack.c.b16 %v7250, %v7246
        %v7671 = vpack.c.b16 %v7251, %v7247
        %v7672 = vpack.c.b16 %v7252, %v7248
        %v7673 = vpack.c.b16 %v7257, %v7253
        %v7674 = vpack.c.b16 %v7258, %v7254
        %v7675 = vpack.c.b16 %v7259, %v7255
        %v7676 = vpack.c.b16 %v7260, %v7256
        %v7677 = vpack.c.b16 %v7265, %v7261
        %v7678 = vpack.c.b16 %v7266, %v7262
        %v7679 = vpack.c.b16 %v7267, %v7263
        %v7680 = vpack.c.b16 %v7268, %v7264
        %v7681 = vpack.c.b16 %v7273, %v7269
        %v7682 = vpack.c.b16 %v7274, %v7270
        %v7683 = vpack.c.b16 %v7275, %v7271
        %v7684 = vpack.c.b16 %v7276, %v7272
        %v7685 = vpack.c.b16 %v7281, %v7277
        %v7686 = vpack.c.b16 %v7282, %v7278
        %v7687 = vpack.c.b16 %v7283, %v7279
        %v7688 = vpack.c.b16 %v7284, %v7280
        %v7689 = vpack.c.b16 %v7289, %v7285
        %v7690 = vpack.c.b16 %v7290, %v7286
        %v7691 = vpack.c.b16 %v7291, %v7287
        %v7692 = vpack.c.b16 %v7292, %v7288
        %v7693 = vpack.c.b16 %v7297, %v7293
        %v7694 = vpack.c.b16 %v7298, %v7294
        %v7695 = vpack.c.b16 %v7299, %v7295
        %v7696 = vpack.c.b16 %v7300, %v7296
        %v7697 = vpack.c.b16 %v7305, %v7301
        %v7698 = vpack.c.b16 %v7306, %v7302
        %v7699 = vpack.c.b16 %v7307, %v7303
        %v7700 = vpack.c.b16 %v7308, %v7304
        %v7701 = vpack.c.b16 %v7313, %v7309
        %v7702 = vpack.c.b16 %v7314, %v7310
        %v7703 = vpack.c.b16 %v7315, %v7311
        %v7704 = vpack.c.b16 %v7316, %v7312
        %v7705 = vpack.c.b16 %v7321, %v7317
        %v7706 = vpack.c.b16 %v7322, %v7318
        %v7707 = vpack.c.b16 %v7323, %v7319
        %v7708 = vpack.c.b16 %v7324, %v7320
        %v7709 = vpack.c.b16 %v7329, %v7325
        %v7710 = vpack.c.b16 %v7330, %v7326
        %v7711 = vpack.c.b16 %v7331, %v7327
        %v7712 = vpack.c.b16 %v7332, %v7328
        %v7713 = vpack.c.b16 %v7337, %v7333
        %v7714 = vpack.c.b16 %v7338, %v7334
        %v7715 = vpack.c.b16 %v7339, %v7335
        %v7716 = vpack.c.b16 %v7340, %v7336
        %v7717 = vpack.c.b16 %v7345, %v7341
        %v7718 = vpack.c.b16 %v7346, %v7342
        %v7719 = vpack.c.b16 %v7347, %v7343
        %v7720 = vpack.c.b16 %v7348, %v7344
        %v7721 = vpack.c.b16 %v7353, %v7349
        %v7722 = vpack.c.b16 %v7354, %v7350
        %v7723 = vpack.c.b16 %v7355, %v7351
        %v7724 = vpack.c.b16 %v7356, %v7352
        %v7725 = vpack.c.b16 %v7361, %v7357
        %v7726 = vpack.c.b16 %v7362, %v7358
        %v7727 = vpack.c.b16 %v7363, %v7359
        %v7728 = vpack.c.b16 %v7364, %v7360
        %v7729 = vpack.c.b16 %v7369, %v7365
        %v7730 = vpack.c.b16 %v7370, %v7366
        %v7731 = vpack.c.b16 %v7371, %v7367
        %v7732 = vpack.c.b16 %v7372, %v7368
        %v7733 = vpack.c.b16 %v7377, %v7373
        %v7734 = vpack.c.b16 %v7378, %v7374
        %v7735 = vpack.c.b16 %v7379, %v7375
        %v7736 = vpack.c.b16 %v7380, %v7376
        %v7737 = vpack.c.b16 %v7385, %v7381
        %v7738 = vpack.c.b16 %v7386, %v7382
        %v7739 = vpack.c.b16 %v7387, %v7383
        %v7740 = vpack.c.b16 %v7388, %v7384
        %v7741 = vpack.c.b16 %v7393, %v7389
        %v7742 = vpack.c.b16 %v7394, %v7390
        %v7743 = vpack.c.b16 %v7395, %v7391
        %v7744 = vpack.c.b16 %v7396, %v7392
        %v7745 = vpack.c.b16 %v7401, %v7397
        %v7746 = vpack.c.b16 %v7402, %v7398
        %v7747 = vpack.c.b16 %v7403, %v7399
        %v7748 = vpack.c.b16 %v7404, %v7400
        %v7749 = vpack.c.b16 %v7409, %v7405
        %v7750 = vpack.c.b16 %v7410, %v7406
        %v7751 = vpack.c.b16 %v7411, %v7407
        %v7752 = vpack.c.b16 %v7412, %v7408
        %v7753 = vpack.c.b16 %v7417, %v7413
        %v7754 = vpack.c.b16 %v7418, %v7414
        %v7755 = vpack.c.b16 %v7419, %v7415
        %v7756 = vpack.c.b16 %v7420, %v7416
        %v7757 = vpack.c.b16 %v7425, %v7421
        %v7758 = vpack.c.b16 %v7426, %v7422
        %v7759 = vpack.c.b16 %v7427, %v7423
        %v7760 = vpack.c.b16 %v7428, %v7424
        %v7761 = vpack.c.b16 %v7433, %v7429
        %v7762 = vpack.c.b16 %v7434, %v7430
        %v7763 = vpack.c.b16 %v7435, %v7431
        %v7764 = vpack.c.b16 %v7436, %v7432
        %v7765 = vpack.c.b16 %v7441, %v7437
        %v7766 = vpack.c.b16 %v7442, %v7438
        %v7767 = vpack.c.b16 %v7443, %v7439
        %v7768 = vpack.c.b16 %v7444, %v7440
        %v7769 = vpack.c.b16 %v7449, %v7445
        %v7770 = vpack.c.b16 %v7450, %v7446
        %v7771 = vpack.c.b16 %v7451, %v7447
        %v7772 = vpack.c.b16 %v7452, %v7448
        %v7773 = vpack.c.b16 %v7457, %v7453
        %v7774 = vpack.c.b16 %v7458, %v7454
        %v7775 = vpack.c.b16 %v7459, %v7455
        %v7776 = vpack.c.b16 %v7460, %v7456
        %v7777 = vpack.c.b16 %v7465, %v7461
        %v7778 = vpack.c.b16 %v7466, %v7462
        %v7779 = vpack.c.b16 %v7467, %v7463
        %v7780 = vpack.c.b16 %v7468, %v7464
        %v7781 = vpack.c.b16 %v7473, %v7469
        %v7782 = vpack.c.b16 %v7474, %v7470
        %v7783 = vpack.c.b16 %v7475, %v7471
        %v7784 = vpack.c.b16 %v7476, %v7472
        %v7785 = vpack.c.b16 %v7481, %v7477
        %v7786 = vpack.c.b16 %v7482, %v7478
        %v7787 = vpack.c.b16 %v7483, %v7479
        %v7788 = vpack.c.b16 %v7484, %v7480
        %v7789 = vpack.c.b16 %v7489, %v7485
        %v7790 = vpack.c.b16 %v7490, %v7486
        %v7791 = vpack.c.b16 %v7491, %v7487
        %v7792 = vpack.c.b16 %v7492, %v7488
        %v7793 = vpack.c.b16 %v7497, %v7493
        %v7794 = vpack.c.b16 %v7498, %v7494
        %v7795 = vpack.c.b16 %v7499, %v7495
        %v7796 = vpack.c.b16 %v7500, %v7496
        %v7797 = vpack.c.b16 %v7505, %v7501
        %v7798 = vpack.c.b16 %v7506, %v7502
        %v7799 = vpack.c.b16 %v7507, %v7503
        %v7800 = vpack.c.b16 %v7508, %v7504
        %v7801 = vpack.c.b16 %v7513, %v7509
        %v7802 = vpack.c.b16 %v7514, %v7510
        %v7803 = vpack.c.b16 %v7515, %v7511
        %v7804 = vpack.c.b16 %v7516, %v7512
        %v7805 = vpack.c.b16 %v7521, %v7517
        %v7806 = vpack.c.b16 %v7522, %v7518
        %v7807 = vpack.c.b16 %v7523, %v7519
        %v7808 = vpack.c.b16 %v7524, %v7520
        %v7809 = vpack.c.b16 %v7529, %v7525
        %v7810 = vpack.c.b16 %v7530, %v7526
        %v7811 = vpack.c.b16 %v7531, %v7527
        %v7812 = vpack.c.b16 %v7532, %v7528
        %v7813 = vpack.c.b16 %v7537, %v7533
        %v7814 = vpack.c.b16 %v7538, %v7534
        %v7815 = vpack.c.b16 %v7539, %v7535
        %v7816 = vpack.c.b16 %v7540, %v7536
        %v7817 = vpack.c.b16 %v7545, %v7541
        %v7818 = vpack.c.b16 %v7546, %v7542
        %v7819 = vpack.c.b16 %v7547, %v7543
        %v7820 = vpack.c.b16 %v7548, %v7544
        %v7821 = vpack.c.b16 %v7553, %v7549
        %v7822 = vpack.c.b16 %v7554, %v7550
        %v7823 = vpack.c.b16 %v7555, %v7551
        %v7824 = vpack.c.b16 %v7556, %v7552
        %v7825 = vpack.c.b16 %v7561, %v7557
        %v7826 = vpack.c.b16 %v7562, %v7558
        %v7827 = vpack.c.b16 %v7563, %v7559
        %v7828 = vpack.c.b16 %v7564, %v7560
        %v7829 = vpack.c.b16 %v7569, %v7565
        %v7830 = vpack.c.b16 %v7570, %v7566
        %v7831 = vpack.c.b16 %v7571, %v7567
        %v7832 = vpack.c.b16 %v7572, %v7568
        %v7833 = vpack.c.b16 %v7577, %v7573
        %v7834 = vpack.c.b16 %v7578, %v7574
        %v7835 = vpack.c.b16 %v7579, %v7575
        %v7836 = vpack.c.b16 %v7580, %v7576
        %8093 = vmatprep.subr.bf16.mxu0 %v7582
        %8094 = vmatpush1.bf16.msra.mxu0 %v7581
        %8095 = vmatprep.subr.bf16.mxu0 %v7586
        %8096 = vmatpush1.bf16.msra.mxu0 %v7585
        %8097 = vmatprep.subr.bf16.mxu0 %v7590
        %8098 = vmatpush1.bf16.msra.mxu0 %v7589
        %8099 = vmatprep.subr.bf16.mxu0 %v7594
        %8100 = vmatpush1.bf16.msra.mxu0 %v7593
        %8101 = vmatprep.subr.bf16.mxu0 %v7598
        %8102 = vmatpush1.bf16.msra.mxu0 %v7597
        %8103 = vmatprep.subr.bf16.mxu0 %v7602
        %8104 = vmatpush1.bf16.msra.mxu0 %v7601
        %8105 = vmatprep.subr.bf16.mxu0 %v7606
        %8106 = vmatpush1.bf16.msra.mxu0 %v7605
        %8107 = vmatprep.subr.bf16.mxu0 %v7610
        %8108 = vmatpush1.bf16.msra.mxu0 %v7609
        %8109 = vmatprep.subr.bf16.mxu0 %v7614
        %8110 = vmatpush1.bf16.msra.mxu0 %v7613
        %8111 = vmatprep.subr.bf16.mxu0 %v7618
        %8112 = vmatpush1.bf16.msra.mxu0 %v7617
        %8113 = vmatprep.subr.bf16.mxu0 %v7622
        %8114 = vmatpush1.bf16.msra.mxu0 %v7621
        %8115 = vmatprep.subr.bf16.mxu0 %v7626
        %8116 = vmatpush1.bf16.msra.mxu0 %v7625
        %8117 = vmatprep.subr.bf16.mxu0 %v7630
        %8118 = vmatpush1.bf16.msra.mxu0 %v7629
        %8119 = vmatprep.subr.bf16.mxu0 %v7634
        %8120 = vmatpush1.bf16.msra.mxu0 %v7633
        %8121 = vmatprep.subr.bf16.mxu0 %v7638
        %8122 = vmatpush1.bf16.msra.mxu0 %v7637
        %8123 = vmatprep.subr.bf16.mxu0 %v7642
        %8124 = vmatpush1.bf16.msra.mxu0 %v7641
        %8125 = vmatprep.mubr.bf16.mxu0 %v6408
        %8126 = vmatmul.mubr.bf16.gmra.mrb[0].mxu0 %v6407
        %v8127 = vpop.f32.mrb[0].mxu0
        %v8128 = vadd.f32 %v6796, %v8127
        %v8129 = vpop.f32.mrb[0].mxu0
        %v8130 = vadd.f32 %v6800, %v8129
        %v8131 = vpop.f32.mrb[0].mxu0
        %v8132 = vadd.f32 %v6796, %v8131
        %v8133 = vpop.f32.mrb[0].mxu0
        %v8134 = vadd.f32 %v6800, %v8133
        %8135 = vmatprep.mubr.bf16.mxu0 %v6416
        %8136 = vmatmul.mubr.bf16.gmra.mrb[0].mxu0 %v6415
        %v8137 = vpop.f32.mrb[0].mxu0
        %v8138 = vadd.f32 %v6796, %v8137
        %v8139 = vpop.f32.mrb[0].mxu0
        %v8140 = vadd.f32 %v6800, %v8139
        %v8141 = vpop.f32.mrb[0].mxu0
        %v8142 = vadd.f32 %v6796, %v8141
        %v8143 = vpop.f32.mrb[0].mxu0
        %v8144 = vadd.f32 %v6800, %v8143
        %8145 = vmatprep.mubr.bf16.mxu0 %v6424
        %8146 = vmatmul.mubr.bf16.gmra.mrb[0].mxu0 %v6423
        %v8147 = vpop.f32.mrb[0].mxu0
        %v8148 = vadd.f32 %v6796, %v8147
        %v8149 = vpop.f32.mrb[0].mxu0
        %v8150 = vadd.f32 %v6800, %v8149
        %v8151 = vpop.f32.mrb[0].mxu0
        %v8152 = vadd.f32 %v6796, %v8151
        %v8153 = vpop.f32.mrb[0].mxu0
        %v8154 = vadd.f32 %v6800, %v8153
        %8155 = vmatprep.mubr.bf16.mxu0 %v6432
        %8156 = vmatmul.mubr.bf16.gmra.mrb[0].mxu0 %v6431
        %v8157 = vpop.f32.mrb[0].mxu0
        %v8158 = vadd.f32 %v6796, %v8157
        %v8159 = vpop.f32.mrb[0].mxu0
        %v8160 = vadd.f32 %v6800, %v8159
        %v8161 = vpop.f32.mrb[0].mxu0
        %v8162 = vadd.f32 %v6796, %v8161
        %v8163 = vpop.f32.mrb[0].mxu0
        %v8164 = vadd.f32 %v6800, %v8163
        %8165 = vmatprep.mubr.bf16.mxu0 %v6440
        %8166 = vmatmul.mubr.bf16.gmra.mrb[0].mxu0 %v6439
        %v8167 = vpop.f32.mrb[0].mxu0
        %v8168 = vadd.f32 %v6796, %v8167
        %v8169 = vpop.f32.mrb[0].mxu0
        %v8170 = vadd.f32 %v6800, %v8169
        %v8171 = vpop.f32.mrb[0].mxu0
        %v8172 = vadd.f32 %v6796, %v8171
        %v8173 = vpop.f32.mrb[0].mxu0
        %v8174 = vadd.f32 %v6800, %v8173
        %8175 = vmatprep.mubr.bf16.mxu0 %v6448
        %8176 = vmatmul.mubr.bf16.gmra.mrb[0].mxu0 %v6447
        %v8177 = vpop.f32.mrb[0].mxu0
        %v8178 = vadd.f32 %v6796, %v8177
        %v8179 = vpop.f32.mrb[0].mxu0
        %v8180 = vadd.f32 %v6800, %v8179
        %v8181 = vpop.f32.mrb[0].mxu0
        %v8182 = vadd.f32 %v6796, %v8181
        %v8183 = vpop.f32.mrb[0].mxu0
        %v8184 = vadd.f32 %v6800, %v8183
        %8185 = vmatprep.mubr.bf16.mxu0 %v6456
        %8186 = vmatmul.mubr.bf16.gmra.mrb[0].mxu0 %v6455
        %v8187 = vpop.f32.mrb[0].mxu0
        %v8188 = vadd.f32 %v6796, %v8187
        %v8189 = vpop.f32.mrb[0].mxu0
        %v8190 = vadd.f32 %v6800, %v8189
        %v8191 = vpop.f32.mrb[0].mxu0
        %v8192 = vadd.f32 %v6796, %v8191
        %v8193 = vpop.f32.mrb[0].mxu0
        %v8194 = vadd.f32 %v6800, %v8193
        %8195 = vmatprep.mubr.bf16.mxu0 %v6464
        %8196 = vmatmul.mubr.bf16.gmra.mrb[0].mxu0 %v6463
        %v8197 = vpop.f32.mrb[0].mxu0
        %v8198 = vadd.f32 %v6796, %v8197
        %v8199 = vpop.f32.mrb[0].mxu0
        %v8200 = vadd.f32 %v6800, %v8199
        %v8201 = vpop.f32.mrb[0].mxu0
        %v8202 = vadd.f32 %v6796, %v8201
        %v8203 = vpop.f32.mrb[0].mxu0
        %v8204 = vadd.f32 %v6800, %v8203
        %8205 = vmatprep.mubr.bf16.mxu0 %v6472
        %8206 = vmatmul.mubr.bf16.gmra.mrb[0].mxu0 %v6471
        %v8207 = vpop.f32.mrb[0].mxu0
        %v8208 = vadd.f32 %v6796, %v8207
        %v8209 = vpop.f32.mrb[0].mxu0
        %v8210 = vadd.f32 %v6800, %v8209
        %v8211 = vpop.f32.mrb[0].mxu0
        %v8212 = vadd.f32 %v6796, %v8211
        %v8213 = vpop.f32.mrb[0].mxu0
        %v8214 = vadd.f32 %v6800, %v8213
        %8215 = vmatprep.mubr.bf16.mxu0 %v6480
        %8216 = vmatmul.mubr.bf16.gmra.mrb[0].mxu0 %v6479
        %v8217 = vpop.f32.mrb[0].mxu0
        %v8218 = vadd.f32 %v6796, %v8217
        %v8219 = vpop.f32.mrb[0].mxu0
        %v8220 = vadd.f32 %v6800, %v8219
        %v8221 = vpop.f32.mrb[0].mxu0
        %v8222 = vadd.f32 %v6796, %v8221
        %v8223 = vpop.f32.mrb[0].mxu0
        %v8224 = vadd.f32 %v6800, %v8223
        %8225 = vmatprep.mubr.bf16.mxu0 %v6488
        %8226 = vmatmul.mubr.bf16.gmra.mrb[0].mxu0 %v6487
        %v8227 = vpop.f32.mrb[0].mxu0
        %v8228 = vadd.f32 %v6796, %v8227
        %v8229 = vpop.f32.mrb[0].mxu0
        %v8230 = vadd.f32 %v6800, %v8229
        %v8231 = vpop.f32.mrb[0].mxu0
        %v8232 = vadd.f32 %v6796, %v8231
        %v8233 = vpop.f32.mrb[0].mxu0
        %v8234 = vadd.f32 %v6800, %v8233
        %8235 = vmatprep.mubr.bf16.mxu0 %v6496
        %8236 = vmatmul.mubr.bf16.gmra.mrb[0].mxu0 %v6495
        %v8237 = vpop.f32.mrb[0].mxu0
        %v8238 = vadd.f32 %v6796, %v8237
        %v8239 = vpop.f32.mrb[0].mxu0
        %v8240 = vadd.f32 %v6800, %v8239
        %v8241 = vpop.f32.mrb[0].mxu0
        %v8242 = vadd.f32 %v6796, %v8241
        %v8243 = vpop.f32.mrb[0].mxu0
        %v8244 = vadd.f32 %v6800, %v8243
        %8245 = vmatprep.mubr.bf16.mxu0 %v6504
        %8246 = vmatmul.mubr.bf16.gmra.mrb[0].mxu0 %v6503
        %v8247 = vpop.f32.mrb[0].mxu0
        %v8248 = vadd.f32 %v6796, %v8247
        %v8249 = vpop.f32.mrb[0].mxu0
        %v8250 = vadd.f32 %v6800, %v8249
        %v8251 = vpop.f32.mrb[0].mxu0
        %v8252 = vadd.f32 %v6796, %v8251
        %v8253 = vpop.f32.mrb[0].mxu0
        %v8254 = vadd.f32 %v6800, %v8253
        %8255 = vmatprep.mubr.bf16.mxu0 %v6512
        %8256 = vmatmul.mubr.bf16.gmra.mrb[0].mxu0 %v6511
        %v8257 = vpop.f32.mrb[0].mxu0
        %v8258 = vadd.f32 %v6796, %v8257
        %v8259 = vpop.f32.mrb[0].mxu0
        %v8260 = vadd.f32 %v6800, %v8259
        %v8261 = vpop.f32.mrb[0].mxu0
        %v8262 = vadd.f32 %v6796, %v8261
        %v8263 = vpop.f32.mrb[0].mxu0
        %v8264 = vadd.f32 %v6800, %v8263
        %8265 = vmatprep.mubr.bf16.mxu0 %v6520
        %8266 = vmatmul.mubr.bf16.gmra.mrb[0].mxu0 %v6519
        %v8267 = vpop.f32.mrb[0].mxu0
        %v8268 = vadd.f32 %v6796, %v8267
        %v8269 = vpop.f32.mrb[0].mxu0
        %v8270 = vadd.f32 %v6800, %v8269
        %v8271 = vpop.f32.mrb[0].mxu0
        %v8272 = vadd.f32 %v6796, %v8271
        %v8273 = vpop.f32.mrb[0].mxu0
        %v8274 = vadd.f32 %v6800, %v8273
        %8275 = vmatprep.mubr.bf16.mxu0 %v6528
        %8276 = vmatmul.mubr.bf16.gmra.mrb[0].mxu0 %v6527
        %v8277 = vpop.f32.mrb[0].mxu0
        %v8278 = vadd.f32 %v6796, %v8277
        %v8279 = vpop.f32.mrb[0].mxu0
        %v8280 = vadd.f32 %v6800, %v8279
        %v8281 = vpop.f32.mrb[0].mxu0
        %v8282 = vadd.f32 %v6796, %v8281
        %v8283 = vpop.f32.mrb[0].mxu0
        %v8284 = vadd.f32 %v6800, %v8283
        %8285 = vdwg.mxu0
        %8286 = vmatprep.subr.bf16.mxu0 %v7646
        %8287 = vmatpush1.bf16.msra.mxu0 %v7645
        %8288 = vmatprep.subr.bf16.mxu0 %v7650
        %8289 = vmatpush1.bf16.msra.mxu0 %v7649
        %8290 = vmatprep.subr.bf16.mxu0 %v7654
        %8291 = vmatpush1.bf16.msra.mxu0 %v7653
        %8292 = vmatprep.subr.bf16.mxu0 %v7658
        %8293 = vmatpush1.bf16.msra.mxu0 %v7657
        %8294 = vmatprep.subr.bf16.mxu0 %v7662
        %8295 = vmatpush1.bf16.msra.mxu0 %v7661
        %8296 = vmatprep.subr.bf16.mxu0 %v7666
        %8297 = vmatpush1.bf16.msra.mxu0 %v7665
        %8298 = vmatprep.subr.bf16.mxu0 %v7670
        %8299 = vmatpush1.bf16.msra.mxu0 %v7669
        %8300 = vmatprep.subr.bf16.mxu0 %v7674
        %8301 = vmatpush1.bf16.msra.mxu0 %v7673
        %8302 = vmatprep.subr.bf16.mxu0 %v7678
        %8303 = vmatpush1.bf16.msra.mxu0 %v7677
        %8304 = vmatprep.subr.bf16.mxu0 %v7682
        %8305 = vmatpush1.bf16.msra.mxu0 %v7681
        %8306 = vmatprep.subr.bf16.mxu0 %v7686
        %8307 = vmatpush1.bf16.msra.mxu0 %v7685
        %8308 = vmatprep.subr.bf16.mxu0 %v7690
        %8309 = vmatpush1.bf16.msra.mxu0 %v7689
        %8310 = vmatprep.subr.bf16.mxu0 %v7694
        %8311 = vmatpush1.bf16.msra.mxu0 %v7693
        %8312 = vmatprep.subr.bf16.mxu0 %v7698
        %8313 = vmatpush1.bf16.msra.mxu0 %v7697
        %8314 = vmatprep.subr.bf16.mxu0 %v7702
        %8315 = vmatpush1.bf16.msra.mxu0 %v7701
        %8316 = vmatprep.subr.bf16.mxu0 %v7706
        %8317 = vmatpush1.bf16.msra.mxu0 %v7705
        %8318 = vmatprep.mubr.bf16.mxu0 %v6410
        %8319 = vmatmul.mubr.bf16.gmra.mrb[0].mxu0 %v6409
        %v8320 = vpop.f32.mrb[0].mxu0
        %v8321 = vadd.f32 %v8128, %v8320
        %v8322 = vpop.f32.mrb[0].mxu0
        %v8323 = vadd.f32 %v8130, %v8322
        %v8324 = vpop.f32.mrb[0].mxu0
        %v8325 = vadd.f32 %v8132, %v8324
        %v8326 = vpop.f32.mrb[0].mxu0
        %v8327 = vadd.f32 %v8134, %v8326
        %8328 = vmatprep.mubr.bf16.mxu0 %v6418
        %8329 = vmatmul.mubr.bf16.gmra.mrb[0].mxu0 %v6417
        %v8330 = vpop.f32.mrb[0].mxu0
        %v8331 = vadd.f32 %v8138, %v8330
        %v8332 = vpop.f32.mrb[0].mxu0
        %v8333 = vadd.f32 %v8140, %v8332
        %v8334 = vpop.f32.mrb[0].mxu0
        %v8335 = vadd.f32 %v8142, %v8334
        %v8336 = vpop.f32.mrb[0].mxu0
        %v8337 = vadd.f32 %v8144, %v8336
        %8338 = vmatprep.mubr.bf16.mxu0 %v6426
        %8339 = vmatmul.mubr.bf16.gmra.mrb[0].mxu0 %v6425
        %v8340 = vpop.f32.mrb[0].mxu0
        %v8341 = vadd.f32 %v8148, %v8340
        %v8342 = vpop.f32.mrb[0].mxu0
        %v8343 = vadd.f32 %v8150, %v8342
        %v8344 = vpop.f32.mrb[0].mxu0
        %v8345 = vadd.f32 %v8152, %v8344
        %v8346 = vpop.f32.mrb[0].mxu0
        %v8347 = vadd.f32 %v8154, %v8346
        %8348 = vmatprep.mubr.bf16.mxu0 %v6434
        %8349 = vmatmul.mubr.bf16.gmra.mrb[0].mxu0 %v6433
        %v8350 = vpop.f32.mrb[0].mxu0
        %v8351 = vadd.f32 %v8158, %v8350
        %v8352 = vpop.f32.mrb[0].mxu0
        %v8353 = vadd.f32 %v8160, %v8352
        %v8354 = vpop.f32.mrb[0].mxu0
        %v8355 = vadd.f32 %v8162, %v8354
        %v8356 = vpop.f32.mrb[0].mxu0
        %v8357 = vadd.f32 %v8164, %v8356
        %8358 = vmatprep.mubr.bf16.mxu0 %v6442
        %8359 = vmatmul.mubr.bf16.gmra.mrb[0].mxu0 %v6441
        %v8360 = vpop.f32.mrb[0].mxu0
        %v8361 = vadd.f32 %v8168, %v8360
        %v8362 = vpop.f32.mrb[0].mxu0
        %v8363 = vadd.f32 %v8170, %v8362
        %v8364 = vpop.f32.mrb[0].mxu0
        %v8365 = vadd.f32 %v8172, %v8364
        %v8366 = vpop.f32.mrb[0].mxu0
        %v8367 = vadd.f32 %v8174, %v8366
        %8368 = vmatprep.mubr.bf16.mxu0 %v6450
        %8369 = vmatmul.mubr.bf16.gmra.mrb[0].mxu0 %v6449
        %v8370 = vpop.f32.mrb[0].mxu0
        %v8371 = vadd.f32 %v8178, %v8370
        %v8372 = vpop.f32.mrb[0].mxu0
        %v8373 = vadd.f32 %v8180, %v8372
        %v8374 = vpop.f32.mrb[0].mxu0
        %v8375 = vadd.f32 %v8182, %v8374
        %v8376 = vpop.f32.mrb[0].mxu0
        %v8377 = vadd.f32 %v8184, %v8376
        %8378 = vmatprep.mubr.bf16.mxu0 %v6458
        %8379 = vmatmul.mubr.bf16.gmra.mrb[0].mxu0 %v6457
        %v8380 = vpop.f32.mrb[0].mxu0
        %v8381 = vadd.f32 %v8188, %v8380
        %v8382 = vpop.f32.mrb[0].mxu0
        %v8383 = vadd.f32 %v8190, %v8382
        %v8384 = vpop.f32.mrb[0].mxu0
        %v8385 = vadd.f32 %v8192, %v8384
        %v8386 = vpop.f32.mrb[0].mxu0
        %v8387 = vadd.f32 %v8194, %v8386
        %8388 = vmatprep.mubr.bf16.mxu0 %v6466
        %8389 = vmatmul.mubr.bf16.gmra.mrb[0].mxu0 %v6465
        %v8390 = vpop.f32.mrb[0].mxu0
        %v8391 = vadd.f32 %v8198, %v8390
        %v8392 = vpop.f32.mrb[0].mxu0
        %v8393 = vadd.f32 %v8200, %v8392
        %v8394 = vpop.f32.mrb[0].mxu0
        %v8395 = vadd.f32 %v8202, %v8394
        %v8396 = vpop.f32.mrb[0].mxu0
        %v8397 = vadd.f32 %v8204, %v8396
        %8398 = vmatprep.mubr.bf16.mxu0 %v6474
        %8399 = vmatmul.mubr.bf16.gmra.mrb[0].mxu0 %v6473
        %v8400 = vpop.f32.mrb[0].mxu0
        %v8401 = vadd.f32 %v8208, %v8400
        %v8402 = vpop.f32.mrb[0].mxu0
        %v8403 = vadd.f32 %v8210, %v8402
        %v8404 = vpop.f32.mrb[0].mxu0
        %v8405 = vadd.f32 %v8212, %v8404
        %v8406 = vpop.f32.mrb[0].mxu0
        %v8407 = vadd.f32 %v8214, %v8406
        %8408 = vmatprep.mubr.bf16.mxu0 %v6482
        %8409 = vmatmul.mubr.bf16.gmra.mrb[0].mxu0 %v6481
        %v8410 = vpop.f32.mrb[0].mxu0
        %v8411 = vadd.f32 %v8218, %v8410
        %v8412 = vpop.f32.mrb[0].mxu0
        %v8413 = vadd.f32 %v8220, %v8412
        %v8414 = vpop.f32.mrb[0].mxu0
        %v8415 = vadd.f32 %v8222, %v8414
        %v8416 = vpop.f32.mrb[0].mxu0
        %v8417 = vadd.f32 %v8224, %v8416
        %8418 = vmatprep.mubr.bf16.mxu0 %v6490
        %8419 = vmatmul.mubr.bf16.gmra.mrb[0].mxu0 %v6489
        %v8420 = vpop.f32.mrb[0].mxu0
        %v8421 = vadd.f32 %v8228, %v8420
        %v8422 = vpop.f32.mrb[0].mxu0
        %v8423 = vadd.f32 %v8230, %v8422
        %v8424 = vpop.f32.mrb[0].mxu0
        %v8425 = vadd.f32 %v8232, %v8424
        %v8426 = vpop.f32.mrb[0].mxu0
        %v8427 = vadd.f32 %v8234, %v8426
        %8428 = vmatprep.mubr.bf16.mxu0 %v6498
        %8429 = vmatmul.mubr.bf16.gmra.mrb[0].mxu0 %v6497
        %v8430 = vpop.f32.mrb[0].mxu0
        %v8431 = vadd.f32 %v8238, %v8430
        %v8432 = vpop.f32.mrb[0].mxu0
        %v8433 = vadd.f32 %v8240, %v8432
        %v8434 = vpop.f32.mrb[0].mxu0
        %v8435 = vadd.f32 %v8242, %v8434
        %v8436 = vpop.f32.mrb[0].mxu0
        %v8437 = vadd.f32 %v8244, %v8436
        %8438 = vmatprep.mubr.bf16.mxu0 %v6506
        %8439 = vmatmul.mubr.bf16.gmra.mrb[0].mxu0 %v6505
        %v8440 = vpop.f32.mrb[0].mxu0
        %v8441 = vadd.f32 %v8248, %v8440
        %v8442 = vpop.f32.mrb[0].mxu0
        %v8443 = vadd.f32 %v8250, %v8442
        %v8444 = vpop.f32.mrb[0].mxu0
        %v8445 = vadd.f32 %v8252, %v8444
        %v8446 = vpop.f32.mrb[0].mxu0
        %v8447 = vadd.f32 %v8254, %v8446
        %8448 = vmatprep.mubr.bf16.mxu0 %v6514
        %8449 = vmatmul.mubr.bf16.gmra.mrb[0].mxu0 %v6513
        %v8450 = vpop.f32.mrb[0].mxu0
        %v8451 = vadd.f32 %v8258, %v8450
        %v8452 = vpop.f32.mrb[0].mxu0
        %v8453 = vadd.f32 %v8260, %v8452
        %v8454 = vpop.f32.mrb[0].mxu0
        %v8455 = vadd.f32 %v8262, %v8454
        %v8456 = vpop.f32.mrb[0].mxu0
        %v8457 = vadd.f32 %v8264, %v8456
        %8458 = vmatprep.mubr.bf16.mxu0 %v6522
        %8459 = vmatmul.mubr.bf16.gmra.mrb[0].mxu0 %v6521
        %v8460 = vpop.f32.mrb[0].mxu0
        %v8461 = vadd.f32 %v8268, %v8460
        %v8462 = vpop.f32.mrb[0].mxu0
        %v8463 = vadd.f32 %v8270, %v8462
        %v8464 = vpop.f32.mrb[0].mxu0
        %v8465 = vadd.f32 %v8272, %v8464
        %v8466 = vpop.f32.mrb[0].mxu0
        %v8467 = vadd.f32 %v8274, %v8466
        %8468 = vmatprep.mubr.bf16.mxu0 %v6530
        %8469 = vmatmul.mubr.bf16.gmra.mrb[0].mxu0 %v6529
        %v8470 = vpop.f32.mrb[0].mxu0
        %v8471 = vadd.f32 %v8278, %v8470
        %v8472 = vpop.f32.mrb[0].mxu0
        %v8473 = vadd.f32 %v8280, %v8472
        %v8474 = vpop.f32.mrb[0].mxu0
        %v8475 = vadd.f32 %v8282, %v8474
        %v8476 = vpop.f32.mrb[0].mxu0
        %v8477 = vadd.f32 %v8284, %v8476
        %8478 = vdwg.mxu0
        %8479 = vmatprep.subr.bf16.mxu0 %v7710
        %8480 = vmatpush1.bf16.msra.mxu0 %v7709
        %8481 = vmatprep.subr.bf16.mxu0 %v7714
        %8482 = vmatpush1.bf16.msra.mxu0 %v7713
        %8483 = vmatprep.subr.bf16.mxu0 %v7718
        %8484 = vmatpush1.bf16.msra.mxu0 %v7717
        %8485 = vmatprep.subr.bf16.mxu0 %v7722
        %8486 = vmatpush1.bf16.msra.mxu0 %v7721
        %8487 = vmatprep.subr.bf16.mxu0 %v7726
        %8488 = vmatpush1.bf16.msra.mxu0 %v7725
        %8489 = vmatprep.subr.bf16.mxu0 %v7730
        %8490 = vmatpush1.bf16.msra.mxu0 %v7729
        %8491 = vmatprep.subr.bf16.mxu0 %v7734
        %8492 = vmatpush1.bf16.msra.mxu0 %v7733
        %8493 = vmatprep.subr.bf16.mxu0 %v7738
        %8494 = vmatpush1.bf16.msra.mxu0 %v7737
        %8495 = vmatprep.subr.bf16.mxu0 %v7742
        %8496 = vmatpush1.bf16.msra.mxu0 %v7741
        %8497 = vmatprep.subr.bf16.mxu0 %v7746
        %8498 = vmatpush1.bf16.msra.mxu0 %v7745
        %8499 = vmatprep.subr.bf16.mxu0 %v7750
        %8500 = vmatpush1.bf16.msra.mxu0 %v7749
        %8501 = vmatprep.subr.bf16.mxu0 %v7754
        %8502 = vmatpush1.bf16.msra.mxu0 %v7753
        %8503 = vmatprep.subr.bf16.mxu0 %v7758
        %8504 = vmatpush1.bf16.msra.mxu0 %v7757
        %8505 = vmatprep.subr.bf16.mxu0 %v7762
        %8506 = vmatpush1.bf16.msra.mxu0 %v7761
        %8507 = vmatprep.subr.bf16.mxu0 %v7766
        %8508 = vmatpush1.bf16.msra.mxu0 %v7765
        %8509 = vmatprep.subr.bf16.mxu0 %v7770
        %8510 = vmatpush1.bf16.msra.mxu0 %v7769
        %8511 = vmatprep.mubr.bf16.mxu0 %v6412
        %8512 = vmatmul.mubr.bf16.gmra.mrb[0].mxu0 %v6411
        %v8513 = vpop.f32.mrb[0].mxu0
        %v8514 = vadd.f32 %v8321, %v8513
        %v8515 = vpop.f32.mrb[0].mxu0
        %v8516 = vadd.f32 %v8323, %v8515
        %v8517 = vpop.f32.mrb[0].mxu0
        %v8518 = vadd.f32 %v8325, %v8517
        %v8519 = vpop.f32.mrb[0].mxu0
        %v8520 = vadd.f32 %v8327, %v8519
        %8521 = vmatprep.mubr.bf16.mxu0 %v6420
        %8522 = vmatmul.mubr.bf16.gmra.mrb[0].mxu0 %v6419
        %v8523 = vpop.f32.mrb[0].mxu0
        %v8524 = vadd.f32 %v8331, %v8523
        %v8525 = vpop.f32.mrb[0].mxu0
        %v8526 = vadd.f32 %v8333, %v8525
        %v8527 = vpop.f32.mrb[0].mxu0
        %v8528 = vadd.f32 %v8335, %v8527
        %v8529 = vpop.f32.mrb[0].mxu0
        %v8530 = vadd.f32 %v8337, %v8529
        %8531 = vmatprep.mubr.bf16.mxu0 %v6428
        %8532 = vmatmul.mubr.bf16.gmra.mrb[0].mxu0 %v6427
        %v8533 = vpop.f32.mrb[0].mxu0
        %v8534 = vadd.f32 %v8341, %v8533
        %v8535 = vpop.f32.mrb[0].mxu0
        %v8536 = vadd.f32 %v8343, %v8535
        %v8537 = vpop.f32.mrb[0].mxu0
        %v8538 = vadd.f32 %v8345, %v8537
        %v8539 = vpop.f32.mrb[0].mxu0
        %v8540 = vadd.f32 %v8347, %v8539
        %8541 = vmatprep.mubr.bf16.mxu0 %v6436
        %8542 = vmatmul.mubr.bf16.gmra.mrb[0].mxu0 %v6435
        %v8543 = vpop.f32.mrb[0].mxu0
        %v8544 = vadd.f32 %v8351, %v8543
        %v8545 = vpop.f32.mrb[0].mxu0
        %v8546 = vadd.f32 %v8353, %v8545
        %v8547 = vpop.f32.mrb[0].mxu0
        %v8548 = vadd.f32 %v8355, %v8547
        %v8549 = vpop.f32.mrb[0].mxu0
        %v8550 = vadd.f32 %v8357, %v8549
        %8551 = vmatprep.mubr.bf16.mxu0 %v6444
        %8552 = vmatmul.mubr.bf16.gmra.mrb[0].mxu0 %v6443
        %v8553 = vpop.f32.mrb[0].mxu0
        %v8554 = vadd.f32 %v8361, %v8553
        %v8555 = vpop.f32.mrb[0].mxu0
        %v8556 = vadd.f32 %v8363, %v8555
        %v8557 = vpop.f32.mrb[0].mxu0
        %v8558 = vadd.f32 %v8365, %v8557
        %v8559 = vpop.f32.mrb[0].mxu0
        %v8560 = vadd.f32 %v8367, %v8559
        %8561 = vmatprep.mubr.bf16.mxu0 %v6452
        %8562 = vmatmul.mubr.bf16.gmra.mrb[0].mxu0 %v6451
        %v8563 = vpop.f32.mrb[0].mxu0
        %v8564 = vadd.f32 %v8371, %v8563
        %v8565 = vpop.f32.mrb[0].mxu0
        %v8566 = vadd.f32 %v8373, %v8565
        %v8567 = vpop.f32.mrb[0].mxu0
        %v8568 = vadd.f32 %v8375, %v8567
        %v8569 = vpop.f32.mrb[0].mxu0
        %v8570 = vadd.f32 %v8377, %v8569
        %8571 = vmatprep.mubr.bf16.mxu0 %v6460
        %8572 = vmatmul.mubr.bf16.gmra.mrb[0].mxu0 %v6459
        %v8573 = vpop.f32.mrb[0].mxu0
        %v8574 = vadd.f32 %v8381, %v8573
        %v8575 = vpop.f32.mrb[0].mxu0
        %v8576 = vadd.f32 %v8383, %v8575
        %v8577 = vpop.f32.mrb[0].mxu0
        %v8578 = vadd.f32 %v8385, %v8577
        %v8579 = vpop.f32.mrb[0].mxu0
        %v8580 = vadd.f32 %v8387, %v8579
        %8581 = vmatprep.mubr.bf16.mxu0 %v6468
        %8582 = vmatmul.mubr.bf16.gmra.mrb[0].mxu0 %v6467
        %v8583 = vpop.f32.mrb[0].mxu0
        %v8584 = vadd.f32 %v8391, %v8583
        %v8585 = vpop.f32.mrb[0].mxu0
        %v8586 = vadd.f32 %v8393, %v8585
        %v8587 = vpop.f32.mrb[0].mxu0
        %v8588 = vadd.f32 %v8395, %v8587
        %v8589 = vpop.f32.mrb[0].mxu0
        %v8590 = vadd.f32 %v8397, %v8589
        %8591 = vmatprep.mubr.bf16.mxu0 %v6476
        %8592 = vmatmul.mubr.bf16.gmra.mrb[0].mxu0 %v6475
        %v8593 = vpop.f32.mrb[0].mxu0
        %v8594 = vadd.f32 %v8401, %v8593
        %v8595 = vpop.f32.mrb[0].mxu0
        %v8596 = vadd.f32 %v8403, %v8595
        %v8597 = vpop.f32.mrb[0].mxu0
        %v8598 = vadd.f32 %v8405, %v8597
        %v8599 = vpop.f32.mrb[0].mxu0
        %v8600 = vadd.f32 %v8407, %v8599
        %8601 = vmatprep.mubr.bf16.mxu0 %v6484
        %8602 = vmatmul.mubr.bf16.gmra.mrb[0].mxu0 %v6483
        %v8603 = vpop.f32.mrb[0].mxu0
        %v8604 = vadd.f32 %v8411, %v8603
        %v8605 = vpop.f32.mrb[0].mxu0
        %v8606 = vadd.f32 %v8413, %v8605
        %v8607 = vpop.f32.mrb[0].mxu0
        %v8608 = vadd.f32 %v8415, %v8607
        %v8609 = vpop.f32.mrb[0].mxu0
        %v8610 = vadd.f32 %v8417, %v8609
        %8611 = vmatprep.mubr.bf16.mxu0 %v6492
        %8612 = vmatmul.mubr.bf16.gmra.mrb[0].mxu0 %v6491
        %v8613 = vpop.f32.mrb[0].mxu0
        %v8614 = vadd.f32 %v8421, %v8613
        %v8615 = vpop.f32.mrb[0].mxu0
        %v8616 = vadd.f32 %v8423, %v8615
        %v8617 = vpop.f32.mrb[0].mxu0
        %v8618 = vadd.f32 %v8425, %v8617
        %v8619 = vpop.f32.mrb[0].mxu0
        %v8620 = vadd.f32 %v8427, %v8619
        %8621 = vmatprep.mubr.bf16.mxu0 %v6500
        %8622 = vmatmul.mubr.bf16.gmra.mrb[0].mxu0 %v6499
        %v8623 = vpop.f32.mrb[0].mxu0
        %v8624 = vadd.f32 %v8431, %v8623
        %v8625 = vpop.f32.mrb[0].mxu0
        %v8626 = vadd.f32 %v8433, %v8625
        %v8627 = vpop.f32.mrb[0].mxu0
        %v8628 = vadd.f32 %v8435, %v8627
        %v8629 = vpop.f32.mrb[0].mxu0
        %v8630 = vadd.f32 %v8437, %v8629
        %8631 = vmatprep.mubr.bf16.mxu0 %v6508
        %8632 = vmatmul.mubr.bf16.gmra.mrb[0].mxu0 %v6507
        %v8633 = vpop.f32.mrb[0].mxu0
        %v8634 = vadd.f32 %v8441, %v8633
        %v8635 = vpop.f32.mrb[0].mxu0
        %v8636 = vadd.f32 %v8443, %v8635
        %v8637 = vpop.f32.mrb[0].mxu0
        %v8638 = vadd.f32 %v8445, %v8637
        %v8639 = vpop.f32.mrb[0].mxu0
        %v8640 = vadd.f32 %v8447, %v8639
        %8641 = vmatprep.mubr.bf16.mxu0 %v6516
        %8642 = vmatmul.mubr.bf16.gmra.mrb[0].mxu0 %v6515
        %v8643 = vpop.f32.mrb[0].mxu0
        %v8644 = vadd.f32 %v8451, %v8643
        %v8645 = vpop.f32.mrb[0].mxu0
        %v8646 = vadd.f32 %v8453, %v8645
        %v8647 = vpop.f32.mrb[0].mxu0
        %v8648 = vadd.f32 %v8455, %v8647
        %v8649 = vpop.f32.mrb[0].mxu0
        %v8650 = vadd.f32 %v8457, %v8649
        %8651 = vmatprep.mubr.bf16.mxu0 %v6524
        %8652 = vmatmul.mubr.bf16.gmra.mrb[0].mxu0 %v6523
        %v8653 = vpop.f32.mrb[0].mxu0
        %v8654 = vadd.f32 %v8461, %v8653
        %v8655 = vpop.f32.mrb[0].mxu0
        %v8656 = vadd.f32 %v8463, %v8655
        %v8657 = vpop.f32.mrb[0].mxu0
        %v8658 = vadd.f32 %v8465, %v8657
        %v8659 = vpop.f32.mrb[0].mxu0
        %v8660 = vadd.f32 %v8467, %v8659
        %8661 = vmatprep.mubr.bf16.mxu0 %v6532
        %8662 = vmatmul.mubr.bf16.gmra.mrb[0].mxu0 %v6531
        %v8663 = vpop.f32.mrb[0].mxu0
        %v8664 = vadd.f32 %v8471, %v8663
        %v8665 = vpop.f32.mrb[0].mxu0
        %v8666 = vadd.f32 %v8473, %v8665
        %v8667 = vpop.f32.mrb[0].mxu0
        %v8668 = vadd.f32 %v8475, %v8667
        %v8669 = vpop.f32.mrb[0].mxu0
        %v8670 = vadd.f32 %v8477, %v8669
        %8671 = vdwg.mxu0
        %8672 = vmatprep.subr.bf16.mxu0 %v7774
        %8673 = vmatpush1.bf16.msra.mxu0 %v7773
        %8674 = vmatprep.subr.bf16.mxu0 %v7778
        %8675 = vmatpush1.bf16.msra.mxu0 %v7777
        %8676 = vmatprep.subr.bf16.mxu0 %v7782
        %8677 = vmatpush1.bf16.msra.mxu0 %v7781
        %8678 = vmatprep.subr.bf16.mxu0 %v7786
        %8679 = vmatpush1.bf16.msra.mxu0 %v7785
        %8680 = vmatprep.subr.bf16.mxu0 %v7790
        %8681 = vmatpush1.bf16.msra.mxu0 %v7789
        %8682 = vmatprep.subr.bf16.mxu0 %v7794
        %8683 = vmatpush1.bf16.msra.mxu0 %v7793
        %8684 = vmatprep.subr.bf16.mxu0 %v7798
        %8685 = vmatpush1.bf16.msra.mxu0 %v7797
        %8686 = vmatprep.subr.bf16.mxu0 %v7802
        %8687 = vmatpush1.bf16.msra.mxu0 %v7801
        %8688 = vmatprep.subr.bf16.mxu0 %v7806
        %8689 = vmatpush1.bf16.msra.mxu0 %v7805
        %8690 = vmatprep.subr.bf16.mxu0 %v7810
        %8691 = vmatpush1.bf16.msra.mxu0 %v7809
        %8692 = vmatprep.subr.bf16.mxu0 %v7814
        %8693 = vmatpush1.bf16.msra.mxu0 %v7813
        %8694 = vmatprep.subr.bf16.mxu0 %v7818
        %8695 = vmatpush1.bf16.msra.mxu0 %v7817
        %8696 = vmatprep.subr.bf16.mxu0 %v7822
        %8697 = vmatpush1.bf16.msra.mxu0 %v7821
        %8698 = vmatprep.subr.bf16.mxu0 %v7826
        %8699 = vmatpush1.bf16.msra.mxu0 %v7825
        %8700 = vmatprep.subr.bf16.mxu0 %v7830
        %8701 = vmatpush1.bf16.msra.mxu0 %v7829
        %8702 = vmatprep.subr.bf16.mxu0 %v7834
        %8703 = vmatpush1.bf16.msra.mxu0 %v7833
        %8704 = vmatprep.mubr.bf16.mxu0 %v6414
        %8705 = vmatmul.mubr.bf16.gmra.mrb[0].mxu0 %v6413
        %v8706 = vpop.f32.mrb[0].mxu0
        %v8707 = vadd.f32 %v8514, %v8706
        %v8708 = vpop.f32.mrb[0].mxu0
        %v8709 = vadd.f32 %v8516, %v8708
        %v8710 = vpop.f32.mrb[0].mxu0
        %v8711 = vadd.f32 %v8518, %v8710
        %v8712 = vpop.f32.mrb[0].mxu0
        %v8713 = vadd.f32 %v8520, %v8712
        %8714 = vmatprep.mubr.bf16.mxu0 %v6422
        %8715 = vmatmul.mubr.bf16.gmra.mrb[0].mxu0 %v6421
        %v8716 = vpop.f32.mrb[0].mxu0
        %v8717 = vadd.f32 %v8524, %v8716
        %v8718 = vpop.f32.mrb[0].mxu0
        %v8719 = vadd.f32 %v8526, %v8718
        %v8720 = vpop.f32.mrb[0].mxu0
        %v8721 = vadd.f32 %v8528, %v8720
        %v8722 = vpop.f32.mrb[0].mxu0
        %v8723 = vadd.f32 %v8530, %v8722
        %8724 = vmatprep.mubr.bf16.mxu0 %v6430
        %8725 = vmatmul.mubr.bf16.gmra.mrb[0].mxu0 %v6429
        %v8726 = vpop.f32.mrb[0].mxu0
        %v8727 = vadd.f32 %v8534, %v8726
        %v8728 = vpop.f32.mrb[0].mxu0
        %v8729 = vadd.f32 %v8536, %v8728
        %v8730 = vpop.f32.mrb[0].mxu0
        %v8731 = vadd.f32 %v8538, %v8730
        %v8732 = vpop.f32.mrb[0].mxu0
        %v8733 = vadd.f32 %v8540, %v8732
        %8734 = vmatprep.mubr.bf16.mxu0 %v6438
        %8735 = vmatmul.mubr.bf16.gmra.mrb[0].mxu0 %v6437
        %v8736 = vpop.f32.mrb[0].mxu0
        %v8737 = vadd.f32 %v8544, %v8736
        %v8738 = vpop.f32.mrb[0].mxu0
        %v8739 = vadd.f32 %v8546, %v8738
        %v8740 = vpop.f32.mrb[0].mxu0
        %v8741 = vadd.f32 %v8548, %v8740
        %v8742 = vpop.f32.mrb[0].mxu0
        %v8743 = vadd.f32 %v8550, %v8742
        %8744 = vmatprep.mubr.bf16.mxu0 %v6446
        %8745 = vmatmul.mubr.bf16.gmra.mrb[0].mxu0 %v6445
        %v8746 = vpop.f32.mrb[0].mxu0
        %v8747 = vadd.f32 %v8554, %v8746
        %v8748 = vpop.f32.mrb[0].mxu0
        %v8749 = vadd.f32 %v8556, %v8748
        %v8750 = vpop.f32.mrb[0].mxu0
        %v8751 = vadd.f32 %v8558, %v8750
        %v8752 = vpop.f32.mrb[0].mxu0
        %v8753 = vadd.f32 %v8560, %v8752
        %8754 = vmatprep.mubr.bf16.mxu0 %v6454
        %8755 = vmatmul.mubr.bf16.gmra.mrb[0].mxu0 %v6453
        %v8756 = vpop.f32.mrb[0].mxu0
        %v8757 = vadd.f32 %v8564, %v8756
        %v8758 = vpop.f32.mrb[0].mxu0
        %v8759 = vadd.f32 %v8566, %v8758
        %v8760 = vpop.f32.mrb[0].mxu0
        %v8761 = vadd.f32 %v8568, %v8760
        %v8762 = vpop.f32.mrb[0].mxu0
        %v8763 = vadd.f32 %v8570, %v8762
        %8764 = vmatprep.mubr.bf16.mxu0 %v6462
        %8765 = vmatmul.mubr.bf16.gmra.mrb[0].mxu0 %v6461
        %v8766 = vpop.f32.mrb[0].mxu0
        %v8767 = vadd.f32 %v8574, %v8766
        %v8768 = vpop.f32.mrb[0].mxu0
        %v8769 = vadd.f32 %v8576, %v8768
        %v8770 = vpop.f32.mrb[0].mxu0
        %v8771 = vadd.f32 %v8578, %v8770
        %v8772 = vpop.f32.mrb[0].mxu0
        %v8773 = vadd.f32 %v8580, %v8772
        %8774 = vmatprep.mubr.bf16.mxu0 %v6470
        %8775 = vmatmul.mubr.bf16.gmra.mrb[0].mxu0 %v6469
        %v8776 = vpop.f32.mrb[0].mxu0
        %v8777 = vadd.f32 %v8584, %v8776
        %v8778 = vpop.f32.mrb[0].mxu0
        %v8779 = vadd.f32 %v8586, %v8778
        %v8780 = vpop.f32.mrb[0].mxu0
        %v8781 = vadd.f32 %v8588, %v8780
        %v8782 = vpop.f32.mrb[0].mxu0
        %v8783 = vadd.f32 %v8590, %v8782
        %8784 = vmatprep.mubr.bf16.mxu0 %v6478
        %8785 = vmatmul.mubr.bf16.gmra.mrb[0].mxu0 %v6477
        %v8786 = vpop.f32.mrb[0].mxu0
        %v8787 = vadd.f32 %v8594, %v8786
        %v8788 = vpop.f32.mrb[0].mxu0
        %v8789 = vadd.f32 %v8596, %v8788
        %v8790 = vpop.f32.mrb[0].mxu0
        %v8791 = vadd.f32 %v8598, %v8790
        %v8792 = vpop.f32.mrb[0].mxu0
        %v8793 = vadd.f32 %v8600, %v8792
        %8794 = vmatprep.mubr.bf16.mxu0 %v6486
        %8795 = vmatmul.mubr.bf16.gmra.mrb[0].mxu0 %v6485
        %v8796 = vpop.f32.mrb[0].mxu0
        %v8797 = vadd.f32 %v8604, %v8796
        %v8798 = vpop.f32.mrb[0].mxu0
        %v8799 = vadd.f32 %v8606, %v8798
        %v8800 = vpop.f32.mrb[0].mxu0
        %v8801 = vadd.f32 %v8608, %v8800
        %v8802 = vpop.f32.mrb[0].mxu0
        %v8803 = vadd.f32 %v8610, %v8802
        %8804 = vmatprep.mubr.bf16.mxu0 %v6494
        %8805 = vmatmul.mubr.bf16.gmra.mrb[0].mxu0 %v6493
        %v8806 = vpop.f32.mrb[0].mxu0
        %v8807 = vadd.f32 %v8614, %v8806
        %v8808 = vpop.f32.mrb[0].mxu0
        %v8809 = vadd.f32 %v8616, %v8808
        %v8810 = vpop.f32.mrb[0].mxu0
        %v8811 = vadd.f32 %v8618, %v8810
        %v8812 = vpop.f32.mrb[0].mxu0
        %v8813 = vadd.f32 %v8620, %v8812
        %8814 = vmatprep.mubr.bf16.mxu0 %v6502
        %8815 = vmatmul.mubr.bf16.gmra.mrb[0].mxu0 %v6501
        %v8816 = vpop.f32.mrb[0].mxu0
        %v8817 = vadd.f32 %v8624, %v8816
        %v8818 = vpop.f32.mrb[0].mxu0
        %v8819 = vadd.f32 %v8626, %v8818
        %v8820 = vpop.f32.mrb[0].mxu0
        %v8821 = vadd.f32 %v8628, %v8820
        %v8822 = vpop.f32.mrb[0].mxu0
        %v8823 = vadd.f32 %v8630, %v8822
        %8824 = vmatprep.mubr.bf16.mxu0 %v6510
        %8825 = vmatmul.mubr.bf16.gmra.mrb[0].mxu0 %v6509
        %v8826 = vpop.f32.mrb[0].mxu0
        %v8827 = vadd.f32 %v8634, %v8826
        %v8828 = vpop.f32.mrb[0].mxu0
        %v8829 = vadd.f32 %v8636, %v8828
        %v8830 = vpop.f32.mrb[0].mxu0
        %v8831 = vadd.f32 %v8638, %v8830
        %v8832 = vpop.f32.mrb[0].mxu0
        %v8833 = vadd.f32 %v8640, %v8832
        %8834 = vmatprep.mubr.bf16.mxu0 %v6518
        %8835 = vmatmul.mubr.bf16.gmra.mrb[0].mxu0 %v6517
        %v8836 = vpop.f32.mrb[0].mxu0
        %v8837 = vadd.f32 %v8644, %v8836
        %v8838 = vpop.f32.mrb[0].mxu0
        %v8839 = vadd.f32 %v8646, %v8838
        %v8840 = vpop.f32.mrb[0].mxu0
        %v8841 = vadd.f32 %v8648, %v8840
        %v8842 = vpop.f32.mrb[0].mxu0
        %v8843 = vadd.f32 %v8650, %v8842
        %8844 = vmatprep.mubr.bf16.mxu0 %v6526
        %8845 = vmatmul.mubr.bf16.gmra.mrb[0].mxu0 %v6525
        %v8846 = vpop.f32.mrb[0].mxu0
        %v8847 = vadd.f32 %v8654, %v8846
        %v8848 = vpop.f32.mrb[0].mxu0
        %v8849 = vadd.f32 %v8656, %v8848
        %v8850 = vpop.f32.mrb[0].mxu0
        %v8851 = vadd.f32 %v8658, %v8850
        %v8852 = vpop.f32.mrb[0].mxu0
        %v8853 = vadd.f32 %v8660, %v8852
        %8854 = vmatprep.mubr.bf16.mxu0 %v6534
        %8855 = vmatmul.mubr.bf16.gmra.mrb[0].mxu0 %v6533
        %v8856 = vpop.f32.mrb[0].mxu0
        %v8857 = vadd.f32 %v8664, %v8856
        %v8858 = vpop.f32.mrb[0].mxu0
        %v8859 = vadd.f32 %v8666, %v8858
        %v8860 = vpop.f32.mrb[0].mxu0
        %v8861 = vadd.f32 %v8668, %v8860
        %v8862 = vpop.f32.mrb[0].mxu0
        %v8863 = vadd.f32 %v8670, %v8862
        %8864 = vdwg.mxu0
        %8865 = vmatprep.subr.bf16.mxu0 %v7584
        %8866 = vmatpush1.bf16.msra.mxu0 %v7583
        %8867 = vmatprep.subr.bf16.mxu0 %v7588
        %8868 = vmatpush1.bf16.msra.mxu0 %v7587
        %8869 = vmatprep.subr.bf16.mxu0 %v7592
        %8870 = vmatpush1.bf16.msra.mxu0 %v7591
        %8871 = vmatprep.subr.bf16.mxu0 %v7596
        %8872 = vmatpush1.bf16.msra.mxu0 %v7595
        %8873 = vmatprep.subr.bf16.mxu0 %v7600
        %8874 = vmatpush1.bf16.msra.mxu0 %v7599
        %8875 = vmatprep.subr.bf16.mxu0 %v7604
        %8876 = vmatpush1.bf16.msra.mxu0 %v7603
        %8877 = vmatprep.subr.bf16.mxu0 %v7608
        %8878 = vmatpush1.bf16.msra.mxu0 %v7607
        %8879 = vmatprep.subr.bf16.mxu0 %v7612
        %8880 = vmatpush1.bf16.msra.mxu0 %v7611
        %8881 = vmatprep.subr.bf16.mxu0 %v7616
        %8882 = vmatpush1.bf16.msra.mxu0 %v7615
        %8883 = vmatprep.subr.bf16.mxu0 %v7620
        %8884 = vmatpush1.bf16.msra.mxu0 %v7619
        %8885 = vmatprep.subr.bf16.mxu0 %v7624
        %8886 = vmatpush1.bf16.msra.mxu0 %v7623
        %8887 = vmatprep.subr.bf16.mxu0 %v7628
        %8888 = vmatpush1.bf16.msra.mxu0 %v7627
        %8889 = vmatprep.subr.bf16.mxu0 %v7632
        %8890 = vmatpush1.bf16.msra.mxu0 %v7631
        %8891 = vmatprep.subr.bf16.mxu0 %v7636
        %8892 = vmatpush1.bf16.msra.mxu0 %v7635
        %8893 = vmatprep.subr.bf16.mxu0 %v7640
        %8894 = vmatpush1.bf16.msra.mxu0 %v7639
        %8895 = vmatprep.subr.bf16.mxu0 %v7644
        %8896 = vmatpush1.bf16.msra.mxu0 %v7643
        %8897 = vmatprep.mubr.bf16.mxu0 %v6408
        %8898 = vmatmul.mubr.bf16.gmra.mrb[0].mxu0 %v6407
        %v8899 = vpop.f32.mrb[0].mxu0
        %v8900 = vadd.f32 %v6804, %v8899
        %v8901 = vpop.f32.mrb[0].mxu0
        %v8902 = vadd.f32 %v6808, %v8901
        %v8903 = vpop.f32.mrb[0].mxu0
        %v8904 = vadd.f32 %v6804, %v8903
        %v8905 = vpop.f32.mrb[0].mxu0
        %v8906 = vadd.f32 %v6808, %v8905
        %8907 = vmatprep.mubr.bf16.mxu0 %v6416
        %8908 = vmatmul.mubr.bf16.gmra.mrb[0].mxu0 %v6415
        %v8909 = vpop.f32.mrb[0].mxu0
        %v8910 = vadd.f32 %v6804, %v8909
        %v8911 = vpop.f32.mrb[0].mxu0
        %v8912 = vadd.f32 %v6808, %v8911
        %v8913 = vpop.f32.mrb[0].mxu0
        %v8914 = vadd.f32 %v6804, %v8913
        %v8915 = vpop.f32.mrb[0].mxu0
        %v8916 = vadd.f32 %v6808, %v8915
        %8917 = vmatprep.mubr.bf16.mxu0 %v6424
        %8918 = vmatmul.mubr.bf16.gmra.mrb[0].mxu0 %v6423
        %v8919 = vpop.f32.mrb[0].mxu0
        %v8920 = vadd.f32 %v6804, %v8919
        %v8921 = vpop.f32.mrb[0].mxu0
        %v8922 = vadd.f32 %v6808, %v8921
        %v8923 = vpop.f32.mrb[0].mxu0
        %v8924 = vadd.f32 %v6804, %v8923
        %v8925 = vpop.f32.mrb[0].mxu0
        %v8926 = vadd.f32 %v6808, %v8925
        %8927 = vmatprep.mubr.bf16.mxu0 %v6432
        %8928 = vmatmul.mubr.bf16.gmra.mrb[0].mxu0 %v6431
        %v8929 = vpop.f32.mrb[0].mxu0
        %v8930 = vadd.f32 %v6804, %v8929
        %v8931 = vpop.f32.mrb[0].mxu0
        %v8932 = vadd.f32 %v6808, %v8931
        %v8933 = vpop.f32.mrb[0].mxu0
        %v8934 = vadd.f32 %v6804, %v8933
        %v8935 = vpop.f32.mrb[0].mxu0
        %v8936 = vadd.f32 %v6808, %v8935
        %8937 = vmatprep.mubr.bf16.mxu0 %v6440
        %8938 = vmatmul.mubr.bf16.gmra.mrb[0].mxu0 %v6439
        %v8939 = vpop.f32.mrb[0].mxu0
        %v8940 = vadd.f32 %v6804, %v8939
        %v8941 = vpop.f32.mrb[0].mxu0
        %v8942 = vadd.f32 %v6808, %v8941
        %v8943 = vpop.f32.mrb[0].mxu0
        %v8944 = vadd.f32 %v6804, %v8943
        %v8945 = vpop.f32.mrb[0].mxu0
        %v8946 = vadd.f32 %v6808, %v8945
        %8947 = vmatprep.mubr.bf16.mxu0 %v6448
        %8948 = vmatmul.mubr.bf16.gmra.mrb[0].mxu0 %v6447
        %v8949 = vpop.f32.mrb[0].mxu0
        %v8950 = vadd.f32 %v6804, %v8949
        %v8951 = vpop.f32.mrb[0].mxu0
        %v8952 = vadd.f32 %v6808, %v8951
        %v8953 = vpop.f32.mrb[0].mxu0
        %v8954 = vadd.f32 %v6804, %v8953
        %v8955 = vpop.f32.mrb[0].mxu0
        %v8956 = vadd.f32 %v6808, %v8955
        %8957 = vmatprep.mubr.bf16.mxu0 %v6456
        %8958 = vmatmul.mubr.bf16.gmra.mrb[0].mxu0 %v6455
        %v8959 = vpop.f32.mrb[0].mxu0
        %v8960 = vadd.f32 %v6804, %v8959
        %v8961 = vpop.f32.mrb[0].mxu0
        %v8962 = vadd.f32 %v6808, %v8961
        %v8963 = vpop.f32.mrb[0].mxu0
        %v8964 = vadd.f32 %v6804, %v8963
        %v8965 = vpop.f32.mrb[0].mxu0
        %v8966 = vadd.f32 %v6808, %v8965
        %8967 = vmatprep.mubr.bf16.mxu0 %v6464
        %8968 = vmatmul.mubr.bf16.gmra.mrb[0].mxu0 %v6463
        %v8969 = vpop.f32.mrb[0].mxu0
        %v8970 = vadd.f32 %v6804, %v8969
        %v8971 = vpop.f32.mrb[0].mxu0
        %v8972 = vadd.f32 %v6808, %v8971
        %v8973 = vpop.f32.mrb[0].mxu0
        %v8974 = vadd.f32 %v6804, %v8973
        %v8975 = vpop.f32.mrb[0].mxu0
        %v8976 = vadd.f32 %v6808, %v8975
        %8977 = vmatprep.mubr.bf16.mxu0 %v6472
        %8978 = vmatmul.mubr.bf16.gmra.mrb[0].mxu0 %v6471
        %v8979 = vpop.f32.mrb[0].mxu0
        %v8980 = vadd.f32 %v6804, %v8979
        %v8981 = vpop.f32.mrb[0].mxu0
        %v8982 = vadd.f32 %v6808, %v8981
        %v8983 = vpop.f32.mrb[0].mxu0
        %v8984 = vadd.f32 %v6804, %v8983
        %v8985 = vpop.f32.mrb[0].mxu0
        %v8986 = vadd.f32 %v6808, %v8985
        %8987 = vmatprep.mubr.bf16.mxu0 %v6480
        %8988 = vmatmul.mubr.bf16.gmra.mrb[0].mxu0 %v6479
        %v8989 = vpop.f32.mrb[0].mxu0
        %v8990 = vadd.f32 %v6804, %v8989
        %v8991 = vpop.f32.mrb[0].mxu0
        %v8992 = vadd.f32 %v6808, %v8991
        %v8993 = vpop.f32.mrb[0].mxu0
        %v8994 = vadd.f32 %v6804, %v8993
        %v8995 = vpop.f32.mrb[0].mxu0
        %v8996 = vadd.f32 %v6808, %v8995
        %8997 = vmatprep.mubr.bf16.mxu0 %v6488
        %8998 = vmatmul.mubr.bf16.gmra.mrb[0].mxu0 %v6487
        %v8999 = vpop.f32.mrb[0].mxu0
        %v9000 = vadd.f32 %v6804, %v8999
        %v9001 = vpop.f32.mrb[0].mxu0
        %v9002 = vadd.f32 %v6808, %v9001
        %v9003 = vpop.f32.mrb[0].mxu0
        %v9004 = vadd.f32 %v6804, %v9003
        %v9005 = vpop.f32.mrb[0].mxu0
        %v9006 = vadd.f32 %v6808, %v9005
        %9007 = vmatprep.mubr.bf16.mxu0 %v6496
        %9008 = vmatmul.mubr.bf16.gmra.mrb[0].mxu0 %v6495
        %v9009 = vpop.f32.mrb[0].mxu0
        %v9010 = vadd.f32 %v6804, %v9009
        %v9011 = vpop.f32.mrb[0].mxu0
        %v9012 = vadd.f32 %v6808, %v9011
        %v9013 = vpop.f32.mrb[0].mxu0
        %v9014 = vadd.f32 %v6804, %v9013
        %v9015 = vpop.f32.mrb[0].mxu0
        %v9016 = vadd.f32 %v6808, %v9015
        %9017 = vmatprep.mubr.bf16.mxu0 %v6504
        %9018 = vmatmul.mubr.bf16.gmra.mrb[0].mxu0 %v6503
        %v9019 = vpop.f32.mrb[0].mxu0
        %v9020 = vadd.f32 %v6804, %v9019
        %v9021 = vpop.f32.mrb[0].mxu0
        %v9022 = vadd.f32 %v6808, %v9021
        %v9023 = vpop.f32.mrb[0].mxu0
        %v9024 = vadd.f32 %v6804, %v9023
        %v9025 = vpop.f32.mrb[0].mxu0
        %v9026 = vadd.f32 %v6808, %v9025
        %9027 = vmatprep.mubr.bf16.mxu0 %v6512
        %9028 = vmatmul.mubr.bf16.gmra.mrb[0].mxu0 %v6511
        %v9029 = vpop.f32.mrb[0].mxu0
        %v9030 = vadd.f32 %v6804, %v9029
        %v9031 = vpop.f32.mrb[0].mxu0
        %v9032 = vadd.f32 %v6808, %v9031
        %v9033 = vpop.f32.mrb[0].mxu0
        %v9034 = vadd.f32 %v6804, %v9033
        %v9035 = vpop.f32.mrb[0].mxu0
        %v9036 = vadd.f32 %v6808, %v9035
        %9037 = vmatprep.mubr.bf16.mxu0 %v6520
        %9038 = vmatmul.mubr.bf16.gmra.mrb[0].mxu0 %v6519
        %v9039 = vpop.f32.mrb[0].mxu0
        %v9040 = vadd.f32 %v6804, %v9039
        %v9041 = vpop.f32.mrb[0].mxu0
        %v9042 = vadd.f32 %v6808, %v9041
        %v9043 = vpop.f32.mrb[0].mxu0
        %v9044 = vadd.f32 %v6804, %v9043
        %v9045 = vpop.f32.mrb[0].mxu0
        %v9046 = vadd.f32 %v6808, %v9045
        %9047 = vmatprep.mubr.bf16.mxu0 %v6528
        %9048 = vmatmul.mubr.bf16.gmra.mrb[0].mxu0 %v6527
        %v9049 = vpop.f32.mrb[0].mxu0
        %v9050 = vadd.f32 %v6804, %v9049
        %v9051 = vpop.f32.mrb[0].mxu0
        %v9052 = vadd.f32 %v6808, %v9051
        %v9053 = vpop.f32.mrb[0].mxu0
        %v9054 = vadd.f32 %v6804, %v9053
        %v9055 = vpop.f32.mrb[0].mxu0
        %v9056 = vadd.f32 %v6808, %v9055
        %9057 = vdwg.mxu0
        %9058 = vmatprep.subr.bf16.mxu0 %v7648
        %9059 = vmatpush1.bf16.msra.mxu0 %v7647
        %9060 = vmatprep.subr.bf16.mxu0 %v7652
        %9061 = vmatpush1.bf16.msra.mxu0 %v7651
        %9062 = vmatprep.subr.bf16.mxu0 %v7656
        %9063 = vmatpush1.bf16.msra.mxu0 %v7655
        %9064 = vmatprep.subr.bf16.mxu0 %v7660
        %9065 = vmatpush1.bf16.msra.mxu0 %v7659
        %9066 = vmatprep.subr.bf16.mxu0 %v7664
        %9067 = vmatpush1.bf16.msra.mxu0 %v7663
        %9068 = vmatprep.subr.bf16.mxu0 %v7668
        %9069 = vmatpush1.bf16.msra.mxu0 %v7667
        %9070 = vmatprep.subr.bf16.mxu0 %v7672
        %9071 = vmatpush1.bf16.msra.mxu0 %v7671
        %9072 = vmatprep.subr.bf16.mxu0 %v7676
        %9073 = vmatpush1.bf16.msra.mxu0 %v7675
        %9074 = vmatprep.subr.bf16.mxu0 %v7680
        %9075 = vmatpush1.bf16.msra.mxu0 %v7679
        %9076 = vmatprep.subr.bf16.mxu0 %v7684
        %9077 = vmatpush1.bf16.msra.mxu0 %v7683
        %9078 = vmatprep.subr.bf16.mxu0 %v7688
        %9079 = vmatpush1.bf16.msra.mxu0 %v7687
        %9080 = vmatprep.subr.bf16.mxu0 %v7692
        %9081 = vmatpush1.bf16.msra.mxu0 %v7691
        %9082 = vmatprep.subr.bf16.mxu0 %v7696
        %9083 = vmatpush1.bf16.msra.mxu0 %v7695
        %9084 = vmatprep.subr.bf16.mxu0 %v7700
        %9085 = vmatpush1.bf16.msra.mxu0 %v7699
        %9086 = vmatprep.subr.bf16.mxu0 %v7704
        %9087 = vmatpush1.bf16.msra.mxu0 %v7703
        %9088 = vmatprep.subr.bf16.mxu0 %v7708
        %9089 = vmatpush1.bf16.msra.mxu0 %v7707
        %9090 = vmatprep.mubr.bf16.mxu0 %v6410
        %9091 = vmatmul.mubr.bf16.gmra.mrb[0].mxu0 %v6409
        %v9092 = vpop.f32.mrb[0].mxu0
        %v9093 = vadd.f32 %v8900, %v9092
        %v9094 = vpop.f32.mrb[0].mxu0
        %v9095 = vadd.f32 %v8902, %v9094
        %v9096 = vpop.f32.mrb[0].mxu0
        %v9097 = vadd.f32 %v8904, %v9096
        %v9098 = vpop.f32.mrb[0].mxu0
        %v9099 = vadd.f32 %v8906, %v9098
        %9100 = vmatprep.mubr.bf16.mxu0 %v6418
        %9101 = vmatmul.mubr.bf16.gmra.mrb[0].mxu0 %v6417
        %v9102 = vpop.f32.mrb[0].mxu0
        %v9103 = vadd.f32 %v8910, %v9102
        %v9104 = vpop.f32.mrb[0].mxu0
        %v9105 = vadd.f32 %v8912, %v9104
        %v9106 = vpop.f32.mrb[0].mxu0
        %v9107 = vadd.f32 %v8914, %v9106
        %v9108 = vpop.f32.mrb[0].mxu0
        %v9109 = vadd.f32 %v8916, %v9108
        %9110 = vmatprep.mubr.bf16.mxu0 %v6426
        %9111 = vmatmul.mubr.bf16.gmra.mrb[0].mxu0 %v6425
        %v9112 = vpop.f32.mrb[0].mxu0
        %v9113 = vadd.f32 %v8920, %v9112
        %v9114 = vpop.f32.mrb[0].mxu0
        %v9115 = vadd.f32 %v8922, %v9114
        %v9116 = vpop.f32.mrb[0].mxu0
        %v9117 = vadd.f32 %v8924, %v9116
        %v9118 = vpop.f32.mrb[0].mxu0
        %v9119 = vadd.f32 %v8926, %v9118
        %9120 = vmatprep.mubr.bf16.mxu0 %v6434
        %9121 = vmatmul.mubr.bf16.gmra.mrb[0].mxu0 %v6433
        %v9122 = vpop.f32.mrb[0].mxu0
        %v9123 = vadd.f32 %v8930, %v9122
        %v9124 = vpop.f32.mrb[0].mxu0
        %v9125 = vadd.f32 %v8932, %v9124
        %v9126 = vpop.f32.mrb[0].mxu0
        %v9127 = vadd.f32 %v8934, %v9126
        %v9128 = vpop.f32.mrb[0].mxu0
        %v9129 = vadd.f32 %v8936, %v9128
        %9130 = vmatprep.mubr.bf16.mxu0 %v6442
        %9131 = vmatmul.mubr.bf16.gmra.mrb[0].mxu0 %v6441
        %v9132 = vpop.f32.mrb[0].mxu0
        %v9133 = vadd.f32 %v8940, %v9132
        %v9134 = vpop.f32.mrb[0].mxu0
        %v9135 = vadd.f32 %v8942, %v9134
        %v9136 = vpop.f32.mrb[0].mxu0
        %v9137 = vadd.f32 %v8944, %v9136
        %v9138 = vpop.f32.mrb[0].mxu0
        %v9139 = vadd.f32 %v8946, %v9138
        %9140 = vmatprep.mubr.bf16.mxu0 %v6450
        %9141 = vmatmul.mubr.bf16.gmra.mrb[0].mxu0 %v6449
        %v9142 = vpop.f32.mrb[0].mxu0
        %v9143 = vadd.f32 %v8950, %v9142
        %v9144 = vpop.f32.mrb[0].mxu0
        %v9145 = vadd.f32 %v8952, %v9144
        %v9146 = vpop.f32.mrb[0].mxu0
        %v9147 = vadd.f32 %v8954, %v9146
        %v9148 = vpop.f32.mrb[0].mxu0
        %v9149 = vadd.f32 %v8956, %v9148
        %9150 = vmatprep.mubr.bf16.mxu0 %v6458
        %9151 = vmatmul.mubr.bf16.gmra.mrb[0].mxu0 %v6457
        %v9152 = vpop.f32.mrb[0].mxu0
        %v9153 = vadd.f32 %v8960, %v9152
        %v9154 = vpop.f32.mrb[0].mxu0
        %v9155 = vadd.f32 %v8962, %v9154
        %v9156 = vpop.f32.mrb[0].mxu0
        %v9157 = vadd.f32 %v8964, %v9156
        %v9158 = vpop.f32.mrb[0].mxu0
        %v9159 = vadd.f32 %v8966, %v9158
        %9160 = vmatprep.mubr.bf16.mxu0 %v6466
        %9161 = vmatmul.mubr.bf16.gmra.mrb[0].mxu0 %v6465
        %v9162 = vpop.f32.mrb[0].mxu0
        %v9163 = vadd.f32 %v8970, %v9162
        %v9164 = vpop.f32.mrb[0].mxu0
        %v9165 = vadd.f32 %v8972, %v9164
        %v9166 = vpop.f32.mrb[0].mxu0
        %v9167 = vadd.f32 %v8974, %v9166
        %v9168 = vpop.f32.mrb[0].mxu0
        %v9169 = vadd.f32 %v8976, %v9168
        %9170 = vmatprep.mubr.bf16.mxu0 %v6474
        %9171 = vmatmul.mubr.bf16.gmra.mrb[0].mxu0 %v6473
        %v9172 = vpop.f32.mrb[0].mxu0
        %v9173 = vadd.f32 %v8980, %v9172
        %v9174 = vpop.f32.mrb[0].mxu0
        %v9175 = vadd.f32 %v8982, %v9174
        %v9176 = vpop.f32.mrb[0].mxu0
        %v9177 = vadd.f32 %v8984, %v9176
        %v9178 = vpop.f32.mrb[0].mxu0
        %v9179 = vadd.f32 %v8986, %v9178
        %9180 = vmatprep.mubr.bf16.mxu0 %v6482
        %9181 = vmatmul.mubr.bf16.gmra.mrb[0].mxu0 %v6481
        %v9182 = vpop.f32.mrb[0].mxu0
        %v9183 = vadd.f32 %v8990, %v9182
        %v9184 = vpop.f32.mrb[0].mxu0
        %v9185 = vadd.f32 %v8992, %v9184
        %v9186 = vpop.f32.mrb[0].mxu0
        %v9187 = vadd.f32 %v8994, %v9186
        %v9188 = vpop.f32.mrb[0].mxu0
        %v9189 = vadd.f32 %v8996, %v9188
        %9190 = vmatprep.mubr.bf16.mxu0 %v6490
        %9191 = vmatmul.mubr.bf16.gmra.mrb[0].mxu0 %v6489
        %v9192 = vpop.f32.mrb[0].mxu0
        %v9193 = vadd.f32 %v9000, %v9192
        %v9194 = vpop.f32.mrb[0].mxu0
        %v9195 = vadd.f32 %v9002, %v9194
        %v9196 = vpop.f32.mrb[0].mxu0
        %v9197 = vadd.f32 %v9004, %v9196
        %v9198 = vpop.f32.mrb[0].mxu0
        %v9199 = vadd.f32 %v9006, %v9198
        %9200 = vmatprep.mubr.bf16.mxu0 %v6498
        %9201 = vmatmul.mubr.bf16.gmra.mrb[0].mxu0 %v6497
        %v9202 = vpop.f32.mrb[0].mxu0
        %v9203 = vadd.f32 %v9010, %v9202
        %v9204 = vpop.f32.mrb[0].mxu0
        %v9205 = vadd.f32 %v9012, %v9204
        %v9206 = vpop.f32.mrb[0].mxu0
        %v9207 = vadd.f32 %v9014, %v9206
        %v9208 = vpop.f32.mrb[0].mxu0
        %v9209 = vadd.f32 %v9016, %v9208
        %9210 = vmatprep.mubr.bf16.mxu0 %v6506
        %9211 = vmatmul.mubr.bf16.gmra.mrb[0].mxu0 %v6505
        %v9212 = vpop.f32.mrb[0].mxu0
        %v9213 = vadd.f32 %v9020, %v9212
        %v9214 = vpop.f32.mrb[0].mxu0
        %v9215 = vadd.f32 %v9022, %v9214
        %v9216 = vpop.f32.mrb[0].mxu0
        %v9217 = vadd.f32 %v9024, %v9216
        %v9218 = vpop.f32.mrb[0].mxu0
        %v9219 = vadd.f32 %v9026, %v9218
        %9220 = vmatprep.mubr.bf16.mxu0 %v6514
        %9221 = vmatmul.mubr.bf16.gmra.mrb[0].mxu0 %v6513
        %v9222 = vpop.f32.mrb[0].mxu0
        %v9223 = vadd.f32 %v9030, %v9222
        %v9224 = vpop.f32.mrb[0].mxu0
        %v9225 = vadd.f32 %v9032, %v9224
        %v9226 = vpop.f32.mrb[0].mxu0
        %v9227 = vadd.f32 %v9034, %v9226
        %v9228 = vpop.f32.mrb[0].mxu0
        %v9229 = vadd.f32 %v9036, %v9228
        %9230 = vmatprep.mubr.bf16.mxu0 %v6522
        %9231 = vmatmul.mubr.bf16.gmra.mrb[0].mxu0 %v6521
        %v9232 = vpop.f32.mrb[0].mxu0
        %v9233 = vadd.f32 %v9040, %v9232
        %v9234 = vpop.f32.mrb[0].mxu0
        %v9235 = vadd.f32 %v9042, %v9234
        %v9236 = vpop.f32.mrb[0].mxu0
        %v9237 = vadd.f32 %v9044, %v9236
        %v9238 = vpop.f32.mrb[0].mxu0
        %v9239 = vadd.f32 %v9046, %v9238
        %9240 = vmatprep.mubr.bf16.mxu0 %v6530
        %9241 = vmatmul.mubr.bf16.gmra.mrb[0].mxu0 %v6529
        %v9242 = vpop.f32.mrb[0].mxu0
        %v9243 = vadd.f32 %v9050, %v9242
        %v9244 = vpop.f32.mrb[0].mxu0
        %v9245 = vadd.f32 %v9052, %v9244
        %v9246 = vpop.f32.mrb[0].mxu0
        %v9247 = vadd.f32 %v9054, %v9246
        %v9248 = vpop.f32.mrb[0].mxu0
        %v9249 = vadd.f32 %v9056, %v9248
        %9250 = vdwg.mxu0
        %9251 = vmatprep.subr.bf16.mxu0 %v7712
        %9252 = vmatpush1.bf16.msra.mxu0 %v7711
        %9253 = vmatprep.subr.bf16.mxu0 %v7716
        %9254 = vmatpush1.bf16.msra.mxu0 %v7715
        %9255 = vmatprep.subr.bf16.mxu0 %v7720
        %9256 = vmatpush1.bf16.msra.mxu0 %v7719
        %9257 = vmatprep.subr.bf16.mxu0 %v7724
        %9258 = vmatpush1.bf16.msra.mxu0 %v7723
        %9259 = vmatprep.subr.bf16.mxu0 %v7728
        %9260 = vmatpush1.bf16.msra.mxu0 %v7727
        %9261 = vmatprep.subr.bf16.mxu0 %v7732
        %9262 = vmatpush1.bf16.msra.mxu0 %v7731
        %9263 = vmatprep.subr.bf16.mxu0 %v7736
        %9264 = vmatpush1.bf16.msra.mxu0 %v7735
        %9265 = vmatprep.subr.bf16.mxu0 %v7740
        %9266 = vmatpush1.bf16.msra.mxu0 %v7739
        %9267 = vmatprep.subr.bf16.mxu0 %v7744
        %9268 = vmatpush1.bf16.msra.mxu0 %v7743
        %9269 = vmatprep.subr.bf16.mxu0 %v7748
        %9270 = vmatpush1.bf16.msra.mxu0 %v7747
        %9271 = vmatprep.subr.bf16.mxu0 %v7752
        %9272 = vmatpush1.bf16.msra.mxu0 %v7751
        %9273 = vmatprep.subr.bf16.mxu0 %v7756
        %9274 = vmatpush1.bf16.msra.mxu0 %v7755
        %9275 = vmatprep.subr.bf16.mxu0 %v7760
        %9276 = vmatpush1.bf16.msra.mxu0 %v7759
        %9277 = vmatprep.subr.bf16.mxu0 %v7764
        %9278 = vmatpush1.bf16.msra.mxu0 %v7763
        %9279 = vmatprep.subr.bf16.mxu0 %v7768
        %9280 = vmatpush1.bf16.msra.mxu0 %v7767
        %9281 = vmatprep.subr.bf16.mxu0 %v7772
        %9282 = vmatpush1.bf16.msra.mxu0 %v7771
        %9283 = vmatprep.mubr.bf16.mxu0 %v6412
        %9284 = vmatmul.mubr.bf16.gmra.mrb[0].mxu0 %v6411
        %v9285 = vpop.f32.mrb[0].mxu0
        %v9286 = vadd.f32 %v9093, %v9285
        %v9287 = vpop.f32.mrb[0].mxu0
        %v9288 = vadd.f32 %v9095, %v9287
        %v9289 = vpop.f32.mrb[0].mxu0
        %v9290 = vadd.f32 %v9097, %v9289
        %v9291 = vpop.f32.mrb[0].mxu0
        %v9292 = vadd.f32 %v9099, %v9291
        %9293 = vmatprep.mubr.bf16.mxu0 %v6420
        %9294 = vmatmul.mubr.bf16.gmra.mrb[0].mxu0 %v6419
        %v9295 = vpop.f32.mrb[0].mxu0
        %v9296 = vadd.f32 %v9103, %v9295
        %v9297 = vpop.f32.mrb[0].mxu0
        %v9298 = vadd.f32 %v9105, %v9297
        %v9299 = vpop.f32.mrb[0].mxu0
        %v9300 = vadd.f32 %v9107, %v9299
        %v9301 = vpop.f32.mrb[0].mxu0
        %v9302 = vadd.f32 %v9109, %v9301
        %9303 = vmatprep.mubr.bf16.mxu0 %v6428
        %9304 = vmatmul.mubr.bf16.gmra.mrb[0].mxu0 %v6427
        %v9305 = vpop.f32.mrb[0].mxu0
        %v9306 = vadd.f32 %v9113, %v9305
        %v9307 = vpop.f32.mrb[0].mxu0
        %v9308 = vadd.f32 %v9115, %v9307
        %v9309 = vpop.f32.mrb[0].mxu0
        %v9310 = vadd.f32 %v9117, %v9309
        %v9311 = vpop.f32.mrb[0].mxu0
        %v9312 = vadd.f32 %v9119, %v9311
        %9313 = vmatprep.mubr.bf16.mxu0 %v6436
        %9314 = vmatmul.mubr.bf16.gmra.mrb[0].mxu0 %v6435
        %v9315 = vpop.f32.mrb[0].mxu0
        %v9316 = vadd.f32 %v9123, %v9315
        %v9317 = vpop.f32.mrb[0].mxu0
        %v9318 = vadd.f32 %v9125, %v9317
        %v9319 = vpop.f32.mrb[0].mxu0
        %v9320 = vadd.f32 %v9127, %v9319
        %v9321 = vpop.f32.mrb[0].mxu0
        %v9322 = vadd.f32 %v9129, %v9321
        %9323 = vmatprep.mubr.bf16.mxu0 %v6444
        %9324 = vmatmul.mubr.bf16.gmra.mrb[0].mxu0 %v6443
        %v9325 = vpop.f32.mrb[0].mxu0
        %v9326 = vadd.f32 %v9133, %v9325
        %v9327 = vpop.f32.mrb[0].mxu0
        %v9328 = vadd.f32 %v9135, %v9327
        %v9329 = vpop.f32.mrb[0].mxu0
        %v9330 = vadd.f32 %v9137, %v9329
        %v9331 = vpop.f32.mrb[0].mxu0
        %v9332 = vadd.f32 %v9139, %v9331
        %9333 = vmatprep.mubr.bf16.mxu0 %v6452
        %9334 = vmatmul.mubr.bf16.gmra.mrb[0].mxu0 %v6451
        %v9335 = vpop.f32.mrb[0].mxu0
        %v9336 = vadd.f32 %v9143, %v9335
        %v9337 = vpop.f32.mrb[0].mxu0
        %v9338 = vadd.f32 %v9145, %v9337
        %v9339 = vpop.f32.mrb[0].mxu0
        %v9340 = vadd.f32 %v9147, %v9339
        %v9341 = vpop.f32.mrb[0].mxu0
        %v9342 = vadd.f32 %v9149, %v9341
        %9343 = vmatprep.mubr.bf16.mxu0 %v6460
        %9344 = vmatmul.mubr.bf16.gmra.mrb[0].mxu0 %v6459
        %v9345 = vpop.f32.mrb[0].mxu0
        %v9346 = vadd.f32 %v9153, %v9345
        %v9347 = vpop.f32.mrb[0].mxu0
        %v9348 = vadd.f32 %v9155, %v9347
        %v9349 = vpop.f32.mrb[0].mxu0
        %v9350 = vadd.f32 %v9157, %v9349
        %v9351 = vpop.f32.mrb[0].mxu0
        %v9352 = vadd.f32 %v9159, %v9351
        %9353 = vmatprep.mubr.bf16.mxu0 %v6468
        %9354 = vmatmul.mubr.bf16.gmra.mrb[0].mxu0 %v6467
        %v9355 = vpop.f32.mrb[0].mxu0
        %v9356 = vadd.f32 %v9163, %v9355
        %v9357 = vpop.f32.mrb[0].mxu0
        %v9358 = vadd.f32 %v9165, %v9357
        %v9359 = vpop.f32.mrb[0].mxu0
        %v9360 = vadd.f32 %v9167, %v9359
        %v9361 = vpop.f32.mrb[0].mxu0
        %v9362 = vadd.f32 %v9169, %v9361
        %9363 = vmatprep.mubr.bf16.mxu0 %v6476
        %9364 = vmatmul.mubr.bf16.gmra.mrb[0].mxu0 %v6475
        %v9365 = vpop.f32.mrb[0].mxu0
        %v9366 = vadd.f32 %v9173, %v9365
        %v9367 = vpop.f32.mrb[0].mxu0
        %v9368 = vadd.f32 %v9175, %v9367
        %v9369 = vpop.f32.mrb[0].mxu0
        %v9370 = vadd.f32 %v9177, %v9369
        %v9371 = vpop.f32.mrb[0].mxu0
        %v9372 = vadd.f32 %v9179, %v9371
        %9373 = vmatprep.mubr.bf16.mxu0 %v6484
        %9374 = vmatmul.mubr.bf16.gmra.mrb[0].mxu0 %v6483
        %v9375 = vpop.f32.mrb[0].mxu0
        %v9376 = vadd.f32 %v9183, %v9375
        %v9377 = vpop.f32.mrb[0].mxu0
        %v9378 = vadd.f32 %v9185, %v9377
        %v9379 = vpop.f32.mrb[0].mxu0
        %v9380 = vadd.f32 %v9187, %v9379
        %v9381 = vpop.f32.mrb[0].mxu0
        %v9382 = vadd.f32 %v9189, %v9381
        %9383 = vmatprep.mubr.bf16.mxu0 %v6492
        %9384 = vmatmul.mubr.bf16.gmra.mrb[0].mxu0 %v6491
        %v9385 = vpop.f32.mrb[0].mxu0
        %v9386 = vadd.f32 %v9193, %v9385
        %v9387 = vpop.f32.mrb[0].mxu0
        %v9388 = vadd.f32 %v9195, %v9387
        %v9389 = vpop.f32.mrb[0].mxu0
        %v9390 = vadd.f32 %v9197, %v9389
        %v9391 = vpop.f32.mrb[0].mxu0
        %v9392 = vadd.f32 %v9199, %v9391
        %9393 = vmatprep.mubr.bf16.mxu0 %v6500
        %9394 = vmatmul.mubr.bf16.gmra.mrb[0].mxu0 %v6499
        %v9395 = vpop.f32.mrb[0].mxu0
        %v9396 = vadd.f32 %v9203, %v9395
        %v9397 = vpop.f32.mrb[0].mxu0
        %v9398 = vadd.f32 %v9205, %v9397
        %v9399 = vpop.f32.mrb[0].mxu0
        %v9400 = vadd.f32 %v9207, %v9399
        %v9401 = vpop.f32.mrb[0].mxu0
        %v9402 = vadd.f32 %v9209, %v9401
        %9403 = vmatprep.mubr.bf16.mxu0 %v6508
        %9404 = vmatmul.mubr.bf16.gmra.mrb[0].mxu0 %v6507
        %v9405 = vpop.f32.mrb[0].mxu0
        %v9406 = vadd.f32 %v9213, %v9405
        %v9407 = vpop.f32.mrb[0].mxu0
        %v9408 = vadd.f32 %v9215, %v9407
        %v9409 = vpop.f32.mrb[0].mxu0
        %v9410 = vadd.f32 %v9217, %v9409
        %v9411 = vpop.f32.mrb[0].mxu0
        %v9412 = vadd.f32 %v9219, %v9411
        %9413 = vmatprep.mubr.bf16.mxu0 %v6516
        %9414 = vmatmul.mubr.bf16.gmra.mrb[0].mxu0 %v6515
        %v9415 = vpop.f32.mrb[0].mxu0
        %v9416 = vadd.f32 %v9223, %v9415
        %v9417 = vpop.f32.mrb[0].mxu0
        %v9418 = vadd.f32 %v9225, %v9417
        %v9419 = vpop.f32.mrb[0].mxu0
        %v9420 = vadd.f32 %v9227, %v9419
        %v9421 = vpop.f32.mrb[0].mxu0
        %v9422 = vadd.f32 %v9229, %v9421
        %9423 = vmatprep.mubr.bf16.mxu0 %v6524
        %9424 = vmatmul.mubr.bf16.gmra.mrb[0].mxu0 %v6523
        %v9425 = vpop.f32.mrb[0].mxu0
        %v9426 = vadd.f32 %v9233, %v9425
        %v9427 = vpop.f32.mrb[0].mxu0
        %v9428 = vadd.f32 %v9235, %v9427
        %v9429 = vpop.f32.mrb[0].mxu0
        %v9430 = vadd.f32 %v9237, %v9429
        %v9431 = vpop.f32.mrb[0].mxu0
        %v9432 = vadd.f32 %v9239, %v9431
        %9433 = vmatprep.mubr.bf16.mxu0 %v6532
        %9434 = vmatmul.mubr.bf16.gmra.mrb[0].mxu0 %v6531
        %v9435 = vpop.f32.mrb[0].mxu0
        %v9436 = vadd.f32 %v9243, %v9435
        %v9437 = vpop.f32.mrb[0].mxu0
        %v9438 = vadd.f32 %v9245, %v9437
        %v9439 = vpop.f32.mrb[0].mxu0
        %v9440 = vadd.f32 %v9247, %v9439
        %v9441 = vpop.f32.mrb[0].mxu0
        %v9442 = vadd.f32 %v9249, %v9441
        %9443 = vdwg.mxu0
        %9444 = vmatprep.subr.bf16.mxu0 %v7776
        %9445 = vmatpush1.bf16.msra.mxu0 %v7775
        %9446 = vmatprep.subr.bf16.mxu0 %v7780
        %9447 = vmatpush1.bf16.msra.mxu0 %v7779
        %9448 = vmatprep.subr.bf16.mxu0 %v7784
        %9449 = vmatpush1.bf16.msra.mxu0 %v7783
        %9450 = vmatprep.subr.bf16.mxu0 %v7788
        %9451 = vmatpush1.bf16.msra.mxu0 %v7787
        %9452 = vmatprep.subr.bf16.mxu0 %v7792
        %9453 = vmatpush1.bf16.msra.mxu0 %v7791
        %9454 = vmatprep.subr.bf16.mxu0 %v7796
        %9455 = vmatpush1.bf16.msra.mxu0 %v7795
        %9456 = vmatprep.subr.bf16.mxu0 %v7800
        %9457 = vmatpush1.bf16.msra.mxu0 %v7799
        %9458 = vmatprep.subr.bf16.mxu0 %v7804
        %9459 = vmatpush1.bf16.msra.mxu0 %v7803
        %9460 = vmatprep.subr.bf16.mxu0 %v7808
        %9461 = vmatpush1.bf16.msra.mxu0 %v7807
        %9462 = vmatprep.subr.bf16.mxu0 %v7812
        %9463 = vmatpush1.bf16.msra.mxu0 %v7811
        %9464 = vmatprep.subr.bf16.mxu0 %v7816
        %9465 = vmatpush1.bf16.msra.mxu0 %v7815
        %9466 = vmatprep.subr.bf16.mxu0 %v7820
        %9467 = vmatpush1.bf16.msra.mxu0 %v7819
        %9468 = vmatprep.subr.bf16.mxu0 %v7824
        %9469 = vmatpush1.bf16.msra.mxu0 %v7823
        %9470 = vmatprep.subr.bf16.mxu0 %v7828
        %9471 = vmatpush1.bf16.msra.mxu0 %v7827
        %9472 = vmatprep.subr.bf16.mxu0 %v7832
        %9473 = vmatpush1.bf16.msra.mxu0 %v7831
        %9474 = vmatprep.subr.bf16.mxu0 %v7836
        %9475 = vmatpush1.bf16.msra.mxu0 %v7835
        %9476 = vmatprep.mubr.bf16.mxu0 %v6414
        %9477 = vmatmul.mubr.bf16.gmra.mrb[0].mxu0 %v6413
        %v9478 = vpop.f32.mrb[0].mxu0
        %v9479 = vadd.f32 %v9286, %v9478
        %v9480 = vpop.f32.mrb[0].mxu0
        %v9481 = vadd.f32 %v9288, %v9480
        %v9482 = vpop.f32.mrb[0].mxu0
        %v9483 = vadd.f32 %v9290, %v9482
        %v9484 = vpop.f32.mrb[0].mxu0
        %v9485 = vadd.f32 %v9292, %v9484
        %9486 = vmatprep.mubr.bf16.mxu0 %v6422
        %9487 = vmatmul.mubr.bf16.gmra.mrb[0].mxu0 %v6421
        %v9488 = vpop.f32.mrb[0].mxu0
        %v9489 = vadd.f32 %v9296, %v9488
        %v9490 = vpop.f32.mrb[0].mxu0
        %v9491 = vadd.f32 %v9298, %v9490
        %v9492 = vpop.f32.mrb[0].mxu0
        %v9493 = vadd.f32 %v9300, %v9492
        %v9494 = vpop.f32.mrb[0].mxu0
        %v9495 = vadd.f32 %v9302, %v9494
        %9496 = vmatprep.mubr.bf16.mxu0 %v6430
        %9497 = vmatmul.mubr.bf16.gmra.mrb[0].mxu0 %v6429
        %v9498 = vpop.f32.mrb[0].mxu0
        %v9499 = vadd.f32 %v9306, %v9498
        %v9500 = vpop.f32.mrb[0].mxu0
        %v9501 = vadd.f32 %v9308, %v9500
        %v9502 = vpop.f32.mrb[0].mxu0
        %v9503 = vadd.f32 %v9310, %v9502
        %v9504 = vpop.f32.mrb[0].mxu0
        %v9505 = vadd.f32 %v9312, %v9504
        %9506 = vmatprep.mubr.bf16.mxu0 %v6438
        %9507 = vmatmul.mubr.bf16.gmra.mrb[0].mxu0 %v6437
        %v9508 = vpop.f32.mrb[0].mxu0
        %v9509 = vadd.f32 %v9316, %v9508
        %v9510 = vpop.f32.mrb[0].mxu0
        %v9511 = vadd.f32 %v9318, %v9510
        %v9512 = vpop.f32.mrb[0].mxu0
        %v9513 = vadd.f32 %v9320, %v9512
        %v9514 = vpop.f32.mrb[0].mxu0
        %v9515 = vadd.f32 %v9322, %v9514
        %9516 = vmatprep.mubr.bf16.mxu0 %v6446
        %9517 = vmatmul.mubr.bf16.gmra.mrb[0].mxu0 %v6445
        %v9518 = vpop.f32.mrb[0].mxu0
        %v9519 = vadd.f32 %v9326, %v9518
        %v9520 = vpop.f32.mrb[0].mxu0
        %v9521 = vadd.f32 %v9328, %v9520
        %v9522 = vpop.f32.mrb[0].mxu0
        %v9523 = vadd.f32 %v9330, %v9522
        %v9524 = vpop.f32.mrb[0].mxu0
        %v9525 = vadd.f32 %v9332, %v9524
        %9526 = vmatprep.mubr.bf16.mxu0 %v6454
        %9527 = vmatmul.mubr.bf16.gmra.mrb[0].mxu0 %v6453
        %v9528 = vpop.f32.mrb[0].mxu0
        %v9529 = vadd.f32 %v9336, %v9528
        %v9530 = vpop.f32.mrb[0].mxu0
        %v9531 = vadd.f32 %v9338, %v9530
        %v9532 = vpop.f32.mrb[0].mxu0
        %v9533 = vadd.f32 %v9340, %v9532
        %v9534 = vpop.f32.mrb[0].mxu0
        %v9535 = vadd.f32 %v9342, %v9534
        %9536 = vmatprep.mubr.bf16.mxu0 %v6462
        %9537 = vmatmul.mubr.bf16.gmra.mrb[0].mxu0 %v6461
        %v9538 = vpop.f32.mrb[0].mxu0
        %v9539 = vadd.f32 %v9346, %v9538
        %v9540 = vpop.f32.mrb[0].mxu0
        %v9541 = vadd.f32 %v9348, %v9540
        %v9542 = vpop.f32.mrb[0].mxu0
        %v9543 = vadd.f32 %v9350, %v9542
        %v9544 = vpop.f32.mrb[0].mxu0
        %v9545 = vadd.f32 %v9352, %v9544
        %9546 = vmatprep.mubr.bf16.mxu0 %v6470
        %9547 = vmatmul.mubr.bf16.gmra.mrb[0].mxu0 %v6469
        %v9548 = vpop.f32.mrb[0].mxu0
        %v9549 = vadd.f32 %v9356, %v9548
        %v9550 = vpop.f32.mrb[0].mxu0
        %v9551 = vadd.f32 %v9358, %v9550
        %v9552 = vpop.f32.mrb[0].mxu0
        %v9553 = vadd.f32 %v9360, %v9552
        %v9554 = vpop.f32.mrb[0].mxu0
        %v9555 = vadd.f32 %v9362, %v9554
        %9556 = vmatprep.mubr.bf16.mxu0 %v6478
        %9557 = vmatmul.mubr.bf16.gmra.mrb[0].mxu0 %v6477
        %v9558 = vpop.f32.mrb[0].mxu0
        %v9559 = vadd.f32 %v9366, %v9558
        %v9560 = vpop.f32.mrb[0].mxu0
        %v9561 = vadd.f32 %v9368, %v9560
        %v9562 = vpop.f32.mrb[0].mxu0
        %v9563 = vadd.f32 %v9370, %v9562
        %v9564 = vpop.f32.mrb[0].mxu0
        %v9565 = vadd.f32 %v9372, %v9564
        %9566 = vmatprep.mubr.bf16.mxu0 %v6486
        %9567 = vmatmul.mubr.bf16.gmra.mrb[0].mxu0 %v6485
        %v9568 = vpop.f32.mrb[0].mxu0
        %v9569 = vadd.f32 %v9376, %v9568
        %v9570 = vpop.f32.mrb[0].mxu0
        %v9571 = vadd.f32 %v9378, %v9570
        %v9572 = vpop.f32.mrb[0].mxu0
        %v9573 = vadd.f32 %v9380, %v9572
        %v9574 = vpop.f32.mrb[0].mxu0
        %v9575 = vadd.f32 %v9382, %v9574
        %9576 = vmatprep.mubr.bf16.mxu0 %v6494
        %9577 = vmatmul.mubr.bf16.gmra.mrb[0].mxu0 %v6493
        %v9578 = vpop.f32.mrb[0].mxu0
        %v9579 = vadd.f32 %v9386, %v9578
        %v9580 = vpop.f32.mrb[0].mxu0
        %v9581 = vadd.f32 %v9388, %v9580
        %v9582 = vpop.f32.mrb[0].mxu0
        %v9583 = vadd.f32 %v9390, %v9582
        %v9584 = vpop.f32.mrb[0].mxu0
        %v9585 = vadd.f32 %v9392, %v9584
        %9586 = vmatprep.mubr.bf16.mxu0 %v6502
        %9587 = vmatmul.mubr.bf16.gmra.mrb[0].mxu0 %v6501
        %v9588 = vpop.f32.mrb[0].mxu0
        %v9589 = vadd.f32 %v9396, %v9588
        %v9590 = vpop.f32.mrb[0].mxu0
        %v9591 = vadd.f32 %v9398, %v9590
        %v9592 = vpop.f32.mrb[0].mxu0
        %v9593 = vadd.f32 %v9400, %v9592
        %v9594 = vpop.f32.mrb[0].mxu0
        %v9595 = vadd.f32 %v9402, %v9594
        %9596 = vmatprep.mubr.bf16.mxu0 %v6510
        %9597 = vmatmul.mubr.bf16.gmra.mrb[0].mxu0 %v6509
        %v9598 = vpop.f32.mrb[0].mxu0
        %v9599 = vadd.f32 %v9406, %v9598
        %v9600 = vpop.f32.mrb[0].mxu0
        %v9601 = vadd.f32 %v9408, %v9600
        %v9602 = vpop.f32.mrb[0].mxu0
        %v9603 = vadd.f32 %v9410, %v9602
        %v9604 = vpop.f32.mrb[0].mxu0
        %v9605 = vadd.f32 %v9412, %v9604
        %9606 = vmatprep.mubr.bf16.mxu0 %v6518
        %9607 = vmatmul.mubr.bf16.gmra.mrb[0].mxu0 %v6517
        %v9608 = vpop.f32.mrb[0].mxu0
        %v9609 = vadd.f32 %v9416, %v9608
        %v9610 = vpop.f32.mrb[0].mxu0
        %v9611 = vadd.f32 %v9418, %v9610
        %v9612 = vpop.f32.mrb[0].mxu0
        %v9613 = vadd.f32 %v9420, %v9612
        %v9614 = vpop.f32.mrb[0].mxu0
        %v9615 = vadd.f32 %v9422, %v9614
        %9616 = vmatprep.mubr.bf16.mxu0 %v6526
        %9617 = vmatmul.mubr.bf16.gmra.mrb[0].mxu0 %v6525
        %v9618 = vpop.f32.mrb[0].mxu0
        %v9619 = vadd.f32 %v9426, %v9618
        %v9620 = vpop.f32.mrb[0].mxu0
        %v9621 = vadd.f32 %v9428, %v9620
        %v9622 = vpop.f32.mrb[0].mxu0
        %v9623 = vadd.f32 %v9430, %v9622
        %v9624 = vpop.f32.mrb[0].mxu0
        %v9625 = vadd.f32 %v9432, %v9624
        %9626 = vmatprep.mubr.bf16.mxu0 %v6534
        %9627 = vmatmul.mubr.bf16.gmra.mrb[0].mxu0 %v6533
        %v9628 = vpop.f32.mrb[0].mxu0
        %v9629 = vadd.f32 %v9436, %v9628
        %v9630 = vpop.f32.mrb[0].mxu0
        %v9631 = vadd.f32 %v9438, %v9630
        %v9632 = vpop.f32.mrb[0].mxu0
        %v9633 = vadd.f32 %v9440, %v9632
        %v9634 = vpop.f32.mrb[0].mxu0
        %v9635 = vadd.f32 %v9442, %v9634
        %9636 = vdwg.mxu0
        %v9637 = vmax.f32 %v8707, 0.0
        %v9638 = vmax.f32 %v8709, 0.0
        %v9639 = vmax.f32 %v9479, 0.0
        %v9640 = vmax.f32 %v9481, 0.0
        %v9641 = vmax.f32 %v8711, 0.0
        %v9642 = vmax.f32 %v8713, 0.0
        %v9643 = vmax.f32 %v9483, 0.0
        %v9644 = vmax.f32 %v9485, 0.0
        %v9645 = vmax.f32 %v8717, 0.0
        %v9646 = vmax.f32 %v8719, 0.0
        %v9647 = vmax.f32 %v9489, 0.0
        %v9648 = vmax.f32 %v9491, 0.0
        %v9649 = vmax.f32 %v8721, 0.0
        %v9650 = vmax.f32 %v8723, 0.0
        %v9651 = vmax.f32 %v9493, 0.0
        %v9652 = vmax.f32 %v9495, 0.0
        %v9653 = vmax.f32 %v8727, 0.0
        %v9654 = vmax.f32 %v8729, 0.0
        %v9655 = vmax.f32 %v9499, 0.0
        %v9656 = vmax.f32 %v9501, 0.0
        %v9657 = vmax.f32 %v8731, 0.0
        %v9658 = vmax.f32 %v8733, 0.0
        %v9659 = vmax.f32 %v9503, 0.0
        %v9660 = vmax.f32 %v9505, 0.0
        %v9661 = vmax.f32 %v8737, 0.0
        %v9662 = vmax.f32 %v8739, 0.0
        %v9663 = vmax.f32 %v9509, 0.0
        %v9664 = vmax.f32 %v9511, 0.0
        %v9665 = vmax.f32 %v8741, 0.0
        %v9666 = vmax.f32 %v8743, 0.0
        %v9667 = vmax.f32 %v9513, 0.0
        %v9668 = vmax.f32 %v9515, 0.0
        %v9669 = vmax.f32 %v8747, 0.0
        %v9670 = vmax.f32 %v8749, 0.0
        %v9671 = vmax.f32 %v9519, 0.0
        %v9672 = vmax.f32 %v9521, 0.0
        %v9673 = vmax.f32 %v8751, 0.0
        %v9674 = vmax.f32 %v8753, 0.0
        %v9675 = vmax.f32 %v9523, 0.0
        %v9676 = vmax.f32 %v9525, 0.0
        %v9677 = vmax.f32 %v8757, 0.0
        %v9678 = vmax.f32 %v8759, 0.0
        %v9679 = vmax.f32 %v9529, 0.0
        %v9680 = vmax.f32 %v9531, 0.0
        %v9681 = vmax.f32 %v8761, 0.0
        %v9682 = vmax.f32 %v8763, 0.0
        %v9683 = vmax.f32 %v9533, 0.0
        %v9684 = vmax.f32 %v9535, 0.0
        %v9685 = vmax.f32 %v8767, 0.0
        %v9686 = vmax.f32 %v8769, 0.0
        %v9687 = vmax.f32 %v9539, 0.0
        %v9688 = vmax.f32 %v9541, 0.0
        %v9689 = vmax.f32 %v8771, 0.0
        %v9690 = vmax.f32 %v8773, 0.0
        %v9691 = vmax.f32 %v9543, 0.0
        %v9692 = vmax.f32 %v9545, 0.0
        %v9693 = vmax.f32 %v8777, 0.0
        %v9694 = vmax.f32 %v8779, 0.0
        %v9695 = vmax.f32 %v9549, 0.0
        %v9696 = vmax.f32 %v9551, 0.0
        %v9697 = vmax.f32 %v8781, 0.0
        %v9698 = vmax.f32 %v8783, 0.0
        %v9699 = vmax.f32 %v9553, 0.0
        %v9700 = vmax.f32 %v9555, 0.0
        %v9701 = vmax.f32 %v8787, 0.0
        %v9702 = vmax.f32 %v8789, 0.0
        %v9703 = vmax.f32 %v9559, 0.0
        %v9704 = vmax.f32 %v9561, 0.0
        %v9705 = vmax.f32 %v8791, 0.0
        %v9706 = vmax.f32 %v8793, 0.0
        %v9707 = vmax.f32 %v9563, 0.0
        %v9708 = vmax.f32 %v9565, 0.0
        %v9709 = vmax.f32 %v8797, 0.0
        %v9710 = vmax.f32 %v8799, 0.0
        %v9711 = vmax.f32 %v9569, 0.0
        %v9712 = vmax.f32 %v9571, 0.0
        %v9713 = vmax.f32 %v8801, 0.0
        %v9714 = vmax.f32 %v8803, 0.0
        %v9715 = vmax.f32 %v9573, 0.0
        %v9716 = vmax.f32 %v9575, 0.0
        %v9717 = vmax.f32 %v8807, 0.0
        %v9718 = vmax.f32 %v8809, 0.0
        %v9719 = vmax.f32 %v9579, 0.0
        %v9720 = vmax.f32 %v9581, 0.0
        %v9721 = vmax.f32 %v8811, 0.0
        %v9722 = vmax.f32 %v8813, 0.0
        %v9723 = vmax.f32 %v9583, 0.0
        %v9724 = vmax.f32 %v9585, 0.0
        %v9725 = vmax.f32 %v8817, 0.0
        %v9726 = vmax.f32 %v8819, 0.0
        %v9727 = vmax.f32 %v9589, 0.0
        %v9728 = vmax.f32 %v9591, 0.0
        %v9729 = vmax.f32 %v8821, 0.0
        %v9730 = vmax.f32 %v8823, 0.0
        %v9731 = vmax.f32 %v9593, 0.0
        %v9732 = vmax.f32 %v9595, 0.0
        %v9733 = vmax.f32 %v8827, 0.0
        %v9734 = vmax.f32 %v8829, 0.0
        %v9735 = vmax.f32 %v9599, 0.0
        %v9736 = vmax.f32 %v9601, 0.0
        %v9737 = vmax.f32 %v8831, 0.0
        %v9738 = vmax.f32 %v8833, 0.0
        %v9739 = vmax.f32 %v9603, 0.0
        %v9740 = vmax.f32 %v9605, 0.0
        %v9741 = vmax.f32 %v8837, 0.0
        %v9742 = vmax.f32 %v8839, 0.0
        %v9743 = vmax.f32 %v9609, 0.0
        %v9744 = vmax.f32 %v9611, 0.0
        %v9745 = vmax.f32 %v8841, 0.0
        %v9746 = vmax.f32 %v8843, 0.0
        %v9747 = vmax.f32 %v9613, 0.0
        %v9748 = vmax.f32 %v9615, 0.0
        %v9749 = vmax.f32 %v8847, 0.0
        %v9750 = vmax.f32 %v8849, 0.0
        %v9751 = vmax.f32 %v9619, 0.0
        %v9752 = vmax.f32 %v9621, 0.0
        %v9753 = vmax.f32 %v8851, 0.0
        %v9754 = vmax.f32 %v8853, 0.0
        %v9755 = vmax.f32 %v9623, 0.0
        %v9756 = vmax.f32 %v9625, 0.0
        %v9757 = vmax.f32 %v8857, 0.0
        %v9758 = vmax.f32 %v8859, 0.0
        %v9759 = vmax.f32 %v9629, 0.0
        %v9760 = vmax.f32 %v9631, 0.0
        %v9761 = vmax.f32 %v8861, 0.0
        %v9762 = vmax.f32 %v8863, 0.0
        %v9763 = vmax.f32 %v9633, 0.0
        %v9764 = vmax.f32 %v9635, 0.0
        %v9765 = vpack.c.bf16 %v9641, %v9637
        %v9766 = vpack.c.bf16 %v9642, %v9638
        %v9767 = vpack.c.bf16 %v9643, %v9639
        %v9768 = vpack.c.bf16 %v9644, %v9640
        %v9769 = vpack.c.bf16 %v9649, %v9645
        %v9770 = vpack.c.bf16 %v9650, %v9646
        %v9771 = vpack.c.bf16 %v9651, %v9647
        %v9772 = vpack.c.bf16 %v9652, %v9648
        %v9773 = vpack.c.bf16 %v9657, %v9653
        %v9774 = vpack.c.bf16 %v9658, %v9654
        %v9775 = vpack.c.bf16 %v9659, %v9655
        %v9776 = vpack.c.bf16 %v9660, %v9656
        %v9777 = vpack.c.bf16 %v9665, %v9661
        %v9778 = vpack.c.bf16 %v9666, %v9662
        %v9779 = vpack.c.bf16 %v9667, %v9663
        %v9780 = vpack.c.bf16 %v9668, %v9664
        %v9781 = vpack.c.bf16 %v9673, %v9669
        %v9782 = vpack.c.bf16 %v9674, %v9670
        %v9783 = vpack.c.bf16 %v9675, %v9671
        %v9784 = vpack.c.bf16 %v9676, %v9672
        %v9785 = vpack.c.bf16 %v9681, %v9677
        %v9786 = vpack.c.bf16 %v9682, %v9678
        %v9787 = vpack.c.bf16 %v9683, %v9679
        %v9788 = vpack.c.bf16 %v9684, %v9680
        %v9789 = vpack.c.bf16 %v9689, %v9685
        %v9790 = vpack.c.bf16 %v9690, %v9686
        %v9791 = vpack.c.bf16 %v9691, %v9687
        %v9792 = vpack.c.bf16 %v9692, %v9688
        %v9793 = vpack.c.bf16 %v9697, %v9693
        %v9794 = vpack.c.bf16 %v9698, %v9694
        %v9795 = vpack.c.bf16 %v9699, %v9695
        %v9796 = vpack.c.bf16 %v9700, %v9696
        %v9797 = vpack.c.bf16 %v9705, %v9701
        %v9798 = vpack.c.bf16 %v9706, %v9702
        %v9799 = vpack.c.bf16 %v9707, %v9703
        %v9800 = vpack.c.bf16 %v9708, %v9704
        %v9801 = vpack.c.bf16 %v9713, %v9709
        %v9802 = vpack.c.bf16 %v9714, %v9710
        %v9803 = vpack.c.bf16 %v9715, %v9711
        %v9804 = vpack.c.bf16 %v9716, %v9712
        %v9805 = vpack.c.bf16 %v9721, %v9717
        %v9806 = vpack.c.bf16 %v9722, %v9718
        %v9807 = vpack.c.bf16 %v9723, %v9719
        %v9808 = vpack.c.bf16 %v9724, %v9720
        %v9809 = vpack.c.bf16 %v9729, %v9725
        %v9810 = vpack.c.bf16 %v9730, %v9726
        %v9811 = vpack.c.bf16 %v9731, %v9727
        %v9812 = vpack.c.bf16 %v9732, %v9728
        %v9813 = vpack.c.bf16 %v9737, %v9733
        %v9814 = vpack.c.bf16 %v9738, %v9734
        %v9815 = vpack.c.bf16 %v9739, %v9735
        %v9816 = vpack.c.bf16 %v9740, %v9736
        %v9817 = vpack.c.bf16 %v9745, %v9741
        %v9818 = vpack.c.bf16 %v9746, %v9742
        %v9819 = vpack.c.bf16 %v9747, %v9743
        %v9820 = vpack.c.bf16 %v9748, %v9744
        %v9821 = vpack.c.bf16 %v9753, %v9749
        %v9822 = vpack.c.bf16 %v9754, %v9750
        %v9823 = vpack.c.bf16 %v9755, %v9751
        %v9824 = vpack.c.bf16 %v9756, %v9752
        %v9825 = vpack.c.bf16 %v9761, %v9757
        %v9826 = vpack.c.bf16 %v9762, %v9758
        %v9827 = vpack.c.bf16 %v9763, %v9759
        %v9828 = vpack.c.bf16 %v9764, %v9760
        %v9829 = vld [vmem:[%s5] sm:$0xf]
        %v9830 = vld [vmem:[%s5 + $0x4] sm:$0xf]
        %v9831 = vld [vmem:[%s5 + $0x8] sm:$0xf]
        %v9832 = vld [vmem:[%s5 + $0xc] sm:$0xf]
        %v9833 = vld [vmem:[%s5 + $0x10] sm:$0xf]
        %v9834 = vld [vmem:[%s5 + $0x14] sm:$0xf]
        %v9835 = vld [vmem:[%s5 + $0x18] sm:$0xf]
        %v9836 = vld [vmem:[%s5 + $0x1c] sm:$0xf]
        %v9837 = vld [vmem:[%s5 + $0x20] sm:$0xf]
        %v9838 = vld [vmem:[%s5 + $0x24] sm:$0xf]
        %v9839 = vld [vmem:[%s5 + $0x28] sm:$0xf]
        %v9840 = vld [vmem:[%s5 + $0x2c] sm:$0xf]
        %v9841 = vld [vmem:[%s5 + $0x30] sm:$0xf]
        %v9842 = vld [vmem:[%s5 + $0x34] sm:$0xf]
        %v9843 = vld [vmem:[%s5 + $0x38] sm:$0xf]
        %v9844 = vld [vmem:[%s5 + $0x3c] sm:$0xf]
        %v9845 = vld [vmem:[%s5 + $0x40] sm:$0xf]
        %v9846 = vld [vmem:[%s5 + $0x44] sm:$0xf]
        %v9847 = vld [vmem:[%s5 + $0x48] sm:$0xf]
        %v9848 = vld [vmem:[%s5 + $0x4c] sm:$0xf]
        %v9849 = vld [vmem:[%s5 + $0x50] sm:$0xf]
        %v9850 = vld [vmem:[%s5 + $0x54] sm:$0xf]
        %v9851 = vld [vmem:[%s5 + $0x58] sm:$0xf]
        %v9852 = vld [vmem:[%s5 + $0x5c] sm:$0xf]
        %v9853 = vld [vmem:[%s5 + $0x60] sm:$0xf]
        %v9854 = vld [vmem:[%s5 + $0x64] sm:$0xf]
        %v9855 = vld [vmem:[%s5 + $0x68] sm:$0xf]
        %v9856 = vld [vmem:[%s5 + $0x6c] sm:$0xf]
        %v9857 = vld [vmem:[%s5 + $0x70] sm:$0xf]
        %v9858 = vld [vmem:[%s5 + $0x74] sm:$0xf]
        %v9859 = vld [vmem:[%s5 + $0x78] sm:$0xf]
        %v9860 = vld [vmem:[%s5 + $0x7c] sm:$0xf]
        %v9861 = vld [vmem:[%s5 + $0x80] sm:$0xf]
        %v9862 = vld [vmem:[%s5 + $0x84] sm:$0xf]
        %v9863 = vld [vmem:[%s5 + $0x88] sm:$0xf]
        %v9864 = vld [vmem:[%s5 + $0x8c] sm:$0xf]
        %v9865 = vld [vmem:[%s5 + $0x90] sm:$0xf]
        %v9866 = vld [vmem:[%s5 + $0x94] sm:$0xf]
        %v9867 = vld [vmem:[%s5 + $0x98] sm:$0xf]
        %v9868 = vld [vmem:[%s5 + $0x9c] sm:$0xf]
        %v9869 = vld [vmem:[%s5 + $0xa0] sm:$0xf]
        %v9870 = vld [vmem:[%s5 + $0xa4] sm:$0xf]
        %v9871 = vld [vmem:[%s5 + $0xa8] sm:$0xf]
        %v9872 = vld [vmem:[%s5 + $0xac] sm:$0xf]
        %v9873 = vld [vmem:[%s5 + $0xb0] sm:$0xf]
        %v9874 = vld [vmem:[%s5 + $0xb4] sm:$0xf]
        %v9875 = vld [vmem:[%s5 + $0xb8] sm:$0xf]
        %v9876 = vld [vmem:[%s5 + $0xbc] sm:$0xf]
        %v9877 = vld [vmem:[%s5 + $0xc0] sm:$0xf]
        %v9878 = vld [vmem:[%s5 + $0xc4] sm:$0xf]
        %v9879 = vld [vmem:[%s5 + $0xc8] sm:$0xf]
        %v9880 = vld [vmem:[%s5 + $0xcc] sm:$0xf]
        %v9881 = vld [vmem:[%s5 + $0xd0] sm:$0xf]
        %v9882 = vld [vmem:[%s5 + $0xd4] sm:$0xf]
        %v9883 = vld [vmem:[%s5 + $0xd8] sm:$0xf]
        %v9884 = vld [vmem:[%s5 + $0xdc] sm:$0xf]
        %v9885 = vld [vmem:[%s5 + $0xe0] sm:$0xf]
        %v9886 = vld [vmem:[%s5 + $0xe4] sm:$0xf]
        %v9887 = vld [vmem:[%s5 + $0xe8] sm:$0xf]
        %v9888 = vld [vmem:[%s5 + $0xec] sm:$0xf]
        %v9889 = vld [vmem:[%s5 + $0xf0] sm:$0xf]
        %v9890 = vld [vmem:[%s5 + $0xf4] sm:$0xf]
        %v9891 = vld [vmem:[%s5 + $0xf8] sm:$0xf]
        %v9892 = vld [vmem:[%s5 + $0xfc] sm:$0xf]
        %v9893 = vld [vmem:[%s6] sm:$0x1]
        %v9895 = vlaneseq
        %v9896 = vshrl.u32 %v9895, 7
        %v9897 = vsub.s32 0, %v9896
        %v9898 = vrot.slane %v9893, %v9897
        %v9964 = vunpack.c.l.b16 %v9829
        %v9965 = vunpack.c.l.b16 %v9830
        %v9966 = vunpack.c.l.b16 %v9831
        %v9967 = vunpack.c.l.b16 %v9832
        %v9968 = vunpack.c.l.b16 %v9833
        %v9969 = vunpack.c.l.b16 %v9834
        %v9970 = vunpack.c.l.b16 %v9835
        %v9971 = vunpack.c.l.b16 %v9836
        %v9972 = vunpack.c.l.b16 %v9837
        %v9973 = vunpack.c.l.b16 %v9838
        %v9974 = vunpack.c.l.b16 %v9839
        %v9975 = vunpack.c.l.b16 %v9840
        %v9976 = vunpack.c.l.b16 %v9841
        %v9977 = vunpack.c.l.b16 %v9842
        %v9978 = vunpack.c.l.b16 %v9843
        %v9979 = vunpack.c.l.b16 %v9844
        %v9980 = vunpack.c.l.b16 %v9845
        %v9981 = vunpack.c.l.b16 %v9846
        %v9982 = vunpack.c.l.b16 %v9847
        %v9983 = vunpack.c.l.b16 %v9848
        %v9984 = vunpack.c.l.b16 %v9849
        %v9985 = vunpack.c.l.b16 %v9850
        %v9986 = vunpack.c.l.b16 %v9851
        %v9987 = vunpack.c.l.b16 %v9852
        %v9988 = vunpack.c.l.b16 %v9853
        %v9989 = vunpack.c.l.b16 %v9854
        %v9990 = vunpack.c.l.b16 %v9855
        %v9991 = vunpack.c.l.b16 %v9856
        %v9992 = vunpack.c.l.b16 %v9857
        %v9993 = vunpack.c.l.b16 %v9858
        %v9994 = vunpack.c.l.b16 %v9859
        %v9995 = vunpack.c.l.b16 %v9860
        %v9996 = vunpack.c.l.b16 %v9861
        %v9997 = vunpack.c.l.b16 %v9862
        %v9998 = vunpack.c.l.b16 %v9863
        %v9999 = vunpack.c.l.b16 %v9864
        %v10000 = vunpack.c.l.b16 %v9865
        %v10001 = vunpack.c.l.b16 %v9866
        %v10002 = vunpack.c.l.b16 %v9867
        %v10003 = vunpack.c.l.b16 %v9868
        %v10004 = vunpack.c.l.b16 %v9869
        %v10005 = vunpack.c.l.b16 %v9870
        %v10006 = vunpack.c.l.b16 %v9871
        %v10007 = vunpack.c.l.b16 %v9872
        %v10008 = vunpack.c.l.b16 %v9873
        %v10009 = vunpack.c.l.b16 %v9874
        %v10010 = vunpack.c.l.b16 %v9875
        %v10011 = vunpack.c.l.b16 %v9876
        %v10012 = vunpack.c.l.b16 %v9877
        %v10013 = vunpack.c.l.b16 %v9878
        %v10014 = vunpack.c.l.b16 %v9879
        %v10015 = vunpack.c.l.b16 %v9880
        %v10016 = vunpack.c.l.b16 %v9881
        %v10017 = vunpack.c.l.b16 %v9882
        %v10018 = vunpack.c.l.b16 %v9883
        %v10019 = vunpack.c.l.b16 %v9884
        %v10020 = vunpack.c.l.b16 %v9885
        %v10021 = vunpack.c.l.b16 %v9886
        %v10022 = vunpack.c.l.b16 %v9887
        %v10023 = vunpack.c.l.b16 %v9888
        %v10024 = vunpack.c.l.b16 %v9889
        %v10025 = vunpack.c.l.b16 %v9890
        %v10026 = vunpack.c.l.b16 %v9891
        %v10027 = vunpack.c.l.b16 %v9892
        %v10028 = vpack.c.b16 %v9965, %v9964
        %v10029 = vpack.c.b16 %v9967, %v9966
        %v10030 = vpack.c.b16 %v9969, %v9968
        %v10031 = vpack.c.b16 %v9971, %v9970
        %v10032 = vpack.c.b16 %v9973, %v9972
        %v10033 = vpack.c.b16 %v9975, %v9974
        %v10034 = vpack.c.b16 %v9977, %v9976
        %v10035 = vpack.c.b16 %v9979, %v9978
        %v10036 = vpack.c.b16 %v9981, %v9980
        %v10037 = vpack.c.b16 %v9983, %v9982
        %v10038 = vpack.c.b16 %v9985, %v9984
        %v10039 = vpack.c.b16 %v9987, %v9986
        %v10040 = vpack.c.b16 %v9989, %v9988
        %v10041 = vpack.c.b16 %v9991, %v9990
        %v10042 = vpack.c.b16 %v9993, %v9992
        %v10043 = vpack.c.b16 %v9995, %v9994
        %v10044 = vpack.c.b16 %v9997, %v9996
        %v10045 = vpack.c.b16 %v9999, %v9998
        %v10046 = vpack.c.b16 %v10001, %v10000
        %v10047 = vpack.c.b16 %v10003, %v10002
        %v10048 = vpack.c.b16 %v10005, %v10004
        %v10049 = vpack.c.b16 %v10007, %v10006
        %v10050 = vpack.c.b16 %v10009, %v10008
        %v10051 = vpack.c.b16 %v10011, %v10010
        %v10052 = vpack.c.b16 %v10013, %v10012
        %v10053 = vpack.c.b16 %v10015, %v10014
        %v10054 = vpack.c.b16 %v10017, %v10016
        %v10055 = vpack.c.b16 %v10019, %v10018
        %v10056 = vpack.c.b16 %v10021, %v10020
        %v10057 = vpack.c.b16 %v10023, %v10022
        %v10058 = vpack.c.b16 %v10025, %v10024
        %v10059 = vpack.c.b16 %v10027, %v10026
        %10092 = vmatprep.subr.bf16.mxu0 0
        %10093 = vmatpush1.bf16.msra.mxu0 %v10028
        %10094 = vmatprep.subr.bf16.mxu0 0
        %10095 = vmatpush1.bf16.msra.mxu0 %v10029
        %10096 = vmatprep.subr.bf16.mxu0 0
        %10097 = vmatpush1.bf16.msra.mxu0 %v10030
        %10098 = vmatprep.subr.bf16.mxu0 0
        %10099 = vmatpush1.bf16.msra.mxu0 %v10031
        %10100 = vmatprep.subr.bf16.mxu0 0
        %10101 = vmatpush1.bf16.msra.mxu0 %v10032
        %10102 = vmatprep.subr.bf16.mxu0 0
        %10103 = vmatpush1.bf16.msra.mxu0 %v10033
        %10104 = vmatprep.subr.bf16.mxu0 0
        %10105 = vmatpush1.bf16.msra.mxu0 %v10034
        %10106 = vmatprep.subr.bf16.mxu0 0
        %10107 = vmatpush1.bf16.msra.mxu0 %v10035
        %10108 = vmatprep.subr.bf16.mxu0 0
        %10109 = vmatpush1.bf16.msra.mxu0 %v10036
        %10110 = vmatprep.subr.bf16.mxu0 0
        %10111 = vmatpush1.bf16.msra.mxu0 %v10037
        %10112 = vmatprep.subr.bf16.mxu0 0
        %10113 = vmatpush1.bf16.msra.mxu0 %v10038
        %10114 = vmatprep.subr.bf16.mxu0 0
        %10115 = vmatpush1.bf16.msra.mxu0 %v10039
        %10116 = vmatprep.subr.bf16.mxu0 0
        %10117 = vmatpush1.bf16.msra.mxu0 %v10040
        %10118 = vmatprep.subr.bf16.mxu0 0
        %10119 = vmatpush1.bf16.msra.mxu0 %v10041
        %10120 = vmatprep.subr.bf16.mxu0 0
        %10121 = vmatpush1.bf16.msra.mxu0 %v10042
        %10122 = vmatprep.subr.bf16.mxu0 0
        %10123 = vmatpush1.bf16.msra.mxu0 %v10043
        %10124 = vmatprep.mubr.bf16.mxu0 %v9766
        %10125 = vmatmul.mubr.bf16.gmra.mrb[0].mxu0 %v9765
        %v10126 = vpop.f32.mrb[0].mxu0
        %v10127 = vadd.f32 %v9898, %v10126
        %v10128 = vpop.f32.mrb[0].mxu0
        %v10129 = vpop.f32.mrb[0].mxu0
        %v10130 = vadd.f32 %v9898, %v10129
        %v10131 = vpop.f32.mrb[0].mxu0
        %10132 = vmatprep.mubr.bf16.mxu0 %v9770
        %10133 = vmatmul.mubr.bf16.gmra.mrb[0].mxu0 %v9769
        %v10134 = vpop.f32.mrb[0].mxu0
        %v10135 = vadd.f32 %v9898, %v10134
        %v10136 = vpop.f32.mrb[0].mxu0
        %v10137 = vpop.f32.mrb[0].mxu0
        %v10138 = vadd.f32 %v9898, %v10137
        %v10139 = vpop.f32.mrb[0].mxu0
        %10140 = vmatprep.mubr.bf16.mxu0 %v9774
        %10141 = vmatmul.mubr.bf16.gmra.mrb[0].mxu0 %v9773
        %v10142 = vpop.f32.mrb[0].mxu0
        %v10143 = vadd.f32 %v9898, %v10142
        %v10144 = vpop.f32.mrb[0].mxu0
        %v10145 = vpop.f32.mrb[0].mxu0
        %v10146 = vadd.f32 %v9898, %v10145
        %v10147 = vpop.f32.mrb[0].mxu0
        %10148 = vmatprep.mubr.bf16.mxu0 %v9778
        %10149 = vmatmul.mubr.bf16.gmra.mrb[0].mxu0 %v9777
        %v10150 = vpop.f32.mrb[0].mxu0
        %v10151 = vadd.f32 %v9898, %v10150
        %v10152 = vpop.f32.mrb[0].mxu0
        %v10153 = vpop.f32.mrb[0].mxu0
        %v10154 = vadd.f32 %v9898, %v10153
        %v10155 = vpop.f32.mrb[0].mxu0
        %10156 = vmatprep.mubr.bf16.mxu0 %v9782
        %10157 = vmatmul.mubr.bf16.gmra.mrb[0].mxu0 %v9781
        %v10158 = vpop.f32.mrb[0].mxu0
        %v10159 = vadd.f32 %v9898, %v10158
        %v10160 = vpop.f32.mrb[0].mxu0
        %v10161 = vpop.f32.mrb[0].mxu0
        %v10162 = vadd.f32 %v9898, %v10161
        %v10163 = vpop.f32.mrb[0].mxu0
        %10164 = vmatprep.mubr.bf16.mxu0 %v9786
        %10165 = vmatmul.mubr.bf16.gmra.mrb[0].mxu0 %v9785
        %v10166 = vpop.f32.mrb[0].mxu0
        %v10167 = vadd.f32 %v9898, %v10166
        %v10168 = vpop.f32.mrb[0].mxu0
        %v10169 = vpop.f32.mrb[0].mxu0
        %v10170 = vadd.f32 %v9898, %v10169
        %v10171 = vpop.f32.mrb[0].mxu0
        %10172 = vmatprep.mubr.bf16.mxu0 %v9790
        %10173 = vmatmul.mubr.bf16.gmra.mrb[0].mxu0 %v9789
        %v10174 = vpop.f32.mrb[0].mxu0
        %v10175 = vadd.f32 %v9898, %v10174
        %v10176 = vpop.f32.mrb[0].mxu0
        %v10177 = vpop.f32.mrb[0].mxu0
        %v10178 = vadd.f32 %v9898, %v10177
        %v10179 = vpop.f32.mrb[0].mxu0
        %10180 = vmatprep.mubr.bf16.mxu0 %v9794
        %10181 = vmatmul.mubr.bf16.gmra.mrb[0].mxu0 %v9793
        %v10182 = vpop.f32.mrb[0].mxu0
        %v10183 = vadd.f32 %v9898, %v10182
        %v10184 = vpop.f32.mrb[0].mxu0
        %v10185 = vpop.f32.mrb[0].mxu0
        %v10186 = vadd.f32 %v9898, %v10185
        %v10187 = vpop.f32.mrb[0].mxu0
        %10188 = vmatprep.mubr.bf16.mxu0 %v9798
        %10189 = vmatmul.mubr.bf16.gmra.mrb[0].mxu0 %v9797
        %v10190 = vpop.f32.mrb[0].mxu0
        %v10191 = vadd.f32 %v9898, %v10190
        %v10192 = vpop.f32.mrb[0].mxu0
        %v10193 = vpop.f32.mrb[0].mxu0
        %v10194 = vadd.f32 %v9898, %v10193
        %v10195 = vpop.f32.mrb[0].mxu0
        %10196 = vmatprep.mubr.bf16.mxu0 %v9802
        %10197 = vmatmul.mubr.bf16.gmra.mrb[0].mxu0 %v9801
        %v10198 = vpop.f32.mrb[0].mxu0
        %v10199 = vadd.f32 %v9898, %v10198
        %v10200 = vpop.f32.mrb[0].mxu0
        %v10201 = vpop.f32.mrb[0].mxu0
        %v10202 = vadd.f32 %v9898, %v10201
        %v10203 = vpop.f32.mrb[0].mxu0
        %10204 = vmatprep.mubr.bf16.mxu0 %v9806
        %10205 = vmatmul.mubr.bf16.gmra.mrb[0].mxu0 %v9805
        %v10206 = vpop.f32.mrb[0].mxu0
        %v10207 = vadd.f32 %v9898, %v10206
        %v10208 = vpop.f32.mrb[0].mxu0
        %v10209 = vpop.f32.mrb[0].mxu0
        %v10210 = vadd.f32 %v9898, %v10209
        %v10211 = vpop.f32.mrb[0].mxu0
        %10212 = vmatprep.mubr.bf16.mxu0 %v9810
        %10213 = vmatmul.mubr.bf16.gmra.mrb[0].mxu0 %v9809
        %v10214 = vpop.f32.mrb[0].mxu0
        %v10215 = vadd.f32 %v9898, %v10214
        %v10216 = vpop.f32.mrb[0].mxu0
        %v10217 = vpop.f32.mrb[0].mxu0
        %v10218 = vadd.f32 %v9898, %v10217
        %v10219 = vpop.f32.mrb[0].mxu0
        %10220 = vmatprep.mubr.bf16.mxu0 %v9814
        %10221 = vmatmul.mubr.bf16.gmra.mrb[0].mxu0 %v9813
        %v10222 = vpop.f32.mrb[0].mxu0
        %v10223 = vadd.f32 %v9898, %v10222
        %v10224 = vpop.f32.mrb[0].mxu0
        %v10225 = vpop.f32.mrb[0].mxu0
        %v10226 = vadd.f32 %v9898, %v10225
        %v10227 = vpop.f32.mrb[0].mxu0
        %10228 = vmatprep.mubr.bf16.mxu0 %v9818
        %10229 = vmatmul.mubr.bf16.gmra.mrb[0].mxu0 %v9817
        %v10230 = vpop.f32.mrb[0].mxu0
        %v10231 = vadd.f32 %v9898, %v10230
        %v10232 = vpop.f32.mrb[0].mxu0
        %v10233 = vpop.f32.mrb[0].mxu0
        %v10234 = vadd.f32 %v9898, %v10233
        %v10235 = vpop.f32.mrb[0].mxu0
        %10236 = vmatprep.mubr.bf16.mxu0 %v9822
        %10237 = vmatmul.mubr.bf16.gmra.mrb[0].mxu0 %v9821
        %v10238 = vpop.f32.mrb[0].mxu0
        %v10239 = vadd.f32 %v9898, %v10238
        %v10240 = vpop.f32.mrb[0].mxu0
        %v10241 = vpop.f32.mrb[0].mxu0
        %v10242 = vadd.f32 %v9898, %v10241
        %v10243 = vpop.f32.mrb[0].mxu0
        %10244 = vmatprep.mubr.bf16.mxu0 %v9826
        %10245 = vmatmul.mubr.bf16.gmra.mrb[0].mxu0 %v9825
        %v10246 = vpop.f32.mrb[0].mxu0
        %v10247 = vadd.f32 %v9898, %v10246
        %v10248 = vpop.f32.mrb[0].mxu0
        %v10249 = vpop.f32.mrb[0].mxu0
        %v10250 = vadd.f32 %v9898, %v10249
        %v10251 = vpop.f32.mrb[0].mxu0
        %10252 = vdwg.mxu0
        %10253 = vmatprep.subr.bf16.mxu0 0
        %10254 = vmatpush1.bf16.msra.mxu0 %v10044
        %10255 = vmatprep.subr.bf16.mxu0 0
        %10256 = vmatpush1.bf16.msra.mxu0 %v10045
        %10257 = vmatprep.subr.bf16.mxu0 0
        %10258 = vmatpush1.bf16.msra.mxu0 %v10046
        %10259 = vmatprep.subr.bf16.mxu0 0
        %10260 = vmatpush1.bf16.msra.mxu0 %v10047
        %10261 = vmatprep.subr.bf16.mxu0 0
        %10262 = vmatpush1.bf16.msra.mxu0 %v10048
        %10263 = vmatprep.subr.bf16.mxu0 0
        %10264 = vmatpush1.bf16.msra.mxu0 %v10049
        %10265 = vmatprep.subr.bf16.mxu0 0
        %10266 = vmatpush1.bf16.msra.mxu0 %v10050
        %10267 = vmatprep.subr.bf16.mxu0 0
        %10268 = vmatpush1.bf16.msra.mxu0 %v10051
        %10269 = vmatprep.subr.bf16.mxu0 0
        %10270 = vmatpush1.bf16.msra.mxu0 %v10052
        %10271 = vmatprep.subr.bf16.mxu0 0
        %10272 = vmatpush1.bf16.msra.mxu0 %v10053
        %10273 = vmatprep.subr.bf16.mxu0 0
        %10274 = vmatpush1.bf16.msra.mxu0 %v10054
        %10275 = vmatprep.subr.bf16.mxu0 0
        %10276 = vmatpush1.bf16.msra.mxu0 %v10055
        %10277 = vmatprep.subr.bf16.mxu0 0
        %10278 = vmatpush1.bf16.msra.mxu0 %v10056
        %10279 = vmatprep.subr.bf16.mxu0 0
        %10280 = vmatpush1.bf16.msra.mxu0 %v10057
        %10281 = vmatprep.subr.bf16.mxu0 0
        %10282 = vmatpush1.bf16.msra.mxu0 %v10058
        %10283 = vmatprep.subr.bf16.mxu0 0
        %10284 = vmatpush1.bf16.msra.mxu0 %v10059
        %10285 = vmatprep.mubr.bf16.mxu0 %v9768
        %10286 = vmatmul.mubr.bf16.gmra.mrb[0].mxu0 %v9767
        %v10287 = vpop.f32.mrb[0].mxu0
        %v10288 = vadd.f32 %v10127, %v10287
        %v10289 = vpop.f32.mrb[0].mxu0
        %v10290 = vpop.f32.mrb[0].mxu0
        %v10291 = vadd.f32 %v10130, %v10290
        %v10292 = vpop.f32.mrb[0].mxu0
        %10293 = vmatprep.mubr.bf16.mxu0 %v9772
        %10294 = vmatmul.mubr.bf16.gmra.mrb[0].mxu0 %v9771
        %v10295 = vpop.f32.mrb[0].mxu0
        %v10296 = vadd.f32 %v10135, %v10295
        %v10297 = vpop.f32.mrb[0].mxu0
        %v10298 = vpop.f32.mrb[0].mxu0
        %v10299 = vadd.f32 %v10138, %v10298
        %v10300 = vpop.f32.mrb[0].mxu0
        %10301 = vmatprep.mubr.bf16.mxu0 %v9776
        %10302 = vmatmul.mubr.bf16.gmra.mrb[0].mxu0 %v9775
        %v10303 = vpop.f32.mrb[0].mxu0
        %v10304 = vadd.f32 %v10143, %v10303
        %v10305 = vpop.f32.mrb[0].mxu0
        %v10306 = vpop.f32.mrb[0].mxu0
        %v10307 = vadd.f32 %v10146, %v10306
        %v10308 = vpop.f32.mrb[0].mxu0
        %10309 = vmatprep.mubr.bf16.mxu0 %v9780
        %10310 = vmatmul.mubr.bf16.gmra.mrb[0].mxu0 %v9779
        %v10311 = vpop.f32.mrb[0].mxu0
        %v10312 = vadd.f32 %v10151, %v10311
        %v10313 = vpop.f32.mrb[0].mxu0
        %v10314 = vpop.f32.mrb[0].mxu0
        %v10315 = vadd.f32 %v10154, %v10314
        %v10316 = vpop.f32.mrb[0].mxu0
        %10317 = vmatprep.mubr.bf16.mxu0 %v9784
        %10318 = vmatmul.mubr.bf16.gmra.mrb[0].mxu0 %v9783
        %v10319 = vpop.f32.mrb[0].mxu0
        %v10320 = vadd.f32 %v10159, %v10319
        %v10321 = vpop.f32.mrb[0].mxu0
        %v10322 = vpop.f32.mrb[0].mxu0
        %v10323 = vadd.f32 %v10162, %v10322
        %v10324 = vpop.f32.mrb[0].mxu0
        %10325 = vmatprep.mubr.bf16.mxu0 %v9788
        %10326 = vmatmul.mubr.bf16.gmra.mrb[0].mxu0 %v9787
        %v10327 = vpop.f32.mrb[0].mxu0
        %v10328 = vadd.f32 %v10167, %v10327
        %v10329 = vpop.f32.mrb[0].mxu0
        %v10330 = vpop.f32.mrb[0].mxu0
        %v10331 = vadd.f32 %v10170, %v10330
        %v10332 = vpop.f32.mrb[0].mxu0
        %10333 = vmatprep.mubr.bf16.mxu0 %v9792
        %10334 = vmatmul.mubr.bf16.gmra.mrb[0].mxu0 %v9791
        %v10335 = vpop.f32.mrb[0].mxu0
        %v10336 = vadd.f32 %v10175, %v10335
        %v10337 = vpop.f32.mrb[0].mxu0
        %v10338 = vpop.f32.mrb[0].mxu0
        %v10339 = vadd.f32 %v10178, %v10338
        %v10340 = vpop.f32.mrb[0].mxu0
        %10341 = vmatprep.mubr.bf16.mxu0 %v9796
        %10342 = vmatmul.mubr.bf16.gmra.mrb[0].mxu0 %v9795
        %v10343 = vpop.f32.mrb[0].mxu0
        %v10344 = vadd.f32 %v10183, %v10343
        %v10345 = vpop.f32.mrb[0].mxu0
        %v10346 = vpop.f32.mrb[0].mxu0
        %v10347 = vadd.f32 %v10186, %v10346
        %v10348 = vpop.f32.mrb[0].mxu0
        %10349 = vmatprep.mubr.bf16.mxu0 %v9800
        %10350 = vmatmul.mubr.bf16.gmra.mrb[0].mxu0 %v9799
        %v10351 = vpop.f32.mrb[0].mxu0
        %v10352 = vadd.f32 %v10191, %v10351
        %v10353 = vpop.f32.mrb[0].mxu0
        %v10354 = vpop.f32.mrb[0].mxu0
        %v10355 = vadd.f32 %v10194, %v10354
        %v10356 = vpop.f32.mrb[0].mxu0
        %10357 = vmatprep.mubr.bf16.mxu0 %v9804
        %10358 = vmatmul.mubr.bf16.gmra.mrb[0].mxu0 %v9803
        %v10359 = vpop.f32.mrb[0].mxu0
        %v10360 = vadd.f32 %v10199, %v10359
        %v10361 = vpop.f32.mrb[0].mxu0
        %v10362 = vpop.f32.mrb[0].mxu0
        %v10363 = vadd.f32 %v10202, %v10362
        %v10364 = vpop.f32.mrb[0].mxu0
        %10365 = vmatprep.mubr.bf16.mxu0 %v9808
        %10366 = vmatmul.mubr.bf16.gmra.mrb[0].mxu0 %v9807
        %v10367 = vpop.f32.mrb[0].mxu0
        %v10368 = vadd.f32 %v10207, %v10367
        %v10369 = vpop.f32.mrb[0].mxu0
        %v10370 = vpop.f32.mrb[0].mxu0
        %v10371 = vadd.f32 %v10210, %v10370
        %v10372 = vpop.f32.mrb[0].mxu0
        %10373 = vmatprep.mubr.bf16.mxu0 %v9812
        %10374 = vmatmul.mubr.bf16.gmra.mrb[0].mxu0 %v9811
        %v10375 = vpop.f32.mrb[0].mxu0
        %v10376 = vadd.f32 %v10215, %v10375
        %v10377 = vpop.f32.mrb[0].mxu0
        %v10378 = vpop.f32.mrb[0].mxu0
        %v10379 = vadd.f32 %v10218, %v10378
        %v10380 = vpop.f32.mrb[0].mxu0
        %10381 = vmatprep.mubr.bf16.mxu0 %v9816
        %10382 = vmatmul.mubr.bf16.gmra.mrb[0].mxu0 %v9815
        %v10383 = vpop.f32.mrb[0].mxu0
        %v10384 = vadd.f32 %v10223, %v10383
        %v10385 = vpop.f32.mrb[0].mxu0
        %v10386 = vpop.f32.mrb[0].mxu0
        %v10387 = vadd.f32 %v10226, %v10386
        %v10388 = vpop.f32.mrb[0].mxu0
        %10389 = vmatprep.mubr.bf16.mxu0 %v9820
        %10390 = vmatmul.mubr.bf16.gmra.mrb[0].mxu0 %v9819
        %v10391 = vpop.f32.mrb[0].mxu0
        %v10392 = vadd.f32 %v10231, %v10391
        %v10393 = vpop.f32.mrb[0].mxu0
        %v10394 = vpop.f32.mrb[0].mxu0
        %v10395 = vadd.f32 %v10234, %v10394
        %v10396 = vpop.f32.mrb[0].mxu0
        %10397 = vmatprep.mubr.bf16.mxu0 %v9824
        %10398 = vmatmul.mubr.bf16.gmra.mrb[0].mxu0 %v9823
        %v10399 = vpop.f32.mrb[0].mxu0
        %v10400 = vadd.f32 %v10239, %v10399
        %v10401 = vpop.f32.mrb[0].mxu0
        %v10402 = vpop.f32.mrb[0].mxu0
        %v10403 = vadd.f32 %v10242, %v10402
        %v10404 = vpop.f32.mrb[0].mxu0
        %10405 = vmatprep.mubr.bf16.mxu0 %v9828
        %10406 = vmatmul.mubr.bf16.gmra.mrb[0].mxu0 %v9827
        %v10407 = vpop.f32.mrb[0].mxu0
        %v10408 = vadd.f32 %v10247, %v10407
        %v10409 = vpop.f32.mrb[0].mxu0
        %v10410 = vpop.f32.mrb[0].mxu0
        %v10411 = vadd.f32 %v10250, %v10410
        %v10412 = vpop.f32.mrb[0].mxu0
        %10413 = vdwg.mxu0
        %10414 = vst [vmem:[%s274] sm:$0xff] %v10288
        %10415 = vst [vmem:[%s274 + $0x8] sm:$0xff] %v10291
        %10416 = vst [vmem:[%s274 + $0x10] sm:$0xff] %v10296
        %10417 = vst [vmem:[%s274 + $0x18] sm:$0xff] %v10299
        %10418 = vst [vmem:[%s274 + $0x20] sm:$0xff] %v10304
        %10419 = vst [vmem:[%s274 + $0x28] sm:$0xff] %v10307
        %10420 = vst [vmem:[%s274 + $0x30] sm:$0xff] %v10312
        %10421 = vst [vmem:[%s274 + $0x38] sm:$0xff] %v10315
        %10422 = vst [vmem:[%s274 + $0x40] sm:$0xff] %v10320
        %10423 = vst [vmem:[%s274 + $0x48] sm:$0xff] %v10323
        %10424 = vst [vmem:[%s274 + $0x50] sm:$0xff] %v10328
        %10425 = vst [vmem:[%s274 + $0x58] sm:$0xff] %v10331
        %10426 = vst [vmem:[%s274 + $0x60] sm:$0xff] %v10336
        %10427 = vst [vmem:[%s274 + $0x68] sm:$0xff] %v10339
        %10428 = vst [vmem:[%s274 + $0x70] sm:$0xff] %v10344
        %10429 = vst [vmem:[%s274 + $0x78] sm:$0xff] %v10347
        %10430 = vst [vmem:[%s274 + $0x80] sm:$0xff] %v10352
        %10431 = vst [vmem:[%s274 + $0x88] sm:$0xff] %v10355
        %10432 = vst [vmem:[%s274 + $0x90] sm:$0xff] %v10360
        %10433 = vst [vmem:[%s274 + $0x98] sm:$0xff] %v10363
        %10434 = vst [vmem:[%s274 + $0xa0] sm:$0xff] %v10368
        %10435 = vst [vmem:[%s274 + $0xa8] sm:$0xff] %v10371
        %10436 = vst [vmem:[%s274 + $0xb0] sm:$0xff] %v10376
        %10437 = vst [vmem:[%s274 + $0xb8] sm:$0xff] %v10379
        %10438 = vst [vmem:[%s274 + $0xc0] sm:$0xff] %v10384
        %10439 = vst [vmem:[%s274 + $0xc8] sm:$0xff] %v10387
        %10440 = vst [vmem:[%s274 + $0xd0] sm:$0xff] %v10392
        %10441 = vst [vmem:[%s274 + $0xd8] sm:$0xff] %v10395
        %10442 = vst [vmem:[%s274 + $0xe0] sm:$0xff] %v10400
        %10443 = vst [vmem:[%s274 + $0xe8] sm:$0xff] %v10403
        %10444 = vst [vmem:[%s274 + $0xf0] sm:$0xff] %v10408
        %10445 = vst [vmem:[%s274 + $0xf8] sm:$0xff] %v10411
        %s10446 = sand.u32 %s181, 1
        %s10447 = scalar_lea.sflag [#allocation3], %s10446
        %s10448 = sand.u32 %s181, 1
        %s10449 = smul.addr %s10448, 256
        %s10450 = scalar_lea.vmem [#allocation2], %s10449
        // Predicated region
        $region49: #{tpu_custom_call.1} parent=47 // pred_check
          %p10451 = pneg %p191
        $region50: #{tpu_custom_call.1} parent=47 // pred_check_branch
          %10453 = sbr.rel (%p10451) target = $region52
        $region51: #{tpu_custom_call.1} parent=47 // pred_region
          %s10454 = smul.u32 32, %s21
          %s10456 = ssub.s32 4096, 4096
          %10457 = vsyncadd %s10447, %s10456
          %s10458 = smul.addr %s10454, 128
          %s10459 = scalar_lea.hbm %s7, %s10458
          %s10460 = sshll.u32 %s10450, 4
          %s10461 = int_to_ptr.vmem [resolvable:$true] %s10460
          %10466 = dma.vmem_to_hbm [thread:$0]  %s10461, 4096, %s10459, %s10447, 128, 128, 8
        $region52: #{tpu_custom_call.1} parent=47 // pred_fallthru
          _
      $region48: #{tpu_custom_call.1} parent=5 // pred_fallthru
        _
      %p10467 = scmp.le.s32.totalorder 2, %s16
      // Predicated region
      $region53: #{tpu_custom_call.1} parent=5 // pred_check
        %p10468 = pneg %p10467
      $region54: #{tpu_custom_call.1} parent=5 // pred_check_branch
        %10470 = sbr.rel (%p10468) target = $region56
      $region55: #{tpu_custom_call.1} parent=5 // pred_region
        %s10471 = ssub.s32 %s16, 2
        // Predicated region
        $region57: #{tpu_custom_call.1} parent=55 // pred_check
          %p10472 = pneg %p197
        $region58: #{tpu_custom_call.1} parent=55 // pred_check_branch
          %10474 = sbr.rel (%p10472) target = $region60
        $region59: #{tpu_custom_call.1} parent=55 // pred_region
          %s10475 = sand.u32 %s182, 1
          %s10476 = scalar_lea.sflag [#allocation3], %s10475
          %s10477 = sand.u32 %s182, 1
          %s10478 = smul.addr %s10477, 256
          %s10479 = scalar_lea.vmem [#allocation2], %s10478
          %10480 = dma.done %s10476, 4096
        $region60: #{tpu_custom_call.1} parent=55 // pred_fallthru
          _
      $region56: #{tpu_custom_call.1} parent=5 // pred_fallthru
        _
    $region6: #{tpu_custom_call.1} parent=1 // loop_footer
      %s20 = sadd.s32 1, %s16
    $region7: #{tpu_custom_call.1} parent=1 // loop_footer_branch
      %15 = sbr.rel target = $region3
    $region8: #{tpu_custom_call.1} parent=1 // loop_exit
      _
    %10481 = vsyncpa [#allocation3], 1
    %s10482 = scalar_lea.sflag [#allocation3], 1
    %10483 = vsyncpa %s10482, 1

</llo_original>
